<compile_context>
chip_gen: v7x
topology: tpu7x:2x2x1
jax: 0.10.0
libtpu: 0.0.40
codegen_flags: <defaults>
</compile_context>

<pallas_src>
import numpy as np
import jax
import jax.numpy as jnp
from jax.experimental import pallas as pl
from jax.experimental.pallas import tpu as pltpu

EPS = 1e-5  # torch.nn.LayerNorm default eps
VMEM_SPEC = pl.BlockSpec(memory_space=pltpu.MemorySpace.VMEM)


def _layer_norm(x, gamma, beta):
    # var = E[x^2] - E[x]^2 : the two lane-reductions are independent -> overlappable XLU
    mu = jnp.mean(x, axis=-1, keepdims=True)
    ms = jnp.mean(x * x, axis=-1, keepdims=True)
    var = jnp.maximum(ms - mu * mu, 0.0)
    return (x - mu) * jax.lax.rsqrt(var + EPS) * gamma + beta


# ---------------------------------------------------------------------------
# Single fused kernel: GCN -> pack -> LayerNorm-LSTM stack -> FC
# ---------------------------------------------------------------------------
def make_fused_kernel(N, V, T, B, H, E, depth):
    def kernel(*refs):
        (s_ref, abd_ref, sel0_ref, w1_ref, b1_ref, w2_ref, b2_ref,
         seltb_ref) = refs[:8]
        p = 8
        layer_refs = []
        for _ in range(depth):
            layer_refs.append(refs[p:p + 10])
            p += 10
        fc_w_ref, fc_b_ref = refs[p], refs[p + 1]
        out_ref = refs[p + 2]                                  # (T*B, 128)

        # ---------------- GCN: all graphs, 3 batched matmuls ----------------
        # gc1: in_features == 1, so X @ W1 is a VPU broadcast multiply
        support = s_ref[...] * w1_ref[...]                                   # (N*V, Hg)
        h1 = jnp.dot(abd_ref[...], support,
                     preferred_element_type=jnp.float32) + b1_ref[...]
        h1 = jnp.maximum(h1, 0.0)                                            # ReLU
        # gc2, node-0 rows only: (A_n[0,:] @ h1_n) @ W2 + b2, all graphs at once
        agg = jnp.dot(sel0_ref[...], h1, preferred_element_type=jnp.float32)  # (N, Hg)
        emb = jnp.dot(agg, w2_ref[...],
                      preferred_element_type=jnp.float32) + b2_ref[...]       # (N, E)

        # ------------- pack into time-major (T*B, E) sequences -------------
        # sel_tb row (t*B + b) is one-hot at starts[b]+t when t < seqlen[b], else zero
        x_tb = jnp.dot(seltb_ref[...], emb, preferred_element_type=jnp.float32)

        # preload layer weights once (values; compiler spills/reloads as needed)
        layers = [tuple(r[...] for r in lr) for lr in layer_refs]

        # hoisted layer-0 input projection + its LayerNorm, batched over all T*B rows
        wih0, _, bih0, _, g_ih0, be_ih0, _, _, _, _ = layers[0]
        ih0_all = _layer_norm(
            jnp.dot(x_tb, wih0, preferred_element_type=jnp.float32) + bih0,
            g_ih0, be_ih0)                                                   # (T*B, 4H)

        # hoisted lane mask (broadcast_in_dim is not CSE'd by JAX -> build once)
        is_sig = jax.lax.broadcasted_iota(jnp.int32, (B, 4 * H), 1) < 3 * H

        # ---------------- recurrence: state lives in vregs ----------------
        h = [jnp.zeros((B, H), jnp.float32) for _ in range(depth)]
        c = [jnp.zeros((B, H), jnp.float32) for _ in range(depth)]
        tops = []
        for t in range(T):                 # T, depth static & small -> fully unrolled
            xt = None
            for l in range(depth):
                (wih, whh, bih, bhh,
                 g_ih, be_ih, g_hh, be_hh, g_ho, be_ho) = layers[l]
                if l == 0:
                    ihn = ih0_all[t * B:(t + 1) * B, :]        # already LayerNormed
                else:
                    ihn = _layer_norm(
                        jnp.dot(xt, wih, preferred_element_type=jnp.float32) + bih,
                        g_ih, be_ih)
                hhn = _layer_norm(
                    jnp.dot(h[l], whh, preferred_element_type=jnp.float32) + bhh,
                    g_hh, be_hh)
                gates = ihn + hhn                              # (B, 4H)
                # one tanh pass: sigmoid on lanes < 3H (i,f,o), tanh on lanes >= 3H (g)
                z = jnp.where(is_sig, 0.5 * gates, gates)
                tz = jnp.tanh(z)
                act = jnp.where(is_sig, 0.5 * (1.0 + tz), tz)
                i_g = act[:, 0 * H:1 * H]
                f_g = act[:, 1 * H:2 * H]
                o_g = act[:, 2 * H:3 * H]
                g_g = act[:, 3 * H:4 * H]
                cy = f_g * c[l] + i_g * g_g
                hy = o_g * jnp.tanh(_layer_norm(cy, g_ho, be_ho))
                h[l] = hy
                c[l] = cy
                xt = hy                    # LockedDropout = identity (eval)
            tops.append(xt)

        hs = jnp.concatenate(tops, axis=0)                     # (T*B, H), row = t*B+b
        # FC epilogue: one (T*B,H)@(H,128) matmul, lane-dense output store
        out_ref[...] = jnp.dot(hs, fc_w_ref[...],
                               preferred_element_type=jnp.float32) + fc_b_ref[...]

    return kernel


# ---------------------------------------------------------------------------
# Full forward pass of simple_gcn_lstm (eval mode) — one kernel launch
# ---------------------------------------------------------------------------
def simple_gcn_lstm_forward(params, S, A, seqlen, T):
    N, V, _ = S.shape
    Hg = params['gc1_w'].shape[1]
    E = params['gc2_w'].shape[1]
    H = params['lstm'][0]['whhT'].shape[0]
    depth = len(params['lstm'])
    C = int(np.asarray(params['fc_b']).reshape(-1).shape[0])

    # block-diagonal adjacency and node-0 row selector (cheap layout prep in the wrapper)
    eyeN = jnp.eye(N, dtype=jnp.float32)
    A_bd = (eyeN[:, None, :, None] * A[:, :, None, :]).reshape(N * V, N * V)
    Sel0 = (eyeN[:, :, None] * A[:, 0, :][:, None, :]).reshape(N, N * V)
    S_flat = S.reshape(N * V, 1)

    # host-side packing: static (T*B, N) selection/mask matrix
    # (seqlen is host data, as in the reference: .cpu().numpy())
    seqlen = np.asarray(seqlen).astype(np.int64)
    B = len(seqlen)
    starts = np.concatenate([[0], np.cumsum(seqlen)[:-1]]).astype(np.int64)
    sel_tb = np.zeros((T * B, N), np.float32)
    for b in range(B):
        for t in range(int(min(T, seqlen[b]))):
            sel_tb[t * B + b, int(starts[b] + t)] = 1.0
    sel_tb = jnp.asarray(sel_tb)

    # pad FC to 128 output lanes so the kernel's output store is lane-dense
    CP = 128
    fc_wT_pad = jnp.zeros((H, CP), jnp.float32).at[:, :C].set(params['fc_wT'])
    fc_b_pad = jnp.zeros((1, CP), jnp.float32).at[:, :C].set(
        jnp.asarray(params['fc_b']).reshape(1, -1))

    args = [S_flat, A_bd, Sel0,
            params['gc1_w'], params['gc1_b'].reshape(1, -1),
            params['gc2_w'], params['gc2_b'].reshape(1, -1),
            sel_tb]
    for p in params['lstm']:
        args += [p['wihT'], p['whhT'], p['bih'], p['bhh'],
                 p['ln_ih_g'], p['ln_ih_b'], p['ln_hh_g'], p['ln_hh_b'],
                 p['ln_ho_g'], p['ln_ho_b']]
    args += [fc_wT_pad, fc_b_pad]

    out = pl.pallas_call(
        make_fused_kernel(N, V, T, B, H, E, depth),
        out_shape=jax.ShapeDtypeStruct((T * B, CP), jnp.float32),
        in_specs=[VMEM_SPEC] * len(args),
        out_specs=VMEM_SPEC,
    )(*args)
    # TODO(synk): add a leading grid axis over B/N with dimension_semantics=("parallel",)
    # to shard across v7x's two TensorCores once batch sizes grow beyond toy scale.
    return out.reshape(T, B, CP).transpose(1, 0, 2)[:, :, :C]   # (batch, T, num_classes)


# ---------------------------------------------------------------------------
# Deterministic parameter initialization (synthetic, shapes match the module)
# ---------------------------------------------------------------------------
def init_params(key, args):
    Hg = args['hidden_size_gcn']
    E = args['embedding_size']
    H = args['hidden_size']
    depth = args['depth']
    C = args['num_classes']
    keys = jax.random.split(key, 5 + depth)

    def uni(k, shape, stdv):
        return jax.random.uniform(k, shape, jnp.float32, -stdv, stdv)

    params = {
        'gc1_w': uni(keys[0], (1, Hg), 1.0 / np.sqrt(Hg)),
        'gc1_b': uni(keys[1], (Hg,), 1.0 / np.sqrt(Hg)),
        'gc2_w': uni(keys[2], (Hg, E), 1.0 / np.sqrt(E)),
        'gc2_b': uni(keys[3], (E,), 1.0 / np.sqrt(E)),
    }
    lstm = []
    for l in range(depth):
        D = E if l == 0 else H
        k0, k1, k2, k3 = jax.random.split(keys[4 + l], 4)
        std = 1.0 / np.sqrt(H)
        lstm.append({
            # stored pre-transposed: x @ Wih^T == x @ wihT
            'wihT': uni(k0, (D, 4 * H), std),
            'whhT': uni(k1, (H, 4 * H), std),
            'bih': uni(k2, (1, 4 * H), std),
            'bhh': uni(k3, (1, 4 * H), std),
            'ln_ih_g': jnp.ones((1, 4 * H), jnp.float32),
            'ln_ih_b': jnp.zeros((1, 4 * H), jnp.float32),
            'ln_hh_g': jnp.ones((1, 4 * H), jnp.float32),
            'ln_hh_b': jnp.zeros((1, 4 * H), jnp.float32),
            'ln_ho_g': jnp.ones((1, H), jnp.float32),
            'ln_ho_b': jnp.zeros((1, H), jnp.float32),
        })
    params['lstm'] = lstm
    kfw, kfb = jax.random.split(keys[4 + depth], 2)
    std = 1.0 / np.sqrt(H)
    params['fc_wT'] = uni(kfw, (H, C), std)
    params['fc_b'] = uni(kfb, (C,), std)
    return params


if __name__ == "__main__":
    args = dict(hidden_size_gcn=16, embedding_size=8, hidden_size=32,
                depth=2, num_classes=4, dropout=0.5)

    key = jax.random.PRNGKey(0)
    kp, ks, ka = jax.random.split(key, 3)
    params = init_params(kp, args)

    T = 8
    seqlen = np.array([3, 5], dtype=np.int32)     # batch=2 sequences, N_total=8 graphs
    N_total = int(seqlen.sum())
    V = 6                                         # nodes per graph, node feature dim = 1
    S = jax.random.normal(ks, (N_total, V, 1), jnp.float32)
    A_raw = jax.random.uniform(ka, (N_total, V, V), jnp.float32)
    A = 0.5 * (A_raw + jnp.transpose(A_raw, (0, 2, 1)))   # symmetric adjacency

    out = simple_gcn_lstm_forward(params, S, A, seqlen, T)
    out = jax.block_until_ready(out)
    assert out.shape == (len(seqlen), T, args['num_classes']), out.shape
    assert bool(jnp.all(jnp.isfinite(out)))
    print("KERNEL_OK")
</pallas_src>

<mosaic_0001>
module attributes {stable_mosaic.version = 11 : i64} {
  func.func @kernel(%arg0: memref<48x1xf32, #tpu.memory_space<vmem>>, %arg1: memref<48x48xf32, #tpu.memory_space<vmem>>, %arg2: memref<8x48xf32, #tpu.memory_space<vmem>>, %arg3: memref<1x16xf32, #tpu.memory_space<vmem>>, %arg4: memref<1x16xf32, #tpu.memory_space<vmem>>, %arg5: memref<16x8xf32, #tpu.memory_space<vmem>>, %arg6: memref<1x8xf32, #tpu.memory_space<vmem>>, %arg7: memref<16x8xf32, #tpu.memory_space<vmem>>, %arg8: memref<8x128xf32, #tpu.memory_space<vmem>>, %arg9: memref<32x128xf32, #tpu.memory_space<vmem>>, %arg10: memref<1x128xf32, #tpu.memory_space<vmem>>, %arg11: memref<1x128xf32, #tpu.memory_space<vmem>>, %arg12: memref<1x128xf32, #tpu.memory_space<vmem>>, %arg13: memref<1x128xf32, #tpu.memory_space<vmem>>, %arg14: memref<1x128xf32, #tpu.memory_space<vmem>>, %arg15: memref<1x128xf32, #tpu.memory_space<vmem>>, %arg16: memref<1x32xf32, #tpu.memory_space<vmem>>, %arg17: memref<1x32xf32, #tpu.memory_space<vmem>>, %arg18: memref<32x128xf32, #tpu.memory_space<vmem>>, %arg19: memref<32x128xf32, #tpu.memory_space<vmem>>, %arg20: memref<1x128xf32, #tpu.memory_space<vmem>>, %arg21: memref<1x128xf32, #tpu.memory_space<vmem>>, %arg22: memref<1x128xf32, #tpu.memory_space<vmem>>, %arg23: memref<1x128xf32, #tpu.memory_space<vmem>>, %arg24: memref<1x128xf32, #tpu.memory_space<vmem>>, %arg25: memref<1x128xf32, #tpu.memory_space<vmem>>, %arg26: memref<1x32xf32, #tpu.memory_space<vmem>>, %arg27: memref<1x32xf32, #tpu.memory_space<vmem>>, %arg28: memref<32x128xf32, #tpu.memory_space<vmem>>, %arg29: memref<1x128xf32, #tpu.memory_space<vmem>>, %arg30: memref<16x128xf32, #tpu.memory_space<vmem>>) attributes {dimension_semantics = [], scalar_prefetch = 0 : i64, scratch_operands = 0 : i64, tpu.core_type = #tpu.core_type<tc>} {
    %c0 = arith.constant 0 : index
    %c0_0 = arith.constant 0 : index
    %0 = vector.load %arg0[%c0, %c0_0] : memref<48x1xf32, #tpu.memory_space<vmem>>, vector<48x1xf32>
    %c0_1 = arith.constant 0 : index
    %c0_2 = arith.constant 0 : index
    %1 = vector.load %arg3[%c0_1, %c0_2] : memref<1x16xf32, #tpu.memory_space<vmem>>, vector<1x16xf32>
    %2 = vector.broadcast %0 : vector<48x1xf32> to vector<48x16xf32>
    %3 = vector.broadcast %1 : vector<1x16xf32> to vector<48x16xf32>
    %4 = arith.mulf %2, %3 : vector<48x16xf32>
    %c0_3 = arith.constant 0 : index
    %c0_4 = arith.constant 0 : index
    %5 = vector.load %arg1[%c0_3, %c0_4] : memref<48x48xf32, #tpu.memory_space<vmem>>, vector<48x48xf32>
    %cst = arith.constant dense<0.000000e+00> : vector<48x16xf32>
    %6 = tpu.matmul %5, %4, %cst {dimension_numbers = #tpu.dot_dimension_numbers<[1], [0], [0], [1], [0, 0, 1, 1], [], []>} : vector<48x48xf32>, vector<48x16xf32>, vector<48x16xf32> -> vector<48x16xf32>
    %c0_5 = arith.constant 0 : index
    %c0_6 = arith.constant 0 : index
    %7 = vector.load %arg4[%c0_5, %c0_6] : memref<1x16xf32, #tpu.memory_space<vmem>>, vector<1x16xf32>
    %8 = vector.broadcast %7 : vector<1x16xf32> to vector<48x16xf32>
    %9 = arith.addf %6, %8 : vector<48x16xf32>
    %cst_7 = arith.constant 0.000000e+00 : f32
    %10 = vector.broadcast %cst_7 : f32 to vector<48x16xf32>
    %11 = arith.maximumf %9, %10 : vector<48x16xf32>
    %c0_8 = arith.constant 0 : index
    %c0_9 = arith.constant 0 : index
    %12 = vector.load %arg2[%c0_8, %c0_9] : memref<8x48xf32, #tpu.memory_space<vmem>>, vector<8x48xf32>
    %cst_10 = arith.constant dense<0.000000e+00> : vector<8x16xf32>
    %13 = tpu.matmul %12, %11, %cst_10 {dimension_numbers = #tpu.dot_dimension_numbers<[1], [0], [0], [1], [0, 0, 1, 1], [], []>} : vector<8x48xf32>, vector<48x16xf32>, vector<8x16xf32> -> vector<8x16xf32>
    %c0_11 = arith.constant 0 : index
    %c0_12 = arith.constant 0 : index
    %14 = vector.load %arg5[%c0_11, %c0_12] : memref<16x8xf32, #tpu.memory_space<vmem>>, vector<16x8xf32>
    %cst_13 = arith.constant dense<0.000000e+00> : vector<8x8xf32>
    %15 = tpu.matmul %13, %14, %cst_13 {dimension_numbers = #tpu.dot_dimension_numbers<[1], [0], [0], [1], [0, 0, 1, 1], [], []>} : vector<8x16xf32>, vector<16x8xf32>, vector<8x8xf32> -> vector<8x8xf32>
    %c0_14 = arith.constant 0 : index
    %c0_15 = arith.constant 0 : index
    %16 = vector.load %arg6[%c0_14, %c0_15] : memref<1x8xf32, #tpu.memory_space<vmem>>, vector<1x8xf32>
    %17 = vector.broadcast %16 : vector<1x8xf32> to vector<8x8xf32>
    %18 = arith.addf %15, %17 : vector<8x8xf32>
    %c0_16 = arith.constant 0 : index
    %c0_17 = arith.constant 0 : index
    %19 = vector.load %arg7[%c0_16, %c0_17] : memref<16x8xf32, #tpu.memory_space<vmem>>, vector<16x8xf32>
    %cst_18 = arith.constant dense<0.000000e+00> : vector<16x8xf32>
    %20 = tpu.matmul %19, %18, %cst_18 {dimension_numbers = #tpu.dot_dimension_numbers<[1], [0], [0], [1], [0, 0, 1, 1], [], []>} : vector<16x8xf32>, vector<8x8xf32>, vector<16x8xf32> -> vector<16x8xf32>
    %c0_19 = arith.constant 0 : index
    %c0_20 = arith.constant 0 : index
    %21 = vector.load %arg8[%c0_19, %c0_20] : memref<8x128xf32, #tpu.memory_space<vmem>>, vector<8x128xf32>
    %c0_21 = arith.constant 0 : index
    %c0_22 = arith.constant 0 : index
    %22 = vector.load %arg9[%c0_21, %c0_22] : memref<32x128xf32, #tpu.memory_space<vmem>>, vector<32x128xf32>
    %c0_23 = arith.constant 0 : index
    %c0_24 = arith.constant 0 : index
    %23 = vector.load %arg10[%c0_23, %c0_24] : memref<1x128xf32, #tpu.memory_space<vmem>>, vector<1x128xf32>
    %c0_25 = arith.constant 0 : index
    %c0_26 = arith.constant 0 : index
    %24 = vector.load %arg11[%c0_25, %c0_26] : memref<1x128xf32, #tpu.memory_space<vmem>>, vector<1x128xf32>
    %c0_27 = arith.constant 0 : index
    %c0_28 = arith.constant 0 : index
    %25 = vector.load %arg12[%c0_27, %c0_28] : memref<1x128xf32, #tpu.memory_space<vmem>>, vector<1x128xf32>
    %c0_29 = arith.constant 0 : index
    %c0_30 = arith.constant 0 : index
    %26 = vector.load %arg13[%c0_29, %c0_30] : memref<1x128xf32, #tpu.memory_space<vmem>>, vector<1x128xf32>
    %c0_31 = arith.constant 0 : index
    %c0_32 = arith.constant 0 : index
    %27 = vector.load %arg14[%c0_31, %c0_32] : memref<1x128xf32, #tpu.memory_space<vmem>>, vector<1x128xf32>
    %c0_33 = arith.constant 0 : index
    %c0_34 = arith.constant 0 : index
    %28 = vector.load %arg15[%c0_33, %c0_34] : memref<1x128xf32, #tpu.memory_space<vmem>>, vector<1x128xf32>
    %c0_35 = arith.constant 0 : index
    %c0_36 = arith.constant 0 : index
    %29 = vector.load %arg16[%c0_35, %c0_36] : memref<1x32xf32, #tpu.memory_space<vmem>>, vector<1x32xf32>
    %c0_37 = arith.constant 0 : index
    %c0_38 = arith.constant 0 : index
    %30 = vector.load %arg17[%c0_37, %c0_38] : memref<1x32xf32, #tpu.memory_space<vmem>>, vector<1x32xf32>
    %c0_39 = arith.constant 0 : index
    %c0_40 = arith.constant 0 : index
    %31 = vector.load %arg18[%c0_39, %c0_40] : memref<32x128xf32, #tpu.memory_space<vmem>>, vector<32x128xf32>
    %c0_41 = arith.constant 0 : index
    %c0_42 = arith.constant 0 : index
    %32 = vector.load %arg19[%c0_41, %c0_42] : memref<32x128xf32, #tpu.memory_space<vmem>>, vector<32x128xf32>
    %c0_43 = arith.constant 0 : index
    %c0_44 = arith.constant 0 : index
    %33 = vector.load %arg20[%c0_43, %c0_44] : memref<1x128xf32, #tpu.memory_space<vmem>>, vector<1x128xf32>
    %c0_45 = arith.constant 0 : index
    %c0_46 = arith.constant 0 : index
    %34 = vector.load %arg21[%c0_45, %c0_46] : memref<1x128xf32, #tpu.memory_space<vmem>>, vector<1x128xf32>
    %c0_47 = arith.constant 0 : index
    %c0_48 = arith.constant 0 : index
    %35 = vector.load %arg22[%c0_47, %c0_48] : memref<1x128xf32, #tpu.memory_space<vmem>>, vector<1x128xf32>
    %c0_49 = arith.constant 0 : index
    %c0_50 = arith.constant 0 : index
    %36 = vector.load %arg23[%c0_49, %c0_50] : memref<1x128xf32, #tpu.memory_space<vmem>>, vector<1x128xf32>
    %c0_51 = arith.constant 0 : index
    %c0_52 = arith.constant 0 : index
    %37 = vector.load %arg24[%c0_51, %c0_52] : memref<1x128xf32, #tpu.memory_space<vmem>>, vector<1x128xf32>
    %c0_53 = arith.constant 0 : index
    %c0_54 = arith.constant 0 : index
    %38 = vector.load %arg25[%c0_53, %c0_54] : memref<1x128xf32, #tpu.memory_space<vmem>>, vector<1x128xf32>
    %c0_55 = arith.constant 0 : index
    %c0_56 = arith.constant 0 : index
    %39 = vector.load %arg26[%c0_55, %c0_56] : memref<1x32xf32, #tpu.memory_space<vmem>>, vector<1x32xf32>
    %c0_57 = arith.constant 0 : index
    %c0_58 = arith.constant 0 : index
    %40 = vector.load %arg27[%c0_57, %c0_58] : memref<1x32xf32, #tpu.memory_space<vmem>>, vector<1x32xf32>
    %cst_59 = arith.constant dense<0.000000e+00> : vector<16x128xf32>
    %41 = tpu.matmul %20, %21, %cst_59 {dimension_numbers = #tpu.dot_dimension_numbers<[1], [0], [0], [1], [0, 0, 1, 1], [], []>} : vector<16x8xf32>, vector<8x128xf32>, vector<16x128xf32> -> vector<16x128xf32>
    %42 = vector.broadcast %23 : vector<1x128xf32> to vector<16x128xf32>
    %43 = arith.addf %41, %42 : vector<16x128xf32>
    %cst_60 = arith.constant dense<0.000000e+00> : vector<16xf32>
    %44 = vector.multi_reduction <add>, %43, %cst_60 [1] : vector<16x128xf32> to vector<16xf32>
    %45 = vector.shape_cast %44 : vector<16xf32> to vector<16x1xf32>
    %cst_61 = arith.constant 1.280000e+02 : f32
    %46 = vector.broadcast %cst_61 : f32 to vector<16x1xf32>
    %47 = arith.divf %45, %46 : vector<16x1xf32>
    %48 = arith.mulf %43, %43 : vector<16x128xf32>
    %cst_62 = arith.constant dense<0.000000e+00> : vector<16xf32>
    %49 = vector.multi_reduction <add>, %48, %cst_62 [1] : vector<16x128xf32> to vector<16xf32>
    %50 = vector.shape_cast %49 : vector<16xf32> to vector<16x1xf32>
    %cst_63 = arith.constant 1.280000e+02 : f32
    %51 = vector.broadcast %cst_63 : f32 to vector<16x1xf32>
    %52 = arith.divf %50, %51 : vector<16x1xf32>
    %53 = arith.mulf %47, %47 : vector<16x1xf32>
    %54 = arith.subf %52, %53 : vector<16x1xf32>
    %cst_64 = arith.constant 0.000000e+00 : f32
    %55 = vector.broadcast %cst_64 : f32 to vector<16x1xf32>
    %56 = arith.maximumf %54, %55 : vector<16x1xf32>
    %57 = vector.broadcast %47 : vector<16x1xf32> to vector<16x128xf32>
    %58 = arith.subf %43, %57 : vector<16x128xf32>
    %cst_65 = arith.constant 9.99999974E-6 : f32
    %59 = vector.broadcast %cst_65 : f32 to vector<16x1xf32>
    %60 = arith.addf %56, %59 : vector<16x1xf32>
    %61 = math.rsqrt %60 : vector<16x1xf32>
    %62 = vector.broadcast %61 : vector<16x1xf32> to vector<16x128xf32>
    %63 = arith.mulf %58, %62 : vector<16x128xf32>
    %64 = vector.broadcast %25 : vector<1x128xf32> to vector<16x128xf32>
    %65 = arith.mulf %63, %64 : vector<16x128xf32>
    %66 = vector.broadcast %26 : vector<1x128xf32> to vector<16x128xf32>
    %67 = arith.addf %65, %66 : vector<16x128xf32>
    %68 = tpu.iota {dimensions = array<i32: 1>} : vector<2x128xi32>
    %c96_i32 = arith.constant 96 : i32
    %69 = vector.broadcast %c96_i32 : i32 to vector<2x128xi32>
    %70 = arith.cmpi slt, %68, %69 : vector<2x128xi32>
    %cst_66 = arith.constant 0.000000e+00 : f32
    %71 = vector.broadcast %cst_66 : f32 to vector<2x32xf32>
    %cst_67 = arith.constant 0.000000e+00 : f32
    %72 = vector.broadcast %cst_67 : f32 to vector<2x32xf32>
    %cst_68 = arith.constant 0.000000e+00 : f32
    %73 = vector.broadcast %cst_68 : f32 to vector<2x32xf32>
    %cst_69 = arith.constant 0.000000e+00 : f32
    %74 = vector.broadcast %cst_69 : f32 to vector<2x32xf32>
    %75 = vector.extract_strided_slice %67 {offsets = [0, 0], sizes = [2, 128], strides = [1, 1]} : vector<16x128xf32> to vector<2x128xf32>
    %cst_70 = arith.constant dense<0.000000e+00> : vector<2x128xf32>
    %76 = tpu.matmul %71, %22, %cst_70 {dimension_numbers = #tpu.dot_dimension_numbers<[1], [0], [0], [1], [0, 0, 1, 1], [], []>} : vector<2x32xf32>, vector<32x128xf32>, vector<2x128xf32> -> vector<2x128xf32>
    %77 = vector.broadcast %24 : vector<1x128xf32> to vector<2x128xf32>
    %78 = arith.addf %76, %77 : vector<2x128xf32>
    %cst_71 = arith.constant dense<0.000000e+00> : vector<2xf32>
    %79 = vector.multi_reduction <add>, %78, %cst_71 [1] : vector<2x128xf32> to vector<2xf32>
    %80 = vector.shape_cast %79 : vector<2xf32> to vector<2x1xf32>
    %cst_72 = arith.constant 1.280000e+02 : f32
    %81 = vector.broadcast %cst_72 : f32 to vector<2x1xf32>
    %82 = arith.divf %80, %81 : vector<2x1xf32>
    %83 = arith.mulf %78, %78 : vector<2x128xf32>
    %cst_73 = arith.constant dense<0.000000e+00> : vector<2xf32>
    %84 = vector.multi_reduction <add>, %83, %cst_73 [1] : vector<2x128xf32> to vector<2xf32>
    %85 = vector.shape_cast %84 : vector<2xf32> to vector<2x1xf32>
    %cst_74 = arith.constant 1.280000e+02 : f32
    %86 = vector.broadcast %cst_74 : f32 to vector<2x1xf32>
    %87 = arith.divf %85, %86 : vector<2x1xf32>
    %88 = arith.mulf %82, %82 : vector<2x1xf32>
    %89 = arith.subf %87, %88 : vector<2x1xf32>
    %cst_75 = arith.constant 0.000000e+00 : f32
    %90 = vector.broadcast %cst_75 : f32 to vector<2x1xf32>
    %91 = arith.maximumf %89, %90 : vector<2x1xf32>
    %92 = vector.broadcast %82 : vector<2x1xf32> to vector<2x128xf32>
    %93 = arith.subf %78, %92 : vector<2x128xf32>
    %cst_76 = arith.constant 9.99999974E-6 : f32
    %94 = vector.broadcast %cst_76 : f32 to vector<2x1xf32>
    %95 = arith.addf %91, %94 : vector<2x1xf32>
    %96 = math.rsqrt %95 : vector<2x1xf32>
    %97 = vector.broadcast %96 : vector<2x1xf32> to vector<2x128xf32>
    %98 = arith.mulf %93, %97 : vector<2x128xf32>
    %99 = vector.broadcast %27 : vector<1x128xf32> to vector<2x128xf32>
    %100 = arith.mulf %98, %99 : vector<2x128xf32>
    %101 = vector.broadcast %28 : vector<1x128xf32> to vector<2x128xf32>
    %102 = arith.addf %100, %101 : vector<2x128xf32>
    %103 = arith.addf %75, %102 : vector<2x128xf32>
    %cst_77 = arith.constant 5.000000e-01 : f32
    %104 = vector.broadcast %cst_77 : f32 to vector<2x128xf32>
    %105 = arith.mulf %104, %103 : vector<2x128xf32>
    %106 = arith.select %70, %105, %103 : vector<2x128xi1>, vector<2x128xf32>
    %107 = math.tanh %106 : vector<2x128xf32>
    %cst_78 = arith.constant 1.000000e+00 : f32
    %108 = vector.broadcast %cst_78 : f32 to vector<2x128xf32>
    %109 = arith.addf %108, %107 : vector<2x128xf32>
    %cst_79 = arith.constant 5.000000e-01 : f32
    %110 = vector.broadcast %cst_79 : f32 to vector<2x128xf32>
    %111 = arith.mulf %110, %109 : vector<2x128xf32>
    %112 = arith.select %70, %111, %107 : vector<2x128xi1>, vector<2x128xf32>
    %113 = vector.extract_strided_slice %112 {offsets = [0, 0], sizes = [2, 32], strides = [1, 1]} : vector<2x128xf32> to vector<2x32xf32>
    %114 = vector.extract_strided_slice %112 {offsets = [0, 32], sizes = [2, 32], strides = [1, 1]} : vector<2x128xf32> to vector<2x32xf32>
    %115 = vector.extract_strided_slice %112 {offsets = [0, 64], sizes = [2, 32], strides = [1, 1]} : vector<2x128xf32> to vector<2x32xf32>
    %116 = vector.extract_strided_slice %112 {offsets = [0, 96], sizes = [2, 32], strides = [1, 1]} : vector<2x128xf32> to vector<2x32xf32>
    %117 = arith.mulf %114, %73 : vector<2x32xf32>
    %118 = arith.mulf %113, %116 : vector<2x32xf32>
    %119 = arith.addf %117, %118 : vector<2x32xf32>
    %cst_80 = arith.constant dense<0.000000e+00> : vector<2xf32>
    %120 = vector.multi_reduction <add>, %119, %cst_80 [1] : vector<2x32xf32> to vector<2xf32>
    %121 = vector.shape_cast %120 : vector<2xf32> to vector<2x1xf32>
    %cst_81 = arith.constant 3.200000e+01 : f32
    %122 = vector.broadcast %cst_81 : f32 to vector<2x1xf32>
    %123 = arith.divf %121, %122 : vector<2x1xf32>
    %124 = arith.mulf %119, %119 : vector<2x32xf32>
    %cst_82 = arith.constant dense<0.000000e+00> : vector<2xf32>
    %125 = vector.multi_reduction <add>, %124, %cst_82 [1] : vector<2x32xf32> to vector<2xf32>
    %126 = vector.shape_cast %125 : vector<2xf32> to vector<2x1xf32>
    %cst_83 = arith.constant 3.200000e+01 : f32
    %127 = vector.broadcast %cst_83 : f32 to vector<2x1xf32>
    %128 = arith.divf %126, %127 : vector<2x1xf32>
    %129 = arith.mulf %123, %123 : vector<2x1xf32>
    %130 = arith.subf %128, %129 : vector<2x1xf32>
    %cst_84 = arith.constant 0.000000e+00 : f32
    %131 = vector.broadcast %cst_84 : f32 to vector<2x1xf32>
    %132 = arith.maximumf %130, %131 : vector<2x1xf32>
    %133 = vector.broadcast %123 : vector<2x1xf32> to vector<2x32xf32>
    %134 = arith.subf %119, %133 : vector<2x32xf32>
    %cst_85 = arith.constant 9.99999974E-6 : f32
    %135 = vector.broadcast %cst_85 : f32 to vector<2x1xf32>
    %136 = arith.addf %132, %135 : vector<2x1xf32>
    %137 = math.rsqrt %136 : vector<2x1xf32>
    %138 = vector.broadcast %137 : vector<2x1xf32> to vector<2x32xf32>
    %139 = arith.mulf %134, %138 : vector<2x32xf32>
    %140 = vector.broadcast %29 : vector<1x32xf32> to vector<2x32xf32>
    %141 = arith.mulf %139, %140 : vector<2x32xf32>
    %142 = vector.broadcast %30 : vector<1x32xf32> to vector<2x32xf32>
    %143 = arith.addf %141, %142 : vector<2x32xf32>
    %144 = math.tanh %143 : vector<2x32xf32>
    %145 = arith.mulf %115, %144 : vector<2x32xf32>
    %cst_86 = arith.constant dense<0.000000e+00> : vector<2x128xf32>
    %146 = tpu.matmul %145, %31, %cst_86 {dimension_numbers = #tpu.dot_dimension_numbers<[1], [0], [0], [1], [0, 0, 1, 1], [], []>} : vector<2x32xf32>, vector<32x128xf32>, vector<2x128xf32> -> vector<2x128xf32>
    %147 = vector.broadcast %33 : vector<1x128xf32> to vector<2x128xf32>
    %148 = arith.addf %146, %147 : vector<2x128xf32>
    %cst_87 = arith.constant dense<0.000000e+00> : vector<2xf32>
    %149 = vector.multi_reduction <add>, %148, %cst_87 [1] : vector<2x128xf32> to vector<2xf32>
    %150 = vector.shape_cast %149 : vector<2xf32> to vector<2x1xf32>
    %cst_88 = arith.constant 1.280000e+02 : f32
    %151 = vector.broadcast %cst_88 : f32 to vector<2x1xf32>
    %152 = arith.divf %150, %151 : vector<2x1xf32>
    %153 = arith.mulf %148, %148 : vector<2x128xf32>
    %cst_89 = arith.constant dense<0.000000e+00> : vector<2xf32>
    %154 = vector.multi_reduction <add>, %153, %cst_89 [1] : vector<2x128xf32> to vector<2xf32>
    %155 = vector.shape_cast %154 : vector<2xf32> to vector<2x1xf32>
    %cst_90 = arith.constant 1.280000e+02 : f32
    %156 = vector.broadcast %cst_90 : f32 to vector<2x1xf32>
    %157 = arith.divf %155, %156 : vector<2x1xf32>
    %158 = arith.mulf %152, %152 : vector<2x1xf32>
    %159 = arith.subf %157, %158 : vector<2x1xf32>
    %cst_91 = arith.constant 0.000000e+00 : f32
    %160 = vector.broadcast %cst_91 : f32 to vector<2x1xf32>
    %161 = arith.maximumf %159, %160 : vector<2x1xf32>
    %162 = vector.broadcast %152 : vector<2x1xf32> to vector<2x128xf32>
    %163 = arith.subf %148, %162 : vector<2x128xf32>
    %cst_92 = arith.constant 9.99999974E-6 : f32
    %164 = vector.broadcast %cst_92 : f32 to vector<2x1xf32>
    %165 = arith.addf %161, %164 : vector<2x1xf32>
    %166 = math.rsqrt %165 : vector<2x1xf32>
    %167 = vector.broadcast %166 : vector<2x1xf32> to vector<2x128xf32>
    %168 = arith.mulf %163, %167 : vector<2x128xf32>
    %169 = vector.broadcast %35 : vector<1x128xf32> to vector<2x128xf32>
    %170 = arith.mulf %168, %169 : vector<2x128xf32>
    %171 = vector.broadcast %36 : vector<1x128xf32> to vector<2x128xf32>
    %172 = arith.addf %170, %171 : vector<2x128xf32>
    %cst_93 = arith.constant dense<0.000000e+00> : vector<2x128xf32>
    %173 = tpu.matmul %72, %32, %cst_93 {dimension_numbers = #tpu.dot_dimension_numbers<[1], [0], [0], [1], [0, 0, 1, 1], [], []>} : vector<2x32xf32>, vector<32x128xf32>, vector<2x128xf32> -> vector<2x128xf32>
    %174 = vector.broadcast %34 : vector<1x128xf32> to vector<2x128xf32>
    %175 = arith.addf %173, %174 : vector<2x128xf32>
    %cst_94 = arith.constant dense<0.000000e+00> : vector<2xf32>
    %176 = vector.multi_reduction <add>, %175, %cst_94 [1] : vector<2x128xf32> to vector<2xf32>
    %177 = vector.shape_cast %176 : vector<2xf32> to vector<2x1xf32>
    %cst_95 = arith.constant 1.280000e+02 : f32
    %178 = vector.broadcast %cst_95 : f32 to vector<2x1xf32>
    %179 = arith.divf %177, %178 : vector<2x1xf32>
    %180 = arith.mulf %175, %175 : vector<2x128xf32>
    %cst_96 = arith.constant dense<0.000000e+00> : vector<2xf32>
    %181 = vector.multi_reduction <add>, %180, %cst_96 [1] : vector<2x128xf32> to vector<2xf32>
    %182 = vector.shape_cast %181 : vector<2xf32> to vector<2x1xf32>
    %cst_97 = arith.constant 1.280000e+02 : f32
    %183 = vector.broadcast %cst_97 : f32 to vector<2x1xf32>
    %184 = arith.divf %182, %183 : vector<2x1xf32>
    %185 = arith.mulf %179, %179 : vector<2x1xf32>
    %186 = arith.subf %184, %185 : vector<2x1xf32>
    %cst_98 = arith.constant 0.000000e+00 : f32
    %187 = vector.broadcast %cst_98 : f32 to vector<2x1xf32>
    %188 = arith.maximumf %186, %187 : vector<2x1xf32>
    %189 = vector.broadcast %179 : vector<2x1xf32> to vector<2x128xf32>
    %190 = arith.subf %175, %189 : vector<2x128xf32>
    %cst_99 = arith.constant 9.99999974E-6 : f32
    %191 = vector.broadcast %cst_99 : f32 to vector<2x1xf32>
    %192 = arith.addf %188, %191 : vector<2x1xf32>
    %193 = math.rsqrt %192 : vector<2x1xf32>
    %194 = vector.broadcast %193 : vector<2x1xf32> to vector<2x128xf32>
    %195 = arith.mulf %190, %194 : vector<2x128xf32>
    %196 = vector.broadcast %37 : vector<1x128xf32> to vector<2x128xf32>
    %197 = arith.mulf %195, %196 : vector<2x128xf32>
    %198 = vector.broadcast %38 : vector<1x128xf32> to vector<2x128xf32>
    %199 = arith.addf %197, %198 : vector<2x128xf32>
    %200 = arith.addf %172, %199 : vector<2x128xf32>
    %cst_100 = arith.constant 5.000000e-01 : f32
    %201 = vector.broadcast %cst_100 : f32 to vector<2x128xf32>
    %202 = arith.mulf %201, %200 : vector<2x128xf32>
    %203 = arith.select %70, %202, %200 : vector<2x128xi1>, vector<2x128xf32>
    %204 = math.tanh %203 : vector<2x128xf32>
    %cst_101 = arith.constant 1.000000e+00 : f32
    %205 = vector.broadcast %cst_101 : f32 to vector<2x128xf32>
    %206 = arith.addf %205, %204 : vector<2x128xf32>
    %cst_102 = arith.constant 5.000000e-01 : f32
    %207 = vector.broadcast %cst_102 : f32 to vector<2x128xf32>
    %208 = arith.mulf %207, %206 : vector<2x128xf32>
    %209 = arith.select %70, %208, %204 : vector<2x128xi1>, vector<2x128xf32>
    %210 = vector.extract_strided_slice %209 {offsets = [0, 0], sizes = [2, 32], strides = [1, 1]} : vector<2x128xf32> to vector<2x32xf32>
    %211 = vector.extract_strided_slice %209 {offsets = [0, 32], sizes = [2, 32], strides = [1, 1]} : vector<2x128xf32> to vector<2x32xf32>
    %212 = vector.extract_strided_slice %209 {offsets = [0, 64], sizes = [2, 32], strides = [1, 1]} : vector<2x128xf32> to vector<2x32xf32>
    %213 = vector.extract_strided_slice %209 {offsets = [0, 96], sizes = [2, 32], strides = [1, 1]} : vector<2x128xf32> to vector<2x32xf32>
    %214 = arith.mulf %211, %74 : vector<2x32xf32>
    %215 = arith.mulf %210, %213 : vector<2x32xf32>
    %216 = arith.addf %214, %215 : vector<2x32xf32>
    %cst_103 = arith.constant dense<0.000000e+00> : vector<2xf32>
    %217 = vector.multi_reduction <add>, %216, %cst_103 [1] : vector<2x32xf32> to vector<2xf32>
    %218 = vector.shape_cast %217 : vector<2xf32> to vector<2x1xf32>
    %cst_104 = arith.constant 3.200000e+01 : f32
    %219 = vector.broadcast %cst_104 : f32 to vector<2x1xf32>
    %220 = arith.divf %218, %219 : vector<2x1xf32>
    %221 = arith.mulf %216, %216 : vector<2x32xf32>
    %cst_105 = arith.constant dense<0.000000e+00> : vector<2xf32>
    %222 = vector.multi_reduction <add>, %221, %cst_105 [1] : vector<2x32xf32> to vector<2xf32>
    %223 = vector.shape_cast %222 : vector<2xf32> to vector<2x1xf32>
    %cst_106 = arith.constant 3.200000e+01 : f32
    %224 = vector.broadcast %cst_106 : f32 to vector<2x1xf32>
    %225 = arith.divf %223, %224 : vector<2x1xf32>
    %226 = arith.mulf %220, %220 : vector<2x1xf32>
    %227 = arith.subf %225, %226 : vector<2x1xf32>
    %cst_107 = arith.constant 0.000000e+00 : f32
    %228 = vector.broadcast %cst_107 : f32 to vector<2x1xf32>
    %229 = arith.maximumf %227, %228 : vector<2x1xf32>
    %230 = vector.broadcast %220 : vector<2x1xf32> to vector<2x32xf32>
    %231 = arith.subf %216, %230 : vector<2x32xf32>
    %cst_108 = arith.constant 9.99999974E-6 : f32
    %232 = vector.broadcast %cst_108 : f32 to vector<2x1xf32>
    %233 = arith.addf %229, %232 : vector<2x1xf32>
    %234 = math.rsqrt %233 : vector<2x1xf32>
    %235 = vector.broadcast %234 : vector<2x1xf32> to vector<2x32xf32>
    %236 = arith.mulf %231, %235 : vector<2x32xf32>
    %237 = vector.broadcast %39 : vector<1x32xf32> to vector<2x32xf32>
    %238 = arith.mulf %236, %237 : vector<2x32xf32>
    %239 = vector.broadcast %40 : vector<1x32xf32> to vector<2x32xf32>
    %240 = arith.addf %238, %239 : vector<2x32xf32>
    %241 = math.tanh %240 : vector<2x32xf32>
    %242 = arith.mulf %212, %241 : vector<2x32xf32>
    %243 = vector.extract_strided_slice %67 {offsets = [2, 0], sizes = [2, 128], strides = [1, 1]} : vector<16x128xf32> to vector<2x128xf32>
    %cst_109 = arith.constant dense<0.000000e+00> : vector<2x128xf32>
    %244 = tpu.matmul %145, %22, %cst_109 {dimension_numbers = #tpu.dot_dimension_numbers<[1], [0], [0], [1], [0, 0, 1, 1], [], []>} : vector<2x32xf32>, vector<32x128xf32>, vector<2x128xf32> -> vector<2x128xf32>
    %245 = vector.broadcast %24 : vector<1x128xf32> to vector<2x128xf32>
    %246 = arith.addf %244, %245 : vector<2x128xf32>
    %cst_110 = arith.constant dense<0.000000e+00> : vector<2xf32>
    %247 = vector.multi_reduction <add>, %246, %cst_110 [1] : vector<2x128xf32> to vector<2xf32>
    %248 = vector.shape_cast %247 : vector<2xf32> to vector<2x1xf32>
    %cst_111 = arith.constant 1.280000e+02 : f32
    %249 = vector.broadcast %cst_111 : f32 to vector<2x1xf32>
    %250 = arith.divf %248, %249 : vector<2x1xf32>
    %251 = arith.mulf %246, %246 : vector<2x128xf32>
    %cst_112 = arith.constant dense<0.000000e+00> : vector<2xf32>
    %252 = vector.multi_reduction <add>, %251, %cst_112 [1] : vector<2x128xf32> to vector<2xf32>
    %253 = vector.shape_cast %252 : vector<2xf32> to vector<2x1xf32>
    %cst_113 = arith.constant 1.280000e+02 : f32
    %254 = vector.broadcast %cst_113 : f32 to vector<2x1xf32>
    %255 = arith.divf %253, %254 : vector<2x1xf32>
    %256 = arith.mulf %250, %250 : vector<2x1xf32>
    %257 = arith.subf %255, %256 : vector<2x1xf32>
    %cst_114 = arith.constant 0.000000e+00 : f32
    %258 = vector.broadcast %cst_114 : f32 to vector<2x1xf32>
    %259 = arith.maximumf %257, %258 : vector<2x1xf32>
    %260 = vector.broadcast %250 : vector<2x1xf32> to vector<2x128xf32>
    %261 = arith.subf %246, %260 : vector<2x128xf32>
    %cst_115 = arith.constant 9.99999974E-6 : f32
    %262 = vector.broadcast %cst_115 : f32 to vector<2x1xf32>
    %263 = arith.addf %259, %262 : vector<2x1xf32>
    %264 = math.rsqrt %263 : vector<2x1xf32>
    %265 = vector.broadcast %264 : vector<2x1xf32> to vector<2x128xf32>
    %266 = arith.mulf %261, %265 : vector<2x128xf32>
    %267 = vector.broadcast %27 : vector<1x128xf32> to vector<2x128xf32>
    %268 = arith.mulf %266, %267 : vector<2x128xf32>
    %269 = vector.broadcast %28 : vector<1x128xf32> to vector<2x128xf32>
    %270 = arith.addf %268, %269 : vector<2x128xf32>
    %271 = arith.addf %243, %270 : vector<2x128xf32>
    %cst_116 = arith.constant 5.000000e-01 : f32
    %272 = vector.broadcast %cst_116 : f32 to vector<2x128xf32>
    %273 = arith.mulf %272, %271 : vector<2x128xf32>
    %274 = arith.select %70, %273, %271 : vector<2x128xi1>, vector<2x128xf32>
    %275 = math.tanh %274 : vector<2x128xf32>
    %cst_117 = arith.constant 1.000000e+00 : f32
    %276 = vector.broadcast %cst_117 : f32 to vector<2x128xf32>
    %277 = arith.addf %276, %275 : vector<2x128xf32>
    %cst_118 = arith.constant 5.000000e-01 : f32
    %278 = vector.broadcast %cst_118 : f32 to vector<2x128xf32>
    %279 = arith.mulf %278, %277 : vector<2x128xf32>
    %280 = arith.select %70, %279, %275 : vector<2x128xi1>, vector<2x128xf32>
    %281 = vector.extract_strided_slice %280 {offsets = [0, 0], sizes = [2, 32], strides = [1, 1]} : vector<2x128xf32> to vector<2x32xf32>
    %282 = vector.extract_strided_slice %280 {offsets = [0, 32], sizes = [2, 32], strides = [1, 1]} : vector<2x128xf32> to vector<2x32xf32>
    %283 = vector.extract_strided_slice %280 {offsets = [0, 64], sizes = [2, 32], strides = [1, 1]} : vector<2x128xf32> to vector<2x32xf32>
    %284 = vector.extract_strided_slice %280 {offsets = [0, 96], sizes = [2, 32], strides = [1, 1]} : vector<2x128xf32> to vector<2x32xf32>
    %285 = arith.mulf %282, %119 : vector<2x32xf32>
    %286 = arith.mulf %281, %284 : vector<2x32xf32>
    %287 = arith.addf %285, %286 : vector<2x32xf32>
    %cst_119 = arith.constant dense<0.000000e+00> : vector<2xf32>
    %288 = vector.multi_reduction <add>, %287, %cst_119 [1] : vector<2x32xf32> to vector<2xf32>
    %289 = vector.shape_cast %288 : vector<2xf32> to vector<2x1xf32>
    %cst_120 = arith.constant 3.200000e+01 : f32
    %290 = vector.broadcast %cst_120 : f32 to vector<2x1xf32>
    %291 = arith.divf %289, %290 : vector<2x1xf32>
    %292 = arith.mulf %287, %287 : vector<2x32xf32>
    %cst_121 = arith.constant dense<0.000000e+00> : vector<2xf32>
    %293 = vector.multi_reduction <add>, %292, %cst_121 [1] : vector<2x32xf32> to vector<2xf32>
    %294 = vector.shape_cast %293 : vector<2xf32> to vector<2x1xf32>
    %cst_122 = arith.constant 3.200000e+01 : f32
    %295 = vector.broadcast %cst_122 : f32 to vector<2x1xf32>
    %296 = arith.divf %294, %295 : vector<2x1xf32>
    %297 = arith.mulf %291, %291 : vector<2x1xf32>
    %298 = arith.subf %296, %297 : vector<2x1xf32>
    %cst_123 = arith.constant 0.000000e+00 : f32
    %299 = vector.broadcast %cst_123 : f32 to vector<2x1xf32>
    %300 = arith.maximumf %298, %299 : vector<2x1xf32>
    %301 = vector.broadcast %291 : vector<2x1xf32> to vector<2x32xf32>
    %302 = arith.subf %287, %301 : vector<2x32xf32>
    %cst_124 = arith.constant 9.99999974E-6 : f32
    %303 = vector.broadcast %cst_124 : f32 to vector<2x1xf32>
    %304 = arith.addf %300, %303 : vector<2x1xf32>
    %305 = math.rsqrt %304 : vector<2x1xf32>
    %306 = vector.broadcast %305 : vector<2x1xf32> to vector<2x32xf32>
    %307 = arith.mulf %302, %306 : vector<2x32xf32>
    %308 = vector.broadcast %29 : vector<1x32xf32> to vector<2x32xf32>
    %309 = arith.mulf %307, %308 : vector<2x32xf32>
    %310 = vector.broadcast %30 : vector<1x32xf32> to vector<2x32xf32>
    %311 = arith.addf %309, %310 : vector<2x32xf32>
    %312 = math.tanh %311 : vector<2x32xf32>
    %313 = arith.mulf %283, %312 : vector<2x32xf32>
    %cst_125 = arith.constant dense<0.000000e+00> : vector<2x128xf32>
    %314 = tpu.matmul %313, %31, %cst_125 {dimension_numbers = #tpu.dot_dimension_numbers<[1], [0], [0], [1], [0, 0, 1, 1], [], []>} : vector<2x32xf32>, vector<32x128xf32>, vector<2x128xf32> -> vector<2x128xf32>
    %315 = vector.broadcast %33 : vector<1x128xf32> to vector<2x128xf32>
    %316 = arith.addf %314, %315 : vector<2x128xf32>
    %cst_126 = arith.constant dense<0.000000e+00> : vector<2xf32>
    %317 = vector.multi_reduction <add>, %316, %cst_126 [1] : vector<2x128xf32> to vector<2xf32>
    %318 = vector.shape_cast %317 : vector<2xf32> to vector<2x1xf32>
    %cst_127 = arith.constant 1.280000e+02 : f32
    %319 = vector.broadcast %cst_127 : f32 to vector<2x1xf32>
    %320 = arith.divf %318, %319 : vector<2x1xf32>
    %321 = arith.mulf %316, %316 : vector<2x128xf32>
    %cst_128 = arith.constant dense<0.000000e+00> : vector<2xf32>
    %322 = vector.multi_reduction <add>, %321, %cst_128 [1] : vector<2x128xf32> to vector<2xf32>
    %323 = vector.shape_cast %322 : vector<2xf32> to vector<2x1xf32>
    %cst_129 = arith.constant 1.280000e+02 : f32
    %324 = vector.broadcast %cst_129 : f32 to vector<2x1xf32>
    %325 = arith.divf %323, %324 : vector<2x1xf32>
    %326 = arith.mulf %320, %320 : vector<2x1xf32>
    %327 = arith.subf %325, %326 : vector<2x1xf32>
    %cst_130 = arith.constant 0.000000e+00 : f32
    %328 = vector.broadcast %cst_130 : f32 to vector<2x1xf32>
    %329 = arith.maximumf %327, %328 : vector<2x1xf32>
    %330 = vector.broadcast %320 : vector<2x1xf32> to vector<2x128xf32>
    %331 = arith.subf %316, %330 : vector<2x128xf32>
    %cst_131 = arith.constant 9.99999974E-6 : f32
    %332 = vector.broadcast %cst_131 : f32 to vector<2x1xf32>
    %333 = arith.addf %329, %332 : vector<2x1xf32>
    %334 = math.rsqrt %333 : vector<2x1xf32>
    %335 = vector.broadcast %334 : vector<2x1xf32> to vector<2x128xf32>
    %336 = arith.mulf %331, %335 : vector<2x128xf32>
    %337 = vector.broadcast %35 : vector<1x128xf32> to vector<2x128xf32>
    %338 = arith.mulf %336, %337 : vector<2x128xf32>
    %339 = vector.broadcast %36 : vector<1x128xf32> to vector<2x128xf32>
    %340 = arith.addf %338, %339 : vector<2x128xf32>
    %cst_132 = arith.constant dense<0.000000e+00> : vector<2x128xf32>
    %341 = tpu.matmul %242, %32, %cst_132 {dimension_numbers = #tpu.dot_dimension_numbers<[1], [0], [0], [1], [0, 0, 1, 1], [], []>} : vector<2x32xf32>, vector<32x128xf32>, vector<2x128xf32> -> vector<2x128xf32>
    %342 = vector.broadcast %34 : vector<1x128xf32> to vector<2x128xf32>
    %343 = arith.addf %341, %342 : vector<2x128xf32>
    %cst_133 = arith.constant dense<0.000000e+00> : vector<2xf32>
    %344 = vector.multi_reduction <add>, %343, %cst_133 [1] : vector<2x128xf32> to vector<2xf32>
    %345 = vector.shape_cast %344 : vector<2xf32> to vector<2x1xf32>
    %cst_134 = arith.constant 1.280000e+02 : f32
    %346 = vector.broadcast %cst_134 : f32 to vector<2x1xf32>
    %347 = arith.divf %345, %346 : vector<2x1xf32>
    %348 = arith.mulf %343, %343 : vector<2x128xf32>
    %cst_135 = arith.constant dense<0.000000e+00> : vector<2xf32>
    %349 = vector.multi_reduction <add>, %348, %cst_135 [1] : vector<2x128xf32> to vector<2xf32>
    %350 = vector.shape_cast %349 : vector<2xf32> to vector<2x1xf32>
    %cst_136 = arith.constant 1.280000e+02 : f32
    %351 = vector.broadcast %cst_136 : f32 to vector<2x1xf32>
    %352 = arith.divf %350, %351 : vector<2x1xf32>
    %353 = arith.mulf %347, %347 : vector<2x1xf32>
    %354 = arith.subf %352, %353 : vector<2x1xf32>
    %cst_137 = arith.constant 0.000000e+00 : f32
    %355 = vector.broadcast %cst_137 : f32 to vector<2x1xf32>
    %356 = arith.maximumf %354, %355 : vector<2x1xf32>
    %357 = vector.broadcast %347 : vector<2x1xf32> to vector<2x128xf32>
    %358 = arith.subf %343, %357 : vector<2x128xf32>
    %cst_138 = arith.constant 9.99999974E-6 : f32
    %359 = vector.broadcast %cst_138 : f32 to vector<2x1xf32>
    %360 = arith.addf %356, %359 : vector<2x1xf32>
    %361 = math.rsqrt %360 : vector<2x1xf32>
    %362 = vector.broadcast %361 : vector<2x1xf32> to vector<2x128xf32>
    %363 = arith.mulf %358, %362 : vector<2x128xf32>
    %364 = vector.broadcast %37 : vector<1x128xf32> to vector<2x128xf32>
    %365 = arith.mulf %363, %364 : vector<2x128xf32>
    %366 = vector.broadcast %38 : vector<1x128xf32> to vector<2x128xf32>
    %367 = arith.addf %365, %366 : vector<2x128xf32>
    %368 = arith.addf %340, %367 : vector<2x128xf32>
    %cst_139 = arith.constant 5.000000e-01 : f32
    %369 = vector.broadcast %cst_139 : f32 to vector<2x128xf32>
    %370 = arith.mulf %369, %368 : vector<2x128xf32>
    %371 = arith.select %70, %370, %368 : vector<2x128xi1>, vector<2x128xf32>
    %372 = math.tanh %371 : vector<2x128xf32>
    %cst_140 = arith.constant 1.000000e+00 : f32
    %373 = vector.broadcast %cst_140 : f32 to vector<2x128xf32>
    %374 = arith.addf %373, %372 : vector<2x128xf32>
    %cst_141 = arith.constant 5.000000e-01 : f32
    %375 = vector.broadcast %cst_141 : f32 to vector<2x128xf32>
    %376 = arith.mulf %375, %374 : vector<2x128xf32>
    %377 = arith.select %70, %376, %372 : vector<2x128xi1>, vector<2x128xf32>
    %378 = vector.extract_strided_slice %377 {offsets = [0, 0], sizes = [2, 32], strides = [1, 1]} : vector<2x128xf32> to vector<2x32xf32>
    %379 = vector.extract_strided_slice %377 {offsets = [0, 32], sizes = [2, 32], strides = [1, 1]} : vector<2x128xf32> to vector<2x32xf32>
    %380 = vector.extract_strided_slice %377 {offsets = [0, 64], sizes = [2, 32], strides = [1, 1]} : vector<2x128xf32> to vector<2x32xf32>
    %381 = vector.extract_strided_slice %377 {offsets = [0, 96], sizes = [2, 32], strides = [1, 1]} : vector<2x128xf32> to vector<2x32xf32>
    %382 = arith.mulf %379, %216 : vector<2x32xf32>
    %383 = arith.mulf %378, %381 : vector<2x32xf32>
    %384 = arith.addf %382, %383 : vector<2x32xf32>
    %cst_142 = arith.constant dense<0.000000e+00> : vector<2xf32>
    %385 = vector.multi_reduction <add>, %384, %cst_142 [1] : vector<2x32xf32> to vector<2xf32>
    %386 = vector.shape_cast %385 : vector<2xf32> to vector<2x1xf32>
    %cst_143 = arith.constant 3.200000e+01 : f32
    %387 = vector.broadcast %cst_143 : f32 to vector<2x1xf32>
    %388 = arith.divf %386, %387 : vector<2x1xf32>
    %389 = arith.mulf %384, %384 : vector<2x32xf32>
    %cst_144 = arith.constant dense<0.000000e+00> : vector<2xf32>
    %390 = vector.multi_reduction <add>, %389, %cst_144 [1] : vector<2x32xf32> to vector<2xf32>
    %391 = vector.shape_cast %390 : vector<2xf32> to vector<2x1xf32>
    %cst_145 = arith.constant 3.200000e+01 : f32
    %392 = vector.broadcast %cst_145 : f32 to vector<2x1xf32>
    %393 = arith.divf %391, %392 : vector<2x1xf32>
    %394 = arith.mulf %388, %388 : vector<2x1xf32>
    %395 = arith.subf %393, %394 : vector<2x1xf32>
    %cst_146 = arith.constant 0.000000e+00 : f32
    %396 = vector.broadcast %cst_146 : f32 to vector<2x1xf32>
    %397 = arith.maximumf %395, %396 : vector<2x1xf32>
    %398 = vector.broadcast %388 : vector<2x1xf32> to vector<2x32xf32>
    %399 = arith.subf %384, %398 : vector<2x32xf32>
    %cst_147 = arith.constant 9.99999974E-6 : f32
    %400 = vector.broadcast %cst_147 : f32 to vector<2x1xf32>
    %401 = arith.addf %397, %400 : vector<2x1xf32>
    %402 = math.rsqrt %401 : vector<2x1xf32>
    %403 = vector.broadcast %402 : vector<2x1xf32> to vector<2x32xf32>
    %404 = arith.mulf %399, %403 : vector<2x32xf32>
    %405 = vector.broadcast %39 : vector<1x32xf32> to vector<2x32xf32>
    %406 = arith.mulf %404, %405 : vector<2x32xf32>
    %407 = vector.broadcast %40 : vector<1x32xf32> to vector<2x32xf32>
    %408 = arith.addf %406, %407 : vector<2x32xf32>
    %409 = math.tanh %408 : vector<2x32xf32>
    %410 = arith.mulf %380, %409 : vector<2x32xf32>
    %411 = vector.extract_strided_slice %67 {offsets = [4, 0], sizes = [2, 128], strides = [1, 1]} : vector<16x128xf32> to vector<2x128xf32>
    %cst_148 = arith.constant dense<0.000000e+00> : vector<2x128xf32>
    %412 = tpu.matmul %313, %22, %cst_148 {dimension_numbers = #tpu.dot_dimension_numbers<[1], [0], [0], [1], [0, 0, 1, 1], [], []>} : vector<2x32xf32>, vector<32x128xf32>, vector<2x128xf32> -> vector<2x128xf32>
    %413 = vector.broadcast %24 : vector<1x128xf32> to vector<2x128xf32>
    %414 = arith.addf %412, %413 : vector<2x128xf32>
    %cst_149 = arith.constant dense<0.000000e+00> : vector<2xf32>
    %415 = vector.multi_reduction <add>, %414, %cst_149 [1] : vector<2x128xf32> to vector<2xf32>
    %416 = vector.shape_cast %415 : vector<2xf32> to vector<2x1xf32>
    %cst_150 = arith.constant 1.280000e+02 : f32
    %417 = vector.broadcast %cst_150 : f32 to vector<2x1xf32>
    %418 = arith.divf %416, %417 : vector<2x1xf32>
    %419 = arith.mulf %414, %414 : vector<2x128xf32>
    %cst_151 = arith.constant dense<0.000000e+00> : vector<2xf32>
    %420 = vector.multi_reduction <add>, %419, %cst_151 [1] : vector<2x128xf32> to vector<2xf32>
    %421 = vector.shape_cast %420 : vector<2xf32> to vector<2x1xf32>
    %cst_152 = arith.constant 1.280000e+02 : f32
    %422 = vector.broadcast %cst_152 : f32 to vector<2x1xf32>
    %423 = arith.divf %421, %422 : vector<2x1xf32>
    %424 = arith.mulf %418, %418 : vector<2x1xf32>
    %425 = arith.subf %423, %424 : vector<2x1xf32>
    %cst_153 = arith.constant 0.000000e+00 : f32
    %426 = vector.broadcast %cst_153 : f32 to vector<2x1xf32>
    %427 = arith.maximumf %425, %426 : vector<2x1xf32>
    %428 = vector.broadcast %418 : vector<2x1xf32> to vector<2x128xf32>
    %429 = arith.subf %414, %428 : vector<2x128xf32>
    %cst_154 = arith.constant 9.99999974E-6 : f32
    %430 = vector.broadcast %cst_154 : f32 to vector<2x1xf32>
    %431 = arith.addf %427, %430 : vector<2x1xf32>
    %432 = math.rsqrt %431 : vector<2x1xf32>
    %433 = vector.broadcast %432 : vector<2x1xf32> to vector<2x128xf32>
    %434 = arith.mulf %429, %433 : vector<2x128xf32>
    %435 = vector.broadcast %27 : vector<1x128xf32> to vector<2x128xf32>
    %436 = arith.mulf %434, %435 : vector<2x128xf32>
    %437 = vector.broadcast %28 : vector<1x128xf32> to vector<2x128xf32>
    %438 = arith.addf %436, %437 : vector<2x128xf32>
    %439 = arith.addf %411, %438 : vector<2x128xf32>
    %cst_155 = arith.constant 5.000000e-01 : f32
    %440 = vector.broadcast %cst_155 : f32 to vector<2x128xf32>
    %441 = arith.mulf %440, %439 : vector<2x128xf32>
    %442 = arith.select %70, %441, %439 : vector<2x128xi1>, vector<2x128xf32>
    %443 = math.tanh %442 : vector<2x128xf32>
    %cst_156 = arith.constant 1.000000e+00 : f32
    %444 = vector.broadcast %cst_156 : f32 to vector<2x128xf32>
    %445 = arith.addf %444, %443 : vector<2x128xf32>
    %cst_157 = arith.constant 5.000000e-01 : f32
    %446 = vector.broadcast %cst_157 : f32 to vector<2x128xf32>
    %447 = arith.mulf %446, %445 : vector<2x128xf32>
    %448 = arith.select %70, %447, %443 : vector<2x128xi1>, vector<2x128xf32>
    %449 = vector.extract_strided_slice %448 {offsets = [0, 0], sizes = [2, 32], strides = [1, 1]} : vector<2x128xf32> to vector<2x32xf32>
    %450 = vector.extract_strided_slice %448 {offsets = [0, 32], sizes = [2, 32], strides = [1, 1]} : vector<2x128xf32> to vector<2x32xf32>
    %451 = vector.extract_strided_slice %448 {offsets = [0, 64], sizes = [2, 32], strides = [1, 1]} : vector<2x128xf32> to vector<2x32xf32>
    %452 = vector.extract_strided_slice %448 {offsets = [0, 96], sizes = [2, 32], strides = [1, 1]} : vector<2x128xf32> to vector<2x32xf32>
    %453 = arith.mulf %450, %287 : vector<2x32xf32>
    %454 = arith.mulf %449, %452 : vector<2x32xf32>
    %455 = arith.addf %453, %454 : vector<2x32xf32>
    %cst_158 = arith.constant dense<0.000000e+00> : vector<2xf32>
    %456 = vector.multi_reduction <add>, %455, %cst_158 [1] : vector<2x32xf32> to vector<2xf32>
    %457 = vector.shape_cast %456 : vector<2xf32> to vector<2x1xf32>
    %cst_159 = arith.constant 3.200000e+01 : f32
    %458 = vector.broadcast %cst_159 : f32 to vector<2x1xf32>
    %459 = arith.divf %457, %458 : vector<2x1xf32>
    %460 = arith.mulf %455, %455 : vector<2x32xf32>
    %cst_160 = arith.constant dense<0.000000e+00> : vector<2xf32>
    %461 = vector.multi_reduction <add>, %460, %cst_160 [1] : vector<2x32xf32> to vector<2xf32>
    %462 = vector.shape_cast %461 : vector<2xf32> to vector<2x1xf32>
    %cst_161 = arith.constant 3.200000e+01 : f32
    %463 = vector.broadcast %cst_161 : f32 to vector<2x1xf32>
    %464 = arith.divf %462, %463 : vector<2x1xf32>
    %465 = arith.mulf %459, %459 : vector<2x1xf32>
    %466 = arith.subf %464, %465 : vector<2x1xf32>
    %cst_162 = arith.constant 0.000000e+00 : f32
    %467 = vector.broadcast %cst_162 : f32 to vector<2x1xf32>
    %468 = arith.maximumf %466, %467 : vector<2x1xf32>
    %469 = vector.broadcast %459 : vector<2x1xf32> to vector<2x32xf32>
    %470 = arith.subf %455, %469 : vector<2x32xf32>
    %cst_163 = arith.constant 9.99999974E-6 : f32
    %471 = vector.broadcast %cst_163 : f32 to vector<2x1xf32>
    %472 = arith.addf %468, %471 : vector<2x1xf32>
    %473 = math.rsqrt %472 : vector<2x1xf32>
    %474 = vector.broadcast %473 : vector<2x1xf32> to vector<2x32xf32>
    %475 = arith.mulf %470, %474 : vector<2x32xf32>
    %476 = vector.broadcast %29 : vector<1x32xf32> to vector<2x32xf32>
    %477 = arith.mulf %475, %476 : vector<2x32xf32>
    %478 = vector.broadcast %30 : vector<1x32xf32> to vector<2x32xf32>
    %479 = arith.addf %477, %478 : vector<2x32xf32>
    %480 = math.tanh %479 : vector<2x32xf32>
    %481 = arith.mulf %451, %480 : vector<2x32xf32>
    %cst_164 = arith.constant dense<0.000000e+00> : vector<2x128xf32>
    %482 = tpu.matmul %481, %31, %cst_164 {dimension_numbers = #tpu.dot_dimension_numbers<[1], [0], [0], [1], [0, 0, 1, 1], [], []>} : vector<2x32xf32>, vector<32x128xf32>, vector<2x128xf32> -> vector<2x128xf32>
    %483 = vector.broadcast %33 : vector<1x128xf32> to vector<2x128xf32>
    %484 = arith.addf %482, %483 : vector<2x128xf32>
    %cst_165 = arith.constant dense<0.000000e+00> : vector<2xf32>
    %485 = vector.multi_reduction <add>, %484, %cst_165 [1] : vector<2x128xf32> to vector<2xf32>
    %486 = vector.shape_cast %485 : vector<2xf32> to vector<2x1xf32>
    %cst_166 = arith.constant 1.280000e+02 : f32
    %487 = vector.broadcast %cst_166 : f32 to vector<2x1xf32>
    %488 = arith.divf %486, %487 : vector<2x1xf32>
    %489 = arith.mulf %484, %484 : vector<2x128xf32>
    %cst_167 = arith.constant dense<0.000000e+00> : vector<2xf32>
    %490 = vector.multi_reduction <add>, %489, %cst_167 [1] : vector<2x128xf32> to vector<2xf32>
    %491 = vector.shape_cast %490 : vector<2xf32> to vector<2x1xf32>
    %cst_168 = arith.constant 1.280000e+02 : f32
    %492 = vector.broadcast %cst_168 : f32 to vector<2x1xf32>
    %493 = arith.divf %491, %492 : vector<2x1xf32>
    %494 = arith.mulf %488, %488 : vector<2x1xf32>
    %495 = arith.subf %493, %494 : vector<2x1xf32>
    %cst_169 = arith.constant 0.000000e+00 : f32
    %496 = vector.broadcast %cst_169 : f32 to vector<2x1xf32>
    %497 = arith.maximumf %495, %496 : vector<2x1xf32>
    %498 = vector.broadcast %488 : vector<2x1xf32> to vector<2x128xf32>
    %499 = arith.subf %484, %498 : vector<2x128xf32>
    %cst_170 = arith.constant 9.99999974E-6 : f32
    %500 = vector.broadcast %cst_170 : f32 to vector<2x1xf32>
    %501 = arith.addf %497, %500 : vector<2x1xf32>
    %502 = math.rsqrt %501 : vector<2x1xf32>
    %503 = vector.broadcast %502 : vector<2x1xf32> to vector<2x128xf32>
    %504 = arith.mulf %499, %503 : vector<2x128xf32>
    %505 = vector.broadcast %35 : vector<1x128xf32> to vector<2x128xf32>
    %506 = arith.mulf %504, %505 : vector<2x128xf32>
    %507 = vector.broadcast %36 : vector<1x128xf32> to vector<2x128xf32>
    %508 = arith.addf %506, %507 : vector<2x128xf32>
    %cst_171 = arith.constant dense<0.000000e+00> : vector<2x128xf32>
    %509 = tpu.matmul %410, %32, %cst_171 {dimension_numbers = #tpu.dot_dimension_numbers<[1], [0], [0], [1], [0, 0, 1, 1], [], []>} : vector<2x32xf32>, vector<32x128xf32>, vector<2x128xf32> -> vector<2x128xf32>
    %510 = vector.broadcast %34 : vector<1x128xf32> to vector<2x128xf32>
    %511 = arith.addf %509, %510 : vector<2x128xf32>
    %cst_172 = arith.constant dense<0.000000e+00> : vector<2xf32>
    %512 = vector.multi_reduction <add>, %511, %cst_172 [1] : vector<2x128xf32> to vector<2xf32>
    %513 = vector.shape_cast %512 : vector<2xf32> to vector<2x1xf32>
    %cst_173 = arith.constant 1.280000e+02 : f32
    %514 = vector.broadcast %cst_173 : f32 to vector<2x1xf32>
    %515 = arith.divf %513, %514 : vector<2x1xf32>
    %516 = arith.mulf %511, %511 : vector<2x128xf32>
    %cst_174 = arith.constant dense<0.000000e+00> : vector<2xf32>
    %517 = vector.multi_reduction <add>, %516, %cst_174 [1] : vector<2x128xf32> to vector<2xf32>
    %518 = vector.shape_cast %517 : vector<2xf32> to vector<2x1xf32>
    %cst_175 = arith.constant 1.280000e+02 : f32
    %519 = vector.broadcast %cst_175 : f32 to vector<2x1xf32>
    %520 = arith.divf %518, %519 : vector<2x1xf32>
    %521 = arith.mulf %515, %515 : vector<2x1xf32>
    %522 = arith.subf %520, %521 : vector<2x1xf32>
    %cst_176 = arith.constant 0.000000e+00 : f32
    %523 = vector.broadcast %cst_176 : f32 to vector<2x1xf32>
    %524 = arith.maximumf %522, %523 : vector<2x1xf32>
    %525 = vector.broadcast %515 : vector<2x1xf32> to vector<2x128xf32>
    %526 = arith.subf %511, %525 : vector<2x128xf32>
    %cst_177 = arith.constant 9.99999974E-6 : f32
    %527 = vector.broadcast %cst_177 : f32 to vector<2x1xf32>
    %528 = arith.addf %524, %527 : vector<2x1xf32>
    %529 = math.rsqrt %528 : vector<2x1xf32>
    %530 = vector.broadcast %529 : vector<2x1xf32> to vector<2x128xf32>
    %531 = arith.mulf %526, %530 : vector<2x128xf32>
    %532 = vector.broadcast %37 : vector<1x128xf32> to vector<2x128xf32>
    %533 = arith.mulf %531, %532 : vector<2x128xf32>
    %534 = vector.broadcast %38 : vector<1x128xf32> to vector<2x128xf32>
    %535 = arith.addf %533, %534 : vector<2x128xf32>
    %536 = arith.addf %508, %535 : vector<2x128xf32>
    %cst_178 = arith.constant 5.000000e-01 : f32
    %537 = vector.broadcast %cst_178 : f32 to vector<2x128xf32>
    %538 = arith.mulf %537, %536 : vector<2x128xf32>
    %539 = arith.select %70, %538, %536 : vector<2x128xi1>, vector<2x128xf32>
    %540 = math.tanh %539 : vector<2x128xf32>
    %cst_179 = arith.constant 1.000000e+00 : f32
    %541 = vector.broadcast %cst_179 : f32 to vector<2x128xf32>
    %542 = arith.addf %541, %540 : vector<2x128xf32>
    %cst_180 = arith.constant 5.000000e-01 : f32
    %543 = vector.broadcast %cst_180 : f32 to vector<2x128xf32>
    %544 = arith.mulf %543, %542 : vector<2x128xf32>
    %545 = arith.select %70, %544, %540 : vector<2x128xi1>, vector<2x128xf32>
    %546 = vector.extract_strided_slice %545 {offsets = [0, 0], sizes = [2, 32], strides = [1, 1]} : vector<2x128xf32> to vector<2x32xf32>
    %547 = vector.extract_strided_slice %545 {offsets = [0, 32], sizes = [2, 32], strides = [1, 1]} : vector<2x128xf32> to vector<2x32xf32>
    %548 = vector.extract_strided_slice %545 {offsets = [0, 64], sizes = [2, 32], strides = [1, 1]} : vector<2x128xf32> to vector<2x32xf32>
    %549 = vector.extract_strided_slice %545 {offsets = [0, 96], sizes = [2, 32], strides = [1, 1]} : vector<2x128xf32> to vector<2x32xf32>
    %550 = arith.mulf %547, %384 : vector<2x32xf32>
    %551 = arith.mulf %546, %549 : vector<2x32xf32>
    %552 = arith.addf %550, %551 : vector<2x32xf32>
    %cst_181 = arith.constant dense<0.000000e+00> : vector<2xf32>
    %553 = vector.multi_reduction <add>, %552, %cst_181 [1] : vector<2x32xf32> to vector<2xf32>
    %554 = vector.shape_cast %553 : vector<2xf32> to vector<2x1xf32>
    %cst_182 = arith.constant 3.200000e+01 : f32
    %555 = vector.broadcast %cst_182 : f32 to vector<2x1xf32>
    %556 = arith.divf %554, %555 : vector<2x1xf32>
    %557 = arith.mulf %552, %552 : vector<2x32xf32>
    %cst_183 = arith.constant dense<0.000000e+00> : vector<2xf32>
    %558 = vector.multi_reduction <add>, %557, %cst_183 [1] : vector<2x32xf32> to vector<2xf32>
    %559 = vector.shape_cast %558 : vector<2xf32> to vector<2x1xf32>
    %cst_184 = arith.constant 3.200000e+01 : f32
    %560 = vector.broadcast %cst_184 : f32 to vector<2x1xf32>
    %561 = arith.divf %559, %560 : vector<2x1xf32>
    %562 = arith.mulf %556, %556 : vector<2x1xf32>
    %563 = arith.subf %561, %562 : vector<2x1xf32>
    %cst_185 = arith.constant 0.000000e+00 : f32
    %564 = vector.broadcast %cst_185 : f32 to vector<2x1xf32>
    %565 = arith.maximumf %563, %564 : vector<2x1xf32>
    %566 = vector.broadcast %556 : vector<2x1xf32> to vector<2x32xf32>
    %567 = arith.subf %552, %566 : vector<2x32xf32>
    %cst_186 = arith.constant 9.99999974E-6 : f32
    %568 = vector.broadcast %cst_186 : f32 to vector<2x1xf32>
    %569 = arith.addf %565, %568 : vector<2x1xf32>
    %570 = math.rsqrt %569 : vector<2x1xf32>
    %571 = vector.broadcast %570 : vector<2x1xf32> to vector<2x32xf32>
    %572 = arith.mulf %567, %571 : vector<2x32xf32>
    %573 = vector.broadcast %39 : vector<1x32xf32> to vector<2x32xf32>
    %574 = arith.mulf %572, %573 : vector<2x32xf32>
    %575 = vector.broadcast %40 : vector<1x32xf32> to vector<2x32xf32>
    %576 = arith.addf %574, %575 : vector<2x32xf32>
    %577 = math.tanh %576 : vector<2x32xf32>
    %578 = arith.mulf %548, %577 : vector<2x32xf32>
    %579 = vector.extract_strided_slice %67 {offsets = [6, 0], sizes = [2, 128], strides = [1, 1]} : vector<16x128xf32> to vector<2x128xf32>
    %cst_187 = arith.constant dense<0.000000e+00> : vector<2x128xf32>
    %580 = tpu.matmul %481, %22, %cst_187 {dimension_numbers = #tpu.dot_dimension_numbers<[1], [0], [0], [1], [0, 0, 1, 1], [], []>} : vector<2x32xf32>, vector<32x128xf32>, vector<2x128xf32> -> vector<2x128xf32>
    %581 = vector.broadcast %24 : vector<1x128xf32> to vector<2x128xf32>
    %582 = arith.addf %580, %581 : vector<2x128xf32>
    %cst_188 = arith.constant dense<0.000000e+00> : vector<2xf32>
    %583 = vector.multi_reduction <add>, %582, %cst_188 [1] : vector<2x128xf32> to vector<2xf32>
    %584 = vector.shape_cast %583 : vector<2xf32> to vector<2x1xf32>
    %cst_189 = arith.constant 1.280000e+02 : f32
    %585 = vector.broadcast %cst_189 : f32 to vector<2x1xf32>
    %586 = arith.divf %584, %585 : vector<2x1xf32>
    %587 = arith.mulf %582, %582 : vector<2x128xf32>
    %cst_190 = arith.constant dense<0.000000e+00> : vector<2xf32>
    %588 = vector.multi_reduction <add>, %587, %cst_190 [1] : vector<2x128xf32> to vector<2xf32>
    %589 = vector.shape_cast %588 : vector<2xf32> to vector<2x1xf32>
    %cst_191 = arith.constant 1.280000e+02 : f32
    %590 = vector.broadcast %cst_191 : f32 to vector<2x1xf32>
    %591 = arith.divf %589, %590 : vector<2x1xf32>
    %592 = arith.mulf %586, %586 : vector<2x1xf32>
    %593 = arith.subf %591, %592 : vector<2x1xf32>
    %cst_192 = arith.constant 0.000000e+00 : f32
    %594 = vector.broadcast %cst_192 : f32 to vector<2x1xf32>
    %595 = arith.maximumf %593, %594 : vector<2x1xf32>
    %596 = vector.broadcast %586 : vector<2x1xf32> to vector<2x128xf32>
    %597 = arith.subf %582, %596 : vector<2x128xf32>
    %cst_193 = arith.constant 9.99999974E-6 : f32
    %598 = vector.broadcast %cst_193 : f32 to vector<2x1xf32>
    %599 = arith.addf %595, %598 : vector<2x1xf32>
    %600 = math.rsqrt %599 : vector<2x1xf32>
    %601 = vector.broadcast %600 : vector<2x1xf32> to vector<2x128xf32>
    %602 = arith.mulf %597, %601 : vector<2x128xf32>
    %603 = vector.broadcast %27 : vector<1x128xf32> to vector<2x128xf32>
    %604 = arith.mulf %602, %603 : vector<2x128xf32>
    %605 = vector.broadcast %28 : vector<1x128xf32> to vector<2x128xf32>
    %606 = arith.addf %604, %605 : vector<2x128xf32>
    %607 = arith.addf %579, %606 : vector<2x128xf32>
    %cst_194 = arith.constant 5.000000e-01 : f32
    %608 = vector.broadcast %cst_194 : f32 to vector<2x128xf32>
    %609 = arith.mulf %608, %607 : vector<2x128xf32>
    %610 = arith.select %70, %609, %607 : vector<2x128xi1>, vector<2x128xf32>
    %611 = math.tanh %610 : vector<2x128xf32>
    %cst_195 = arith.constant 1.000000e+00 : f32
    %612 = vector.broadcast %cst_195 : f32 to vector<2x128xf32>
    %613 = arith.addf %612, %611 : vector<2x128xf32>
    %cst_196 = arith.constant 5.000000e-01 : f32
    %614 = vector.broadcast %cst_196 : f32 to vector<2x128xf32>
    %615 = arith.mulf %614, %613 : vector<2x128xf32>
    %616 = arith.select %70, %615, %611 : vector<2x128xi1>, vector<2x128xf32>
    %617 = vector.extract_strided_slice %616 {offsets = [0, 0], sizes = [2, 32], strides = [1, 1]} : vector<2x128xf32> to vector<2x32xf32>
    %618 = vector.extract_strided_slice %616 {offsets = [0, 32], sizes = [2, 32], strides = [1, 1]} : vector<2x128xf32> to vector<2x32xf32>
    %619 = vector.extract_strided_slice %616 {offsets = [0, 64], sizes = [2, 32], strides = [1, 1]} : vector<2x128xf32> to vector<2x32xf32>
    %620 = vector.extract_strided_slice %616 {offsets = [0, 96], sizes = [2, 32], strides = [1, 1]} : vector<2x128xf32> to vector<2x32xf32>
    %621 = arith.mulf %618, %455 : vector<2x32xf32>
    %622 = arith.mulf %617, %620 : vector<2x32xf32>
    %623 = arith.addf %621, %622 : vector<2x32xf32>
    %cst_197 = arith.constant dense<0.000000e+00> : vector<2xf32>
    %624 = vector.multi_reduction <add>, %623, %cst_197 [1] : vector<2x32xf32> to vector<2xf32>
    %625 = vector.shape_cast %624 : vector<2xf32> to vector<2x1xf32>
    %cst_198 = arith.constant 3.200000e+01 : f32
    %626 = vector.broadcast %cst_198 : f32 to vector<2x1xf32>
    %627 = arith.divf %625, %626 : vector<2x1xf32>
    %628 = arith.mulf %623, %623 : vector<2x32xf32>
    %cst_199 = arith.constant dense<0.000000e+00> : vector<2xf32>
    %629 = vector.multi_reduction <add>, %628, %cst_199 [1] : vector<2x32xf32> to vector<2xf32>
    %630 = vector.shape_cast %629 : vector<2xf32> to vector<2x1xf32>
    %cst_200 = arith.constant 3.200000e+01 : f32
    %631 = vector.broadcast %cst_200 : f32 to vector<2x1xf32>
    %632 = arith.divf %630, %631 : vector<2x1xf32>
    %633 = arith.mulf %627, %627 : vector<2x1xf32>
    %634 = arith.subf %632, %633 : vector<2x1xf32>
    %cst_201 = arith.constant 0.000000e+00 : f32
    %635 = vector.broadcast %cst_201 : f32 to vector<2x1xf32>
    %636 = arith.maximumf %634, %635 : vector<2x1xf32>
    %637 = vector.broadcast %627 : vector<2x1xf32> to vector<2x32xf32>
    %638 = arith.subf %623, %637 : vector<2x32xf32>
    %cst_202 = arith.constant 9.99999974E-6 : f32
    %639 = vector.broadcast %cst_202 : f32 to vector<2x1xf32>
    %640 = arith.addf %636, %639 : vector<2x1xf32>
    %641 = math.rsqrt %640 : vector<2x1xf32>
    %642 = vector.broadcast %641 : vector<2x1xf32> to vector<2x32xf32>
    %643 = arith.mulf %638, %642 : vector<2x32xf32>
    %644 = vector.broadcast %29 : vector<1x32xf32> to vector<2x32xf32>
    %645 = arith.mulf %643, %644 : vector<2x32xf32>
    %646 = vector.broadcast %30 : vector<1x32xf32> to vector<2x32xf32>
    %647 = arith.addf %645, %646 : vector<2x32xf32>
    %648 = math.tanh %647 : vector<2x32xf32>
    %649 = arith.mulf %619, %648 : vector<2x32xf32>
    %cst_203 = arith.constant dense<0.000000e+00> : vector<2x128xf32>
    %650 = tpu.matmul %649, %31, %cst_203 {dimension_numbers = #tpu.dot_dimension_numbers<[1], [0], [0], [1], [0, 0, 1, 1], [], []>} : vector<2x32xf32>, vector<32x128xf32>, vector<2x128xf32> -> vector<2x128xf32>
    %651 = vector.broadcast %33 : vector<1x128xf32> to vector<2x128xf32>
    %652 = arith.addf %650, %651 : vector<2x128xf32>
    %cst_204 = arith.constant dense<0.000000e+00> : vector<2xf32>
    %653 = vector.multi_reduction <add>, %652, %cst_204 [1] : vector<2x128xf32> to vector<2xf32>
    %654 = vector.shape_cast %653 : vector<2xf32> to vector<2x1xf32>
    %cst_205 = arith.constant 1.280000e+02 : f32
    %655 = vector.broadcast %cst_205 : f32 to vector<2x1xf32>
    %656 = arith.divf %654, %655 : vector<2x1xf32>
    %657 = arith.mulf %652, %652 : vector<2x128xf32>
    %cst_206 = arith.constant dense<0.000000e+00> : vector<2xf32>
    %658 = vector.multi_reduction <add>, %657, %cst_206 [1] : vector<2x128xf32> to vector<2xf32>
    %659 = vector.shape_cast %658 : vector<2xf32> to vector<2x1xf32>
    %cst_207 = arith.constant 1.280000e+02 : f32
    %660 = vector.broadcast %cst_207 : f32 to vector<2x1xf32>
    %661 = arith.divf %659, %660 : vector<2x1xf32>
    %662 = arith.mulf %656, %656 : vector<2x1xf32>
    %663 = arith.subf %661, %662 : vector<2x1xf32>
    %cst_208 = arith.constant 0.000000e+00 : f32
    %664 = vector.broadcast %cst_208 : f32 to vector<2x1xf32>
    %665 = arith.maximumf %663, %664 : vector<2x1xf32>
    %666 = vector.broadcast %656 : vector<2x1xf32> to vector<2x128xf32>
    %667 = arith.subf %652, %666 : vector<2x128xf32>
    %cst_209 = arith.constant 9.99999974E-6 : f32
    %668 = vector.broadcast %cst_209 : f32 to vector<2x1xf32>
    %669 = arith.addf %665, %668 : vector<2x1xf32>
    %670 = math.rsqrt %669 : vector<2x1xf32>
    %671 = vector.broadcast %670 : vector<2x1xf32> to vector<2x128xf32>
    %672 = arith.mulf %667, %671 : vector<2x128xf32>
    %673 = vector.broadcast %35 : vector<1x128xf32> to vector<2x128xf32>
    %674 = arith.mulf %672, %673 : vector<2x128xf32>
    %675 = vector.broadcast %36 : vector<1x128xf32> to vector<2x128xf32>
    %676 = arith.addf %674, %675 : vector<2x128xf32>
    %cst_210 = arith.constant dense<0.000000e+00> : vector<2x128xf32>
    %677 = tpu.matmul %578, %32, %cst_210 {dimension_numbers = #tpu.dot_dimension_numbers<[1], [0], [0], [1], [0, 0, 1, 1], [], []>} : vector<2x32xf32>, vector<32x128xf32>, vector<2x128xf32> -> vector<2x128xf32>
    %678 = vector.broadcast %34 : vector<1x128xf32> to vector<2x128xf32>
    %679 = arith.addf %677, %678 : vector<2x128xf32>
    %cst_211 = arith.constant dense<0.000000e+00> : vector<2xf32>
    %680 = vector.multi_reduction <add>, %679, %cst_211 [1] : vector<2x128xf32> to vector<2xf32>
    %681 = vector.shape_cast %680 : vector<2xf32> to vector<2x1xf32>
    %cst_212 = arith.constant 1.280000e+02 : f32
    %682 = vector.broadcast %cst_212 : f32 to vector<2x1xf32>
    %683 = arith.divf %681, %682 : vector<2x1xf32>
    %684 = arith.mulf %679, %679 : vector<2x128xf32>
    %cst_213 = arith.constant dense<0.000000e+00> : vector<2xf32>
    %685 = vector.multi_reduction <add>, %684, %cst_213 [1] : vector<2x128xf32> to vector<2xf32>
    %686 = vector.shape_cast %685 : vector<2xf32> to vector<2x1xf32>
    %cst_214 = arith.constant 1.280000e+02 : f32
    %687 = vector.broadcast %cst_214 : f32 to vector<2x1xf32>
    %688 = arith.divf %686, %687 : vector<2x1xf32>
    %689 = arith.mulf %683, %683 : vector<2x1xf32>
    %690 = arith.subf %688, %689 : vector<2x1xf32>
    %cst_215 = arith.constant 0.000000e+00 : f32
    %691 = vector.broadcast %cst_215 : f32 to vector<2x1xf32>
    %692 = arith.maximumf %690, %691 : vector<2x1xf32>
    %693 = vector.broadcast %683 : vector<2x1xf32> to vector<2x128xf32>
    %694 = arith.subf %679, %693 : vector<2x128xf32>
    %cst_216 = arith.constant 9.99999974E-6 : f32
    %695 = vector.broadcast %cst_216 : f32 to vector<2x1xf32>
    %696 = arith.addf %692, %695 : vector<2x1xf32>
    %697 = math.rsqrt %696 : vector<2x1xf32>
    %698 = vector.broadcast %697 : vector<2x1xf32> to vector<2x128xf32>
    %699 = arith.mulf %694, %698 : vector<2x128xf32>
    %700 = vector.broadcast %37 : vector<1x128xf32> to vector<2x128xf32>
    %701 = arith.mulf %699, %700 : vector<2x128xf32>
    %702 = vector.broadcast %38 : vector<1x128xf32> to vector<2x128xf32>
    %703 = arith.addf %701, %702 : vector<2x128xf32>
    %704 = arith.addf %676, %703 : vector<2x128xf32>
    %cst_217 = arith.constant 5.000000e-01 : f32
    %705 = vector.broadcast %cst_217 : f32 to vector<2x128xf32>
    %706 = arith.mulf %705, %704 : vector<2x128xf32>
    %707 = arith.select %70, %706, %704 : vector<2x128xi1>, vector<2x128xf32>
    %708 = math.tanh %707 : vector<2x128xf32>
    %cst_218 = arith.constant 1.000000e+00 : f32
    %709 = vector.broadcast %cst_218 : f32 to vector<2x128xf32>
    %710 = arith.addf %709, %708 : vector<2x128xf32>
    %cst_219 = arith.constant 5.000000e-01 : f32
    %711 = vector.broadcast %cst_219 : f32 to vector<2x128xf32>
    %712 = arith.mulf %711, %710 : vector<2x128xf32>
    %713 = arith.select %70, %712, %708 : vector<2x128xi1>, vector<2x128xf32>
    %714 = vector.extract_strided_slice %713 {offsets = [0, 0], sizes = [2, 32], strides = [1, 1]} : vector<2x128xf32> to vector<2x32xf32>
    %715 = vector.extract_strided_slice %713 {offsets = [0, 32], sizes = [2, 32], strides = [1, 1]} : vector<2x128xf32> to vector<2x32xf32>
    %716 = vector.extract_strided_slice %713 {offsets = [0, 64], sizes = [2, 32], strides = [1, 1]} : vector<2x128xf32> to vector<2x32xf32>
    %717 = vector.extract_strided_slice %713 {offsets = [0, 96], sizes = [2, 32], strides = [1, 1]} : vector<2x128xf32> to vector<2x32xf32>
    %718 = arith.mulf %715, %552 : vector<2x32xf32>
    %719 = arith.mulf %714, %717 : vector<2x32xf32>
    %720 = arith.addf %718, %719 : vector<2x32xf32>
    %cst_220 = arith.constant dense<0.000000e+00> : vector<2xf32>
    %721 = vector.multi_reduction <add>, %720, %cst_220 [1] : vector<2x32xf32> to vector<2xf32>
    %722 = vector.shape_cast %721 : vector<2xf32> to vector<2x1xf32>
    %cst_221 = arith.constant 3.200000e+01 : f32
    %723 = vector.broadcast %cst_221 : f32 to vector<2x1xf32>
    %724 = arith.divf %722, %723 : vector<2x1xf32>
    %725 = arith.mulf %720, %720 : vector<2x32xf32>
    %cst_222 = arith.constant dense<0.000000e+00> : vector<2xf32>
    %726 = vector.multi_reduction <add>, %725, %cst_222 [1] : vector<2x32xf32> to vector<2xf32>
    %727 = vector.shape_cast %726 : vector<2xf32> to vector<2x1xf32>
    %cst_223 = arith.constant 3.200000e+01 : f32
    %728 = vector.broadcast %cst_223 : f32 to vector<2x1xf32>
    %729 = arith.divf %727, %728 : vector<2x1xf32>
    %730 = arith.mulf %724, %724 : vector<2x1xf32>
    %731 = arith.subf %729, %730 : vector<2x1xf32>
    %cst_224 = arith.constant 0.000000e+00 : f32
    %732 = vector.broadcast %cst_224 : f32 to vector<2x1xf32>
    %733 = arith.maximumf %731, %732 : vector<2x1xf32>
    %734 = vector.broadcast %724 : vector<2x1xf32> to vector<2x32xf32>
    %735 = arith.subf %720, %734 : vector<2x32xf32>
    %cst_225 = arith.constant 9.99999974E-6 : f32
    %736 = vector.broadcast %cst_225 : f32 to vector<2x1xf32>
    %737 = arith.addf %733, %736 : vector<2x1xf32>
    %738 = math.rsqrt %737 : vector<2x1xf32>
    %739 = vector.broadcast %738 : vector<2x1xf32> to vector<2x32xf32>
    %740 = arith.mulf %735, %739 : vector<2x32xf32>
    %741 = vector.broadcast %39 : vector<1x32xf32> to vector<2x32xf32>
    %742 = arith.mulf %740, %741 : vector<2x32xf32>
    %743 = vector.broadcast %40 : vector<1x32xf32> to vector<2x32xf32>
    %744 = arith.addf %742, %743 : vector<2x32xf32>
    %745 = math.tanh %744 : vector<2x32xf32>
    %746 = arith.mulf %716, %745 : vector<2x32xf32>
    %747 = vector.extract_strided_slice %67 {offsets = [8, 0], sizes = [2, 128], strides = [1, 1]} : vector<16x128xf32> to vector<2x128xf32>
    %cst_226 = arith.constant dense<0.000000e+00> : vector<2x128xf32>
    %748 = tpu.matmul %649, %22, %cst_226 {dimension_numbers = #tpu.dot_dimension_numbers<[1], [0], [0], [1], [0, 0, 1, 1], [], []>} : vector<2x32xf32>, vector<32x128xf32>, vector<2x128xf32> -> vector<2x128xf32>
    %749 = vector.broadcast %24 : vector<1x128xf32> to vector<2x128xf32>
    %750 = arith.addf %748, %749 : vector<2x128xf32>
    %cst_227 = arith.constant dense<0.000000e+00> : vector<2xf32>
    %751 = vector.multi_reduction <add>, %750, %cst_227 [1] : vector<2x128xf32> to vector<2xf32>
    %752 = vector.shape_cast %751 : vector<2xf32> to vector<2x1xf32>
    %cst_228 = arith.constant 1.280000e+02 : f32
    %753 = vector.broadcast %cst_228 : f32 to vector<2x1xf32>
    %754 = arith.divf %752, %753 : vector<2x1xf32>
    %755 = arith.mulf %750, %750 : vector<2x128xf32>
    %cst_229 = arith.constant dense<0.000000e+00> : vector<2xf32>
    %756 = vector.multi_reduction <add>, %755, %cst_229 [1] : vector<2x128xf32> to vector<2xf32>
    %757 = vector.shape_cast %756 : vector<2xf32> to vector<2x1xf32>
    %cst_230 = arith.constant 1.280000e+02 : f32
    %758 = vector.broadcast %cst_230 : f32 to vector<2x1xf32>
    %759 = arith.divf %757, %758 : vector<2x1xf32>
    %760 = arith.mulf %754, %754 : vector<2x1xf32>
    %761 = arith.subf %759, %760 : vector<2x1xf32>
    %cst_231 = arith.constant 0.000000e+00 : f32
    %762 = vector.broadcast %cst_231 : f32 to vector<2x1xf32>
    %763 = arith.maximumf %761, %762 : vector<2x1xf32>
    %764 = vector.broadcast %754 : vector<2x1xf32> to vector<2x128xf32>
    %765 = arith.subf %750, %764 : vector<2x128xf32>
    %cst_232 = arith.constant 9.99999974E-6 : f32
    %766 = vector.broadcast %cst_232 : f32 to vector<2x1xf32>
    %767 = arith.addf %763, %766 : vector<2x1xf32>
    %768 = math.rsqrt %767 : vector<2x1xf32>
    %769 = vector.broadcast %768 : vector<2x1xf32> to vector<2x128xf32>
    %770 = arith.mulf %765, %769 : vector<2x128xf32>
    %771 = vector.broadcast %27 : vector<1x128xf32> to vector<2x128xf32>
    %772 = arith.mulf %770, %771 : vector<2x128xf32>
    %773 = vector.broadcast %28 : vector<1x128xf32> to vector<2x128xf32>
    %774 = arith.addf %772, %773 : vector<2x128xf32>
    %775 = arith.addf %747, %774 : vector<2x128xf32>
    %cst_233 = arith.constant 5.000000e-01 : f32
    %776 = vector.broadcast %cst_233 : f32 to vector<2x128xf32>
    %777 = arith.mulf %776, %775 : vector<2x128xf32>
    %778 = arith.select %70, %777, %775 : vector<2x128xi1>, vector<2x128xf32>
    %779 = math.tanh %778 : vector<2x128xf32>
    %cst_234 = arith.constant 1.000000e+00 : f32
    %780 = vector.broadcast %cst_234 : f32 to vector<2x128xf32>
    %781 = arith.addf %780, %779 : vector<2x128xf32>
    %cst_235 = arith.constant 5.000000e-01 : f32
    %782 = vector.broadcast %cst_235 : f32 to vector<2x128xf32>
    %783 = arith.mulf %782, %781 : vector<2x128xf32>
    %784 = arith.select %70, %783, %779 : vector<2x128xi1>, vector<2x128xf32>
    %785 = vector.extract_strided_slice %784 {offsets = [0, 0], sizes = [2, 32], strides = [1, 1]} : vector<2x128xf32> to vector<2x32xf32>
    %786 = vector.extract_strided_slice %784 {offsets = [0, 32], sizes = [2, 32], strides = [1, 1]} : vector<2x128xf32> to vector<2x32xf32>
    %787 = vector.extract_strided_slice %784 {offsets = [0, 64], sizes = [2, 32], strides = [1, 1]} : vector<2x128xf32> to vector<2x32xf32>
    %788 = vector.extract_strided_slice %784 {offsets = [0, 96], sizes = [2, 32], strides = [1, 1]} : vector<2x128xf32> to vector<2x32xf32>
    %789 = arith.mulf %786, %623 : vector<2x32xf32>
    %790 = arith.mulf %785, %788 : vector<2x32xf32>
    %791 = arith.addf %789, %790 : vector<2x32xf32>
    %cst_236 = arith.constant dense<0.000000e+00> : vector<2xf32>
    %792 = vector.multi_reduction <add>, %791, %cst_236 [1] : vector<2x32xf32> to vector<2xf32>
    %793 = vector.shape_cast %792 : vector<2xf32> to vector<2x1xf32>
    %cst_237 = arith.constant 3.200000e+01 : f32
    %794 = vector.broadcast %cst_237 : f32 to vector<2x1xf32>
    %795 = arith.divf %793, %794 : vector<2x1xf32>
    %796 = arith.mulf %791, %791 : vector<2x32xf32>
    %cst_238 = arith.constant dense<0.000000e+00> : vector<2xf32>
    %797 = vector.multi_reduction <add>, %796, %cst_238 [1] : vector<2x32xf32> to vector<2xf32>
    %798 = vector.shape_cast %797 : vector<2xf32> to vector<2x1xf32>
    %cst_239 = arith.constant 3.200000e+01 : f32
    %799 = vector.broadcast %cst_239 : f32 to vector<2x1xf32>
    %800 = arith.divf %798, %799 : vector<2x1xf32>
    %801 = arith.mulf %795, %795 : vector<2x1xf32>
    %802 = arith.subf %800, %801 : vector<2x1xf32>
    %cst_240 = arith.constant 0.000000e+00 : f32
    %803 = vector.broadcast %cst_240 : f32 to vector<2x1xf32>
    %804 = arith.maximumf %802, %803 : vector<2x1xf32>
    %805 = vector.broadcast %795 : vector<2x1xf32> to vector<2x32xf32>
    %806 = arith.subf %791, %805 : vector<2x32xf32>
    %cst_241 = arith.constant 9.99999974E-6 : f32
    %807 = vector.broadcast %cst_241 : f32 to vector<2x1xf32>
    %808 = arith.addf %804, %807 : vector<2x1xf32>
    %809 = math.rsqrt %808 : vector<2x1xf32>
    %810 = vector.broadcast %809 : vector<2x1xf32> to vector<2x32xf32>
    %811 = arith.mulf %806, %810 : vector<2x32xf32>
    %812 = vector.broadcast %29 : vector<1x32xf32> to vector<2x32xf32>
    %813 = arith.mulf %811, %812 : vector<2x32xf32>
    %814 = vector.broadcast %30 : vector<1x32xf32> to vector<2x32xf32>
    %815 = arith.addf %813, %814 : vector<2x32xf32>
    %816 = math.tanh %815 : vector<2x32xf32>
    %817 = arith.mulf %787, %816 : vector<2x32xf32>
    %cst_242 = arith.constant dense<0.000000e+00> : vector<2x128xf32>
    %818 = tpu.matmul %817, %31, %cst_242 {dimension_numbers = #tpu.dot_dimension_numbers<[1], [0], [0], [1], [0, 0, 1, 1], [], []>} : vector<2x32xf32>, vector<32x128xf32>, vector<2x128xf32> -> vector<2x128xf32>
    %819 = vector.broadcast %33 : vector<1x128xf32> to vector<2x128xf32>
    %820 = arith.addf %818, %819 : vector<2x128xf32>
    %cst_243 = arith.constant dense<0.000000e+00> : vector<2xf32>
    %821 = vector.multi_reduction <add>, %820, %cst_243 [1] : vector<2x128xf32> to vector<2xf32>
    %822 = vector.shape_cast %821 : vector<2xf32> to vector<2x1xf32>
    %cst_244 = arith.constant 1.280000e+02 : f32
    %823 = vector.broadcast %cst_244 : f32 to vector<2x1xf32>
    %824 = arith.divf %822, %823 : vector<2x1xf32>
    %825 = arith.mulf %820, %820 : vector<2x128xf32>
    %cst_245 = arith.constant dense<0.000000e+00> : vector<2xf32>
    %826 = vector.multi_reduction <add>, %825, %cst_245 [1] : vector<2x128xf32> to vector<2xf32>
    %827 = vector.shape_cast %826 : vector<2xf32> to vector<2x1xf32>
    %cst_246 = arith.constant 1.280000e+02 : f32
    %828 = vector.broadcast %cst_246 : f32 to vector<2x1xf32>
    %829 = arith.divf %827, %828 : vector<2x1xf32>
    %830 = arith.mulf %824, %824 : vector<2x1xf32>
    %831 = arith.subf %829, %830 : vector<2x1xf32>
    %cst_247 = arith.constant 0.000000e+00 : f32
    %832 = vector.broadcast %cst_247 : f32 to vector<2x1xf32>
    %833 = arith.maximumf %831, %832 : vector<2x1xf32>
    %834 = vector.broadcast %824 : vector<2x1xf32> to vector<2x128xf32>
    %835 = arith.subf %820, %834 : vector<2x128xf32>
    %cst_248 = arith.constant 9.99999974E-6 : f32
    %836 = vector.broadcast %cst_248 : f32 to vector<2x1xf32>
    %837 = arith.addf %833, %836 : vector<2x1xf32>
    %838 = math.rsqrt %837 : vector<2x1xf32>
    %839 = vector.broadcast %838 : vector<2x1xf32> to vector<2x128xf32>
    %840 = arith.mulf %835, %839 : vector<2x128xf32>
    %841 = vector.broadcast %35 : vector<1x128xf32> to vector<2x128xf32>
    %842 = arith.mulf %840, %841 : vector<2x128xf32>
    %843 = vector.broadcast %36 : vector<1x128xf32> to vector<2x128xf32>
    %844 = arith.addf %842, %843 : vector<2x128xf32>
    %cst_249 = arith.constant dense<0.000000e+00> : vector<2x128xf32>
    %845 = tpu.matmul %746, %32, %cst_249 {dimension_numbers = #tpu.dot_dimension_numbers<[1], [0], [0], [1], [0, 0, 1, 1], [], []>} : vector<2x32xf32>, vector<32x128xf32>, vector<2x128xf32> -> vector<2x128xf32>
    %846 = vector.broadcast %34 : vector<1x128xf32> to vector<2x128xf32>
    %847 = arith.addf %845, %846 : vector<2x128xf32>
    %cst_250 = arith.constant dense<0.000000e+00> : vector<2xf32>
    %848 = vector.multi_reduction <add>, %847, %cst_250 [1] : vector<2x128xf32> to vector<2xf32>
    %849 = vector.shape_cast %848 : vector<2xf32> to vector<2x1xf32>
    %cst_251 = arith.constant 1.280000e+02 : f32
    %850 = vector.broadcast %cst_251 : f32 to vector<2x1xf32>
    %851 = arith.divf %849, %850 : vector<2x1xf32>
    %852 = arith.mulf %847, %847 : vector<2x128xf32>
    %cst_252 = arith.constant dense<0.000000e+00> : vector<2xf32>
    %853 = vector.multi_reduction <add>, %852, %cst_252 [1] : vector<2x128xf32> to vector<2xf32>
    %854 = vector.shape_cast %853 : vector<2xf32> to vector<2x1xf32>
    %cst_253 = arith.constant 1.280000e+02 : f32
    %855 = vector.broadcast %cst_253 : f32 to vector<2x1xf32>
    %856 = arith.divf %854, %855 : vector<2x1xf32>
    %857 = arith.mulf %851, %851 : vector<2x1xf32>
    %858 = arith.subf %856, %857 : vector<2x1xf32>
    %cst_254 = arith.constant 0.000000e+00 : f32
    %859 = vector.broadcast %cst_254 : f32 to vector<2x1xf32>
    %860 = arith.maximumf %858, %859 : vector<2x1xf32>
    %861 = vector.broadcast %851 : vector<2x1xf32> to vector<2x128xf32>
    %862 = arith.subf %847, %861 : vector<2x128xf32>
    %cst_255 = arith.constant 9.99999974E-6 : f32
    %863 = vector.broadcast %cst_255 : f32 to vector<2x1xf32>
    %864 = arith.addf %860, %863 : vector<2x1xf32>
    %865 = math.rsqrt %864 : vector<2x1xf32>
    %866 = vector.broadcast %865 : vector<2x1xf32> to vector<2x128xf32>
    %867 = arith.mulf %862, %866 : vector<2x128xf32>
    %868 = vector.broadcast %37 : vector<1x128xf32> to vector<2x128xf32>
    %869 = arith.mulf %867, %868 : vector<2x128xf32>
    %870 = vector.broadcast %38 : vector<1x128xf32> to vector<2x128xf32>
    %871 = arith.addf %869, %870 : vector<2x128xf32>
    %872 = arith.addf %844, %871 : vector<2x128xf32>
    %cst_256 = arith.constant 5.000000e-01 : f32
    %873 = vector.broadcast %cst_256 : f32 to vector<2x128xf32>
    %874 = arith.mulf %873, %872 : vector<2x128xf32>
    %875 = arith.select %70, %874, %872 : vector<2x128xi1>, vector<2x128xf32>
    %876 = math.tanh %875 : vector<2x128xf32>
    %cst_257 = arith.constant 1.000000e+00 : f32
    %877 = vector.broadcast %cst_257 : f32 to vector<2x128xf32>
    %878 = arith.addf %877, %876 : vector<2x128xf32>
    %cst_258 = arith.constant 5.000000e-01 : f32
    %879 = vector.broadcast %cst_258 : f32 to vector<2x128xf32>
    %880 = arith.mulf %879, %878 : vector<2x128xf32>
    %881 = arith.select %70, %880, %876 : vector<2x128xi1>, vector<2x128xf32>
    %882 = vector.extract_strided_slice %881 {offsets = [0, 0], sizes = [2, 32], strides = [1, 1]} : vector<2x128xf32> to vector<2x32xf32>
    %883 = vector.extract_strided_slice %881 {offsets = [0, 32], sizes = [2, 32], strides = [1, 1]} : vector<2x128xf32> to vector<2x32xf32>
    %884 = vector.extract_strided_slice %881 {offsets = [0, 64], sizes = [2, 32], strides = [1, 1]} : vector<2x128xf32> to vector<2x32xf32>
    %885 = vector.extract_strided_slice %881 {offsets = [0, 96], sizes = [2, 32], strides = [1, 1]} : vector<2x128xf32> to vector<2x32xf32>
    %886 = arith.mulf %883, %720 : vector<2x32xf32>
    %887 = arith.mulf %882, %885 : vector<2x32xf32>
    %888 = arith.addf %886, %887 : vector<2x32xf32>
    %cst_259 = arith.constant dense<0.000000e+00> : vector<2xf32>
    %889 = vector.multi_reduction <add>, %888, %cst_259 [1] : vector<2x32xf32> to vector<2xf32>
    %890 = vector.shape_cast %889 : vector<2xf32> to vector<2x1xf32>
    %cst_260 = arith.constant 3.200000e+01 : f32
    %891 = vector.broadcast %cst_260 : f32 to vector<2x1xf32>
    %892 = arith.divf %890, %891 : vector<2x1xf32>
    %893 = arith.mulf %888, %888 : vector<2x32xf32>
    %cst_261 = arith.constant dense<0.000000e+00> : vector<2xf32>
    %894 = vector.multi_reduction <add>, %893, %cst_261 [1] : vector<2x32xf32> to vector<2xf32>
    %895 = vector.shape_cast %894 : vector<2xf32> to vector<2x1xf32>
    %cst_262 = arith.constant 3.200000e+01 : f32
    %896 = vector.broadcast %cst_262 : f32 to vector<2x1xf32>
    %897 = arith.divf %895, %896 : vector<2x1xf32>
    %898 = arith.mulf %892, %892 : vector<2x1xf32>
    %899 = arith.subf %897, %898 : vector<2x1xf32>
    %cst_263 = arith.constant 0.000000e+00 : f32
    %900 = vector.broadcast %cst_263 : f32 to vector<2x1xf32>
    %901 = arith.maximumf %899, %900 : vector<2x1xf32>
    %902 = vector.broadcast %892 : vector<2x1xf32> to vector<2x32xf32>
    %903 = arith.subf %888, %902 : vector<2x32xf32>
    %cst_264 = arith.constant 9.99999974E-6 : f32
    %904 = vector.broadcast %cst_264 : f32 to vector<2x1xf32>
    %905 = arith.addf %901, %904 : vector<2x1xf32>
    %906 = math.rsqrt %905 : vector<2x1xf32>
    %907 = vector.broadcast %906 : vector<2x1xf32> to vector<2x32xf32>
    %908 = arith.mulf %903, %907 : vector<2x32xf32>
    %909 = vector.broadcast %39 : vector<1x32xf32> to vector<2x32xf32>
    %910 = arith.mulf %908, %909 : vector<2x32xf32>
    %911 = vector.broadcast %40 : vector<1x32xf32> to vector<2x32xf32>
    %912 = arith.addf %910, %911 : vector<2x32xf32>
    %913 = math.tanh %912 : vector<2x32xf32>
    %914 = arith.mulf %884, %913 : vector<2x32xf32>
    %915 = vector.extract_strided_slice %67 {offsets = [10, 0], sizes = [2, 128], strides = [1, 1]} : vector<16x128xf32> to vector<2x128xf32>
    %cst_265 = arith.constant dense<0.000000e+00> : vector<2x128xf32>
    %916 = tpu.matmul %817, %22, %cst_265 {dimension_numbers = #tpu.dot_dimension_numbers<[1], [0], [0], [1], [0, 0, 1, 1], [], []>} : vector<2x32xf32>, vector<32x128xf32>, vector<2x128xf32> -> vector<2x128xf32>
    %917 = vector.broadcast %24 : vector<1x128xf32> to vector<2x128xf32>
    %918 = arith.addf %916, %917 : vector<2x128xf32>
    %cst_266 = arith.constant dense<0.000000e+00> : vector<2xf32>
    %919 = vector.multi_reduction <add>, %918, %cst_266 [1] : vector<2x128xf32> to vector<2xf32>
    %920 = vector.shape_cast %919 : vector<2xf32> to vector<2x1xf32>
    %cst_267 = arith.constant 1.280000e+02 : f32
    %921 = vector.broadcast %cst_267 : f32 to vector<2x1xf32>
    %922 = arith.divf %920, %921 : vector<2x1xf32>
    %923 = arith.mulf %918, %918 : vector<2x128xf32>
    %cst_268 = arith.constant dense<0.000000e+00> : vector<2xf32>
    %924 = vector.multi_reduction <add>, %923, %cst_268 [1] : vector<2x128xf32> to vector<2xf32>
    %925 = vector.shape_cast %924 : vector<2xf32> to vector<2x1xf32>
    %cst_269 = arith.constant 1.280000e+02 : f32
    %926 = vector.broadcast %cst_269 : f32 to vector<2x1xf32>
    %927 = arith.divf %925, %926 : vector<2x1xf32>
    %928 = arith.mulf %922, %922 : vector<2x1xf32>
    %929 = arith.subf %927, %928 : vector<2x1xf32>
    %cst_270 = arith.constant 0.000000e+00 : f32
    %930 = vector.broadcast %cst_270 : f32 to vector<2x1xf32>
    %931 = arith.maximumf %929, %930 : vector<2x1xf32>
    %932 = vector.broadcast %922 : vector<2x1xf32> to vector<2x128xf32>
    %933 = arith.subf %918, %932 : vector<2x128xf32>
    %cst_271 = arith.constant 9.99999974E-6 : f32
    %934 = vector.broadcast %cst_271 : f32 to vector<2x1xf32>
    %935 = arith.addf %931, %934 : vector<2x1xf32>
    %936 = math.rsqrt %935 : vector<2x1xf32>
    %937 = vector.broadcast %936 : vector<2x1xf32> to vector<2x128xf32>
    %938 = arith.mulf %933, %937 : vector<2x128xf32>
    %939 = vector.broadcast %27 : vector<1x128xf32> to vector<2x128xf32>
    %940 = arith.mulf %938, %939 : vector<2x128xf32>
    %941 = vector.broadcast %28 : vector<1x128xf32> to vector<2x128xf32>
    %942 = arith.addf %940, %941 : vector<2x128xf32>
    %943 = arith.addf %915, %942 : vector<2x128xf32>
    %cst_272 = arith.constant 5.000000e-01 : f32
    %944 = vector.broadcast %cst_272 : f32 to vector<2x128xf32>
    %945 = arith.mulf %944, %943 : vector<2x128xf32>
    %946 = arith.select %70, %945, %943 : vector<2x128xi1>, vector<2x128xf32>
    %947 = math.tanh %946 : vector<2x128xf32>
    %cst_273 = arith.constant 1.000000e+00 : f32
    %948 = vector.broadcast %cst_273 : f32 to vector<2x128xf32>
    %949 = arith.addf %948, %947 : vector<2x128xf32>
    %cst_274 = arith.constant 5.000000e-01 : f32
    %950 = vector.broadcast %cst_274 : f32 to vector<2x128xf32>
    %951 = arith.mulf %950, %949 : vector<2x128xf32>
    %952 = arith.select %70, %951, %947 : vector<2x128xi1>, vector<2x128xf32>
    %953 = vector.extract_strided_slice %952 {offsets = [0, 0], sizes = [2, 32], strides = [1, 1]} : vector<2x128xf32> to vector<2x32xf32>
    %954 = vector.extract_strided_slice %952 {offsets = [0, 32], sizes = [2, 32], strides = [1, 1]} : vector<2x128xf32> to vector<2x32xf32>
    %955 = vector.extract_strided_slice %952 {offsets = [0, 64], sizes = [2, 32], strides = [1, 1]} : vector<2x128xf32> to vector<2x32xf32>
    %956 = vector.extract_strided_slice %952 {offsets = [0, 96], sizes = [2, 32], strides = [1, 1]} : vector<2x128xf32> to vector<2x32xf32>
    %957 = arith.mulf %954, %791 : vector<2x32xf32>
    %958 = arith.mulf %953, %956 : vector<2x32xf32>
    %959 = arith.addf %957, %958 : vector<2x32xf32>
    %cst_275 = arith.constant dense<0.000000e+00> : vector<2xf32>
    %960 = vector.multi_reduction <add>, %959, %cst_275 [1] : vector<2x32xf32> to vector<2xf32>
    %961 = vector.shape_cast %960 : vector<2xf32> to vector<2x1xf32>
    %cst_276 = arith.constant 3.200000e+01 : f32
    %962 = vector.broadcast %cst_276 : f32 to vector<2x1xf32>
    %963 = arith.divf %961, %962 : vector<2x1xf32>
    %964 = arith.mulf %959, %959 : vector<2x32xf32>
    %cst_277 = arith.constant dense<0.000000e+00> : vector<2xf32>
    %965 = vector.multi_reduction <add>, %964, %cst_277 [1] : vector<2x32xf32> to vector<2xf32>
    %966 = vector.shape_cast %965 : vector<2xf32> to vector<2x1xf32>
    %cst_278 = arith.constant 3.200000e+01 : f32
    %967 = vector.broadcast %cst_278 : f32 to vector<2x1xf32>
    %968 = arith.divf %966, %967 : vector<2x1xf32>
    %969 = arith.mulf %963, %963 : vector<2x1xf32>
    %970 = arith.subf %968, %969 : vector<2x1xf32>
    %cst_279 = arith.constant 0.000000e+00 : f32
    %971 = vector.broadcast %cst_279 : f32 to vector<2x1xf32>
    %972 = arith.maximumf %970, %971 : vector<2x1xf32>
    %973 = vector.broadcast %963 : vector<2x1xf32> to vector<2x32xf32>
    %974 = arith.subf %959, %973 : vector<2x32xf32>
    %cst_280 = arith.constant 9.99999974E-6 : f32
    %975 = vector.broadcast %cst_280 : f32 to vector<2x1xf32>
    %976 = arith.addf %972, %975 : vector<2x1xf32>
    %977 = math.rsqrt %976 : vector<2x1xf32>
    %978 = vector.broadcast %977 : vector<2x1xf32> to vector<2x32xf32>
    %979 = arith.mulf %974, %978 : vector<2x32xf32>
    %980 = vector.broadcast %29 : vector<1x32xf32> to vector<2x32xf32>
    %981 = arith.mulf %979, %980 : vector<2x32xf32>
    %982 = vector.broadcast %30 : vector<1x32xf32> to vector<2x32xf32>
    %983 = arith.addf %981, %982 : vector<2x32xf32>
    %984 = math.tanh %983 : vector<2x32xf32>
    %985 = arith.mulf %955, %984 : vector<2x32xf32>
    %cst_281 = arith.constant dense<0.000000e+00> : vector<2x128xf32>
    %986 = tpu.matmul %985, %31, %cst_281 {dimension_numbers = #tpu.dot_dimension_numbers<[1], [0], [0], [1], [0, 0, 1, 1], [], []>} : vector<2x32xf32>, vector<32x128xf32>, vector<2x128xf32> -> vector<2x128xf32>
    %987 = vector.broadcast %33 : vector<1x128xf32> to vector<2x128xf32>
    %988 = arith.addf %986, %987 : vector<2x128xf32>
    %cst_282 = arith.constant dense<0.000000e+00> : vector<2xf32>
    %989 = vector.multi_reduction <add>, %988, %cst_282 [1] : vector<2x128xf32> to vector<2xf32>
    %990 = vector.shape_cast %989 : vector<2xf32> to vector<2x1xf32>
    %cst_283 = arith.constant 1.280000e+02 : f32
    %991 = vector.broadcast %cst_283 : f32 to vector<2x1xf32>
    %992 = arith.divf %990, %991 : vector<2x1xf32>
    %993 = arith.mulf %988, %988 : vector<2x128xf32>
    %cst_284 = arith.constant dense<0.000000e+00> : vector<2xf32>
    %994 = vector.multi_reduction <add>, %993, %cst_284 [1] : vector<2x128xf32> to vector<2xf32>
    %995 = vector.shape_cast %994 : vector<2xf32> to vector<2x1xf32>
    %cst_285 = arith.constant 1.280000e+02 : f32
    %996 = vector.broadcast %cst_285 : f32 to vector<2x1xf32>
    %997 = arith.divf %995, %996 : vector<2x1xf32>
    %998 = arith.mulf %992, %992 : vector<2x1xf32>
    %999 = arith.subf %997, %998 : vector<2x1xf32>
    %cst_286 = arith.constant 0.000000e+00 : f32
    %1000 = vector.broadcast %cst_286 : f32 to vector<2x1xf32>
    %1001 = arith.maximumf %999, %1000 : vector<2x1xf32>
    %1002 = vector.broadcast %992 : vector<2x1xf32> to vector<2x128xf32>
    %1003 = arith.subf %988, %1002 : vector<2x128xf32>
    %cst_287 = arith.constant 9.99999974E-6 : f32
    %1004 = vector.broadcast %cst_287 : f32 to vector<2x1xf32>
    %1005 = arith.addf %1001, %1004 : vector<2x1xf32>
    %1006 = math.rsqrt %1005 : vector<2x1xf32>
    %1007 = vector.broadcast %1006 : vector<2x1xf32> to vector<2x128xf32>
    %1008 = arith.mulf %1003, %1007 : vector<2x128xf32>
    %1009 = vector.broadcast %35 : vector<1x128xf32> to vector<2x128xf32>
    %1010 = arith.mulf %1008, %1009 : vector<2x128xf32>
    %1011 = vector.broadcast %36 : vector<1x128xf32> to vector<2x128xf32>
    %1012 = arith.addf %1010, %1011 : vector<2x128xf32>
    %cst_288 = arith.constant dense<0.000000e+00> : vector<2x128xf32>
    %1013 = tpu.matmul %914, %32, %cst_288 {dimension_numbers = #tpu.dot_dimension_numbers<[1], [0], [0], [1], [0, 0, 1, 1], [], []>} : vector<2x32xf32>, vector<32x128xf32>, vector<2x128xf32> -> vector<2x128xf32>
    %1014 = vector.broadcast %34 : vector<1x128xf32> to vector<2x128xf32>
    %1015 = arith.addf %1013, %1014 : vector<2x128xf32>
    %cst_289 = arith.constant dense<0.000000e+00> : vector<2xf32>
    %1016 = vector.multi_reduction <add>, %1015, %cst_289 [1] : vector<2x128xf32> to vector<2xf32>
    %1017 = vector.shape_cast %1016 : vector<2xf32> to vector<2x1xf32>
    %cst_290 = arith.constant 1.280000e+02 : f32
    %1018 = vector.broadcast %cst_290 : f32 to vector<2x1xf32>
    %1019 = arith.divf %1017, %1018 : vector<2x1xf32>
    %1020 = arith.mulf %1015, %1015 : vector<2x128xf32>
    %cst_291 = arith.constant dense<0.000000e+00> : vector<2xf32>
    %1021 = vector.multi_reduction <add>, %1020, %cst_291 [1] : vector<2x128xf32> to vector<2xf32>
    %1022 = vector.shape_cast %1021 : vector<2xf32> to vector<2x1xf32>
    %cst_292 = arith.constant 1.280000e+02 : f32
    %1023 = vector.broadcast %cst_292 : f32 to vector<2x1xf32>
    %1024 = arith.divf %1022, %1023 : vector<2x1xf32>
    %1025 = arith.mulf %1019, %1019 : vector<2x1xf32>
    %1026 = arith.subf %1024, %1025 : vector<2x1xf32>
    %cst_293 = arith.constant 0.000000e+00 : f32
    %1027 = vector.broadcast %cst_293 : f32 to vector<2x1xf32>
    %1028 = arith.maximumf %1026, %1027 : vector<2x1xf32>
    %1029 = vector.broadcast %1019 : vector<2x1xf32> to vector<2x128xf32>
    %1030 = arith.subf %1015, %1029 : vector<2x128xf32>
    %cst_294 = arith.constant 9.99999974E-6 : f32
    %1031 = vector.broadcast %cst_294 : f32 to vector<2x1xf32>
    %1032 = arith.addf %1028, %1031 : vector<2x1xf32>
    %1033 = math.rsqrt %1032 : vector<2x1xf32>
    %1034 = vector.broadcast %1033 : vector<2x1xf32> to vector<2x128xf32>
    %1035 = arith.mulf %1030, %1034 : vector<2x128xf32>
    %1036 = vector.broadcast %37 : vector<1x128xf32> to vector<2x128xf32>
    %1037 = arith.mulf %1035, %1036 : vector<2x128xf32>
    %1038 = vector.broadcast %38 : vector<1x128xf32> to vector<2x128xf32>
    %1039 = arith.addf %1037, %1038 : vector<2x128xf32>
    %1040 = arith.addf %1012, %1039 : vector<2x128xf32>
    %cst_295 = arith.constant 5.000000e-01 : f32
    %1041 = vector.broadcast %cst_295 : f32 to vector<2x128xf32>
    %1042 = arith.mulf %1041, %1040 : vector<2x128xf32>
    %1043 = arith.select %70, %1042, %1040 : vector<2x128xi1>, vector<2x128xf32>
    %1044 = math.tanh %1043 : vector<2x128xf32>
    %cst_296 = arith.constant 1.000000e+00 : f32
    %1045 = vector.broadcast %cst_296 : f32 to vector<2x128xf32>
    %1046 = arith.addf %1045, %1044 : vector<2x128xf32>
    %cst_297 = arith.constant 5.000000e-01 : f32
    %1047 = vector.broadcast %cst_297 : f32 to vector<2x128xf32>
    %1048 = arith.mulf %1047, %1046 : vector<2x128xf32>
    %1049 = arith.select %70, %1048, %1044 : vector<2x128xi1>, vector<2x128xf32>
    %1050 = vector.extract_strided_slice %1049 {offsets = [0, 0], sizes = [2, 32], strides = [1, 1]} : vector<2x128xf32> to vector<2x32xf32>
    %1051 = vector.extract_strided_slice %1049 {offsets = [0, 32], sizes = [2, 32], strides = [1, 1]} : vector<2x128xf32> to vector<2x32xf32>
    %1052 = vector.extract_strided_slice %1049 {offsets = [0, 64], sizes = [2, 32], strides = [1, 1]} : vector<2x128xf32> to vector<2x32xf32>
    %1053 = vector.extract_strided_slice %1049 {offsets = [0, 96], sizes = [2, 32], strides = [1, 1]} : vector<2x128xf32> to vector<2x32xf32>
    %1054 = arith.mulf %1051, %888 : vector<2x32xf32>
    %1055 = arith.mulf %1050, %1053 : vector<2x32xf32>
    %1056 = arith.addf %1054, %1055 : vector<2x32xf32>
    %cst_298 = arith.constant dense<0.000000e+00> : vector<2xf32>
    %1057 = vector.multi_reduction <add>, %1056, %cst_298 [1] : vector<2x32xf32> to vector<2xf32>
    %1058 = vector.shape_cast %1057 : vector<2xf32> to vector<2x1xf32>
    %cst_299 = arith.constant 3.200000e+01 : f32
    %1059 = vector.broadcast %cst_299 : f32 to vector<2x1xf32>
    %1060 = arith.divf %1058, %1059 : vector<2x1xf32>
    %1061 = arith.mulf %1056, %1056 : vector<2x32xf32>
    %cst_300 = arith.constant dense<0.000000e+00> : vector<2xf32>
    %1062 = vector.multi_reduction <add>, %1061, %cst_300 [1] : vector<2x32xf32> to vector<2xf32>
    %1063 = vector.shape_cast %1062 : vector<2xf32> to vector<2x1xf32>
    %cst_301 = arith.constant 3.200000e+01 : f32
    %1064 = vector.broadcast %cst_301 : f32 to vector<2x1xf32>
    %1065 = arith.divf %1063, %1064 : vector<2x1xf32>
    %1066 = arith.mulf %1060, %1060 : vector<2x1xf32>
    %1067 = arith.subf %1065, %1066 : vector<2x1xf32>
    %cst_302 = arith.constant 0.000000e+00 : f32
    %1068 = vector.broadcast %cst_302 : f32 to vector<2x1xf32>
    %1069 = arith.maximumf %1067, %1068 : vector<2x1xf32>
    %1070 = vector.broadcast %1060 : vector<2x1xf32> to vector<2x32xf32>
    %1071 = arith.subf %1056, %1070 : vector<2x32xf32>
    %cst_303 = arith.constant 9.99999974E-6 : f32
    %1072 = vector.broadcast %cst_303 : f32 to vector<2x1xf32>
    %1073 = arith.addf %1069, %1072 : vector<2x1xf32>
    %1074 = math.rsqrt %1073 : vector<2x1xf32>
    %1075 = vector.broadcast %1074 : vector<2x1xf32> to vector<2x32xf32>
    %1076 = arith.mulf %1071, %1075 : vector<2x32xf32>
    %1077 = vector.broadcast %39 : vector<1x32xf32> to vector<2x32xf32>
    %1078 = arith.mulf %1076, %1077 : vector<2x32xf32>
    %1079 = vector.broadcast %40 : vector<1x32xf32> to vector<2x32xf32>
    %1080 = arith.addf %1078, %1079 : vector<2x32xf32>
    %1081 = math.tanh %1080 : vector<2x32xf32>
    %1082 = arith.mulf %1052, %1081 : vector<2x32xf32>
    %1083 = vector.extract_strided_slice %67 {offsets = [12, 0], sizes = [2, 128], strides = [1, 1]} : vector<16x128xf32> to vector<2x128xf32>
    %cst_304 = arith.constant dense<0.000000e+00> : vector<2x128xf32>
    %1084 = tpu.matmul %985, %22, %cst_304 {dimension_numbers = #tpu.dot_dimension_numbers<[1], [0], [0], [1], [0, 0, 1, 1], [], []>} : vector<2x32xf32>, vector<32x128xf32>, vector<2x128xf32> -> vector<2x128xf32>
    %1085 = vector.broadcast %24 : vector<1x128xf32> to vector<2x128xf32>
    %1086 = arith.addf %1084, %1085 : vector<2x128xf32>
    %cst_305 = arith.constant dense<0.000000e+00> : vector<2xf32>
    %1087 = vector.multi_reduction <add>, %1086, %cst_305 [1] : vector<2x128xf32> to vector<2xf32>
    %1088 = vector.shape_cast %1087 : vector<2xf32> to vector<2x1xf32>
    %cst_306 = arith.constant 1.280000e+02 : f32
    %1089 = vector.broadcast %cst_306 : f32 to vector<2x1xf32>
    %1090 = arith.divf %1088, %1089 : vector<2x1xf32>
    %1091 = arith.mulf %1086, %1086 : vector<2x128xf32>
    %cst_307 = arith.constant dense<0.000000e+00> : vector<2xf32>
    %1092 = vector.multi_reduction <add>, %1091, %cst_307 [1] : vector<2x128xf32> to vector<2xf32>
    %1093 = vector.shape_cast %1092 : vector<2xf32> to vector<2x1xf32>
    %cst_308 = arith.constant 1.280000e+02 : f32
    %1094 = vector.broadcast %cst_308 : f32 to vector<2x1xf32>
    %1095 = arith.divf %1093, %1094 : vector<2x1xf32>
    %1096 = arith.mulf %1090, %1090 : vector<2x1xf32>
    %1097 = arith.subf %1095, %1096 : vector<2x1xf32>
    %cst_309 = arith.constant 0.000000e+00 : f32
    %1098 = vector.broadcast %cst_309 : f32 to vector<2x1xf32>
    %1099 = arith.maximumf %1097, %1098 : vector<2x1xf32>
    %1100 = vector.broadcast %1090 : vector<2x1xf32> to vector<2x128xf32>
    %1101 = arith.subf %1086, %1100 : vector<2x128xf32>
    %cst_310 = arith.constant 9.99999974E-6 : f32
    %1102 = vector.broadcast %cst_310 : f32 to vector<2x1xf32>
    %1103 = arith.addf %1099, %1102 : vector<2x1xf32>
    %1104 = math.rsqrt %1103 : vector<2x1xf32>
    %1105 = vector.broadcast %1104 : vector<2x1xf32> to vector<2x128xf32>
    %1106 = arith.mulf %1101, %1105 : vector<2x128xf32>
    %1107 = vector.broadcast %27 : vector<1x128xf32> to vector<2x128xf32>
    %1108 = arith.mulf %1106, %1107 : vector<2x128xf32>
    %1109 = vector.broadcast %28 : vector<1x128xf32> to vector<2x128xf32>
    %1110 = arith.addf %1108, %1109 : vector<2x128xf32>
    %1111 = arith.addf %1083, %1110 : vector<2x128xf32>
    %cst_311 = arith.constant 5.000000e-01 : f32
    %1112 = vector.broadcast %cst_311 : f32 to vector<2x128xf32>
    %1113 = arith.mulf %1112, %1111 : vector<2x128xf32>
    %1114 = arith.select %70, %1113, %1111 : vector<2x128xi1>, vector<2x128xf32>
    %1115 = math.tanh %1114 : vector<2x128xf32>
    %cst_312 = arith.constant 1.000000e+00 : f32
    %1116 = vector.broadcast %cst_312 : f32 to vector<2x128xf32>
    %1117 = arith.addf %1116, %1115 : vector<2x128xf32>
    %cst_313 = arith.constant 5.000000e-01 : f32
    %1118 = vector.broadcast %cst_313 : f32 to vector<2x128xf32>
    %1119 = arith.mulf %1118, %1117 : vector<2x128xf32>
    %1120 = arith.select %70, %1119, %1115 : vector<2x128xi1>, vector<2x128xf32>
    %1121 = vector.extract_strided_slice %1120 {offsets = [0, 0], sizes = [2, 32], strides = [1, 1]} : vector<2x128xf32> to vector<2x32xf32>
    %1122 = vector.extract_strided_slice %1120 {offsets = [0, 32], sizes = [2, 32], strides = [1, 1]} : vector<2x128xf32> to vector<2x32xf32>
    %1123 = vector.extract_strided_slice %1120 {offsets = [0, 64], sizes = [2, 32], strides = [1, 1]} : vector<2x128xf32> to vector<2x32xf32>
    %1124 = vector.extract_strided_slice %1120 {offsets = [0, 96], sizes = [2, 32], strides = [1, 1]} : vector<2x128xf32> to vector<2x32xf32>
    %1125 = arith.mulf %1122, %959 : vector<2x32xf32>
    %1126 = arith.mulf %1121, %1124 : vector<2x32xf32>
    %1127 = arith.addf %1125, %1126 : vector<2x32xf32>
    %cst_314 = arith.constant dense<0.000000e+00> : vector<2xf32>
    %1128 = vector.multi_reduction <add>, %1127, %cst_314 [1] : vector<2x32xf32> to vector<2xf32>
    %1129 = vector.shape_cast %1128 : vector<2xf32> to vector<2x1xf32>
    %cst_315 = arith.constant 3.200000e+01 : f32
    %1130 = vector.broadcast %cst_315 : f32 to vector<2x1xf32>
    %1131 = arith.divf %1129, %1130 : vector<2x1xf32>
    %1132 = arith.mulf %1127, %1127 : vector<2x32xf32>
    %cst_316 = arith.constant dense<0.000000e+00> : vector<2xf32>
    %1133 = vector.multi_reduction <add>, %1132, %cst_316 [1] : vector<2x32xf32> to vector<2xf32>
    %1134 = vector.shape_cast %1133 : vector<2xf32> to vector<2x1xf32>
    %cst_317 = arith.constant 3.200000e+01 : f32
    %1135 = vector.broadcast %cst_317 : f32 to vector<2x1xf32>
    %1136 = arith.divf %1134, %1135 : vector<2x1xf32>
    %1137 = arith.mulf %1131, %1131 : vector<2x1xf32>
    %1138 = arith.subf %1136, %1137 : vector<2x1xf32>
    %cst_318 = arith.constant 0.000000e+00 : f32
    %1139 = vector.broadcast %cst_318 : f32 to vector<2x1xf32>
    %1140 = arith.maximumf %1138, %1139 : vector<2x1xf32>
    %1141 = vector.broadcast %1131 : vector<2x1xf32> to vector<2x32xf32>
    %1142 = arith.subf %1127, %1141 : vector<2x32xf32>
    %cst_319 = arith.constant 9.99999974E-6 : f32
    %1143 = vector.broadcast %cst_319 : f32 to vector<2x1xf32>
    %1144 = arith.addf %1140, %1143 : vector<2x1xf32>
    %1145 = math.rsqrt %1144 : vector<2x1xf32>
    %1146 = vector.broadcast %1145 : vector<2x1xf32> to vector<2x32xf32>
    %1147 = arith.mulf %1142, %1146 : vector<2x32xf32>
    %1148 = vector.broadcast %29 : vector<1x32xf32> to vector<2x32xf32>
    %1149 = arith.mulf %1147, %1148 : vector<2x32xf32>
    %1150 = vector.broadcast %30 : vector<1x32xf32> to vector<2x32xf32>
    %1151 = arith.addf %1149, %1150 : vector<2x32xf32>
    %1152 = math.tanh %1151 : vector<2x32xf32>
    %1153 = arith.mulf %1123, %1152 : vector<2x32xf32>
    %cst_320 = arith.constant dense<0.000000e+00> : vector<2x128xf32>
    %1154 = tpu.matmul %1153, %31, %cst_320 {dimension_numbers = #tpu.dot_dimension_numbers<[1], [0], [0], [1], [0, 0, 1, 1], [], []>} : vector<2x32xf32>, vector<32x128xf32>, vector<2x128xf32> -> vector<2x128xf32>
    %1155 = vector.broadcast %33 : vector<1x128xf32> to vector<2x128xf32>
    %1156 = arith.addf %1154, %1155 : vector<2x128xf32>
    %cst_321 = arith.constant dense<0.000000e+00> : vector<2xf32>
    %1157 = vector.multi_reduction <add>, %1156, %cst_321 [1] : vector<2x128xf32> to vector<2xf32>
    %1158 = vector.shape_cast %1157 : vector<2xf32> to vector<2x1xf32>
    %cst_322 = arith.constant 1.280000e+02 : f32
    %1159 = vector.broadcast %cst_322 : f32 to vector<2x1xf32>
    %1160 = arith.divf %1158, %1159 : vector<2x1xf32>
    %1161 = arith.mulf %1156, %1156 : vector<2x128xf32>
    %cst_323 = arith.constant dense<0.000000e+00> : vector<2xf32>
    %1162 = vector.multi_reduction <add>, %1161, %cst_323 [1] : vector<2x128xf32> to vector<2xf32>
    %1163 = vector.shape_cast %1162 : vector<2xf32> to vector<2x1xf32>
    %cst_324 = arith.constant 1.280000e+02 : f32
    %1164 = vector.broadcast %cst_324 : f32 to vector<2x1xf32>
    %1165 = arith.divf %1163, %1164 : vector<2x1xf32>
    %1166 = arith.mulf %1160, %1160 : vector<2x1xf32>
    %1167 = arith.subf %1165, %1166 : vector<2x1xf32>
    %cst_325 = arith.constant 0.000000e+00 : f32
    %1168 = vector.broadcast %cst_325 : f32 to vector<2x1xf32>
    %1169 = arith.maximumf %1167, %1168 : vector<2x1xf32>
    %1170 = vector.broadcast %1160 : vector<2x1xf32> to vector<2x128xf32>
    %1171 = arith.subf %1156, %1170 : vector<2x128xf32>
    %cst_326 = arith.constant 9.99999974E-6 : f32
    %1172 = vector.broadcast %cst_326 : f32 to vector<2x1xf32>
    %1173 = arith.addf %1169, %1172 : vector<2x1xf32>
    %1174 = math.rsqrt %1173 : vector<2x1xf32>
    %1175 = vector.broadcast %1174 : vector<2x1xf32> to vector<2x128xf32>
    %1176 = arith.mulf %1171, %1175 : vector<2x128xf32>
    %1177 = vector.broadcast %35 : vector<1x128xf32> to vector<2x128xf32>
    %1178 = arith.mulf %1176, %1177 : vector<2x128xf32>
    %1179 = vector.broadcast %36 : vector<1x128xf32> to vector<2x128xf32>
    %1180 = arith.addf %1178, %1179 : vector<2x128xf32>
    %cst_327 = arith.constant dense<0.000000e+00> : vector<2x128xf32>
    %1181 = tpu.matmul %1082, %32, %cst_327 {dimension_numbers = #tpu.dot_dimension_numbers<[1], [0], [0], [1], [0, 0, 1, 1], [], []>} : vector<2x32xf32>, vector<32x128xf32>, vector<2x128xf32> -> vector<2x128xf32>
    %1182 = vector.broadcast %34 : vector<1x128xf32> to vector<2x128xf32>
    %1183 = arith.addf %1181, %1182 : vector<2x128xf32>
    %cst_328 = arith.constant dense<0.000000e+00> : vector<2xf32>
    %1184 = vector.multi_reduction <add>, %1183, %cst_328 [1] : vector<2x128xf32> to vector<2xf32>
    %1185 = vector.shape_cast %1184 : vector<2xf32> to vector<2x1xf32>
    %cst_329 = arith.constant 1.280000e+02 : f32
    %1186 = vector.broadcast %cst_329 : f32 to vector<2x1xf32>
    %1187 = arith.divf %1185, %1186 : vector<2x1xf32>
    %1188 = arith.mulf %1183, %1183 : vector<2x128xf32>
    %cst_330 = arith.constant dense<0.000000e+00> : vector<2xf32>
    %1189 = vector.multi_reduction <add>, %1188, %cst_330 [1] : vector<2x128xf32> to vector<2xf32>
    %1190 = vector.shape_cast %1189 : vector<2xf32> to vector<2x1xf32>
    %cst_331 = arith.constant 1.280000e+02 : f32
    %1191 = vector.broadcast %cst_331 : f32 to vector<2x1xf32>
    %1192 = arith.divf %1190, %1191 : vector<2x1xf32>
    %1193 = arith.mulf %1187, %1187 : vector<2x1xf32>
    %1194 = arith.subf %1192, %1193 : vector<2x1xf32>
    %cst_332 = arith.constant 0.000000e+00 : f32
    %1195 = vector.broadcast %cst_332 : f32 to vector<2x1xf32>
    %1196 = arith.maximumf %1194, %1195 : vector<2x1xf32>
    %1197 = vector.broadcast %1187 : vector<2x1xf32> to vector<2x128xf32>
    %1198 = arith.subf %1183, %1197 : vector<2x128xf32>
    %cst_333 = arith.constant 9.99999974E-6 : f32
    %1199 = vector.broadcast %cst_333 : f32 to vector<2x1xf32>
    %1200 = arith.addf %1196, %1199 : vector<2x1xf32>
    %1201 = math.rsqrt %1200 : vector<2x1xf32>
    %1202 = vector.broadcast %1201 : vector<2x1xf32> to vector<2x128xf32>
    %1203 = arith.mulf %1198, %1202 : vector<2x128xf32>
    %1204 = vector.broadcast %37 : vector<1x128xf32> to vector<2x128xf32>
    %1205 = arith.mulf %1203, %1204 : vector<2x128xf32>
    %1206 = vector.broadcast %38 : vector<1x128xf32> to vector<2x128xf32>
    %1207 = arith.addf %1205, %1206 : vector<2x128xf32>
    %1208 = arith.addf %1180, %1207 : vector<2x128xf32>
    %cst_334 = arith.constant 5.000000e-01 : f32
    %1209 = vector.broadcast %cst_334 : f32 to vector<2x128xf32>
    %1210 = arith.mulf %1209, %1208 : vector<2x128xf32>
    %1211 = arith.select %70, %1210, %1208 : vector<2x128xi1>, vector<2x128xf32>
    %1212 = math.tanh %1211 : vector<2x128xf32>
    %cst_335 = arith.constant 1.000000e+00 : f32
    %1213 = vector.broadcast %cst_335 : f32 to vector<2x128xf32>
    %1214 = arith.addf %1213, %1212 : vector<2x128xf32>
    %cst_336 = arith.constant 5.000000e-01 : f32
    %1215 = vector.broadcast %cst_336 : f32 to vector<2x128xf32>
    %1216 = arith.mulf %1215, %1214 : vector<2x128xf32>
    %1217 = arith.select %70, %1216, %1212 : vector<2x128xi1>, vector<2x128xf32>
    %1218 = vector.extract_strided_slice %1217 {offsets = [0, 0], sizes = [2, 32], strides = [1, 1]} : vector<2x128xf32> to vector<2x32xf32>
    %1219 = vector.extract_strided_slice %1217 {offsets = [0, 32], sizes = [2, 32], strides = [1, 1]} : vector<2x128xf32> to vector<2x32xf32>
    %1220 = vector.extract_strided_slice %1217 {offsets = [0, 64], sizes = [2, 32], strides = [1, 1]} : vector<2x128xf32> to vector<2x32xf32>
    %1221 = vector.extract_strided_slice %1217 {offsets = [0, 96], sizes = [2, 32], strides = [1, 1]} : vector<2x128xf32> to vector<2x32xf32>
    %1222 = arith.mulf %1219, %1056 : vector<2x32xf32>
    %1223 = arith.mulf %1218, %1221 : vector<2x32xf32>
    %1224 = arith.addf %1222, %1223 : vector<2x32xf32>
    %cst_337 = arith.constant dense<0.000000e+00> : vector<2xf32>
    %1225 = vector.multi_reduction <add>, %1224, %cst_337 [1] : vector<2x32xf32> to vector<2xf32>
    %1226 = vector.shape_cast %1225 : vector<2xf32> to vector<2x1xf32>
    %cst_338 = arith.constant 3.200000e+01 : f32
    %1227 = vector.broadcast %cst_338 : f32 to vector<2x1xf32>
    %1228 = arith.divf %1226, %1227 : vector<2x1xf32>
    %1229 = arith.mulf %1224, %1224 : vector<2x32xf32>
    %cst_339 = arith.constant dense<0.000000e+00> : vector<2xf32>
    %1230 = vector.multi_reduction <add>, %1229, %cst_339 [1] : vector<2x32xf32> to vector<2xf32>
    %1231 = vector.shape_cast %1230 : vector<2xf32> to vector<2x1xf32>
    %cst_340 = arith.constant 3.200000e+01 : f32
    %1232 = vector.broadcast %cst_340 : f32 to vector<2x1xf32>
    %1233 = arith.divf %1231, %1232 : vector<2x1xf32>
    %1234 = arith.mulf %1228, %1228 : vector<2x1xf32>
    %1235 = arith.subf %1233, %1234 : vector<2x1xf32>
    %cst_341 = arith.constant 0.000000e+00 : f32
    %1236 = vector.broadcast %cst_341 : f32 to vector<2x1xf32>
    %1237 = arith.maximumf %1235, %1236 : vector<2x1xf32>
    %1238 = vector.broadcast %1228 : vector<2x1xf32> to vector<2x32xf32>
    %1239 = arith.subf %1224, %1238 : vector<2x32xf32>
    %cst_342 = arith.constant 9.99999974E-6 : f32
    %1240 = vector.broadcast %cst_342 : f32 to vector<2x1xf32>
    %1241 = arith.addf %1237, %1240 : vector<2x1xf32>
    %1242 = math.rsqrt %1241 : vector<2x1xf32>
    %1243 = vector.broadcast %1242 : vector<2x1xf32> to vector<2x32xf32>
    %1244 = arith.mulf %1239, %1243 : vector<2x32xf32>
    %1245 = vector.broadcast %39 : vector<1x32xf32> to vector<2x32xf32>
    %1246 = arith.mulf %1244, %1245 : vector<2x32xf32>
    %1247 = vector.broadcast %40 : vector<1x32xf32> to vector<2x32xf32>
    %1248 = arith.addf %1246, %1247 : vector<2x32xf32>
    %1249 = math.tanh %1248 : vector<2x32xf32>
    %1250 = arith.mulf %1220, %1249 : vector<2x32xf32>
    %1251 = vector.extract_strided_slice %67 {offsets = [14, 0], sizes = [2, 128], strides = [1, 1]} : vector<16x128xf32> to vector<2x128xf32>
    %cst_343 = arith.constant dense<0.000000e+00> : vector<2x128xf32>
    %1252 = tpu.matmul %1153, %22, %cst_343 {dimension_numbers = #tpu.dot_dimension_numbers<[1], [0], [0], [1], [0, 0, 1, 1], [], []>} : vector<2x32xf32>, vector<32x128xf32>, vector<2x128xf32> -> vector<2x128xf32>
    %1253 = vector.broadcast %24 : vector<1x128xf32> to vector<2x128xf32>
    %1254 = arith.addf %1252, %1253 : vector<2x128xf32>
    %cst_344 = arith.constant dense<0.000000e+00> : vector<2xf32>
    %1255 = vector.multi_reduction <add>, %1254, %cst_344 [1] : vector<2x128xf32> to vector<2xf32>
    %1256 = vector.shape_cast %1255 : vector<2xf32> to vector<2x1xf32>
    %cst_345 = arith.constant 1.280000e+02 : f32
    %1257 = vector.broadcast %cst_345 : f32 to vector<2x1xf32>
    %1258 = arith.divf %1256, %1257 : vector<2x1xf32>
    %1259 = arith.mulf %1254, %1254 : vector<2x128xf32>
    %cst_346 = arith.constant dense<0.000000e+00> : vector<2xf32>
    %1260 = vector.multi_reduction <add>, %1259, %cst_346 [1] : vector<2x128xf32> to vector<2xf32>
    %1261 = vector.shape_cast %1260 : vector<2xf32> to vector<2x1xf32>
    %cst_347 = arith.constant 1.280000e+02 : f32
    %1262 = vector.broadcast %cst_347 : f32 to vector<2x1xf32>
    %1263 = arith.divf %1261, %1262 : vector<2x1xf32>
    %1264 = arith.mulf %1258, %1258 : vector<2x1xf32>
    %1265 = arith.subf %1263, %1264 : vector<2x1xf32>
    %cst_348 = arith.constant 0.000000e+00 : f32
    %1266 = vector.broadcast %cst_348 : f32 to vector<2x1xf32>
    %1267 = arith.maximumf %1265, %1266 : vector<2x1xf32>
    %1268 = vector.broadcast %1258 : vector<2x1xf32> to vector<2x128xf32>
    %1269 = arith.subf %1254, %1268 : vector<2x128xf32>
    %cst_349 = arith.constant 9.99999974E-6 : f32
    %1270 = vector.broadcast %cst_349 : f32 to vector<2x1xf32>
    %1271 = arith.addf %1267, %1270 : vector<2x1xf32>
    %1272 = math.rsqrt %1271 : vector<2x1xf32>
    %1273 = vector.broadcast %1272 : vector<2x1xf32> to vector<2x128xf32>
    %1274 = arith.mulf %1269, %1273 : vector<2x128xf32>
    %1275 = vector.broadcast %27 : vector<1x128xf32> to vector<2x128xf32>
    %1276 = arith.mulf %1274, %1275 : vector<2x128xf32>
    %1277 = vector.broadcast %28 : vector<1x128xf32> to vector<2x128xf32>
    %1278 = arith.addf %1276, %1277 : vector<2x128xf32>
    %1279 = arith.addf %1251, %1278 : vector<2x128xf32>
    %cst_350 = arith.constant 5.000000e-01 : f32
    %1280 = vector.broadcast %cst_350 : f32 to vector<2x128xf32>
    %1281 = arith.mulf %1280, %1279 : vector<2x128xf32>
    %1282 = arith.select %70, %1281, %1279 : vector<2x128xi1>, vector<2x128xf32>
    %1283 = math.tanh %1282 : vector<2x128xf32>
    %cst_351 = arith.constant 1.000000e+00 : f32
    %1284 = vector.broadcast %cst_351 : f32 to vector<2x128xf32>
    %1285 = arith.addf %1284, %1283 : vector<2x128xf32>
    %cst_352 = arith.constant 5.000000e-01 : f32
    %1286 = vector.broadcast %cst_352 : f32 to vector<2x128xf32>
    %1287 = arith.mulf %1286, %1285 : vector<2x128xf32>
    %1288 = arith.select %70, %1287, %1283 : vector<2x128xi1>, vector<2x128xf32>
    %1289 = vector.extract_strided_slice %1288 {offsets = [0, 0], sizes = [2, 32], strides = [1, 1]} : vector<2x128xf32> to vector<2x32xf32>
    %1290 = vector.extract_strided_slice %1288 {offsets = [0, 32], sizes = [2, 32], strides = [1, 1]} : vector<2x128xf32> to vector<2x32xf32>
    %1291 = vector.extract_strided_slice %1288 {offsets = [0, 64], sizes = [2, 32], strides = [1, 1]} : vector<2x128xf32> to vector<2x32xf32>
    %1292 = vector.extract_strided_slice %1288 {offsets = [0, 96], sizes = [2, 32], strides = [1, 1]} : vector<2x128xf32> to vector<2x32xf32>
    %1293 = arith.mulf %1290, %1127 : vector<2x32xf32>
    %1294 = arith.mulf %1289, %1292 : vector<2x32xf32>
    %1295 = arith.addf %1293, %1294 : vector<2x32xf32>
    %cst_353 = arith.constant dense<0.000000e+00> : vector<2xf32>
    %1296 = vector.multi_reduction <add>, %1295, %cst_353 [1] : vector<2x32xf32> to vector<2xf32>
    %1297 = vector.shape_cast %1296 : vector<2xf32> to vector<2x1xf32>
    %cst_354 = arith.constant 3.200000e+01 : f32
    %1298 = vector.broadcast %cst_354 : f32 to vector<2x1xf32>
    %1299 = arith.divf %1297, %1298 : vector<2x1xf32>
    %1300 = arith.mulf %1295, %1295 : vector<2x32xf32>
    %cst_355 = arith.constant dense<0.000000e+00> : vector<2xf32>
    %1301 = vector.multi_reduction <add>, %1300, %cst_355 [1] : vector<2x32xf32> to vector<2xf32>
    %1302 = vector.shape_cast %1301 : vector<2xf32> to vector<2x1xf32>
    %cst_356 = arith.constant 3.200000e+01 : f32
    %1303 = vector.broadcast %cst_356 : f32 to vector<2x1xf32>
    %1304 = arith.divf %1302, %1303 : vector<2x1xf32>
    %1305 = arith.mulf %1299, %1299 : vector<2x1xf32>
    %1306 = arith.subf %1304, %1305 : vector<2x1xf32>
    %cst_357 = arith.constant 0.000000e+00 : f32
    %1307 = vector.broadcast %cst_357 : f32 to vector<2x1xf32>
    %1308 = arith.maximumf %1306, %1307 : vector<2x1xf32>
    %1309 = vector.broadcast %1299 : vector<2x1xf32> to vector<2x32xf32>
    %1310 = arith.subf %1295, %1309 : vector<2x32xf32>
    %cst_358 = arith.constant 9.99999974E-6 : f32
    %1311 = vector.broadcast %cst_358 : f32 to vector<2x1xf32>
    %1312 = arith.addf %1308, %1311 : vector<2x1xf32>
    %1313 = math.rsqrt %1312 : vector<2x1xf32>
    %1314 = vector.broadcast %1313 : vector<2x1xf32> to vector<2x32xf32>
    %1315 = arith.mulf %1310, %1314 : vector<2x32xf32>
    %1316 = vector.broadcast %29 : vector<1x32xf32> to vector<2x32xf32>
    %1317 = arith.mulf %1315, %1316 : vector<2x32xf32>
    %1318 = vector.broadcast %30 : vector<1x32xf32> to vector<2x32xf32>
    %1319 = arith.addf %1317, %1318 : vector<2x32xf32>
    %1320 = math.tanh %1319 : vector<2x32xf32>
    %1321 = arith.mulf %1291, %1320 : vector<2x32xf32>
    %cst_359 = arith.constant dense<0.000000e+00> : vector<2x128xf32>
    %1322 = tpu.matmul %1321, %31, %cst_359 {dimension_numbers = #tpu.dot_dimension_numbers<[1], [0], [0], [1], [0, 0, 1, 1], [], []>} : vector<2x32xf32>, vector<32x128xf32>, vector<2x128xf32> -> vector<2x128xf32>
    %1323 = vector.broadcast %33 : vector<1x128xf32> to vector<2x128xf32>
    %1324 = arith.addf %1322, %1323 : vector<2x128xf32>
    %cst_360 = arith.constant dense<0.000000e+00> : vector<2xf32>
    %1325 = vector.multi_reduction <add>, %1324, %cst_360 [1] : vector<2x128xf32> to vector<2xf32>
    %1326 = vector.shape_cast %1325 : vector<2xf32> to vector<2x1xf32>
    %cst_361 = arith.constant 1.280000e+02 : f32
    %1327 = vector.broadcast %cst_361 : f32 to vector<2x1xf32>
    %1328 = arith.divf %1326, %1327 : vector<2x1xf32>
    %1329 = arith.mulf %1324, %1324 : vector<2x128xf32>
    %cst_362 = arith.constant dense<0.000000e+00> : vector<2xf32>
    %1330 = vector.multi_reduction <add>, %1329, %cst_362 [1] : vector<2x128xf32> to vector<2xf32>
    %1331 = vector.shape_cast %1330 : vector<2xf32> to vector<2x1xf32>
    %cst_363 = arith.constant 1.280000e+02 : f32
    %1332 = vector.broadcast %cst_363 : f32 to vector<2x1xf32>
    %1333 = arith.divf %1331, %1332 : vector<2x1xf32>
    %1334 = arith.mulf %1328, %1328 : vector<2x1xf32>
    %1335 = arith.subf %1333, %1334 : vector<2x1xf32>
    %cst_364 = arith.constant 0.000000e+00 : f32
    %1336 = vector.broadcast %cst_364 : f32 to vector<2x1xf32>
    %1337 = arith.maximumf %1335, %1336 : vector<2x1xf32>
    %1338 = vector.broadcast %1328 : vector<2x1xf32> to vector<2x128xf32>
    %1339 = arith.subf %1324, %1338 : vector<2x128xf32>
    %cst_365 = arith.constant 9.99999974E-6 : f32
    %1340 = vector.broadcast %cst_365 : f32 to vector<2x1xf32>
    %1341 = arith.addf %1337, %1340 : vector<2x1xf32>
    %1342 = math.rsqrt %1341 : vector<2x1xf32>
    %1343 = vector.broadcast %1342 : vector<2x1xf32> to vector<2x128xf32>
    %1344 = arith.mulf %1339, %1343 : vector<2x128xf32>
    %1345 = vector.broadcast %35 : vector<1x128xf32> to vector<2x128xf32>
    %1346 = arith.mulf %1344, %1345 : vector<2x128xf32>
    %1347 = vector.broadcast %36 : vector<1x128xf32> to vector<2x128xf32>
    %1348 = arith.addf %1346, %1347 : vector<2x128xf32>
    %cst_366 = arith.constant dense<0.000000e+00> : vector<2x128xf32>
    %1349 = tpu.matmul %1250, %32, %cst_366 {dimension_numbers = #tpu.dot_dimension_numbers<[1], [0], [0], [1], [0, 0, 1, 1], [], []>} : vector<2x32xf32>, vector<32x128xf32>, vector<2x128xf32> -> vector<2x128xf32>
    %1350 = vector.broadcast %34 : vector<1x128xf32> to vector<2x128xf32>
    %1351 = arith.addf %1349, %1350 : vector<2x128xf32>
    %cst_367 = arith.constant dense<0.000000e+00> : vector<2xf32>
    %1352 = vector.multi_reduction <add>, %1351, %cst_367 [1] : vector<2x128xf32> to vector<2xf32>
    %1353 = vector.shape_cast %1352 : vector<2xf32> to vector<2x1xf32>
    %cst_368 = arith.constant 1.280000e+02 : f32
    %1354 = vector.broadcast %cst_368 : f32 to vector<2x1xf32>
    %1355 = arith.divf %1353, %1354 : vector<2x1xf32>
    %1356 = arith.mulf %1351, %1351 : vector<2x128xf32>
    %cst_369 = arith.constant dense<0.000000e+00> : vector<2xf32>
    %1357 = vector.multi_reduction <add>, %1356, %cst_369 [1] : vector<2x128xf32> to vector<2xf32>
    %1358 = vector.shape_cast %1357 : vector<2xf32> to vector<2x1xf32>
    %cst_370 = arith.constant 1.280000e+02 : f32
    %1359 = vector.broadcast %cst_370 : f32 to vector<2x1xf32>
    %1360 = arith.divf %1358, %1359 : vector<2x1xf32>
    %1361 = arith.mulf %1355, %1355 : vector<2x1xf32>
    %1362 = arith.subf %1360, %1361 : vector<2x1xf32>
    %cst_371 = arith.constant 0.000000e+00 : f32
    %1363 = vector.broadcast %cst_371 : f32 to vector<2x1xf32>
    %1364 = arith.maximumf %1362, %1363 : vector<2x1xf32>
    %1365 = vector.broadcast %1355 : vector<2x1xf32> to vector<2x128xf32>
    %1366 = arith.subf %1351, %1365 : vector<2x128xf32>
    %cst_372 = arith.constant 9.99999974E-6 : f32
    %1367 = vector.broadcast %cst_372 : f32 to vector<2x1xf32>
    %1368 = arith.addf %1364, %1367 : vector<2x1xf32>
    %1369 = math.rsqrt %1368 : vector<2x1xf32>
    %1370 = vector.broadcast %1369 : vector<2x1xf32> to vector<2x128xf32>
    %1371 = arith.mulf %1366, %1370 : vector<2x128xf32>
    %1372 = vector.broadcast %37 : vector<1x128xf32> to vector<2x128xf32>
    %1373 = arith.mulf %1371, %1372 : vector<2x128xf32>
    %1374 = vector.broadcast %38 : vector<1x128xf32> to vector<2x128xf32>
    %1375 = arith.addf %1373, %1374 : vector<2x128xf32>
    %1376 = arith.addf %1348, %1375 : vector<2x128xf32>
    %cst_373 = arith.constant 5.000000e-01 : f32
    %1377 = vector.broadcast %cst_373 : f32 to vector<2x128xf32>
    %1378 = arith.mulf %1377, %1376 : vector<2x128xf32>
    %1379 = arith.select %70, %1378, %1376 : vector<2x128xi1>, vector<2x128xf32>
    %1380 = math.tanh %1379 : vector<2x128xf32>
    %cst_374 = arith.constant 1.000000e+00 : f32
    %1381 = vector.broadcast %cst_374 : f32 to vector<2x128xf32>
    %1382 = arith.addf %1381, %1380 : vector<2x128xf32>
    %cst_375 = arith.constant 5.000000e-01 : f32
    %1383 = vector.broadcast %cst_375 : f32 to vector<2x128xf32>
    %1384 = arith.mulf %1383, %1382 : vector<2x128xf32>
    %1385 = arith.select %70, %1384, %1380 : vector<2x128xi1>, vector<2x128xf32>
    %1386 = vector.extract_strided_slice %1385 {offsets = [0, 0], sizes = [2, 32], strides = [1, 1]} : vector<2x128xf32> to vector<2x32xf32>
    %1387 = vector.extract_strided_slice %1385 {offsets = [0, 32], sizes = [2, 32], strides = [1, 1]} : vector<2x128xf32> to vector<2x32xf32>
    %1388 = vector.extract_strided_slice %1385 {offsets = [0, 64], sizes = [2, 32], strides = [1, 1]} : vector<2x128xf32> to vector<2x32xf32>
    %1389 = vector.extract_strided_slice %1385 {offsets = [0, 96], sizes = [2, 32], strides = [1, 1]} : vector<2x128xf32> to vector<2x32xf32>
    %1390 = arith.mulf %1387, %1224 : vector<2x32xf32>
    %1391 = arith.mulf %1386, %1389 : vector<2x32xf32>
    %1392 = arith.addf %1390, %1391 : vector<2x32xf32>
    %cst_376 = arith.constant dense<0.000000e+00> : vector<2xf32>
    %1393 = vector.multi_reduction <add>, %1392, %cst_376 [1] : vector<2x32xf32> to vector<2xf32>
    %1394 = vector.shape_cast %1393 : vector<2xf32> to vector<2x1xf32>
    %cst_377 = arith.constant 3.200000e+01 : f32
    %1395 = vector.broadcast %cst_377 : f32 to vector<2x1xf32>
    %1396 = arith.divf %1394, %1395 : vector<2x1xf32>
    %1397 = arith.mulf %1392, %1392 : vector<2x32xf32>
    %cst_378 = arith.constant dense<0.000000e+00> : vector<2xf32>
    %1398 = vector.multi_reduction <add>, %1397, %cst_378 [1] : vector<2x32xf32> to vector<2xf32>
    %1399 = vector.shape_cast %1398 : vector<2xf32> to vector<2x1xf32>
    %cst_379 = arith.constant 3.200000e+01 : f32
    %1400 = vector.broadcast %cst_379 : f32 to vector<2x1xf32>
    %1401 = arith.divf %1399, %1400 : vector<2x1xf32>
    %1402 = arith.mulf %1396, %1396 : vector<2x1xf32>
    %1403 = arith.subf %1401, %1402 : vector<2x1xf32>
    %cst_380 = arith.constant 0.000000e+00 : f32
    %1404 = vector.broadcast %cst_380 : f32 to vector<2x1xf32>
    %1405 = arith.maximumf %1403, %1404 : vector<2x1xf32>
    %1406 = vector.broadcast %1396 : vector<2x1xf32> to vector<2x32xf32>
    %1407 = arith.subf %1392, %1406 : vector<2x32xf32>
    %cst_381 = arith.constant 9.99999974E-6 : f32
    %1408 = vector.broadcast %cst_381 : f32 to vector<2x1xf32>
    %1409 = arith.addf %1405, %1408 : vector<2x1xf32>
    %1410 = math.rsqrt %1409 : vector<2x1xf32>
    %1411 = vector.broadcast %1410 : vector<2x1xf32> to vector<2x32xf32>
    %1412 = arith.mulf %1407, %1411 : vector<2x32xf32>
    %1413 = vector.broadcast %39 : vector<1x32xf32> to vector<2x32xf32>
    %1414 = arith.mulf %1412, %1413 : vector<2x32xf32>
    %1415 = vector.broadcast %40 : vector<1x32xf32> to vector<2x32xf32>
    %1416 = arith.addf %1414, %1415 : vector<2x32xf32>
    %1417 = math.tanh %1416 : vector<2x32xf32>
    %1418 = arith.mulf %1388, %1417 : vector<2x32xf32>
    %1419 = tpu.concatenate %242, %410, %578, %746, %914, %1082, %1250, %1418 in 0 : vector<2x32xf32>, vector<2x32xf32>, vector<2x32xf32>, vector<2x32xf32>, vector<2x32xf32>, vector<2x32xf32>, vector<2x32xf32>, vector<2x32xf32> -> vector<16x32xf32>
    %c0_382 = arith.constant 0 : index
    %c0_383 = arith.constant 0 : index
    %1420 = vector.load %arg28[%c0_382, %c0_383] : memref<32x128xf32, #tpu.memory_space<vmem>>, vector<32x128xf32>
    %cst_384 = arith.constant dense<0.000000e+00> : vector<16x128xf32>
    %1421 = tpu.matmul %1419, %1420, %cst_384 {dimension_numbers = #tpu.dot_dimension_numbers<[1], [0], [0], [1], [0, 0, 1, 1], [], []>} : vector<16x32xf32>, vector<32x128xf32>, vector<16x128xf32> -> vector<16x128xf32>
    %c0_385 = arith.constant 0 : index
    %c0_386 = arith.constant 0 : index
    %1422 = vector.load %arg29[%c0_385, %c0_386] : memref<1x128xf32, #tpu.memory_space<vmem>>, vector<1x128xf32>
    %1423 = vector.broadcast %1422 : vector<1x128xf32> to vector<16x128xf32>
    %1424 = arith.addf %1421, %1423 : vector<16x128xf32>
    %c0_387 = arith.constant 0 : index
    %c0_388 = arith.constant 0 : index
    %1425 = vector.load %arg30[%c0_387, %c0_388] : memref<16x128xf32, #tpu.memory_space<vmem>>, vector<16x128xf32>
    tpu.vector_store %arg30[%c0_387, %c0_388], %1424 {strides = array<i32>} : memref<16x128xf32, #tpu.memory_space<vmem>>, vector<16x128xf32>,
    return
  }
}

</mosaic_0001>

<llo_original>
// kernel: tpu_custom_call.1
$region0: #{tpu_custom_call.1}
  #allocation0 [shape = 'u32[]', space=smem, size = 0x4, offset = 0x4, fixed_abs, tag = 'smem constant byte address 0x4 - core index']
  #allocation1 [shape = 'u32[144,128]{1,0:T(1,128)}', space=vmem, size = 0x12000, scoped, tag = 'internal scratch']
  %s0 = inlined_call_operand.smem [shape: u32[31], index: -1, kind: input, shape index: {}]
  %s1 = sld [smem:[%s0]]
  %s2 = scalar_lea.smem %s0, 1
  %s3 = sld [smem:[%s2]]
  %s4 = scalar_lea.smem %s0, 2
  %s5 = sld [smem:[%s4]]
  %s6 = scalar_lea.smem %s0, 3
  %s7 = sld [smem:[%s6]]
  %s8 = scalar_lea.smem %s0, 4
  %s9 = sld [smem:[%s8]]
  %s10 = scalar_lea.smem %s0, 5
  %s11 = sld [smem:[%s10]]
  %s12 = scalar_lea.smem %s0, 6
  %s13 = sld [smem:[%s12]]
  %s14 = scalar_lea.smem %s0, 7
  %s15 = sld [smem:[%s14]]
  %s16 = scalar_lea.smem %s0, 8
  %s17 = sld [smem:[%s16]]
  %s18 = scalar_lea.smem %s0, 9
  %s19 = sld [smem:[%s18]]
  %s20 = scalar_lea.smem %s0, 10
  %s21 = sld [smem:[%s20]]
  %s22 = scalar_lea.smem %s0, 11
  %s23 = sld [smem:[%s22]]
  %s24 = scalar_lea.smem %s0, 12
  %s25 = sld [smem:[%s24]]
  %s26 = scalar_lea.smem %s0, 13
  %s27 = sld [smem:[%s26]]
  %s28 = scalar_lea.smem %s0, 14
  %s29 = sld [smem:[%s28]]
  %s30 = scalar_lea.smem %s0, 15
  %s31 = sld [smem:[%s30]]
  %s32 = scalar_lea.smem %s0, 16
  %s33 = sld [smem:[%s32]]
  %s34 = scalar_lea.smem %s0, 17
  %s35 = sld [smem:[%s34]]
  %s36 = scalar_lea.smem %s0, 18
  %s37 = sld [smem:[%s36]]
  %s38 = scalar_lea.smem %s0, 19
  %s39 = sld [smem:[%s38]]
  %s40 = scalar_lea.smem %s0, 20
  %s41 = sld [smem:[%s40]]
  %s42 = scalar_lea.smem %s0, 21
  %s43 = sld [smem:[%s42]]
  %s44 = scalar_lea.smem %s0, 22
  %s45 = sld [smem:[%s44]]
  %s46 = scalar_lea.smem %s0, 23
  %s47 = sld [smem:[%s46]]
  %s48 = scalar_lea.smem %s0, 24
  %s49 = sld [smem:[%s48]]
  %s50 = scalar_lea.smem %s0, 25
  %s51 = sld [smem:[%s50]]
  %s52 = scalar_lea.smem %s0, 26
  %s53 = sld [smem:[%s52]]
  %s54 = scalar_lea.smem %s0, 27
  %s55 = sld [smem:[%s54]]
  %s56 = scalar_lea.smem %s0, 28
  %s57 = sld [smem:[%s56]]
  %s58 = scalar_lea.smem %s0, 29
  %s59 = sld [smem:[%s58]]
  %s60 = scalar_lea.smem %s0, 30
  %s61 = sld [smem:[%s60]]
  %s62 = sld [smem:[#allocation0]]
  $region190: #{tpu_custom_call.1} parent=0
    _
  %s64 = ssub.s32 1, %s62
  %s65 = scalar_select 0, %s64, %s62
  $region1: #{tpu_custom_call.1} parent=0
    #allocation2 [shape = 'u8[4096]{0}', space=vmem, size = 0x1000, scoped, tag = 'input window, operand 2, single buffered']
    #allocation3 [shape = 's32[1]{0}', space=sflag, size = 0x4, scoped, tag = 'scoped memory for tpu_custom_call.1']
    #allocation4 [shape = 's32[1]{0}', space=sflag, size = 0x4, scoped, tag = 'scoped memory for tpu_custom_call.1']
    #allocation5 [shape = 'u8[512]{0}', space=vmem, size = 0x400, scoped, tag = 'input window, operand 3, single buffered']
    #allocation6 [shape = 's32[1]{0}', space=sflag, size = 0x4, scoped, tag = 'scoped memory for tpu_custom_call.1']
    #allocation7 [shape = 'u8[512]{0}', space=vmem, size = 0x400, scoped, tag = 'input window, operand 4, single buffered']
    #allocation8 [shape = 'u8[512]{0}', space=vmem, size = 0x400, scoped, tag = 'input window, operand 6, single buffered']
    #allocation9 [shape = 's32[1]{0}', space=sflag, size = 0x4, scoped, tag = 'scoped memory for tpu_custom_call.1']
    #allocation10 [shape = 'u8[4096]{0}', space=vmem, size = 0x1000, scoped, tag = 'input window, operand 8, single buffered']
    #allocation11 [shape = 'u8[512]{0}', space=vmem, size = 0x400, scoped, tag = 'input window, operand 10, single buffered']
    #allocation12 [shape = 's32[1]{0}', space=sflag, size = 0x4, scoped, tag = 'scoped memory for tpu_custom_call.1']
    #allocation13 [shape = 'u8[512]{0}', space=vmem, size = 0x400, scoped, tag = 'input window, operand 11, single buffered']
    #allocation14 [shape = 'u8[512]{0}', space=vmem, size = 0x400, scoped, tag = 'input window, operand 12, single buffered']
    #allocation15 [shape = 's32[1]{0}', space=sflag, size = 0x4, scoped, tag = 'scoped memory for tpu_custom_call.1']
    #allocation16 [shape = 'u8[512]{0}', space=vmem, size = 0x400, scoped, tag = 'input window, operand 13, single buffered']
    #allocation17 [shape = 'u8[512]{0}', space=vmem, size = 0x400, scoped, tag = 'input window, operand 14, single buffered']
    #allocation18 [shape = 's32[1]{0}', space=sflag, size = 0x4, scoped, tag = 'scoped memory for tpu_custom_call.1']
    #allocation19 [shape = 'u8[512]{0}', space=vmem, size = 0x400, scoped, tag = 'input window, operand 15, single buffered']
    #allocation20 [shape = 'u8[512]{0}', space=vmem, size = 0x400, scoped, tag = 'input window, operand 16, single buffered']
    #allocation21 [shape = 's32[1]{0}', space=sflag, size = 0x4, scoped, tag = 'scoped memory for tpu_custom_call.1']
    #allocation22 [shape = 'u8[512]{0}', space=vmem, size = 0x400, scoped, tag = 'input window, operand 17, single buffered']
    #allocation23 [shape = 'u8[512]{0}', space=vmem, size = 0x400, scoped, tag = 'input window, operand 20, single buffered']
    #allocation24 [shape = 's32[1]{0}', space=sflag, size = 0x4, scoped, tag = 'scoped memory for tpu_custom_call.1']
    #allocation25 [shape = 'u8[512]{0}', space=vmem, size = 0x400, scoped, tag = 'input window, operand 21, single buffered']
    #allocation26 [shape = 'u8[8192]{0}', space=vmem, size = 0x2000, scoped, tag = 'output window, operand 0, single buffered']
    %66 = vsyncpa [#allocation3], 0
    %67 = vsyncpa [#allocation6], 0
    %68 = vsyncpa [#allocation9], 0
    %69 = vsyncpa [#allocation12], 0
    %70 = vsyncpa [#allocation15], 0
    %71 = vsyncpa [#allocation18], 0
    %72 = vsyncpa [#allocation21], 0
    %73 = vsyncpa [#allocation24], 0
    %74 = vsyncpa [#allocation4], 0
    // Predicated region
    $region2: #{tpu_custom_call.1} parent=1 // pred_check
      _
    $region3: #{tpu_custom_call.1} parent=1 // pred_check_branch
      %76 = sbr.rel (0) target = $region5
    $region4: #{tpu_custom_call.1} parent=1 // pred_region
      _
    $region5: #{tpu_custom_call.1} parent=1 // pred_fallthru
      _
    // Predicated region
    $region6: #{tpu_custom_call.1} parent=1 // pred_check
      _
    $region7: #{tpu_custom_call.1} parent=1 // pred_check_branch
      %78 = sbr.rel (0) target = $region9
    $region8: #{tpu_custom_call.1} parent=1 // pred_region
      _
    $region9: #{tpu_custom_call.1} parent=1 // pred_fallthru
      _
    // Predicated region
    $region10: #{tpu_custom_call.1} parent=1 // pred_check
      _
    $region11: #{tpu_custom_call.1} parent=1 // pred_check_branch
      %80 = sbr.rel (0) target = $region13
    $region12: #{tpu_custom_call.1} parent=1 // pred_region
      %s82 = ssub.s32 128, 128
      %83 = vsyncadd [#allocation3], %s82
      %s85 = sshll.u32 [#allocation2], 4
      %s86 = int_to_ptr.vmem [resolvable:$true] %s85
      %88 = dma.hbm_to_vmem [thread:$0]  %s5, 128, %s86, [#allocation3]
    $region13: #{tpu_custom_call.1} parent=1 // pred_fallthru
      _
    // Predicated region
    $region14: #{tpu_custom_call.1} parent=1 // pred_check
      _
    $region15: #{tpu_custom_call.1} parent=1 // pred_check_branch
      %90 = sbr.rel (0) target = $region17
    $region16: #{tpu_custom_call.1} parent=1 // pred_region
      %s92 = ssub.s32 16, 16
      %93 = vsyncadd [#allocation6], %s92
      %s95 = sshll.u32 [#allocation5], 4
      %s96 = int_to_ptr.vmem [resolvable:$true] %s95
      %98 = dma.hbm_to_vmem [thread:$0]  %s7, 16, %s96, [#allocation6]
    $region17: #{tpu_custom_call.1} parent=1 // pred_fallthru
      _
    // Predicated region
    $region18: #{tpu_custom_call.1} parent=1 // pred_check
      _
    $region19: #{tpu_custom_call.1} parent=1 // pred_check_branch
      %100 = sbr.rel (0) target = $region21
    $region20: #{tpu_custom_call.1} parent=1 // pred_region
      %s102 = ssub.s32 16, 16
      %103 = vsyncadd [#allocation6], %s102
      %s105 = sshll.u32 [#allocation7], 4
      %s106 = int_to_ptr.vmem [resolvable:$true] %s105
      %108 = dma.hbm_to_vmem [thread:$0]  %s9, 16, %s106, [#allocation6]
    $region21: #{tpu_custom_call.1} parent=1 // pred_fallthru
      _
    // Predicated region
    $region22: #{tpu_custom_call.1} parent=1 // pred_check
      _
    $region23: #{tpu_custom_call.1} parent=1 // pred_check_branch
      %110 = sbr.rel (0) target = $region25
    $region24: #{tpu_custom_call.1} parent=1 // pred_region
      _
    $region25: #{tpu_custom_call.1} parent=1 // pred_fallthru
      _
    // Predicated region
    $region26: #{tpu_custom_call.1} parent=1 // pred_check
      _
    $region27: #{tpu_custom_call.1} parent=1 // pred_check_branch
      %112 = sbr.rel (0) target = $region29
    $region28: #{tpu_custom_call.1} parent=1 // pred_region
      %s114 = ssub.s32 16, 16
      %115 = vsyncadd [#allocation9], %s114
      %s117 = sshll.u32 [#allocation8], 4
      %s118 = int_to_ptr.vmem [resolvable:$true] %s117
      %120 = dma.hbm_to_vmem [thread:$0]  %s13, 16, %s118, [#allocation9]
    $region29: #{tpu_custom_call.1} parent=1 // pred_fallthru
      _
    // Predicated region
    $region30: #{tpu_custom_call.1} parent=1 // pred_check
      _
    $region31: #{tpu_custom_call.1} parent=1 // pred_check_branch
      %122 = sbr.rel (0) target = $region33
    $region32: #{tpu_custom_call.1} parent=1 // pred_region
      _
    $region33: #{tpu_custom_call.1} parent=1 // pred_fallthru
      _
    // Predicated region
    $region34: #{tpu_custom_call.1} parent=1 // pred_check
      _
    $region35: #{tpu_custom_call.1} parent=1 // pred_check_branch
      %124 = sbr.rel (0) target = $region37
    $region36: #{tpu_custom_call.1} parent=1 // pred_region
      %s126 = ssub.s32 128, 128
      %127 = vsyncadd [#allocation9], %s126
      %s129 = sshll.u32 [#allocation10], 4
      %s130 = int_to_ptr.vmem [resolvable:$true] %s129
      %132 = dma.hbm_to_vmem [thread:$0]  %s17, 128, %s130, [#allocation9]
    $region37: #{tpu_custom_call.1} parent=1 // pred_fallthru
      _
    // Predicated region
    $region38: #{tpu_custom_call.1} parent=1 // pred_check
      _
    $region39: #{tpu_custom_call.1} parent=1 // pred_check_branch
      %134 = sbr.rel (0) target = $region41
    $region40: #{tpu_custom_call.1} parent=1 // pred_region
      _
    $region41: #{tpu_custom_call.1} parent=1 // pred_fallthru
      _
    // Predicated region
    $region42: #{tpu_custom_call.1} parent=1 // pred_check
      _
    $region43: #{tpu_custom_call.1} parent=1 // pred_check_branch
      %136 = sbr.rel (0) target = $region45
    $region44: #{tpu_custom_call.1} parent=1 // pred_region
      %s138 = ssub.s32 16, 16
      %139 = vsyncadd [#allocation12], %s138
      %s141 = sshll.u32 [#allocation11], 4
      %s142 = int_to_ptr.vmem [resolvable:$true] %s141
      %144 = dma.hbm_to_vmem [thread:$0]  %s21, 16, %s142, [#allocation12]
    $region45: #{tpu_custom_call.1} parent=1 // pred_fallthru
      _
    // Predicated region
    $region46: #{tpu_custom_call.1} parent=1 // pred_check
      _
    $region47: #{tpu_custom_call.1} parent=1 // pred_check_branch
      %146 = sbr.rel (0) target = $region49
    $region48: #{tpu_custom_call.1} parent=1 // pred_region
      %s148 = ssub.s32 16, 16
      %149 = vsyncadd [#allocation12], %s148
      %s151 = sshll.u32 [#allocation13], 4
      %s152 = int_to_ptr.vmem [resolvable:$true] %s151
      %154 = dma.hbm_to_vmem [thread:$0]  %s23, 16, %s152, [#allocation12]
    $region49: #{tpu_custom_call.1} parent=1 // pred_fallthru
      _
    // Predicated region
    $region50: #{tpu_custom_call.1} parent=1 // pred_check
      _
    $region51: #{tpu_custom_call.1} parent=1 // pred_check_branch
      %156 = sbr.rel (0) target = $region53
    $region52: #{tpu_custom_call.1} parent=1 // pred_region
      %s158 = ssub.s32 16, 16
      %159 = vsyncadd [#allocation15], %s158
      %s161 = sshll.u32 [#allocation14], 4
      %s162 = int_to_ptr.vmem [resolvable:$true] %s161
      %164 = dma.hbm_to_vmem [thread:$0]  %s25, 16, %s162, [#allocation15]
    $region53: #{tpu_custom_call.1} parent=1 // pred_fallthru
      _
    // Predicated region
    $region54: #{tpu_custom_call.1} parent=1 // pred_check
      _
    $region55: #{tpu_custom_call.1} parent=1 // pred_check_branch
      %166 = sbr.rel (0) target = $region57
    $region56: #{tpu_custom_call.1} parent=1 // pred_region
      %s168 = ssub.s32 16, 16
      %169 = vsyncadd [#allocation15], %s168
      %s171 = sshll.u32 [#allocation16], 4
      %s172 = int_to_ptr.vmem [resolvable:$true] %s171
      %174 = dma.hbm_to_vmem [thread:$0]  %s27, 16, %s172, [#allocation15]
    $region57: #{tpu_custom_call.1} parent=1 // pred_fallthru
      _
    // Predicated region
    $region58: #{tpu_custom_call.1} parent=1 // pred_check
      _
    $region59: #{tpu_custom_call.1} parent=1 // pred_check_branch
      %176 = sbr.rel (0) target = $region61
    $region60: #{tpu_custom_call.1} parent=1 // pred_region
      %s178 = ssub.s32 16, 16
      %179 = vsyncadd [#allocation18], %s178
      %s181 = sshll.u32 [#allocation17], 4
      %s182 = int_to_ptr.vmem [resolvable:$true] %s181
      %184 = dma.hbm_to_vmem [thread:$0]  %s29, 16, %s182, [#allocation18]
    $region61: #{tpu_custom_call.1} parent=1 // pred_fallthru
      _
    // Predicated region
    $region62: #{tpu_custom_call.1} parent=1 // pred_check
      _
    $region63: #{tpu_custom_call.1} parent=1 // pred_check_branch
      %186 = sbr.rel (0) target = $region65
    $region64: #{tpu_custom_call.1} parent=1 // pred_region
      %s188 = ssub.s32 16, 16
      %189 = vsyncadd [#allocation18], %s188
      %s191 = sshll.u32 [#allocation19], 4
      %s192 = int_to_ptr.vmem [resolvable:$true] %s191
      %194 = dma.hbm_to_vmem [thread:$0]  %s31, 16, %s192, [#allocation18]
    $region65: #{tpu_custom_call.1} parent=1 // pred_fallthru
      _
    // Predicated region
    $region66: #{tpu_custom_call.1} parent=1 // pred_check
      _
    $region67: #{tpu_custom_call.1} parent=1 // pred_check_branch
      %196 = sbr.rel (0) target = $region69
    $region68: #{tpu_custom_call.1} parent=1 // pred_region
      %s198 = ssub.s32 16, 16
      %199 = vsyncadd [#allocation21], %s198
      %s201 = sshll.u32 [#allocation20], 4
      %s202 = int_to_ptr.vmem [resolvable:$true] %s201
      %204 = dma.hbm_to_vmem [thread:$0]  %s33, 16, %s202, [#allocation21]
    $region69: #{tpu_custom_call.1} parent=1 // pred_fallthru
      _
    // Predicated region
    $region70: #{tpu_custom_call.1} parent=1 // pred_check
      _
    $region71: #{tpu_custom_call.1} parent=1 // pred_check_branch
      %206 = sbr.rel (0) target = $region73
    $region72: #{tpu_custom_call.1} parent=1 // pred_region
      %s208 = ssub.s32 16, 16
      %209 = vsyncadd [#allocation21], %s208
      %s211 = sshll.u32 [#allocation22], 4
      %s212 = int_to_ptr.vmem [resolvable:$true] %s211
      %214 = dma.hbm_to_vmem [thread:$0]  %s35, 16, %s212, [#allocation21]
    $region73: #{tpu_custom_call.1} parent=1 // pred_fallthru
      _
    // Predicated region
    $region74: #{tpu_custom_call.1} parent=1 // pred_check
      _
    $region75: #{tpu_custom_call.1} parent=1 // pred_check_branch
      %216 = sbr.rel (0) target = $region77
    $region76: #{tpu_custom_call.1} parent=1 // pred_region
      _
    $region77: #{tpu_custom_call.1} parent=1 // pred_fallthru
      _
    // Predicated region
    $region78: #{tpu_custom_call.1} parent=1 // pred_check
      _
    $region79: #{tpu_custom_call.1} parent=1 // pred_check_branch
      %218 = sbr.rel (0) target = $region81
    $region80: #{tpu_custom_call.1} parent=1 // pred_region
      _
    $region81: #{tpu_custom_call.1} parent=1 // pred_fallthru
      _
    // Predicated region
    $region82: #{tpu_custom_call.1} parent=1 // pred_check
      _
    $region83: #{tpu_custom_call.1} parent=1 // pred_check_branch
      %220 = sbr.rel (0) target = $region85
    $region84: #{tpu_custom_call.1} parent=1 // pred_region
      %s222 = ssub.s32 16, 16
      %223 = vsyncadd [#allocation24], %s222
      %s225 = sshll.u32 [#allocation23], 4
      %s226 = int_to_ptr.vmem [resolvable:$true] %s225
      %228 = dma.hbm_to_vmem [thread:$0]  %s41, 16, %s226, [#allocation24]
    $region85: #{tpu_custom_call.1} parent=1 // pred_fallthru
      _
    // Predicated region
    $region86: #{tpu_custom_call.1} parent=1 // pred_check
      _
    $region87: #{tpu_custom_call.1} parent=1 // pred_check_branch
      %230 = sbr.rel (0) target = $region89
    $region88: #{tpu_custom_call.1} parent=1 // pred_region
      %s232 = ssub.s32 16, 16
      %233 = vsyncadd [#allocation24], %s232
      %s235 = sshll.u32 [#allocation25], 4
      %s236 = int_to_ptr.vmem [resolvable:$true] %s235
      %238 = dma.hbm_to_vmem [thread:$0]  %s43, 16, %s236, [#allocation24]
    $region89: #{tpu_custom_call.1} parent=1 // pred_fallthru
      _
    // Predicated region
    $region90: #{tpu_custom_call.1} parent=1 // pred_check
      _
    $region91: #{tpu_custom_call.1} parent=1 // pred_check_branch
      %240 = sbr.rel (0) target = $region93
    $region92: #{tpu_custom_call.1} parent=1 // pred_region
      _
    $region93: #{tpu_custom_call.1} parent=1 // pred_fallthru
      _
    // Predicated region
    $region94: #{tpu_custom_call.1} parent=1 // pred_check
      _
    $region95: #{tpu_custom_call.1} parent=1 // pred_check_branch
      %242 = sbr.rel (0) target = $region97
    $region96: #{tpu_custom_call.1} parent=1 // pred_region
      _
    $region97: #{tpu_custom_call.1} parent=1 // pred_fallthru
      _
    // Predicated region
    $region98: #{tpu_custom_call.1} parent=1 // pred_check
      _
    $region99: #{tpu_custom_call.1} parent=1 // pred_check_branch
      %244 = sbr.rel (0) target = $region101
    $region100: #{tpu_custom_call.1} parent=1 // pred_region
      _
    $region101: #{tpu_custom_call.1} parent=1 // pred_fallthru
      _
    // Predicated region
    $region102: #{tpu_custom_call.1} parent=1 // pred_check
      _
    $region103: #{tpu_custom_call.1} parent=1 // pred_check_branch
      %246 = sbr.rel (0) target = $region105
    $region104: #{tpu_custom_call.1} parent=1 // pred_region
      _
    $region105: #{tpu_custom_call.1} parent=1 // pred_fallthru
      _
    // Predicated region
    $region106: #{tpu_custom_call.1} parent=1 // pred_check
      _
    $region107: #{tpu_custom_call.1} parent=1 // pred_check_branch
      %248 = sbr.rel (0) target = $region109
    $region108: #{tpu_custom_call.1} parent=1 // pred_region
      _
    $region109: #{tpu_custom_call.1} parent=1 // pred_fallthru
      _
    // Predicated region
    $region110: #{tpu_custom_call.1} parent=1 // pred_check
      _
    $region111: #{tpu_custom_call.1} parent=1 // pred_check_branch
      %250 = sbr.rel (0) target = $region113
    $region112: #{tpu_custom_call.1} parent=1 // pred_region
      _
    $region113: #{tpu_custom_call.1} parent=1 // pred_fallthru
      _
    // Predicated region
    $region114: #{tpu_custom_call.1} parent=1 // pred_check
      _
    $region115: #{tpu_custom_call.1} parent=1 // pred_check_branch
      %252 = sbr.rel (0) target = $region117
    $region116: #{tpu_custom_call.1} parent=1 // pred_region
      _
    $region117: #{tpu_custom_call.1} parent=1 // pred_fallthru
      _
    // Predicated region
    $region118: #{tpu_custom_call.1} parent=1 // pred_check
      _
    $region119: #{tpu_custom_call.1} parent=1 // pred_check_branch
      %254 = sbr.rel (0) target = $region121
    $region120: #{tpu_custom_call.1} parent=1 // pred_region
      _
    $region121: #{tpu_custom_call.1} parent=1 // pred_fallthru
      _
    // Predicated region
    $region122: #{tpu_custom_call.1} parent=1 // pred_check
      _
    $region123: #{tpu_custom_call.1} parent=1 // pred_check_branch
      %256 = sbr.rel (0) target = $region125
    $region124: #{tpu_custom_call.1} parent=1 // pred_region
      %257 = dma.done [#allocation3], 128
    $region125: #{tpu_custom_call.1} parent=1 // pred_fallthru
      _
    // Predicated region
    $region126: #{tpu_custom_call.1} parent=1 // pred_check
      _
    $region127: #{tpu_custom_call.1} parent=1 // pred_check_branch
      %259 = sbr.rel (0) target = $region129
    $region128: #{tpu_custom_call.1} parent=1 // pred_region
      %260 = dma.done [#allocation6], 16
    $region129: #{tpu_custom_call.1} parent=1 // pred_fallthru
      _
    // Predicated region
    $region130: #{tpu_custom_call.1} parent=1 // pred_check
      _
    $region131: #{tpu_custom_call.1} parent=1 // pred_check_branch
      %262 = sbr.rel (0) target = $region133
    $region132: #{tpu_custom_call.1} parent=1 // pred_region
      %263 = dma.done [#allocation6], 16
    $region133: #{tpu_custom_call.1} parent=1 // pred_fallthru
      _
    // Predicated region
    $region134: #{tpu_custom_call.1} parent=1 // pred_check
      _
    $region135: #{tpu_custom_call.1} parent=1 // pred_check_branch
      %265 = sbr.rel (0) target = $region137
    $region136: #{tpu_custom_call.1} parent=1 // pred_region
      %266 = dma.done [#allocation9], 16
    $region137: #{tpu_custom_call.1} parent=1 // pred_fallthru
      _
    // Predicated region
    $region138: #{tpu_custom_call.1} parent=1 // pred_check
      _
    $region139: #{tpu_custom_call.1} parent=1 // pred_check_branch
      %268 = sbr.rel (0) target = $region141
    $region140: #{tpu_custom_call.1} parent=1 // pred_region
      %269 = dma.done [#allocation9], 128
    $region141: #{tpu_custom_call.1} parent=1 // pred_fallthru
      _
    // Predicated region
    $region142: #{tpu_custom_call.1} parent=1 // pred_check
      _
    $region143: #{tpu_custom_call.1} parent=1 // pred_check_branch
      %271 = sbr.rel (0) target = $region145
    $region144: #{tpu_custom_call.1} parent=1 // pred_region
      %272 = dma.done [#allocation12], 16
    $region145: #{tpu_custom_call.1} parent=1 // pred_fallthru
      _
    // Predicated region
    $region146: #{tpu_custom_call.1} parent=1 // pred_check
      _
    $region147: #{tpu_custom_call.1} parent=1 // pred_check_branch
      %274 = sbr.rel (0) target = $region149
    $region148: #{tpu_custom_call.1} parent=1 // pred_region
      %275 = dma.done [#allocation12], 16
    $region149: #{tpu_custom_call.1} parent=1 // pred_fallthru
      _
    // Predicated region
    $region150: #{tpu_custom_call.1} parent=1 // pred_check
      _
    $region151: #{tpu_custom_call.1} parent=1 // pred_check_branch
      %277 = sbr.rel (0) target = $region153
    $region152: #{tpu_custom_call.1} parent=1 // pred_region
      %278 = dma.done [#allocation15], 16
    $region153: #{tpu_custom_call.1} parent=1 // pred_fallthru
      _
    // Predicated region
    $region154: #{tpu_custom_call.1} parent=1 // pred_check
      _
    $region155: #{tpu_custom_call.1} parent=1 // pred_check_branch
      %280 = sbr.rel (0) target = $region157
    $region156: #{tpu_custom_call.1} parent=1 // pred_region
      %281 = dma.done [#allocation15], 16
    $region157: #{tpu_custom_call.1} parent=1 // pred_fallthru
      _
    // Predicated region
    $region158: #{tpu_custom_call.1} parent=1 // pred_check
      _
    $region159: #{tpu_custom_call.1} parent=1 // pred_check_branch
      %283 = sbr.rel (0) target = $region161
    $region160: #{tpu_custom_call.1} parent=1 // pred_region
      %284 = dma.done [#allocation18], 16
    $region161: #{tpu_custom_call.1} parent=1 // pred_fallthru
      _
    // Predicated region
    $region162: #{tpu_custom_call.1} parent=1 // pred_check
      _
    $region163: #{tpu_custom_call.1} parent=1 // pred_check_branch
      %286 = sbr.rel (0) target = $region165
    $region164: #{tpu_custom_call.1} parent=1 // pred_region
      %287 = dma.done [#allocation18], 16
    $region165: #{tpu_custom_call.1} parent=1 // pred_fallthru
      _
    // Predicated region
    $region166: #{tpu_custom_call.1} parent=1 // pred_check
      _
    $region167: #{tpu_custom_call.1} parent=1 // pred_check_branch
      %289 = sbr.rel (0) target = $region169
    $region168: #{tpu_custom_call.1} parent=1 // pred_region
      %290 = dma.done [#allocation21], 16
    $region169: #{tpu_custom_call.1} parent=1 // pred_fallthru
      _
    // Predicated region
    $region170: #{tpu_custom_call.1} parent=1 // pred_check
      _
    $region171: #{tpu_custom_call.1} parent=1 // pred_check_branch
      %292 = sbr.rel (0) target = $region173
    $region172: #{tpu_custom_call.1} parent=1 // pred_region
      %293 = dma.done [#allocation21], 16
    $region173: #{tpu_custom_call.1} parent=1 // pred_fallthru
      _
    // Predicated region
    $region174: #{tpu_custom_call.1} parent=1 // pred_check
      _
    $region175: #{tpu_custom_call.1} parent=1 // pred_check_branch
      %295 = sbr.rel (0) target = $region177
    $region176: #{tpu_custom_call.1} parent=1 // pred_region
      %296 = dma.done [#allocation24], 16
    $region177: #{tpu_custom_call.1} parent=1 // pred_fallthru
      _
    // Predicated region
    $region178: #{tpu_custom_call.1} parent=1 // pred_check
      _
    $region179: #{tpu_custom_call.1} parent=1 // pred_check_branch
      %298 = sbr.rel (0) target = $region181
    $region180: #{tpu_custom_call.1} parent=1 // pred_region
      %299 = dma.done [#allocation24], 16
    $region181: #{tpu_custom_call.1} parent=1 // pred_fallthru
      _
    %v300 = vld [vmem:[%s1] sm:$0xff]
    %v301 = vld [vmem:[%s1 + $0x8] sm:$0xff]
    %v302 = vld [vmem:[%s1 + $0x10] sm:$0xff]
    %v303 = vld [vmem:[%s1 + $0x18] sm:$0xff]
    %v304 = vld [vmem:[%s1 + $0x20] sm:$0xff]
    %v305 = vld [vmem:[%s1 + $0x28] sm:$0xff]
    %v306 = vld [vmem:[#allocation5] sm:$0x1]
    %308 = vset.pattern.permute.xlu0 0
    %309 = vperm.xlu0 %308, %v300
    %v310 = vpop.permute.xlu0 %309
    %313 = vset.pattern.permute.xlu0 0
    %314 = vperm.xlu0 %313, %v301
    %v315 = vpop.permute.xlu0 %314
    %318 = vset.pattern.permute.xlu0 0
    %319 = vperm.xlu0 %318, %v302
    %v320 = vpop.permute.xlu0 %319
    %323 = vset.pattern.permute.xlu0 0
    %324 = vperm.xlu0 %323, %v303
    %v325 = vpop.permute.xlu0 %324
    %328 = vset.pattern.permute.xlu0 0
    %329 = vperm.xlu0 %328, %v304
    %v330 = vpop.permute.xlu0 %329
    %333 = vset.pattern.permute.xlu0 0
    %334 = vperm.xlu0 %333, %v305
    %v335 = vpop.permute.xlu0 %334
    %v338 = vlaneseq
    %v339 = vshrl.u32 %v338, 7
    %v340 = vsub.s32 0, %v339
    %v341 = vrot.slane %v306, %v340
    %v343 = vmul.f32 %v310, %v341
    %v344 = vmul.f32 %v315, %v341
    %v345 = vmul.f32 %v320, %v341
    %v346 = vmul.f32 %v325, %v341
    %v347 = vmul.f32 %v330, %v341
    %v348 = vmul.f32 %v335, %v341
    %v349 = vld [vmem:[%s3] sm:$0xff]
    %v350 = vld [vmem:[%s3 + $0x8] sm:$0xff]
    %v351 = vld [vmem:[%s3 + $0x10] sm:$0xff]
    %v352 = vld [vmem:[%s3 + $0x18] sm:$0xff]
    %v353 = vld [vmem:[%s3 + $0x20] sm:$0xff]
    %v354 = vld [vmem:[%s3 + $0x28] sm:$0xff]
    %v355 = vld [vmem:[#allocation7] sm:$0x1]
    %v357 = vlaneseq
    %v358 = vshrl.u32 %v357, 7
    %v359 = vsub.s32 0, %v358
    %v360 = vrot.slane %v355, %v359
    %vm362 = vcmask 392192
    %v364 = vsel %vm362, %v349, 0
    %v367 = vsel %vm362, %v350, 0
    %v370 = vsel %vm362, %v351, 0
    %v373 = vsel %vm362, %v352, 0
    %v376 = vsel %vm362, %v353, 0
    %v379 = vsel %vm362, %v354, 0
    %381 = vmatprep.subr.mxu0 0.0
    %382 = vmatpush1.msra.mxu0 %v343
    %383 = vmatprep.subr.mxu0 0.0
    %384 = vmatpush1.msra.mxu0 %v344
    %385 = vmatprep.subr.mxu0 0.0
    %386 = vmatpush1.msra.mxu0 %v345
    %387 = vmatprep.subr.mxu0 0.0
    %388 = vmatpush1.msra.mxu0 %v346
    %389 = vmatprep.subr.mxu0 0.0
    %390 = vmatpush1.msra.mxu0 %v347
    %391 = vmatprep.subr.mxu0 0.0
    %392 = vmatpush1.msra.mxu0 %v348
    %393 = vmatprep.subr.mxu0 0.0
    %394 = vmatpush1.msra.mxu0 0.0
    %395 = vmatprep.subr.mxu0 0.0
    %396 = vmatpush1.msra.mxu0 0.0
    %397 = vmatprep.subr.mxu0 0.0
    %398 = vmatpush1.msra.mxu0 0.0
    %399 = vmatprep.subr.mxu0 0.0
    %400 = vmatpush1.msra.mxu0 0.0
    %401 = vmatprep.subr.mxu0 0.0
    %402 = vmatpush1.msra.mxu0 0.0
    %403 = vmatprep.subr.mxu0 0.0
    %404 = vmatpush1.msra.mxu0 0.0
    %405 = vmatprep.subr.mxu0 0.0
    %406 = vmatpush1.msra.mxu0 0.0
    %407 = vmatprep.subr.mxu0 0.0
    %408 = vmatpush1.msra.mxu0 0.0
    %409 = vmatprep.subr.mxu0 0.0
    %410 = vmatpush1.msra.mxu0 0.0
    %411 = vmatprep.subr.mxu0 0.0
    %412 = vmatpush1.msra.mxu0 0.0
    %413 = vmatprep.subr.mxu0 0.0
    %414 = vmatpush1.msra.mxu0 0.0
    %415 = vmatprep.subr.mxu0 0.0
    %416 = vmatpush1.msra.mxu0 0.0
    %417 = vmatprep.subr.mxu0 0.0
    %418 = vmatpush1.msra.mxu0 0.0
    %419 = vmatprep.subr.mxu0 0.0
    %420 = vmatpush1.msra.mxu0 0.0
    %421 = vmatprep.subr.mxu0 0.0
    %422 = vmatpush1.msra.mxu0 0.0
    %423 = vmatprep.subr.mxu0 0.0
    %424 = vmatpush1.msra.mxu0 0.0
    %425 = vmatprep.subr.mxu0 0.0
    %426 = vmatpush1.msra.mxu0 0.0
    %427 = vmatprep.subr.mxu0 0.0
    %428 = vmatpush1.msra.mxu0 0.0
    %429 = vmatprep.subr.mxu0 0.0
    %430 = vmatpush1.msra.mxu0 0.0
    %431 = vmatprep.subr.mxu0 0.0
    %432 = vmatpush1.msra.mxu0 0.0
    %433 = vmatprep.subr.mxu0 0.0
    %434 = vmatpush1.msra.mxu0 0.0
    %435 = vmatprep.subr.mxu0 0.0
    %436 = vmatpush1.msra.mxu0 0.0
    %437 = vmatprep.subr.mxu0 0.0
    %438 = vmatpush1.msra.mxu0 0.0
    %439 = vmatprep.subr.mxu0 0.0
    %440 = vmatpush1.msra.mxu0 0.0
    %441 = vmatprep.subr.mxu0 0.0
    %442 = vmatpush1.msra.mxu0 0.0
    %443 = vmatprep.subr.mxu0 0.0
    %444 = vmatpush1.msra.mxu0 0.0
    %445 = vmatprep.mubr.f32.mxu0 0.0
    %446 = vmatmul.mubr.f32.gmra.mrb[0].mxu0 %v364
    %v447 = vpop.f32.mrb[0].mxu0
    %v448 = vadd.f32 %v360, %v447
    %v449 = vpop.f32.mrb[0].mxu0
    %450 = vmatprep.mubr.f32.mxu0 0.0
    %451 = vmatmul.mubr.f32.gmra.mrb[0].mxu0 %v367
    %v452 = vpop.f32.mrb[0].mxu0
    %v453 = vadd.f32 %v360, %v452
    %v454 = vpop.f32.mrb[0].mxu0
    %455 = vmatprep.mubr.f32.mxu0 0.0
    %456 = vmatmul.mubr.f32.gmra.mrb[0].mxu0 %v370
    %v457 = vpop.f32.mrb[0].mxu0
    %v458 = vadd.f32 %v360, %v457
    %v459 = vpop.f32.mrb[0].mxu0
    %460 = vmatprep.mubr.f32.mxu0 0.0
    %461 = vmatmul.mubr.f32.gmra.mrb[0].mxu0 %v373
    %v462 = vpop.f32.mrb[0].mxu0
    %v463 = vadd.f32 %v360, %v462
    %v464 = vpop.f32.mrb[0].mxu0
    %465 = vmatprep.mubr.f32.mxu0 0.0
    %466 = vmatmul.mubr.f32.gmra.mrb[0].mxu0 %v376
    %v467 = vpop.f32.mrb[0].mxu0
    %v468 = vadd.f32 %v360, %v467
    %v469 = vpop.f32.mrb[0].mxu0
    %470 = vmatprep.mubr.f32.mxu0 0.0
    %471 = vmatmul.mubr.f32.gmra.mrb[0].mxu0 %v379
    %v472 = vpop.f32.mrb[0].mxu0
    %v473 = vadd.f32 %v360, %v472
    %v474 = vpop.f32.mrb[0].mxu0
    %475 = vdwg.mxu0
    %v476 = vmax.f32 %v448, 0.0
    %v477 = vmax.f32 %v453, 0.0
    %v478 = vmax.f32 %v458, 0.0
    %v479 = vmax.f32 %v463, 0.0
    %v480 = vmax.f32 %v468, 0.0
    %v481 = vmax.f32 %v473, 0.0
    %v482 = vld [vmem:[#allocation2] sm:$0xff]
    %v484 = vsel %vm362, %v482, 0
    %486 = vmatprep.subr.mxu0 0.0
    %487 = vmatpush1.msra.mxu0 %v476
    %488 = vmatprep.subr.mxu0 0.0
    %489 = vmatpush1.msra.mxu0 %v477
    %490 = vmatprep.subr.mxu0 0.0
    %491 = vmatpush1.msra.mxu0 %v478
    %492 = vmatprep.subr.mxu0 0.0
    %493 = vmatpush1.msra.mxu0 %v479
    %494 = vmatprep.subr.mxu0 0.0
    %495 = vmatpush1.msra.mxu0 %v480
    %496 = vmatprep.subr.mxu0 0.0
    %497 = vmatpush1.msra.mxu0 %v481
    %498 = vmatprep.subr.mxu0 0.0
    %499 = vmatpush1.msra.mxu0 0.0
    %500 = vmatprep.subr.mxu0 0.0
    %501 = vmatpush1.msra.mxu0 0.0
    %502 = vmatprep.subr.mxu0 0.0
    %503 = vmatpush1.msra.mxu0 0.0
    %504 = vmatprep.subr.mxu0 0.0
    %505 = vmatpush1.msra.mxu0 0.0
    %506 = vmatprep.subr.mxu0 0.0
    %507 = vmatpush1.msra.mxu0 0.0
    %508 = vmatprep.subr.mxu0 0.0
    %509 = vmatpush1.msra.mxu0 0.0
    %510 = vmatprep.subr.mxu0 0.0
    %511 = vmatpush1.msra.mxu0 0.0
    %512 = vmatprep.subr.mxu0 0.0
    %513 = vmatpush1.msra.mxu0 0.0
    %514 = vmatprep.subr.mxu0 0.0
    %515 = vmatpush1.msra.mxu0 0.0
    %516 = vmatprep.subr.mxu0 0.0
    %517 = vmatpush1.msra.mxu0 0.0
    %518 = vmatprep.subr.mxu0 0.0
    %519 = vmatpush1.msra.mxu0 0.0
    %520 = vmatprep.subr.mxu0 0.0
    %521 = vmatpush1.msra.mxu0 0.0
    %522 = vmatprep.subr.mxu0 0.0
    %523 = vmatpush1.msra.mxu0 0.0
    %524 = vmatprep.subr.mxu0 0.0
    %525 = vmatpush1.msra.mxu0 0.0
    %526 = vmatprep.subr.mxu0 0.0
    %527 = vmatpush1.msra.mxu0 0.0
    %528 = vmatprep.subr.mxu0 0.0
    %529 = vmatpush1.msra.mxu0 0.0
    %530 = vmatprep.subr.mxu0 0.0
    %531 = vmatpush1.msra.mxu0 0.0
    %532 = vmatprep.subr.mxu0 0.0
    %533 = vmatpush1.msra.mxu0 0.0
    %534 = vmatprep.subr.mxu0 0.0
    %535 = vmatpush1.msra.mxu0 0.0
    %536 = vmatprep.subr.mxu0 0.0
    %537 = vmatpush1.msra.mxu0 0.0
    %538 = vmatprep.subr.mxu0 0.0
    %539 = vmatpush1.msra.mxu0 0.0
    %540 = vmatprep.subr.mxu0 0.0
    %541 = vmatpush1.msra.mxu0 0.0
    %542 = vmatprep.subr.mxu0 0.0
    %543 = vmatpush1.msra.mxu0 0.0
    %544 = vmatprep.subr.mxu0 0.0
    %545 = vmatpush1.msra.mxu0 0.0
    %546 = vmatprep.subr.mxu0 0.0
    %547 = vmatpush1.msra.mxu0 0.0
    %548 = vmatprep.subr.mxu0 0.0
    %549 = vmatpush1.msra.mxu0 0.0
    %550 = vmatprep.mubr.f32.mxu0 0.0
    %551 = vmatmul.mubr.f32.gmra.mrb[0].mxu0 %v484
    %v552 = vpop.f32.mrb[0].mxu0
    %v553 = vadd.f32 0.0, %v552
    %v554 = vpop.f32.mrb[0].mxu0
    %555 = vdwg.mxu0
    %v556 = vld [vmem:[%s11] sm:$0xff]
    %v557 = vld [vmem:[%s11 + $0x8] sm:$0xff]
    %v558 = vld [vmem:[#allocation8] sm:$0x1]
    %v560 = vlaneseq
    %v561 = vshrl.u32 %v560, 7
    %v562 = vsub.s32 0, %v561
    %v563 = vrot.slane %v558, %v562
    %vm565 = vcmask 130048
    %v567 = vsel %vm565, %v553, 0
    %569 = vmatprep.subr.mxu0 0.0
    %570 = vmatpush1.msra.mxu0 %v556
    %571 = vmatprep.subr.mxu0 0.0
    %572 = vmatpush1.msra.mxu0 %v557
    %573 = vmatprep.subr.mxu0 0.0
    %574 = vmatpush1.msra.mxu0 0.0
    %575 = vmatprep.subr.mxu0 0.0
    %576 = vmatpush1.msra.mxu0 0.0
    %577 = vmatprep.subr.mxu0 0.0
    %578 = vmatpush1.msra.mxu0 0.0
    %579 = vmatprep.subr.mxu0 0.0
    %580 = vmatpush1.msra.mxu0 0.0
    %581 = vmatprep.subr.mxu0 0.0
    %582 = vmatpush1.msra.mxu0 0.0
    %583 = vmatprep.subr.mxu0 0.0
    %584 = vmatpush1.msra.mxu0 0.0
    %585 = vmatprep.subr.mxu0 0.0
    %586 = vmatpush1.msra.mxu0 0.0
    %587 = vmatprep.subr.mxu0 0.0
    %588 = vmatpush1.msra.mxu0 0.0
    %589 = vmatprep.subr.mxu0 0.0
    %590 = vmatpush1.msra.mxu0 0.0
    %591 = vmatprep.subr.mxu0 0.0
    %592 = vmatpush1.msra.mxu0 0.0
    %593 = vmatprep.subr.mxu0 0.0
    %594 = vmatpush1.msra.mxu0 0.0
    %595 = vmatprep.subr.mxu0 0.0
    %596 = vmatpush1.msra.mxu0 0.0
    %597 = vmatprep.subr.mxu0 0.0
    %598 = vmatpush1.msra.mxu0 0.0
    %599 = vmatprep.subr.mxu0 0.0
    %600 = vmatpush1.msra.mxu0 0.0
    %601 = vmatprep.subr.mxu0 0.0
    %602 = vmatpush1.msra.mxu0 0.0
    %603 = vmatprep.subr.mxu0 0.0
    %604 = vmatpush1.msra.mxu0 0.0
    %605 = vmatprep.subr.mxu0 0.0
    %606 = vmatpush1.msra.mxu0 0.0
    %607 = vmatprep.subr.mxu0 0.0
    %608 = vmatpush1.msra.mxu0 0.0
    %609 = vmatprep.subr.mxu0 0.0
    %610 = vmatpush1.msra.mxu0 0.0
    %611 = vmatprep.subr.mxu0 0.0
    %612 = vmatpush1.msra.mxu0 0.0
    %613 = vmatprep.subr.mxu0 0.0
    %614 = vmatpush1.msra.mxu0 0.0
    %615 = vmatprep.subr.mxu0 0.0
    %616 = vmatpush1.msra.mxu0 0.0
    %617 = vmatprep.subr.mxu0 0.0
    %618 = vmatpush1.msra.mxu0 0.0
    %619 = vmatprep.subr.mxu0 0.0
    %620 = vmatpush1.msra.mxu0 0.0
    %621 = vmatprep.subr.mxu0 0.0
    %622 = vmatpush1.msra.mxu0 0.0
    %623 = vmatprep.subr.mxu0 0.0
    %624 = vmatpush1.msra.mxu0 0.0
    %625 = vmatprep.subr.mxu0 0.0
    %626 = vmatpush1.msra.mxu0 0.0
    %627 = vmatprep.subr.mxu0 0.0
    %628 = vmatpush1.msra.mxu0 0.0
    %629 = vmatprep.subr.mxu0 0.0
    %630 = vmatpush1.msra.mxu0 0.0
    %631 = vmatprep.subr.mxu0 0.0
    %632 = vmatpush1.msra.mxu0 0.0
    %633 = vmatprep.mubr.f32.mxu0 0.0
    %634 = vmatmul.mubr.f32.gmra.mrb[0].mxu0 %v567
    %v635 = vpop.f32.mrb[0].mxu0
    %v636 = vadd.f32 %v563, %v635
    %v637 = vpop.f32.mrb[0].mxu0
    %638 = vdwg.mxu0
    %v639 = vld [vmem:[%s15] sm:$0xff]
    %v640 = vld [vmem:[%s15 + $0x8] sm:$0xff]
    %vm641 = vcmask 64512
    %v643 = vsel %vm641, %v639, 0
    %v646 = vsel %vm641, %v640, 0
    %648 = vmatprep.subr.mxu0 0.0
    %649 = vmatpush1.msra.mxu0 %v636
    %650 = vmatprep.subr.mxu0 0.0
    %651 = vmatpush1.msra.mxu0 0.0
    %652 = vmatprep.subr.mxu0 0.0
    %653 = vmatpush1.msra.mxu0 0.0
    %654 = vmatprep.subr.mxu0 0.0
    %655 = vmatpush1.msra.mxu0 0.0
    %656 = vmatprep.subr.mxu0 0.0
    %657 = vmatpush1.msra.mxu0 0.0
    %658 = vmatprep.subr.mxu0 0.0
    %659 = vmatpush1.msra.mxu0 0.0
    %660 = vmatprep.subr.mxu0 0.0
    %661 = vmatpush1.msra.mxu0 0.0
    %662 = vmatprep.subr.mxu0 0.0
    %663 = vmatpush1.msra.mxu0 0.0
    %664 = vmatprep.subr.mxu0 0.0
    %665 = vmatpush1.msra.mxu0 0.0
    %666 = vmatprep.subr.mxu0 0.0
    %667 = vmatpush1.msra.mxu0 0.0
    %668 = vmatprep.subr.mxu0 0.0
    %669 = vmatpush1.msra.mxu0 0.0
    %670 = vmatprep.subr.mxu0 0.0
    %671 = vmatpush1.msra.mxu0 0.0
    %672 = vmatprep.subr.mxu0 0.0
    %673 = vmatpush1.msra.mxu0 0.0
    %674 = vmatprep.subr.mxu0 0.0
    %675 = vmatpush1.msra.mxu0 0.0
    %676 = vmatprep.subr.mxu0 0.0
    %677 = vmatpush1.msra.mxu0 0.0
    %678 = vmatprep.subr.mxu0 0.0
    %679 = vmatpush1.msra.mxu0 0.0
    %680 = vmatprep.subr.mxu0 0.0
    %681 = vmatpush1.msra.mxu0 0.0
    %682 = vmatprep.subr.mxu0 0.0
    %683 = vmatpush1.msra.mxu0 0.0
    %684 = vmatprep.subr.mxu0 0.0
    %685 = vmatpush1.msra.mxu0 0.0
    %686 = vmatprep.subr.mxu0 0.0
    %687 = vmatpush1.msra.mxu0 0.0
    %688 = vmatprep.subr.mxu0 0.0
    %689 = vmatpush1.msra.mxu0 0.0
    %690 = vmatprep.subr.mxu0 0.0
    %691 = vmatpush1.msra.mxu0 0.0
    %692 = vmatprep.subr.mxu0 0.0
    %693 = vmatpush1.msra.mxu0 0.0
    %694 = vmatprep.subr.mxu0 0.0
    %695 = vmatpush1.msra.mxu0 0.0
    %696 = vmatprep.subr.mxu0 0.0
    %697 = vmatpush1.msra.mxu0 0.0
    %698 = vmatprep.subr.mxu0 0.0
    %699 = vmatpush1.msra.mxu0 0.0
    %700 = vmatprep.subr.mxu0 0.0
    %701 = vmatpush1.msra.mxu0 0.0
    %702 = vmatprep.subr.mxu0 0.0
    %703 = vmatpush1.msra.mxu0 0.0
    %704 = vmatprep.subr.mxu0 0.0
    %705 = vmatpush1.msra.mxu0 0.0
    %706 = vmatprep.subr.mxu0 0.0
    %707 = vmatpush1.msra.mxu0 0.0
    %708 = vmatprep.subr.mxu0 0.0
    %709 = vmatpush1.msra.mxu0 0.0
    %710 = vmatprep.subr.mxu0 0.0
    %711 = vmatpush1.msra.mxu0 0.0
    %712 = vmatprep.mubr.f32.mxu0 0.0
    %713 = vmatmul.mubr.f32.gmra.mrb[0].mxu0 %v643
    %v714 = vpop.f32.mrb[0].mxu0
    %v715 = vadd.f32 0.0, %v714
    %v716 = vpop.f32.mrb[0].mxu0
    %717 = vmatprep.mubr.f32.mxu0 0.0
    %718 = vmatmul.mubr.f32.gmra.mrb[0].mxu0 %v646
    %v719 = vpop.f32.mrb[0].mxu0
    %v720 = vadd.f32 0.0, %v719
    %v721 = vpop.f32.mrb[0].mxu0
    %722 = vdwg.mxu0
    %v723 = vld [vmem:[#allocation10] sm:$0xff]
    %v724 = vld [vmem:[%s19] sm:$0xff]
    %v725 = vld [vmem:[%s19 + $0x8] sm:$0xff]
    %v726 = vld [vmem:[%s19 + $0x10] sm:$0xff]
    %v727 = vld [vmem:[%s19 + $0x18] sm:$0xff]
    %v728 = vld [vmem:[#allocation11] sm:$0x1]
    %v729 = vld [vmem:[#allocation13] sm:$0x1]
    %v730 = vld [vmem:[#allocation14] sm:$0x1]
    %v731 = vld [vmem:[#allocation16] sm:$0x1]
    %v732 = vld [vmem:[#allocation17] sm:$0x1]
    %v733 = vld [vmem:[#allocation19] sm:$0x1]
    %v734 = vld [vmem:[#allocation20] sm:$0x1]
    %v735 = vld [vmem:[#allocation22] sm:$0x1]
    %v736 = vld [vmem:[%s37] sm:$0xff]
    %v737 = vld [vmem:[%s37 + $0x8] sm:$0xff]
    %v738 = vld [vmem:[%s37 + $0x10] sm:$0xff]
    %v739 = vld [vmem:[%s37 + $0x18] sm:$0xff]
    %v740 = vld [vmem:[%s39] sm:$0xff]
    %v741 = vld [vmem:[%s39 + $0x8] sm:$0xff]
    %v742 = vld [vmem:[%s39 + $0x10] sm:$0xff]
    %v743 = vld [vmem:[%s39 + $0x18] sm:$0xff]
    %v744 = vld [vmem:[#allocation23] sm:$0x1]
    %v745 = vld [vmem:[#allocation25] sm:$0x1]
    %v746 = vld [vmem:[%s45] sm:$0x1]
    %v747 = vld [vmem:[%s47] sm:$0x1]
    %v748 = vld [vmem:[%s49] sm:$0x1]
    %v749 = vld [vmem:[%s51] sm:$0x1]
    %v750 = vld [vmem:[%s53] sm:$0x1]
    %v751 = vld [vmem:[%s55] sm:$0x1]
    %v753 = vlaneseq
    %v754 = vshrl.u32 %v753, 7
    %v755 = vsub.s32 0, %v754
    %v756 = vrot.slane %v728, %v755
    %v759 = vsel %vm641, %v715, 0
    %v762 = vsel %vm641, %v720, 0
    %764 = vmatprep.subr.mxu0 0.0
    %765 = vmatpush1.msra.mxu0 %v723
    %766 = vmatprep.subr.mxu0 0.0
    %767 = vmatpush1.msra.mxu0 0.0
    %768 = vmatprep.subr.mxu0 0.0
    %769 = vmatpush1.msra.mxu0 0.0
    %770 = vmatprep.subr.mxu0 0.0
    %771 = vmatpush1.msra.mxu0 0.0
    %772 = vmatprep.subr.mxu0 0.0
    %773 = vmatpush1.msra.mxu0 0.0
    %774 = vmatprep.subr.mxu0 0.0
    %775 = vmatpush1.msra.mxu0 0.0
    %776 = vmatprep.subr.mxu0 0.0
    %777 = vmatpush1.msra.mxu0 0.0
    %778 = vmatprep.subr.mxu0 0.0
    %779 = vmatpush1.msra.mxu0 0.0
    %780 = vmatprep.subr.mxu0 0.0
    %781 = vmatpush1.msra.mxu0 0.0
    %782 = vmatprep.subr.mxu0 0.0
    %783 = vmatpush1.msra.mxu0 0.0
    %784 = vmatprep.subr.mxu0 0.0
    %785 = vmatpush1.msra.mxu0 0.0
    %786 = vmatprep.subr.mxu0 0.0
    %787 = vmatpush1.msra.mxu0 0.0
    %788 = vmatprep.subr.mxu0 0.0
    %789 = vmatpush1.msra.mxu0 0.0
    %790 = vmatprep.subr.mxu0 0.0
    %791 = vmatpush1.msra.mxu0 0.0
    %792 = vmatprep.subr.mxu0 0.0
    %793 = vmatpush1.msra.mxu0 0.0
    %794 = vmatprep.subr.mxu0 0.0
    %795 = vmatpush1.msra.mxu0 0.0
    %796 = vmatprep.subr.mxu0 0.0
    %797 = vmatpush1.msra.mxu0 0.0
    %798 = vmatprep.subr.mxu0 0.0
    %799 = vmatpush1.msra.mxu0 0.0
    %800 = vmatprep.subr.mxu0 0.0
    %801 = vmatpush1.msra.mxu0 0.0
    %802 = vmatprep.subr.mxu0 0.0
    %803 = vmatpush1.msra.mxu0 0.0
    %804 = vmatprep.subr.mxu0 0.0
    %805 = vmatpush1.msra.mxu0 0.0
    %806 = vmatprep.subr.mxu0 0.0
    %807 = vmatpush1.msra.mxu0 0.0
    %808 = vmatprep.subr.mxu0 0.0
    %809 = vmatpush1.msra.mxu0 0.0
    %810 = vmatprep.subr.mxu0 0.0
    %811 = vmatpush1.msra.mxu0 0.0
    %812 = vmatprep.subr.mxu0 0.0
    %813 = vmatpush1.msra.mxu0 0.0
    %814 = vmatprep.subr.mxu0 0.0
    %815 = vmatpush1.msra.mxu0 0.0
    %816 = vmatprep.subr.mxu0 0.0
    %817 = vmatpush1.msra.mxu0 0.0
    %818 = vmatprep.subr.mxu0 0.0
    %819 = vmatpush1.msra.mxu0 0.0
    %820 = vmatprep.subr.mxu0 0.0
    %821 = vmatpush1.msra.mxu0 0.0
    %822 = vmatprep.subr.mxu0 0.0
    %823 = vmatpush1.msra.mxu0 0.0
    %824 = vmatprep.subr.mxu0 0.0
    %825 = vmatpush1.msra.mxu0 0.0
    %826 = vmatprep.subr.mxu0 0.0
    %827 = vmatpush1.msra.mxu0 0.0
    %828 = vmatprep.mubr.f32.mxu0 0.0
    %829 = vmatmul.mubr.f32.gmra.mrb[0].mxu0 %v759
    %v830 = vpop.f32.mrb[0].mxu0
    %v831 = vadd.f32 %v756, %v830
    %v832 = vpop.f32.mrb[0].mxu0
    %833 = vmatprep.mubr.f32.mxu0 0.0
    %834 = vmatmul.mubr.f32.gmra.mrb[0].mxu0 %v762
    %v835 = vpop.f32.mrb[0].mxu0
    %v836 = vadd.f32 %v756, %v835
    %v837 = vpop.f32.mrb[0].mxu0
    %838 = vdwg.mxu0
    %839 = vadd.xlane.f32.xlu0 %v831
    %v840 = vpop.xlane.xlu0 %839
    %841 = vadd.xlane.f32.xlu0 %v836
    %v842 = vpop.xlane.xlu0 %841
    %v843 = vrcp.pop 128.0
    %v844 = vmul.f32 %v840, %v843
    %v845 = vmul.f32 %v842, %v843
    %v846 = vmul.f32 %v831, %v831
    %v847 = vmul.f32 %v836, %v836
    %848 = vadd.xlane.f32.xlu0 %v846
    %v849 = vpop.xlane.xlu0 %848
    %850 = vadd.xlane.f32.xlu0 %v847
    %v851 = vpop.xlane.xlu0 %850
    %v852 = vmul.f32 %v849, %v843
    %v853 = vmul.f32 %v851, %v843
    %v854 = vmul.f32 %v844, %v844
    %v855 = vmul.f32 %v845, %v845
    %v856 = vsub.f32 %v852, %v854
    %v857 = vsub.f32 %v853, %v855
    %v858 = vmax.f32 %v856, 0.0
    %v859 = vmax.f32 %v857, 0.0
    %v860 = vsub.f32 %v831, %v844
    %v861 = vsub.f32 %v836, %v845
    %v862 = vadd.f32 %v858, 1e-05
    %v863 = vadd.f32 %v859, 1e-05
    %v864 = vrsqrt.pop %v862
    %v865 = vrsqrt.pop %v863
    %v866 = vmul.f32 %v860, %v864
    %v867 = vmul.f32 %v861, %v865
    %v869 = vlaneseq
    %v870 = vshrl.u32 %v869, 7
    %v871 = vsub.s32 0, %v870
    %v872 = vrot.slane %v730, %v871
    %v874 = vmul.f32 %v866, %v872
    %v875 = vmul.f32 %v867, %v872
    %v877 = vlaneseq
    %v878 = vshrl.u32 %v877, 7
    %v879 = vsub.s32 0, %v878
    %v880 = vrot.slane %v731, %v879
    %v882 = vadd.f32 %v874, %v880
    %v883 = vadd.f32 %v875, %v880
    %v884 = vlaneseq
    %v885 = vand.u32 %v884, 127
    %vm886 = vcmp.lt.s32.totalorder %v885, 96
    %v888 = vlaneseq
    %v889 = vshrl.u32 %v888, 7
    %v890 = vsub.s32 0, %v889
    %v891 = vrot.slane %v729, %v890
    %vm893 = vcmask 261120
    %v895 = vsel %vm893, 0.0, 0
    %897 = vmatprep.subr.mxu0 0.0
    %898 = vmatpush1.msra.mxu0 %v724
    %899 = vmatprep.subr.mxu0 0.0
    %900 = vmatpush1.msra.mxu0 %v725
    %901 = vmatprep.subr.mxu0 0.0
    %902 = vmatpush1.msra.mxu0 %v726
    %903 = vmatprep.subr.mxu0 0.0
    %904 = vmatpush1.msra.mxu0 %v727
    %905 = vmatprep.subr.mxu0 0.0
    %906 = vmatpush1.msra.mxu0 0.0
    %907 = vmatprep.subr.mxu0 0.0
    %908 = vmatpush1.msra.mxu0 0.0
    %909 = vmatprep.subr.mxu0 0.0
    %910 = vmatpush1.msra.mxu0 0.0
    %911 = vmatprep.subr.mxu0 0.0
    %912 = vmatpush1.msra.mxu0 0.0
    %913 = vmatprep.subr.mxu0 0.0
    %914 = vmatpush1.msra.mxu0 0.0
    %915 = vmatprep.subr.mxu0 0.0
    %916 = vmatpush1.msra.mxu0 0.0
    %917 = vmatprep.subr.mxu0 0.0
    %918 = vmatpush1.msra.mxu0 0.0
    %919 = vmatprep.subr.mxu0 0.0
    %920 = vmatpush1.msra.mxu0 0.0
    %921 = vmatprep.subr.mxu0 0.0
    %922 = vmatpush1.msra.mxu0 0.0
    %923 = vmatprep.subr.mxu0 0.0
    %924 = vmatpush1.msra.mxu0 0.0
    %925 = vmatprep.subr.mxu0 0.0
    %926 = vmatpush1.msra.mxu0 0.0
    %927 = vmatprep.subr.mxu0 0.0
    %928 = vmatpush1.msra.mxu0 0.0
    %929 = vmatprep.subr.mxu0 0.0
    %930 = vmatpush1.msra.mxu0 0.0
    %931 = vmatprep.subr.mxu0 0.0
    %932 = vmatpush1.msra.mxu0 0.0
    %933 = vmatprep.subr.mxu0 0.0
    %934 = vmatpush1.msra.mxu0 0.0
    %935 = vmatprep.subr.mxu0 0.0
    %936 = vmatpush1.msra.mxu0 0.0
    %937 = vmatprep.subr.mxu0 0.0
    %938 = vmatpush1.msra.mxu0 0.0
    %939 = vmatprep.subr.mxu0 0.0
    %940 = vmatpush1.msra.mxu0 0.0
    %941 = vmatprep.subr.mxu0 0.0
    %942 = vmatpush1.msra.mxu0 0.0
    %943 = vmatprep.subr.mxu0 0.0
    %944 = vmatpush1.msra.mxu0 0.0
    %945 = vmatprep.subr.mxu0 0.0
    %946 = vmatpush1.msra.mxu0 0.0
    %947 = vmatprep.subr.mxu0 0.0
    %948 = vmatpush1.msra.mxu0 0.0
    %949 = vmatprep.subr.mxu0 0.0
    %950 = vmatpush1.msra.mxu0 0.0
    %951 = vmatprep.subr.mxu0 0.0
    %952 = vmatpush1.msra.mxu0 0.0
    %953 = vmatprep.subr.mxu0 0.0
    %954 = vmatpush1.msra.mxu0 0.0
    %955 = vmatprep.subr.mxu0 0.0
    %956 = vmatpush1.msra.mxu0 0.0
    %957 = vmatprep.subr.mxu0 0.0
    %958 = vmatpush1.msra.mxu0 0.0
    %959 = vmatprep.subr.mxu0 0.0
    %960 = vmatpush1.msra.mxu0 0.0
    %961 = vmatprep.mubr.f32.mxu0 0.0
    %962 = vmatmul.mubr.f32.gmra.mrb[0].mxu0 %v895
    %v963 = vpop.f32.mrb[0].mxu0
    %v964 = vadd.f32 %v891, %v963
    %v965 = vpop.f32.mrb[0].mxu0
    %966 = vdwg.mxu0
    %vm967 = vcmask 1041408
    %v968 = vsel %vm967, %v964, 0.0
    %969 = vadd.xlane.f32.xlu0 %v968
    %v970 = vpop.xlane.xlu0 %969
    %v971 = vmul.f32 %v970, %v843
    %v972 = vmul.f32 %v964, %v964
    %v973 = vsel %vm967, %v972, 0.0
    %974 = vadd.xlane.f32.xlu0 %v973
    %v975 = vpop.xlane.xlu0 %974
    %v976 = vmul.f32 %v975, %v843
    %v977 = vmul.f32 %v971, %v971
    %v978 = vsub.f32 %v976, %v977
    %v979 = vmax.f32 %v978, 0.0
    %v980 = vsub.f32 %v964, %v971
    %v981 = vadd.f32 %v979, 1e-05
    %v982 = vrsqrt.pop %v981
    %v983 = vmul.f32 %v980, %v982
    %v985 = vlaneseq
    %v986 = vshrl.u32 %v985, 7
    %v987 = vsub.s32 0, %v986
    %v988 = vrot.slane %v732, %v987
    %v990 = vmul.f32 %v983, %v988
    %v992 = vlaneseq
    %v993 = vshrl.u32 %v992, 7
    %v994 = vsub.s32 0, %v993
    %v995 = vrot.slane %v733, %v994
    %v997 = vadd.f32 %v990, %v995
    %v998 = vadd.f32 %v882, %v997
    %v999 = vmul.f32 %v998, 0.5
    %v1000 = vsel %vm886, %v999, %v998
    %v1001 = vtanh.pop %v1000
    %v1002 = vadd.f32 %v1001, 1.0
    %v1003 = vmul.f32 %v1002, 0.5
    %v1004 = vsel %vm886, %v1003, %v1001
    %v1005 = vmul.f32 %v1004, 0.0
    %1007 = vrot.lane.b32.xlu0 %v1004, 32
    %v1008 = vpop.permute.xlu0 %1007
    %v1010 = vmul.f32 %v1004, %v1008
    %1012 = vrot.lane.b32.xlu0 %v1010, 32
    %v1013 = vpop.permute.xlu0 %1012
    %v1015 = vadd.f32 %v1005, %v1013
    %1017 = vrot.lane.b32.xlu0 %v1015, 96
    %v1018 = vpop.permute.xlu0 %1017
    %vm1020 = vcmask 254976
    %v1021 = vsel %vm1020, %v1018, 0.0
    %1022 = vadd.xlane.f32.xlu0 %v1021
    %v1023 = vpop.xlane.xlu0 %1022
    %v1024 = vrcp.pop 32.0
    %v1025 = vmul.f32 %v1023, %v1024
    %v1026 = vmul.f32 %v1015, %v1015
    %1028 = vrot.lane.b32.xlu0 %v1026, 96
    %v1029 = vpop.permute.xlu0 %1028
    %v1031 = vsel %vm1020, %v1029, 0.0
    %1032 = vadd.xlane.f32.xlu0 %v1031
    %v1033 = vpop.xlane.xlu0 %1032
    %v1034 = vmul.f32 %v1033, %v1024
    %v1035 = vmul.f32 %v1025, %v1025
    %v1036 = vsub.f32 %v1034, %v1035
    %v1037 = vmax.f32 %v1036, 0.0
    %v1038 = vsub.f32 %v1015, %v1025
    %v1039 = vadd.f32 %v1037, 1e-05
    %v1040 = vrsqrt.pop %v1039
    %v1041 = vmul.f32 %v1038, %v1040
    %v1043 = vlaneseq
    %v1044 = vshrl.u32 %v1043, 7
    %v1045 = vsub.s32 0, %v1044
    %v1046 = vrot.slane %v734, %v1045
    %1047 = vrot.lane.b32.xlu0 %v1046, 32
    %v1048 = vpop.permute.xlu0 %1047
    %v1050 = vmul.f32 %v1041, %v1048
    %v1052 = vlaneseq
    %v1053 = vshrl.u32 %v1052, 7
    %v1054 = vsub.s32 0, %v1053
    %v1055 = vrot.slane %v735, %v1054
    %1056 = vrot.lane.b32.xlu0 %v1055, 32
    %v1057 = vpop.permute.xlu0 %1056
    %v1059 = vadd.f32 %v1050, %v1057
    %v1060 = vtanh.pop %v1059
    %1062 = vrot.lane.b32.xlu0 %v1060, 32
    %v1063 = vpop.permute.xlu0 %1062
    %v1065 = vmul.f32 %v1004, %v1063
    %v1067 = vlaneseq
    %v1068 = vshrl.u32 %v1067, 7
    %v1069 = vsub.s32 0, %v1068
    %v1070 = vrot.slane %v744, %v1069
    %1073 = vrot.lane.b32.xlu0 %v1065, 64
    %v1074 = vpop.permute.xlu0 %1073
    %v1075 = vsel %vm893, %v1074, 0
    %1077 = vmatprep.subr.mxu0 0.0
    %1078 = vmatpush1.msra.mxu0 %v736
    %1079 = vmatprep.subr.mxu0 0.0
    %1080 = vmatpush1.msra.mxu0 %v737
    %1081 = vmatprep.subr.mxu0 0.0
    %1082 = vmatpush1.msra.mxu0 %v738
    %1083 = vmatprep.subr.mxu0 0.0
    %1084 = vmatpush1.msra.mxu0 %v739
    %1085 = vmatprep.subr.mxu0 0.0
    %1086 = vmatpush1.msra.mxu0 0.0
    %1087 = vmatprep.subr.mxu0 0.0
    %1088 = vmatpush1.msra.mxu0 0.0
    %1089 = vmatprep.subr.mxu0 0.0
    %1090 = vmatpush1.msra.mxu0 0.0
    %1091 = vmatprep.subr.mxu0 0.0
    %1092 = vmatpush1.msra.mxu0 0.0
    %1093 = vmatprep.subr.mxu0 0.0
    %1094 = vmatpush1.msra.mxu0 0.0
    %1095 = vmatprep.subr.mxu0 0.0
    %1096 = vmatpush1.msra.mxu0 0.0
    %1097 = vmatprep.subr.mxu0 0.0
    %1098 = vmatpush1.msra.mxu0 0.0
    %1099 = vmatprep.subr.mxu0 0.0
    %1100 = vmatpush1.msra.mxu0 0.0
    %1101 = vmatprep.subr.mxu0 0.0
    %1102 = vmatpush1.msra.mxu0 0.0
    %1103 = vmatprep.subr.mxu0 0.0
    %1104 = vmatpush1.msra.mxu0 0.0
    %1105 = vmatprep.subr.mxu0 0.0
    %1106 = vmatpush1.msra.mxu0 0.0
    %1107 = vmatprep.subr.mxu0 0.0
    %1108 = vmatpush1.msra.mxu0 0.0
    %1109 = vmatprep.subr.mxu0 0.0
    %1110 = vmatpush1.msra.mxu0 0.0
    %1111 = vmatprep.subr.mxu0 0.0
    %1112 = vmatpush1.msra.mxu0 0.0
    %1113 = vmatprep.subr.mxu0 0.0
    %1114 = vmatpush1.msra.mxu0 0.0
    %1115 = vmatprep.subr.mxu0 0.0
    %1116 = vmatpush1.msra.mxu0 0.0
    %1117 = vmatprep.subr.mxu0 0.0
    %1118 = vmatpush1.msra.mxu0 0.0
    %1119 = vmatprep.subr.mxu0 0.0
    %1120 = vmatpush1.msra.mxu0 0.0
    %1121 = vmatprep.subr.mxu0 0.0
    %1122 = vmatpush1.msra.mxu0 0.0
    %1123 = vmatprep.subr.mxu0 0.0
    %1124 = vmatpush1.msra.mxu0 0.0
    %1125 = vmatprep.subr.mxu0 0.0
    %1126 = vmatpush1.msra.mxu0 0.0
    %1127 = vmatprep.subr.mxu0 0.0
    %1128 = vmatpush1.msra.mxu0 0.0
    %1129 = vmatprep.subr.mxu0 0.0
    %1130 = vmatpush1.msra.mxu0 0.0
    %1131 = vmatprep.subr.mxu0 0.0
    %1132 = vmatpush1.msra.mxu0 0.0
    %1133 = vmatprep.subr.mxu0 0.0
    %1134 = vmatpush1.msra.mxu0 0.0
    %1135 = vmatprep.subr.mxu0 0.0
    %1136 = vmatpush1.msra.mxu0 0.0
    %1137 = vmatprep.subr.mxu0 0.0
    %1138 = vmatpush1.msra.mxu0 0.0
    %1139 = vmatprep.subr.mxu0 0.0
    %1140 = vmatpush1.msra.mxu0 0.0
    %1141 = vmatprep.mubr.f32.mxu0 0.0
    %1142 = vmatmul.mubr.f32.gmra.mrb[0].mxu0 %v1075
    %v1143 = vpop.f32.mrb[0].mxu0
    %v1144 = vadd.f32 %v1070, %v1143
    %v1145 = vpop.f32.mrb[0].mxu0
    %1146 = vdwg.mxu0
    %v1147 = vsel %vm967, %v1144, 0.0
    %1148 = vadd.xlane.f32.xlu0 %v1147
    %v1149 = vpop.xlane.xlu0 %1148
    %v1150 = vmul.f32 %v1149, %v843
    %v1151 = vmul.f32 %v1144, %v1144
    %v1152 = vsel %vm967, %v1151, 0.0
    %1153 = vadd.xlane.f32.xlu0 %v1152
    %v1154 = vpop.xlane.xlu0 %1153
    %v1155 = vmul.f32 %v1154, %v843
    %v1156 = vmul.f32 %v1150, %v1150
    %v1157 = vsub.f32 %v1155, %v1156
    %v1158 = vmax.f32 %v1157, 0.0
    %v1159 = vsub.f32 %v1144, %v1150
    %v1160 = vadd.f32 %v1158, 1e-05
    %v1161 = vrsqrt.pop %v1160
    %v1162 = vmul.f32 %v1159, %v1161
    %v1164 = vlaneseq
    %v1165 = vshrl.u32 %v1164, 7
    %v1166 = vsub.s32 0, %v1165
    %v1167 = vrot.slane %v746, %v1166
    %v1169 = vmul.f32 %v1162, %v1167
    %v1171 = vlaneseq
    %v1172 = vshrl.u32 %v1171, 7
    %v1173 = vsub.s32 0, %v1172
    %v1174 = vrot.slane %v747, %v1173
    %v1176 = vadd.f32 %v1169, %v1174
    %v1178 = vlaneseq
    %v1179 = vshrl.u32 %v1178, 7
    %v1180 = vsub.s32 0, %v1179
    %v1181 = vrot.slane %v745, %v1180
    %1183 = vmatprep.subr.mxu0 0.0
    %1184 = vmatpush1.msra.mxu0 %v740
    %1185 = vmatprep.subr.mxu0 0.0
    %1186 = vmatpush1.msra.mxu0 %v741
    %1187 = vmatprep.subr.mxu0 0.0
    %1188 = vmatpush1.msra.mxu0 %v742
    %1189 = vmatprep.subr.mxu0 0.0
    %1190 = vmatpush1.msra.mxu0 %v743
    %1191 = vmatprep.subr.mxu0 0.0
    %1192 = vmatpush1.msra.mxu0 0.0
    %1193 = vmatprep.subr.mxu0 0.0
    %1194 = vmatpush1.msra.mxu0 0.0
    %1195 = vmatprep.subr.mxu0 0.0
    %1196 = vmatpush1.msra.mxu0 0.0
    %1197 = vmatprep.subr.mxu0 0.0
    %1198 = vmatpush1.msra.mxu0 0.0
    %1199 = vmatprep.subr.mxu0 0.0
    %1200 = vmatpush1.msra.mxu0 0.0
    %1201 = vmatprep.subr.mxu0 0.0
    %1202 = vmatpush1.msra.mxu0 0.0
    %1203 = vmatprep.subr.mxu0 0.0
    %1204 = vmatpush1.msra.mxu0 0.0
    %1205 = vmatprep.subr.mxu0 0.0
    %1206 = vmatpush1.msra.mxu0 0.0
    %1207 = vmatprep.subr.mxu0 0.0
    %1208 = vmatpush1.msra.mxu0 0.0
    %1209 = vmatprep.subr.mxu0 0.0
    %1210 = vmatpush1.msra.mxu0 0.0
    %1211 = vmatprep.subr.mxu0 0.0
    %1212 = vmatpush1.msra.mxu0 0.0
    %1213 = vmatprep.subr.mxu0 0.0
    %1214 = vmatpush1.msra.mxu0 0.0
    %1215 = vmatprep.subr.mxu0 0.0
    %1216 = vmatpush1.msra.mxu0 0.0
    %1217 = vmatprep.subr.mxu0 0.0
    %1218 = vmatpush1.msra.mxu0 0.0
    %1219 = vmatprep.subr.mxu0 0.0
    %1220 = vmatpush1.msra.mxu0 0.0
    %1221 = vmatprep.subr.mxu0 0.0
    %1222 = vmatpush1.msra.mxu0 0.0
    %1223 = vmatprep.subr.mxu0 0.0
    %1224 = vmatpush1.msra.mxu0 0.0
    %1225 = vmatprep.subr.mxu0 0.0
    %1226 = vmatpush1.msra.mxu0 0.0
    %1227 = vmatprep.subr.mxu0 0.0
    %1228 = vmatpush1.msra.mxu0 0.0
    %1229 = vmatprep.subr.mxu0 0.0
    %1230 = vmatpush1.msra.mxu0 0.0
    %1231 = vmatprep.subr.mxu0 0.0
    %1232 = vmatpush1.msra.mxu0 0.0
    %1233 = vmatprep.subr.mxu0 0.0
    %1234 = vmatpush1.msra.mxu0 0.0
    %1235 = vmatprep.subr.mxu0 0.0
    %1236 = vmatpush1.msra.mxu0 0.0
    %1237 = vmatprep.subr.mxu0 0.0
    %1238 = vmatpush1.msra.mxu0 0.0
    %1239 = vmatprep.subr.mxu0 0.0
    %1240 = vmatpush1.msra.mxu0 0.0
    %1241 = vmatprep.subr.mxu0 0.0
    %1242 = vmatpush1.msra.mxu0 0.0
    %1243 = vmatprep.subr.mxu0 0.0
    %1244 = vmatpush1.msra.mxu0 0.0
    %1245 = vmatprep.subr.mxu0 0.0
    %1246 = vmatpush1.msra.mxu0 0.0
    %1247 = vmatprep.mubr.f32.mxu0 0.0
    %1248 = vmatmul.mubr.f32.gmra.mrb[0].mxu0 %v895
    %v1249 = vpop.f32.mrb[0].mxu0
    %v1250 = vadd.f32 %v1181, %v1249
    %v1251 = vpop.f32.mrb[0].mxu0
    %1252 = vdwg.mxu0
    %v1253 = vsel %vm967, %v1250, 0.0
    %1254 = vadd.xlane.f32.xlu0 %v1253
    %v1255 = vpop.xlane.xlu0 %1254
    %v1256 = vmul.f32 %v1255, %v843
    %v1257 = vmul.f32 %v1250, %v1250
    %v1258 = vsel %vm967, %v1257, 0.0
    %1259 = vadd.xlane.f32.xlu0 %v1258
    %v1260 = vpop.xlane.xlu0 %1259
    %v1261 = vmul.f32 %v1260, %v843
    %v1262 = vmul.f32 %v1256, %v1256
    %v1263 = vsub.f32 %v1261, %v1262
    %v1264 = vmax.f32 %v1263, 0.0
    %v1265 = vsub.f32 %v1250, %v1256
    %v1266 = vadd.f32 %v1264, 1e-05
    %v1267 = vrsqrt.pop %v1266
    %v1268 = vmul.f32 %v1265, %v1267
    %v1270 = vlaneseq
    %v1271 = vshrl.u32 %v1270, 7
    %v1272 = vsub.s32 0, %v1271
    %v1273 = vrot.slane %v748, %v1272
    %v1275 = vmul.f32 %v1268, %v1273
    %v1277 = vlaneseq
    %v1278 = vshrl.u32 %v1277, 7
    %v1279 = vsub.s32 0, %v1278
    %v1280 = vrot.slane %v749, %v1279
    %v1282 = vadd.f32 %v1275, %v1280
    %v1283 = vadd.f32 %v1176, %v1282
    %v1284 = vmul.f32 %v1283, 0.5
    %v1285 = vsel %vm886, %v1284, %v1283
    %v1286 = vtanh.pop %v1285
    %v1287 = vadd.f32 %v1286, 1.0
    %v1288 = vmul.f32 %v1287, 0.5
    %v1289 = vsel %vm886, %v1288, %v1286
    %v1290 = vmul.f32 %v1289, 0.0
    %1292 = vrot.lane.b32.xlu0 %v1289, 32
    %v1293 = vpop.permute.xlu0 %1292
    %v1295 = vmul.f32 %v1289, %v1293
    %1297 = vrot.lane.b32.xlu0 %v1295, 32
    %v1298 = vpop.permute.xlu0 %1297
    %v1300 = vadd.f32 %v1290, %v1298
    %1302 = vrot.lane.b32.xlu0 %v1300, 96
    %v1303 = vpop.permute.xlu0 %1302
    %v1305 = vsel %vm1020, %v1303, 0.0
    %1306 = vadd.xlane.f32.xlu0 %v1305
    %v1307 = vpop.xlane.xlu0 %1306
    %v1308 = vmul.f32 %v1307, %v1024
    %v1309 = vmul.f32 %v1300, %v1300
    %1311 = vrot.lane.b32.xlu0 %v1309, 96
    %v1312 = vpop.permute.xlu0 %1311
    %v1314 = vsel %vm1020, %v1312, 0.0
    %1315 = vadd.xlane.f32.xlu0 %v1314
    %v1316 = vpop.xlane.xlu0 %1315
    %v1317 = vmul.f32 %v1316, %v1024
    %v1318 = vmul.f32 %v1308, %v1308
    %v1319 = vsub.f32 %v1317, %v1318
    %v1320 = vmax.f32 %v1319, 0.0
    %v1321 = vsub.f32 %v1300, %v1308
    %v1322 = vadd.f32 %v1320, 1e-05
    %v1323 = vrsqrt.pop %v1322
    %v1324 = vmul.f32 %v1321, %v1323
    %v1326 = vlaneseq
    %v1327 = vshrl.u32 %v1326, 7
    %v1328 = vsub.s32 0, %v1327
    %v1329 = vrot.slane %v750, %v1328
    %1330 = vrot.lane.b32.xlu0 %v1329, 32
    %v1331 = vpop.permute.xlu0 %1330
    %v1333 = vmul.f32 %v1324, %v1331
    %v1335 = vlaneseq
    %v1336 = vshrl.u32 %v1335, 7
    %v1337 = vsub.s32 0, %v1336
    %v1338 = vrot.slane %v751, %v1337
    %1339 = vrot.lane.b32.xlu0 %v1338, 32
    %v1340 = vpop.permute.xlu0 %1339
    %v1342 = vadd.f32 %v1333, %v1340
    %v1343 = vtanh.pop %v1342
    %1345 = vrot.lane.b32.xlu0 %v1343, 32
    %v1346 = vpop.permute.xlu0 %1345
    %v1348 = vmul.f32 %v1289, %v1346
    %1349 = vmatprep.subr.mxu0 0.0
    %1350 = vmatpush1.msra.mxu0 %v724
    %1351 = vmatprep.subr.mxu0 0.0
    %1352 = vmatpush1.msra.mxu0 %v725
    %1353 = vmatprep.subr.mxu0 0.0
    %1354 = vmatpush1.msra.mxu0 %v726
    %1355 = vmatprep.subr.mxu0 0.0
    %1356 = vmatpush1.msra.mxu0 %v727
    %1357 = vmatprep.subr.mxu0 0.0
    %1358 = vmatpush1.msra.mxu0 0.0
    %1359 = vmatprep.subr.mxu0 0.0
    %1360 = vmatpush1.msra.mxu0 0.0
    %1361 = vmatprep.subr.mxu0 0.0
    %1362 = vmatpush1.msra.mxu0 0.0
    %1363 = vmatprep.subr.mxu0 0.0
    %1364 = vmatpush1.msra.mxu0 0.0
    %1365 = vmatprep.subr.mxu0 0.0
    %1366 = vmatpush1.msra.mxu0 0.0
    %1367 = vmatprep.subr.mxu0 0.0
    %1368 = vmatpush1.msra.mxu0 0.0
    %1369 = vmatprep.subr.mxu0 0.0
    %1370 = vmatpush1.msra.mxu0 0.0
    %1371 = vmatprep.subr.mxu0 0.0
    %1372 = vmatpush1.msra.mxu0 0.0
    %1373 = vmatprep.subr.mxu0 0.0
    %1374 = vmatpush1.msra.mxu0 0.0
    %1375 = vmatprep.subr.mxu0 0.0
    %1376 = vmatpush1.msra.mxu0 0.0
    %1377 = vmatprep.subr.mxu0 0.0
    %1378 = vmatpush1.msra.mxu0 0.0
    %1379 = vmatprep.subr.mxu0 0.0
    %1380 = vmatpush1.msra.mxu0 0.0
    %1381 = vmatprep.subr.mxu0 0.0
    %1382 = vmatpush1.msra.mxu0 0.0
    %1383 = vmatprep.subr.mxu0 0.0
    %1384 = vmatpush1.msra.mxu0 0.0
    %1385 = vmatprep.subr.mxu0 0.0
    %1386 = vmatpush1.msra.mxu0 0.0
    %1387 = vmatprep.subr.mxu0 0.0
    %1388 = vmatpush1.msra.mxu0 0.0
    %1389 = vmatprep.subr.mxu0 0.0
    %1390 = vmatpush1.msra.mxu0 0.0
    %1391 = vmatprep.subr.mxu0 0.0
    %1392 = vmatpush1.msra.mxu0 0.0
    %1393 = vmatprep.subr.mxu0 0.0
    %1394 = vmatpush1.msra.mxu0 0.0
    %1395 = vmatprep.subr.mxu0 0.0
    %1396 = vmatpush1.msra.mxu0 0.0
    %1397 = vmatprep.subr.mxu0 0.0
    %1398 = vmatpush1.msra.mxu0 0.0
    %1399 = vmatprep.subr.mxu0 0.0
    %1400 = vmatpush1.msra.mxu0 0.0
    %1401 = vmatprep.subr.mxu0 0.0
    %1402 = vmatpush1.msra.mxu0 0.0
    %1403 = vmatprep.subr.mxu0 0.0
    %1404 = vmatpush1.msra.mxu0 0.0
    %1405 = vmatprep.subr.mxu0 0.0
    %1406 = vmatpush1.msra.mxu0 0.0
    %1407 = vmatprep.subr.mxu0 0.0
    %1408 = vmatpush1.msra.mxu0 0.0
    %1409 = vmatprep.subr.mxu0 0.0
    %1410 = vmatpush1.msra.mxu0 0.0
    %1411 = vmatprep.subr.mxu0 0.0
    %1412 = vmatpush1.msra.mxu0 0.0
    %1413 = vmatprep.mubr.f32.mxu0 0.0
    %1414 = vmatmul.mubr.f32.gmra.mrb[0].mxu0 %v1075
    %v1415 = vpop.f32.mrb[0].mxu0
    %v1416 = vadd.f32 %v891, %v1415
    %v1417 = vpop.f32.mrb[0].mxu0
    %1418 = vdwg.mxu0
    %v1419 = vsel %vm967, %v1416, 0.0
    %1420 = vadd.xlane.f32.xlu0 %v1419
    %v1421 = vpop.xlane.xlu0 %1420
    %v1422 = vmul.f32 %v1421, %v843
    %v1423 = vmul.f32 %v1416, %v1416
    %v1424 = vsel %vm967, %v1423, 0.0
    %1425 = vadd.xlane.f32.xlu0 %v1424
    %v1426 = vpop.xlane.xlu0 %1425
    %v1427 = vmul.f32 %v1426, %v843
    %v1428 = vmul.f32 %v1422, %v1422
    %v1429 = vsub.f32 %v1427, %v1428
    %v1430 = vmax.f32 %v1429, 0.0
    %v1431 = vsub.f32 %v1416, %v1422
    %v1432 = vadd.f32 %v1430, 1e-05
    %v1433 = vrsqrt.pop %v1432
    %v1434 = vmul.f32 %v1431, %v1433
    %v1435 = vmul.f32 %v1434, %v988
    %v1436 = vadd.f32 %v1435, %v995
    %v1438 = vrot.slane %v1436, 6
    %v1440 = vadd.f32 %v882, %v1438
    %v1441 = vmul.f32 %v1440, 0.5
    %v1442 = vsel %vm886, %v1441, %v1440
    %v1443 = vtanh.pop %v1442
    %v1444 = vadd.f32 %v1443, 1.0
    %v1445 = vmul.f32 %v1444, 0.5
    %v1446 = vsel %vm886, %v1445, %v1443
    %v1447 = vrot.slane %v1015, 6
    %v1449 = vmul.f32 %v1446, %v1447
    %1451 = vrot.lane.b32.xlu0 %v1446, 32
    %v1452 = vpop.permute.xlu0 %1451
    %v1454 = vmul.f32 %v1446, %v1452
    %1456 = vrot.lane.b32.xlu0 %v1454, 32
    %v1457 = vpop.permute.xlu0 %1456
    %v1459 = vadd.f32 %v1449, %v1457
    %1461 = vrot.lane.b32.xlu0 %v1459, 96
    %v1462 = vpop.permute.xlu0 %1461
    %vm1464 = vcmask 257026
    %v1465 = vsel %vm1464, %v1462, 0.0
    %1466 = vadd.xlane.f32.xlu0 %v1465
    %v1467 = vpop.xlane.xlu0 %1466
    %v1468 = vmul.f32 %v1467, %v1024
    %v1469 = vmul.f32 %v1459, %v1459
    %1471 = vrot.lane.b32.xlu0 %v1469, 96
    %v1472 = vpop.permute.xlu0 %1471
    %v1474 = vsel %vm1464, %v1472, 0.0
    %1475 = vadd.xlane.f32.xlu0 %v1474
    %v1476 = vpop.xlane.xlu0 %1475
    %v1477 = vmul.f32 %v1476, %v1024
    %v1478 = vmul.f32 %v1468, %v1468
    %v1479 = vsub.f32 %v1477, %v1478
    %v1480 = vmax.f32 %v1479, 0.0
    %v1481 = vsub.f32 %v1459, %v1468
    %v1482 = vadd.f32 %v1480, 1e-05
    %v1483 = vrsqrt.pop %v1482
    %v1484 = vmul.f32 %v1481, %v1483
    %v1485 = vmul.f32 %v1484, %v1048
    %v1486 = vadd.f32 %v1485, %v1057
    %v1487 = vtanh.pop %v1486
    %1489 = vrot.lane.b32.xlu0 %v1487, 32
    %v1490 = vpop.permute.xlu0 %1489
    %v1492 = vmul.f32 %v1446, %v1490
    %v1494 = vrot.slane %v1492, 2
    %1495 = vrot.lane.b32.xlu0 %v1494, 64
    %v1496 = vpop.permute.xlu0 %1495
    %v1497 = vsel %vm893, %v1496, 0
    %1499 = vmatprep.subr.mxu0 0.0
    %1500 = vmatpush1.msra.mxu0 %v736
    %1501 = vmatprep.subr.mxu0 0.0
    %1502 = vmatpush1.msra.mxu0 %v737
    %1503 = vmatprep.subr.mxu0 0.0
    %1504 = vmatpush1.msra.mxu0 %v738
    %1505 = vmatprep.subr.mxu0 0.0
    %1506 = vmatpush1.msra.mxu0 %v739
    %1507 = vmatprep.subr.mxu0 0.0
    %1508 = vmatpush1.msra.mxu0 0.0
    %1509 = vmatprep.subr.mxu0 0.0
    %1510 = vmatpush1.msra.mxu0 0.0
    %1511 = vmatprep.subr.mxu0 0.0
    %1512 = vmatpush1.msra.mxu0 0.0
    %1513 = vmatprep.subr.mxu0 0.0
    %1514 = vmatpush1.msra.mxu0 0.0
    %1515 = vmatprep.subr.mxu0 0.0
    %1516 = vmatpush1.msra.mxu0 0.0
    %1517 = vmatprep.subr.mxu0 0.0
    %1518 = vmatpush1.msra.mxu0 0.0
    %1519 = vmatprep.subr.mxu0 0.0
    %1520 = vmatpush1.msra.mxu0 0.0
    %1521 = vmatprep.subr.mxu0 0.0
    %1522 = vmatpush1.msra.mxu0 0.0
    %1523 = vmatprep.subr.mxu0 0.0
    %1524 = vmatpush1.msra.mxu0 0.0
    %1525 = vmatprep.subr.mxu0 0.0
    %1526 = vmatpush1.msra.mxu0 0.0
    %1527 = vmatprep.subr.mxu0 0.0
    %1528 = vmatpush1.msra.mxu0 0.0
    %1529 = vmatprep.subr.mxu0 0.0
    %1530 = vmatpush1.msra.mxu0 0.0
    %1531 = vmatprep.subr.mxu0 0.0
    %1532 = vmatpush1.msra.mxu0 0.0
    %1533 = vmatprep.subr.mxu0 0.0
    %1534 = vmatpush1.msra.mxu0 0.0
    %1535 = vmatprep.subr.mxu0 0.0
    %1536 = vmatpush1.msra.mxu0 0.0
    %1537 = vmatprep.subr.mxu0 0.0
    %1538 = vmatpush1.msra.mxu0 0.0
    %1539 = vmatprep.subr.mxu0 0.0
    %1540 = vmatpush1.msra.mxu0 0.0
    %1541 = vmatprep.subr.mxu0 0.0
    %1542 = vmatpush1.msra.mxu0 0.0
    %1543 = vmatprep.subr.mxu0 0.0
    %1544 = vmatpush1.msra.mxu0 0.0
    %1545 = vmatprep.subr.mxu0 0.0
    %1546 = vmatpush1.msra.mxu0 0.0
    %1547 = vmatprep.subr.mxu0 0.0
    %1548 = vmatpush1.msra.mxu0 0.0
    %1549 = vmatprep.subr.mxu0 0.0
    %1550 = vmatpush1.msra.mxu0 0.0
    %1551 = vmatprep.subr.mxu0 0.0
    %1552 = vmatpush1.msra.mxu0 0.0
    %1553 = vmatprep.subr.mxu0 0.0
    %1554 = vmatpush1.msra.mxu0 0.0
    %1555 = vmatprep.subr.mxu0 0.0
    %1556 = vmatpush1.msra.mxu0 0.0
    %1557 = vmatprep.subr.mxu0 0.0
    %1558 = vmatpush1.msra.mxu0 0.0
    %1559 = vmatprep.subr.mxu0 0.0
    %1560 = vmatpush1.msra.mxu0 0.0
    %1561 = vmatprep.subr.mxu0 0.0
    %1562 = vmatpush1.msra.mxu0 0.0
    %1563 = vmatprep.mubr.f32.mxu0 0.0
    %1564 = vmatmul.mubr.f32.gmra.mrb[0].mxu0 %v1497
    %v1565 = vpop.f32.mrb[0].mxu0
    %v1566 = vadd.f32 %v1070, %v1565
    %v1567 = vpop.f32.mrb[0].mxu0
    %1568 = vdwg.mxu0
    %v1569 = vsel %vm967, %v1566, 0.0
    %1570 = vadd.xlane.f32.xlu0 %v1569
    %v1571 = vpop.xlane.xlu0 %1570
    %v1572 = vmul.f32 %v1571, %v843
    %v1573 = vmul.f32 %v1566, %v1566
    %v1574 = vsel %vm967, %v1573, 0.0
    %1575 = vadd.xlane.f32.xlu0 %v1574
    %v1576 = vpop.xlane.xlu0 %1575
    %v1577 = vmul.f32 %v1576, %v843
    %v1578 = vmul.f32 %v1572, %v1572
    %v1579 = vsub.f32 %v1577, %v1578
    %v1580 = vmax.f32 %v1579, 0.0
    %v1581 = vsub.f32 %v1566, %v1572
    %v1582 = vadd.f32 %v1580, 1e-05
    %v1583 = vrsqrt.pop %v1582
    %v1584 = vmul.f32 %v1581, %v1583
    %v1585 = vmul.f32 %v1584, %v1167
    %v1586 = vadd.f32 %v1585, %v1174
    %1588 = vrot.lane.b32.xlu0 %v1348, 64
    %v1589 = vpop.permute.xlu0 %1588
    %v1590 = vsel %vm893, %v1589, 0
    %1592 = vmatprep.subr.mxu0 0.0
    %1593 = vmatpush1.msra.mxu0 %v740
    %1594 = vmatprep.subr.mxu0 0.0
    %1595 = vmatpush1.msra.mxu0 %v741
    %1596 = vmatprep.subr.mxu0 0.0
    %1597 = vmatpush1.msra.mxu0 %v742
    %1598 = vmatprep.subr.mxu0 0.0
    %1599 = vmatpush1.msra.mxu0 %v743
    %1600 = vmatprep.subr.mxu0 0.0
    %1601 = vmatpush1.msra.mxu0 0.0
    %1602 = vmatprep.subr.mxu0 0.0
    %1603 = vmatpush1.msra.mxu0 0.0
    %1604 = vmatprep.subr.mxu0 0.0
    %1605 = vmatpush1.msra.mxu0 0.0
    %1606 = vmatprep.subr.mxu0 0.0
    %1607 = vmatpush1.msra.mxu0 0.0
    %1608 = vmatprep.subr.mxu0 0.0
    %1609 = vmatpush1.msra.mxu0 0.0
    %1610 = vmatprep.subr.mxu0 0.0
    %1611 = vmatpush1.msra.mxu0 0.0
    %1612 = vmatprep.subr.mxu0 0.0
    %1613 = vmatpush1.msra.mxu0 0.0
    %1614 = vmatprep.subr.mxu0 0.0
    %1615 = vmatpush1.msra.mxu0 0.0
    %1616 = vmatprep.subr.mxu0 0.0
    %1617 = vmatpush1.msra.mxu0 0.0
    %1618 = vmatprep.subr.mxu0 0.0
    %1619 = vmatpush1.msra.mxu0 0.0
    %1620 = vmatprep.subr.mxu0 0.0
    %1621 = vmatpush1.msra.mxu0 0.0
    %1622 = vmatprep.subr.mxu0 0.0
    %1623 = vmatpush1.msra.mxu0 0.0
    %1624 = vmatprep.subr.mxu0 0.0
    %1625 = vmatpush1.msra.mxu0 0.0
    %1626 = vmatprep.subr.mxu0 0.0
    %1627 = vmatpush1.msra.mxu0 0.0
    %1628 = vmatprep.subr.mxu0 0.0
    %1629 = vmatpush1.msra.mxu0 0.0
    %1630 = vmatprep.subr.mxu0 0.0
    %1631 = vmatpush1.msra.mxu0 0.0
    %1632 = vmatprep.subr.mxu0 0.0
    %1633 = vmatpush1.msra.mxu0 0.0
    %1634 = vmatprep.subr.mxu0 0.0
    %1635 = vmatpush1.msra.mxu0 0.0
    %1636 = vmatprep.subr.mxu0 0.0
    %1637 = vmatpush1.msra.mxu0 0.0
    %1638 = vmatprep.subr.mxu0 0.0
    %1639 = vmatpush1.msra.mxu0 0.0
    %1640 = vmatprep.subr.mxu0 0.0
    %1641 = vmatpush1.msra.mxu0 0.0
    %1642 = vmatprep.subr.mxu0 0.0
    %1643 = vmatpush1.msra.mxu0 0.0
    %1644 = vmatprep.subr.mxu0 0.0
    %1645 = vmatpush1.msra.mxu0 0.0
    %1646 = vmatprep.subr.mxu0 0.0
    %1647 = vmatpush1.msra.mxu0 0.0
    %1648 = vmatprep.subr.mxu0 0.0
    %1649 = vmatpush1.msra.mxu0 0.0
    %1650 = vmatprep.subr.mxu0 0.0
    %1651 = vmatpush1.msra.mxu0 0.0
    %1652 = vmatprep.subr.mxu0 0.0
    %1653 = vmatpush1.msra.mxu0 0.0
    %1654 = vmatprep.subr.mxu0 0.0
    %1655 = vmatpush1.msra.mxu0 0.0
    %1656 = vmatprep.mubr.f32.mxu0 0.0
    %1657 = vmatmul.mubr.f32.gmra.mrb[0].mxu0 %v1590
    %v1658 = vpop.f32.mrb[0].mxu0
    %v1659 = vadd.f32 %v1181, %v1658
    %v1660 = vpop.f32.mrb[0].mxu0
    %1661 = vdwg.mxu0
    %v1662 = vsel %vm967, %v1659, 0.0
    %1663 = vadd.xlane.f32.xlu0 %v1662
    %v1664 = vpop.xlane.xlu0 %1663
    %v1665 = vmul.f32 %v1664, %v843
    %v1666 = vmul.f32 %v1659, %v1659
    %v1667 = vsel %vm967, %v1666, 0.0
    %1668 = vadd.xlane.f32.xlu0 %v1667
    %v1669 = vpop.xlane.xlu0 %1668
    %v1670 = vmul.f32 %v1669, %v843
    %v1671 = vmul.f32 %v1665, %v1665
    %v1672 = vsub.f32 %v1670, %v1671
    %v1673 = vmax.f32 %v1672, 0.0
    %v1674 = vsub.f32 %v1659, %v1665
    %v1675 = vadd.f32 %v1673, 1e-05
    %v1676 = vrsqrt.pop %v1675
    %v1677 = vmul.f32 %v1674, %v1676
    %v1678 = vmul.f32 %v1677, %v1273
    %v1679 = vadd.f32 %v1678, %v1280
    %v1680 = vadd.f32 %v1586, %v1679
    %v1681 = vmul.f32 %v1680, 0.5
    %v1682 = vsel %vm886, %v1681, %v1680
    %v1683 = vtanh.pop %v1682
    %v1684 = vadd.f32 %v1683, 1.0
    %v1685 = vmul.f32 %v1684, 0.5
    %v1686 = vsel %vm886, %v1685, %v1683
    %v1687 = vmul.f32 %v1686, %v1300
    %1689 = vrot.lane.b32.xlu0 %v1686, 32
    %v1690 = vpop.permute.xlu0 %1689
    %v1692 = vmul.f32 %v1686, %v1690
    %1694 = vrot.lane.b32.xlu0 %v1692, 32
    %v1695 = vpop.permute.xlu0 %1694
    %v1697 = vadd.f32 %v1687, %v1695
    %1699 = vrot.lane.b32.xlu0 %v1697, 96
    %v1700 = vpop.permute.xlu0 %1699
    %v1702 = vsel %vm1020, %v1700, 0.0
    %1703 = vadd.xlane.f32.xlu0 %v1702
    %v1704 = vpop.xlane.xlu0 %1703
    %v1705 = vmul.f32 %v1704, %v1024
    %v1706 = vmul.f32 %v1697, %v1697
    %1708 = vrot.lane.b32.xlu0 %v1706, 96
    %v1709 = vpop.permute.xlu0 %1708
    %v1711 = vsel %vm1020, %v1709, 0.0
    %1712 = vadd.xlane.f32.xlu0 %v1711
    %v1713 = vpop.xlane.xlu0 %1712
    %v1714 = vmul.f32 %v1713, %v1024
    %v1715 = vmul.f32 %v1705, %v1705
    %v1716 = vsub.f32 %v1714, %v1715
    %v1717 = vmax.f32 %v1716, 0.0
    %v1718 = vsub.f32 %v1697, %v1705
    %v1719 = vadd.f32 %v1717, 1e-05
    %v1720 = vrsqrt.pop %v1719
    %v1721 = vmul.f32 %v1718, %v1720
    %v1722 = vmul.f32 %v1721, %v1331
    %v1723 = vadd.f32 %v1722, %v1340
    %v1724 = vtanh.pop %v1723
    %1726 = vrot.lane.b32.xlu0 %v1724, 32
    %v1727 = vpop.permute.xlu0 %1726
    %v1729 = vmul.f32 %v1686, %v1727
    %1730 = vmatprep.subr.mxu0 0.0
    %1731 = vmatpush1.msra.mxu0 %v724
    %1732 = vmatprep.subr.mxu0 0.0
    %1733 = vmatpush1.msra.mxu0 %v725
    %1734 = vmatprep.subr.mxu0 0.0
    %1735 = vmatpush1.msra.mxu0 %v726
    %1736 = vmatprep.subr.mxu0 0.0
    %1737 = vmatpush1.msra.mxu0 %v727
    %1738 = vmatprep.subr.mxu0 0.0
    %1739 = vmatpush1.msra.mxu0 0.0
    %1740 = vmatprep.subr.mxu0 0.0
    %1741 = vmatpush1.msra.mxu0 0.0
    %1742 = vmatprep.subr.mxu0 0.0
    %1743 = vmatpush1.msra.mxu0 0.0
    %1744 = vmatprep.subr.mxu0 0.0
    %1745 = vmatpush1.msra.mxu0 0.0
    %1746 = vmatprep.subr.mxu0 0.0
    %1747 = vmatpush1.msra.mxu0 0.0
    %1748 = vmatprep.subr.mxu0 0.0
    %1749 = vmatpush1.msra.mxu0 0.0
    %1750 = vmatprep.subr.mxu0 0.0
    %1751 = vmatpush1.msra.mxu0 0.0
    %1752 = vmatprep.subr.mxu0 0.0
    %1753 = vmatpush1.msra.mxu0 0.0
    %1754 = vmatprep.subr.mxu0 0.0
    %1755 = vmatpush1.msra.mxu0 0.0
    %1756 = vmatprep.subr.mxu0 0.0
    %1757 = vmatpush1.msra.mxu0 0.0
    %1758 = vmatprep.subr.mxu0 0.0
    %1759 = vmatpush1.msra.mxu0 0.0
    %1760 = vmatprep.subr.mxu0 0.0
    %1761 = vmatpush1.msra.mxu0 0.0
    %1762 = vmatprep.subr.mxu0 0.0
    %1763 = vmatpush1.msra.mxu0 0.0
    %1764 = vmatprep.subr.mxu0 0.0
    %1765 = vmatpush1.msra.mxu0 0.0
    %1766 = vmatprep.subr.mxu0 0.0
    %1767 = vmatpush1.msra.mxu0 0.0
    %1768 = vmatprep.subr.mxu0 0.0
    %1769 = vmatpush1.msra.mxu0 0.0
    %1770 = vmatprep.subr.mxu0 0.0
    %1771 = vmatpush1.msra.mxu0 0.0
    %1772 = vmatprep.subr.mxu0 0.0
    %1773 = vmatpush1.msra.mxu0 0.0
    %1774 = vmatprep.subr.mxu0 0.0
    %1775 = vmatpush1.msra.mxu0 0.0
    %1776 = vmatprep.subr.mxu0 0.0
    %1777 = vmatpush1.msra.mxu0 0.0
    %1778 = vmatprep.subr.mxu0 0.0
    %1779 = vmatpush1.msra.mxu0 0.0
    %1780 = vmatprep.subr.mxu0 0.0
    %1781 = vmatpush1.msra.mxu0 0.0
    %1782 = vmatprep.subr.mxu0 0.0
    %1783 = vmatpush1.msra.mxu0 0.0
    %1784 = vmatprep.subr.mxu0 0.0
    %1785 = vmatpush1.msra.mxu0 0.0
    %1786 = vmatprep.subr.mxu0 0.0
    %1787 = vmatpush1.msra.mxu0 0.0
    %1788 = vmatprep.subr.mxu0 0.0
    %1789 = vmatpush1.msra.mxu0 0.0
    %1790 = vmatprep.subr.mxu0 0.0
    %1791 = vmatpush1.msra.mxu0 0.0
    %1792 = vmatprep.subr.mxu0 0.0
    %1793 = vmatpush1.msra.mxu0 0.0
    %1794 = vmatprep.mubr.f32.mxu0 0.0
    %1795 = vmatmul.mubr.f32.gmra.mrb[0].mxu0 %v1497
    %v1796 = vpop.f32.mrb[0].mxu0
    %v1797 = vadd.f32 %v891, %v1796
    %v1798 = vpop.f32.mrb[0].mxu0
    %1799 = vdwg.mxu0
    %v1800 = vsel %vm967, %v1797, 0.0
    %1801 = vadd.xlane.f32.xlu0 %v1800
    %v1802 = vpop.xlane.xlu0 %1801
    %v1803 = vmul.f32 %v1802, %v843
    %v1804 = vmul.f32 %v1797, %v1797
    %v1805 = vsel %vm967, %v1804, 0.0
    %1806 = vadd.xlane.f32.xlu0 %v1805
    %v1807 = vpop.xlane.xlu0 %1806
    %v1808 = vmul.f32 %v1807, %v843
    %v1809 = vmul.f32 %v1803, %v1803
    %v1810 = vsub.f32 %v1808, %v1809
    %v1811 = vmax.f32 %v1810, 0.0
    %v1812 = vsub.f32 %v1797, %v1803
    %v1813 = vadd.f32 %v1811, 1e-05
    %v1814 = vrsqrt.pop %v1813
    %v1815 = vmul.f32 %v1812, %v1814
    %v1816 = vmul.f32 %v1815, %v988
    %v1817 = vadd.f32 %v1816, %v995
    %v1819 = vrot.slane %v1817, 4
    %v1821 = vadd.f32 %v882, %v1819
    %v1822 = vmul.f32 %v1821, 0.5
    %v1823 = vsel %vm886, %v1822, %v1821
    %v1824 = vtanh.pop %v1823
    %v1825 = vadd.f32 %v1824, 1.0
    %v1826 = vmul.f32 %v1825, 0.5
    %v1827 = vsel %vm886, %v1826, %v1824
    %v1828 = vrot.slane %v1459, 6
    %v1830 = vmul.f32 %v1827, %v1828
    %1832 = vrot.lane.b32.xlu0 %v1827, 32
    %v1833 = vpop.permute.xlu0 %1832
    %v1835 = vmul.f32 %v1827, %v1833
    %1837 = vrot.lane.b32.xlu0 %v1835, 32
    %v1838 = vpop.permute.xlu0 %1837
    %v1840 = vadd.f32 %v1830, %v1838
    %1842 = vrot.lane.b32.xlu0 %v1840, 96
    %v1843 = vpop.permute.xlu0 %1842
    %vm1845 = vcmask 259076
    %v1846 = vsel %vm1845, %v1843, 0.0
    %1847 = vadd.xlane.f32.xlu0 %v1846
    %v1848 = vpop.xlane.xlu0 %1847
    %v1849 = vmul.f32 %v1848, %v1024
    %v1850 = vmul.f32 %v1840, %v1840
    %1852 = vrot.lane.b32.xlu0 %v1850, 96
    %v1853 = vpop.permute.xlu0 %1852
    %v1855 = vsel %vm1845, %v1853, 0.0
    %1856 = vadd.xlane.f32.xlu0 %v1855
    %v1857 = vpop.xlane.xlu0 %1856
    %v1858 = vmul.f32 %v1857, %v1024
    %v1859 = vmul.f32 %v1849, %v1849
    %v1860 = vsub.f32 %v1858, %v1859
    %v1861 = vmax.f32 %v1860, 0.0
    %v1862 = vsub.f32 %v1840, %v1849
    %v1863 = vadd.f32 %v1861, 1e-05
    %v1864 = vrsqrt.pop %v1863
    %v1865 = vmul.f32 %v1862, %v1864
    %v1866 = vmul.f32 %v1865, %v1048
    %v1867 = vadd.f32 %v1866, %v1057
    %v1868 = vtanh.pop %v1867
    %1870 = vrot.lane.b32.xlu0 %v1868, 32
    %v1871 = vpop.permute.xlu0 %1870
    %v1873 = vmul.f32 %v1827, %v1871
    %v1875 = vrot.slane %v1873, 4
    %1876 = vrot.lane.b32.xlu0 %v1875, 64
    %v1877 = vpop.permute.xlu0 %1876
    %v1878 = vsel %vm893, %v1877, 0
    %1880 = vmatprep.subr.mxu0 0.0
    %1881 = vmatpush1.msra.mxu0 %v736
    %1882 = vmatprep.subr.mxu0 0.0
    %1883 = vmatpush1.msra.mxu0 %v737
    %1884 = vmatprep.subr.mxu0 0.0
    %1885 = vmatpush1.msra.mxu0 %v738
    %1886 = vmatprep.subr.mxu0 0.0
    %1887 = vmatpush1.msra.mxu0 %v739
    %1888 = vmatprep.subr.mxu0 0.0
    %1889 = vmatpush1.msra.mxu0 0.0
    %1890 = vmatprep.subr.mxu0 0.0
    %1891 = vmatpush1.msra.mxu0 0.0
    %1892 = vmatprep.subr.mxu0 0.0
    %1893 = vmatpush1.msra.mxu0 0.0
    %1894 = vmatprep.subr.mxu0 0.0
    %1895 = vmatpush1.msra.mxu0 0.0
    %1896 = vmatprep.subr.mxu0 0.0
    %1897 = vmatpush1.msra.mxu0 0.0
    %1898 = vmatprep.subr.mxu0 0.0
    %1899 = vmatpush1.msra.mxu0 0.0
    %1900 = vmatprep.subr.mxu0 0.0
    %1901 = vmatpush1.msra.mxu0 0.0
    %1902 = vmatprep.subr.mxu0 0.0
    %1903 = vmatpush1.msra.mxu0 0.0
    %1904 = vmatprep.subr.mxu0 0.0
    %1905 = vmatpush1.msra.mxu0 0.0
    %1906 = vmatprep.subr.mxu0 0.0
    %1907 = vmatpush1.msra.mxu0 0.0
    %1908 = vmatprep.subr.mxu0 0.0
    %1909 = vmatpush1.msra.mxu0 0.0
    %1910 = vmatprep.subr.mxu0 0.0
    %1911 = vmatpush1.msra.mxu0 0.0
    %1912 = vmatprep.subr.mxu0 0.0
    %1913 = vmatpush1.msra.mxu0 0.0
    %1914 = vmatprep.subr.mxu0 0.0
    %1915 = vmatpush1.msra.mxu0 0.0
    %1916 = vmatprep.subr.mxu0 0.0
    %1917 = vmatpush1.msra.mxu0 0.0
    %1918 = vmatprep.subr.mxu0 0.0
    %1919 = vmatpush1.msra.mxu0 0.0
    %1920 = vmatprep.subr.mxu0 0.0
    %1921 = vmatpush1.msra.mxu0 0.0
    %1922 = vmatprep.subr.mxu0 0.0
    %1923 = vmatpush1.msra.mxu0 0.0
    %1924 = vmatprep.subr.mxu0 0.0
    %1925 = vmatpush1.msra.mxu0 0.0
    %1926 = vmatprep.subr.mxu0 0.0
    %1927 = vmatpush1.msra.mxu0 0.0
    %1928 = vmatprep.subr.mxu0 0.0
    %1929 = vmatpush1.msra.mxu0 0.0
    %1930 = vmatprep.subr.mxu0 0.0
    %1931 = vmatpush1.msra.mxu0 0.0
    %1932 = vmatprep.subr.mxu0 0.0
    %1933 = vmatpush1.msra.mxu0 0.0
    %1934 = vmatprep.subr.mxu0 0.0
    %1935 = vmatpush1.msra.mxu0 0.0
    %1936 = vmatprep.subr.mxu0 0.0
    %1937 = vmatpush1.msra.mxu0 0.0
    %1938 = vmatprep.subr.mxu0 0.0
    %1939 = vmatpush1.msra.mxu0 0.0
    %1940 = vmatprep.subr.mxu0 0.0
    %1941 = vmatpush1.msra.mxu0 0.0
    %1942 = vmatprep.subr.mxu0 0.0
    %1943 = vmatpush1.msra.mxu0 0.0
    %1944 = vmatprep.mubr.f32.mxu0 0.0
    %1945 = vmatmul.mubr.f32.gmra.mrb[0].mxu0 %v1878
    %v1946 = vpop.f32.mrb[0].mxu0
    %v1947 = vadd.f32 %v1070, %v1946
    %v1948 = vpop.f32.mrb[0].mxu0
    %1949 = vdwg.mxu0
    %v1950 = vsel %vm967, %v1947, 0.0
    %1951 = vadd.xlane.f32.xlu0 %v1950
    %v1952 = vpop.xlane.xlu0 %1951
    %v1953 = vmul.f32 %v1952, %v843
    %v1954 = vmul.f32 %v1947, %v1947
    %v1955 = vsel %vm967, %v1954, 0.0
    %1956 = vadd.xlane.f32.xlu0 %v1955
    %v1957 = vpop.xlane.xlu0 %1956
    %v1958 = vmul.f32 %v1957, %v843
    %v1959 = vmul.f32 %v1953, %v1953
    %v1960 = vsub.f32 %v1958, %v1959
    %v1961 = vmax.f32 %v1960, 0.0
    %v1962 = vsub.f32 %v1947, %v1953
    %v1963 = vadd.f32 %v1961, 1e-05
    %v1964 = vrsqrt.pop %v1963
    %v1965 = vmul.f32 %v1962, %v1964
    %v1966 = vmul.f32 %v1965, %v1167
    %v1967 = vadd.f32 %v1966, %v1174
    %1969 = vrot.lane.b32.xlu0 %v1729, 64
    %v1970 = vpop.permute.xlu0 %1969
    %v1971 = vsel %vm893, %v1970, 0
    %1973 = vmatprep.subr.mxu0 0.0
    %1974 = vmatpush1.msra.mxu0 %v740
    %1975 = vmatprep.subr.mxu0 0.0
    %1976 = vmatpush1.msra.mxu0 %v741
    %1977 = vmatprep.subr.mxu0 0.0
    %1978 = vmatpush1.msra.mxu0 %v742
    %1979 = vmatprep.subr.mxu0 0.0
    %1980 = vmatpush1.msra.mxu0 %v743
    %1981 = vmatprep.subr.mxu0 0.0
    %1982 = vmatpush1.msra.mxu0 0.0
    %1983 = vmatprep.subr.mxu0 0.0
    %1984 = vmatpush1.msra.mxu0 0.0
    %1985 = vmatprep.subr.mxu0 0.0
    %1986 = vmatpush1.msra.mxu0 0.0
    %1987 = vmatprep.subr.mxu0 0.0
    %1988 = vmatpush1.msra.mxu0 0.0
    %1989 = vmatprep.subr.mxu0 0.0
    %1990 = vmatpush1.msra.mxu0 0.0
    %1991 = vmatprep.subr.mxu0 0.0
    %1992 = vmatpush1.msra.mxu0 0.0
    %1993 = vmatprep.subr.mxu0 0.0
    %1994 = vmatpush1.msra.mxu0 0.0
    %1995 = vmatprep.subr.mxu0 0.0
    %1996 = vmatpush1.msra.mxu0 0.0
    %1997 = vmatprep.subr.mxu0 0.0
    %1998 = vmatpush1.msra.mxu0 0.0
    %1999 = vmatprep.subr.mxu0 0.0
    %2000 = vmatpush1.msra.mxu0 0.0
    %2001 = vmatprep.subr.mxu0 0.0
    %2002 = vmatpush1.msra.mxu0 0.0
    %2003 = vmatprep.subr.mxu0 0.0
    %2004 = vmatpush1.msra.mxu0 0.0
    %2005 = vmatprep.subr.mxu0 0.0
    %2006 = vmatpush1.msra.mxu0 0.0
    %2007 = vmatprep.subr.mxu0 0.0
    %2008 = vmatpush1.msra.mxu0 0.0
    %2009 = vmatprep.subr.mxu0 0.0
    %2010 = vmatpush1.msra.mxu0 0.0
    %2011 = vmatprep.subr.mxu0 0.0
    %2012 = vmatpush1.msra.mxu0 0.0
    %2013 = vmatprep.subr.mxu0 0.0
    %2014 = vmatpush1.msra.mxu0 0.0
    %2015 = vmatprep.subr.mxu0 0.0
    %2016 = vmatpush1.msra.mxu0 0.0
    %2017 = vmatprep.subr.mxu0 0.0
    %2018 = vmatpush1.msra.mxu0 0.0
    %2019 = vmatprep.subr.mxu0 0.0
    %2020 = vmatpush1.msra.mxu0 0.0
    %2021 = vmatprep.subr.mxu0 0.0
    %2022 = vmatpush1.msra.mxu0 0.0
    %2023 = vmatprep.subr.mxu0 0.0
    %2024 = vmatpush1.msra.mxu0 0.0
    %2025 = vmatprep.subr.mxu0 0.0
    %2026 = vmatpush1.msra.mxu0 0.0
    %2027 = vmatprep.subr.mxu0 0.0
    %2028 = vmatpush1.msra.mxu0 0.0
    %2029 = vmatprep.subr.mxu0 0.0
    %2030 = vmatpush1.msra.mxu0 0.0
    %2031 = vmatprep.subr.mxu0 0.0
    %2032 = vmatpush1.msra.mxu0 0.0
    %2033 = vmatprep.subr.mxu0 0.0
    %2034 = vmatpush1.msra.mxu0 0.0
    %2035 = vmatprep.subr.mxu0 0.0
    %2036 = vmatpush1.msra.mxu0 0.0
    %2037 = vmatprep.mubr.f32.mxu0 0.0
    %2038 = vmatmul.mubr.f32.gmra.mrb[0].mxu0 %v1971
    %v2039 = vpop.f32.mrb[0].mxu0
    %v2040 = vadd.f32 %v1181, %v2039
    %v2041 = vpop.f32.mrb[0].mxu0
    %2042 = vdwg.mxu0
    %v2043 = vsel %vm967, %v2040, 0.0
    %2044 = vadd.xlane.f32.xlu0 %v2043
    %v2045 = vpop.xlane.xlu0 %2044
    %v2046 = vmul.f32 %v2045, %v843
    %v2047 = vmul.f32 %v2040, %v2040
    %v2048 = vsel %vm967, %v2047, 0.0
    %2049 = vadd.xlane.f32.xlu0 %v2048
    %v2050 = vpop.xlane.xlu0 %2049
    %v2051 = vmul.f32 %v2050, %v843
    %v2052 = vmul.f32 %v2046, %v2046
    %v2053 = vsub.f32 %v2051, %v2052
    %v2054 = vmax.f32 %v2053, 0.0
    %v2055 = vsub.f32 %v2040, %v2046
    %v2056 = vadd.f32 %v2054, 1e-05
    %v2057 = vrsqrt.pop %v2056
    %v2058 = vmul.f32 %v2055, %v2057
    %v2059 = vmul.f32 %v2058, %v1273
    %v2060 = vadd.f32 %v2059, %v1280
    %v2061 = vadd.f32 %v1967, %v2060
    %v2062 = vmul.f32 %v2061, 0.5
    %v2063 = vsel %vm886, %v2062, %v2061
    %v2064 = vtanh.pop %v2063
    %v2065 = vadd.f32 %v2064, 1.0
    %v2066 = vmul.f32 %v2065, 0.5
    %v2067 = vsel %vm886, %v2066, %v2064
    %v2068 = vmul.f32 %v2067, %v1697
    %2070 = vrot.lane.b32.xlu0 %v2067, 32
    %v2071 = vpop.permute.xlu0 %2070
    %v2073 = vmul.f32 %v2067, %v2071
    %2075 = vrot.lane.b32.xlu0 %v2073, 32
    %v2076 = vpop.permute.xlu0 %2075
    %v2078 = vadd.f32 %v2068, %v2076
    %2080 = vrot.lane.b32.xlu0 %v2078, 96
    %v2081 = vpop.permute.xlu0 %2080
    %v2083 = vsel %vm1020, %v2081, 0.0
    %2084 = vadd.xlane.f32.xlu0 %v2083
    %v2085 = vpop.xlane.xlu0 %2084
    %v2086 = vmul.f32 %v2085, %v1024
    %v2087 = vmul.f32 %v2078, %v2078
    %2089 = vrot.lane.b32.xlu0 %v2087, 96
    %v2090 = vpop.permute.xlu0 %2089
    %v2092 = vsel %vm1020, %v2090, 0.0
    %2093 = vadd.xlane.f32.xlu0 %v2092
    %v2094 = vpop.xlane.xlu0 %2093
    %v2095 = vmul.f32 %v2094, %v1024
    %v2096 = vmul.f32 %v2086, %v2086
    %v2097 = vsub.f32 %v2095, %v2096
    %v2098 = vmax.f32 %v2097, 0.0
    %v2099 = vsub.f32 %v2078, %v2086
    %v2100 = vadd.f32 %v2098, 1e-05
    %v2101 = vrsqrt.pop %v2100
    %v2102 = vmul.f32 %v2099, %v2101
    %v2103 = vmul.f32 %v2102, %v1331
    %v2104 = vadd.f32 %v2103, %v1340
    %v2105 = vtanh.pop %v2104
    %2107 = vrot.lane.b32.xlu0 %v2105, 32
    %v2108 = vpop.permute.xlu0 %2107
    %v2110 = vmul.f32 %v2067, %v2108
    %2111 = vmatprep.subr.mxu0 0.0
    %2112 = vmatpush1.msra.mxu0 %v724
    %2113 = vmatprep.subr.mxu0 0.0
    %2114 = vmatpush1.msra.mxu0 %v725
    %2115 = vmatprep.subr.mxu0 0.0
    %2116 = vmatpush1.msra.mxu0 %v726
    %2117 = vmatprep.subr.mxu0 0.0
    %2118 = vmatpush1.msra.mxu0 %v727
    %2119 = vmatprep.subr.mxu0 0.0
    %2120 = vmatpush1.msra.mxu0 0.0
    %2121 = vmatprep.subr.mxu0 0.0
    %2122 = vmatpush1.msra.mxu0 0.0
    %2123 = vmatprep.subr.mxu0 0.0
    %2124 = vmatpush1.msra.mxu0 0.0
    %2125 = vmatprep.subr.mxu0 0.0
    %2126 = vmatpush1.msra.mxu0 0.0
    %2127 = vmatprep.subr.mxu0 0.0
    %2128 = vmatpush1.msra.mxu0 0.0
    %2129 = vmatprep.subr.mxu0 0.0
    %2130 = vmatpush1.msra.mxu0 0.0
    %2131 = vmatprep.subr.mxu0 0.0
    %2132 = vmatpush1.msra.mxu0 0.0
    %2133 = vmatprep.subr.mxu0 0.0
    %2134 = vmatpush1.msra.mxu0 0.0
    %2135 = vmatprep.subr.mxu0 0.0
    %2136 = vmatpush1.msra.mxu0 0.0
    %2137 = vmatprep.subr.mxu0 0.0
    %2138 = vmatpush1.msra.mxu0 0.0
    %2139 = vmatprep.subr.mxu0 0.0
    %2140 = vmatpush1.msra.mxu0 0.0
    %2141 = vmatprep.subr.mxu0 0.0
    %2142 = vmatpush1.msra.mxu0 0.0
    %2143 = vmatprep.subr.mxu0 0.0
    %2144 = vmatpush1.msra.mxu0 0.0
    %2145 = vmatprep.subr.mxu0 0.0
    %2146 = vmatpush1.msra.mxu0 0.0
    %2147 = vmatprep.subr.mxu0 0.0
    %2148 = vmatpush1.msra.mxu0 0.0
    %2149 = vmatprep.subr.mxu0 0.0
    %2150 = vmatpush1.msra.mxu0 0.0
    %2151 = vmatprep.subr.mxu0 0.0
    %2152 = vmatpush1.msra.mxu0 0.0
    %2153 = vmatprep.subr.mxu0 0.0
    %2154 = vmatpush1.msra.mxu0 0.0
    %2155 = vmatprep.subr.mxu0 0.0
    %2156 = vmatpush1.msra.mxu0 0.0
    %2157 = vmatprep.subr.mxu0 0.0
    %2158 = vmatpush1.msra.mxu0 0.0
    %2159 = vmatprep.subr.mxu0 0.0
    %2160 = vmatpush1.msra.mxu0 0.0
    %2161 = vmatprep.subr.mxu0 0.0
    %2162 = vmatpush1.msra.mxu0 0.0
    %2163 = vmatprep.subr.mxu0 0.0
    %2164 = vmatpush1.msra.mxu0 0.0
    %2165 = vmatprep.subr.mxu0 0.0
    %2166 = vmatpush1.msra.mxu0 0.0
    %2167 = vmatprep.subr.mxu0 0.0
    %2168 = vmatpush1.msra.mxu0 0.0
    %2169 = vmatprep.subr.mxu0 0.0
    %2170 = vmatpush1.msra.mxu0 0.0
    %2171 = vmatprep.subr.mxu0 0.0
    %2172 = vmatpush1.msra.mxu0 0.0
    %2173 = vmatprep.subr.mxu0 0.0
    %2174 = vmatpush1.msra.mxu0 0.0
    %2175 = vmatprep.mubr.f32.mxu0 0.0
    %2176 = vmatmul.mubr.f32.gmra.mrb[0].mxu0 %v1878
    %v2177 = vpop.f32.mrb[0].mxu0
    %v2178 = vadd.f32 %v891, %v2177
    %v2179 = vpop.f32.mrb[0].mxu0
    %2180 = vdwg.mxu0
    %v2181 = vsel %vm967, %v2178, 0.0
    %2182 = vadd.xlane.f32.xlu0 %v2181
    %v2183 = vpop.xlane.xlu0 %2182
    %v2184 = vmul.f32 %v2183, %v843
    %v2185 = vmul.f32 %v2178, %v2178
    %v2186 = vsel %vm967, %v2185, 0.0
    %2187 = vadd.xlane.f32.xlu0 %v2186
    %v2188 = vpop.xlane.xlu0 %2187
    %v2189 = vmul.f32 %v2188, %v843
    %v2190 = vmul.f32 %v2184, %v2184
    %v2191 = vsub.f32 %v2189, %v2190
    %v2192 = vmax.f32 %v2191, 0.0
    %v2193 = vsub.f32 %v2178, %v2184
    %v2194 = vadd.f32 %v2192, 1e-05
    %v2195 = vrsqrt.pop %v2194
    %v2196 = vmul.f32 %v2193, %v2195
    %v2197 = vmul.f32 %v2196, %v988
    %v2198 = vadd.f32 %v2197, %v995
    %v2200 = vrot.slane %v2198, 2
    %v2202 = vadd.f32 %v882, %v2200
    %v2203 = vmul.f32 %v2202, 0.5
    %v2204 = vsel %vm886, %v2203, %v2202
    %v2205 = vtanh.pop %v2204
    %v2206 = vadd.f32 %v2205, 1.0
    %v2207 = vmul.f32 %v2206, 0.5
    %v2208 = vsel %vm886, %v2207, %v2205
    %v2209 = vrot.slane %v1840, 6
    %v2211 = vmul.f32 %v2208, %v2209
    %2213 = vrot.lane.b32.xlu0 %v2208, 32
    %v2214 = vpop.permute.xlu0 %2213
    %v2216 = vmul.f32 %v2208, %v2214
    %2218 = vrot.lane.b32.xlu0 %v2216, 32
    %v2219 = vpop.permute.xlu0 %2218
    %v2221 = vadd.f32 %v2211, %v2219
    %2223 = vrot.lane.b32.xlu0 %v2221, 96
    %v2224 = vpop.permute.xlu0 %2223
    %vm2226 = vcmask 261126
    %v2227 = vsel %vm2226, %v2224, 0.0
    %2228 = vadd.xlane.f32.xlu0 %v2227
    %v2229 = vpop.xlane.xlu0 %2228
    %v2230 = vmul.f32 %v2229, %v1024
    %v2231 = vmul.f32 %v2221, %v2221
    %2233 = vrot.lane.b32.xlu0 %v2231, 96
    %v2234 = vpop.permute.xlu0 %2233
    %v2236 = vsel %vm2226, %v2234, 0.0
    %2237 = vadd.xlane.f32.xlu0 %v2236
    %v2238 = vpop.xlane.xlu0 %2237
    %v2239 = vmul.f32 %v2238, %v1024
    %v2240 = vmul.f32 %v2230, %v2230
    %v2241 = vsub.f32 %v2239, %v2240
    %v2242 = vmax.f32 %v2241, 0.0
    %v2243 = vsub.f32 %v2221, %v2230
    %v2244 = vadd.f32 %v2242, 1e-05
    %v2245 = vrsqrt.pop %v2244
    %v2246 = vmul.f32 %v2243, %v2245
    %v2247 = vmul.f32 %v2246, %v1048
    %v2248 = vadd.f32 %v2247, %v1057
    %v2249 = vtanh.pop %v2248
    %2251 = vrot.lane.b32.xlu0 %v2249, 32
    %v2252 = vpop.permute.xlu0 %2251
    %v2254 = vmul.f32 %v2208, %v2252
    %v2256 = vrot.slane %v2254, 6
    %2257 = vrot.lane.b32.xlu0 %v2256, 64
    %v2258 = vpop.permute.xlu0 %2257
    %v2259 = vsel %vm893, %v2258, 0
    %2261 = vmatprep.subr.mxu0 0.0
    %2262 = vmatpush1.msra.mxu0 %v736
    %2263 = vmatprep.subr.mxu0 0.0
    %2264 = vmatpush1.msra.mxu0 %v737
    %2265 = vmatprep.subr.mxu0 0.0
    %2266 = vmatpush1.msra.mxu0 %v738
    %2267 = vmatprep.subr.mxu0 0.0
    %2268 = vmatpush1.msra.mxu0 %v739
    %2269 = vmatprep.subr.mxu0 0.0
    %2270 = vmatpush1.msra.mxu0 0.0
    %2271 = vmatprep.subr.mxu0 0.0
    %2272 = vmatpush1.msra.mxu0 0.0
    %2273 = vmatprep.subr.mxu0 0.0
    %2274 = vmatpush1.msra.mxu0 0.0
    %2275 = vmatprep.subr.mxu0 0.0
    %2276 = vmatpush1.msra.mxu0 0.0
    %2277 = vmatprep.subr.mxu0 0.0
    %2278 = vmatpush1.msra.mxu0 0.0
    %2279 = vmatprep.subr.mxu0 0.0
    %2280 = vmatpush1.msra.mxu0 0.0
    %2281 = vmatprep.subr.mxu0 0.0
    %2282 = vmatpush1.msra.mxu0 0.0
    %2283 = vmatprep.subr.mxu0 0.0
    %2284 = vmatpush1.msra.mxu0 0.0
    %2285 = vmatprep.subr.mxu0 0.0
    %2286 = vmatpush1.msra.mxu0 0.0
    %2287 = vmatprep.subr.mxu0 0.0
    %2288 = vmatpush1.msra.mxu0 0.0
    %2289 = vmatprep.subr.mxu0 0.0
    %2290 = vmatpush1.msra.mxu0 0.0
    %2291 = vmatprep.subr.mxu0 0.0
    %2292 = vmatpush1.msra.mxu0 0.0
    %2293 = vmatprep.subr.mxu0 0.0
    %2294 = vmatpush1.msra.mxu0 0.0
    %2295 = vmatprep.subr.mxu0 0.0
    %2296 = vmatpush1.msra.mxu0 0.0
    %2297 = vmatprep.subr.mxu0 0.0
    %2298 = vmatpush1.msra.mxu0 0.0
    %2299 = vmatprep.subr.mxu0 0.0
    %2300 = vmatpush1.msra.mxu0 0.0
    %2301 = vmatprep.subr.mxu0 0.0
    %2302 = vmatpush1.msra.mxu0 0.0
    %2303 = vmatprep.subr.mxu0 0.0
    %2304 = vmatpush1.msra.mxu0 0.0
    %2305 = vmatprep.subr.mxu0 0.0
    %2306 = vmatpush1.msra.mxu0 0.0
    %2307 = vmatprep.subr.mxu0 0.0
    %2308 = vmatpush1.msra.mxu0 0.0
    %2309 = vmatprep.subr.mxu0 0.0
    %2310 = vmatpush1.msra.mxu0 0.0
    %2311 = vmatprep.subr.mxu0 0.0
    %2312 = vmatpush1.msra.mxu0 0.0
    %2313 = vmatprep.subr.mxu0 0.0
    %2314 = vmatpush1.msra.mxu0 0.0
    %2315 = vmatprep.subr.mxu0 0.0
    %2316 = vmatpush1.msra.mxu0 0.0
    %2317 = vmatprep.subr.mxu0 0.0
    %2318 = vmatpush1.msra.mxu0 0.0
    %2319 = vmatprep.subr.mxu0 0.0
    %2320 = vmatpush1.msra.mxu0 0.0
    %2321 = vmatprep.subr.mxu0 0.0
    %2322 = vmatpush1.msra.mxu0 0.0
    %2323 = vmatprep.subr.mxu0 0.0
    %2324 = vmatpush1.msra.mxu0 0.0
    %2325 = vmatprep.mubr.f32.mxu0 0.0
    %2326 = vmatmul.mubr.f32.gmra.mrb[0].mxu0 %v2259
    %v2327 = vpop.f32.mrb[0].mxu0
    %v2328 = vadd.f32 %v1070, %v2327
    %v2329 = vpop.f32.mrb[0].mxu0
    %2330 = vdwg.mxu0
    %v2331 = vsel %vm967, %v2328, 0.0
    %2332 = vadd.xlane.f32.xlu0 %v2331
    %v2333 = vpop.xlane.xlu0 %2332
    %v2334 = vmul.f32 %v2333, %v843
    %v2335 = vmul.f32 %v2328, %v2328
    %v2336 = vsel %vm967, %v2335, 0.0
    %2337 = vadd.xlane.f32.xlu0 %v2336
    %v2338 = vpop.xlane.xlu0 %2337
    %v2339 = vmul.f32 %v2338, %v843
    %v2340 = vmul.f32 %v2334, %v2334
    %v2341 = vsub.f32 %v2339, %v2340
    %v2342 = vmax.f32 %v2341, 0.0
    %v2343 = vsub.f32 %v2328, %v2334
    %v2344 = vadd.f32 %v2342, 1e-05
    %v2345 = vrsqrt.pop %v2344
    %v2346 = vmul.f32 %v2343, %v2345
    %v2347 = vmul.f32 %v2346, %v1167
    %v2348 = vadd.f32 %v2347, %v1174
    %2350 = vrot.lane.b32.xlu0 %v2110, 64
    %v2351 = vpop.permute.xlu0 %2350
    %v2352 = vsel %vm893, %v2351, 0
    %2354 = vmatprep.subr.mxu0 0.0
    %2355 = vmatpush1.msra.mxu0 %v740
    %2356 = vmatprep.subr.mxu0 0.0
    %2357 = vmatpush1.msra.mxu0 %v741
    %2358 = vmatprep.subr.mxu0 0.0
    %2359 = vmatpush1.msra.mxu0 %v742
    %2360 = vmatprep.subr.mxu0 0.0
    %2361 = vmatpush1.msra.mxu0 %v743
    %2362 = vmatprep.subr.mxu0 0.0
    %2363 = vmatpush1.msra.mxu0 0.0
    %2364 = vmatprep.subr.mxu0 0.0
    %2365 = vmatpush1.msra.mxu0 0.0
    %2366 = vmatprep.subr.mxu0 0.0
    %2367 = vmatpush1.msra.mxu0 0.0
    %2368 = vmatprep.subr.mxu0 0.0
    %2369 = vmatpush1.msra.mxu0 0.0
    %2370 = vmatprep.subr.mxu0 0.0
    %2371 = vmatpush1.msra.mxu0 0.0
    %2372 = vmatprep.subr.mxu0 0.0
    %2373 = vmatpush1.msra.mxu0 0.0
    %2374 = vmatprep.subr.mxu0 0.0
    %2375 = vmatpush1.msra.mxu0 0.0
    %2376 = vmatprep.subr.mxu0 0.0
    %2377 = vmatpush1.msra.mxu0 0.0
    %2378 = vmatprep.subr.mxu0 0.0
    %2379 = vmatpush1.msra.mxu0 0.0
    %2380 = vmatprep.subr.mxu0 0.0
    %2381 = vmatpush1.msra.mxu0 0.0
    %2382 = vmatprep.subr.mxu0 0.0
    %2383 = vmatpush1.msra.mxu0 0.0
    %2384 = vmatprep.subr.mxu0 0.0
    %2385 = vmatpush1.msra.mxu0 0.0
    %2386 = vmatprep.subr.mxu0 0.0
    %2387 = vmatpush1.msra.mxu0 0.0
    %2388 = vmatprep.subr.mxu0 0.0
    %2389 = vmatpush1.msra.mxu0 0.0
    %2390 = vmatprep.subr.mxu0 0.0
    %2391 = vmatpush1.msra.mxu0 0.0
    %2392 = vmatprep.subr.mxu0 0.0
    %2393 = vmatpush1.msra.mxu0 0.0
    %2394 = vmatprep.subr.mxu0 0.0
    %2395 = vmatpush1.msra.mxu0 0.0
    %2396 = vmatprep.subr.mxu0 0.0
    %2397 = vmatpush1.msra.mxu0 0.0
    %2398 = vmatprep.subr.mxu0 0.0
    %2399 = vmatpush1.msra.mxu0 0.0
    %2400 = vmatprep.subr.mxu0 0.0
    %2401 = vmatpush1.msra.mxu0 0.0
    %2402 = vmatprep.subr.mxu0 0.0
    %2403 = vmatpush1.msra.mxu0 0.0
    %2404 = vmatprep.subr.mxu0 0.0
    %2405 = vmatpush1.msra.mxu0 0.0
    %2406 = vmatprep.subr.mxu0 0.0
    %2407 = vmatpush1.msra.mxu0 0.0
    %2408 = vmatprep.subr.mxu0 0.0
    %2409 = vmatpush1.msra.mxu0 0.0
    %2410 = vmatprep.subr.mxu0 0.0
    %2411 = vmatpush1.msra.mxu0 0.0
    %2412 = vmatprep.subr.mxu0 0.0
    %2413 = vmatpush1.msra.mxu0 0.0
    %2414 = vmatprep.subr.mxu0 0.0
    %2415 = vmatpush1.msra.mxu0 0.0
    %2416 = vmatprep.subr.mxu0 0.0
    %2417 = vmatpush1.msra.mxu0 0.0
    %2418 = vmatprep.mubr.f32.mxu0 0.0
    %2419 = vmatmul.mubr.f32.gmra.mrb[0].mxu0 %v2352
    %v2420 = vpop.f32.mrb[0].mxu0
    %v2421 = vadd.f32 %v1181, %v2420
    %v2422 = vpop.f32.mrb[0].mxu0
    %2423 = vdwg.mxu0
    %v2424 = vsel %vm967, %v2421, 0.0
    %2425 = vadd.xlane.f32.xlu0 %v2424
    %v2426 = vpop.xlane.xlu0 %2425
    %v2427 = vmul.f32 %v2426, %v843
    %v2428 = vmul.f32 %v2421, %v2421
    %v2429 = vsel %vm967, %v2428, 0.0
    %2430 = vadd.xlane.f32.xlu0 %v2429
    %v2431 = vpop.xlane.xlu0 %2430
    %v2432 = vmul.f32 %v2431, %v843
    %v2433 = vmul.f32 %v2427, %v2427
    %v2434 = vsub.f32 %v2432, %v2433
    %v2435 = vmax.f32 %v2434, 0.0
    %v2436 = vsub.f32 %v2421, %v2427
    %v2437 = vadd.f32 %v2435, 1e-05
    %v2438 = vrsqrt.pop %v2437
    %v2439 = vmul.f32 %v2436, %v2438
    %v2440 = vmul.f32 %v2439, %v1273
    %v2441 = vadd.f32 %v2440, %v1280
    %v2442 = vadd.f32 %v2348, %v2441
    %v2443 = vmul.f32 %v2442, 0.5
    %v2444 = vsel %vm886, %v2443, %v2442
    %v2445 = vtanh.pop %v2444
    %v2446 = vadd.f32 %v2445, 1.0
    %v2447 = vmul.f32 %v2446, 0.5
    %v2448 = vsel %vm886, %v2447, %v2445
    %v2449 = vmul.f32 %v2448, %v2078
    %2451 = vrot.lane.b32.xlu0 %v2448, 32
    %v2452 = vpop.permute.xlu0 %2451
    %v2454 = vmul.f32 %v2448, %v2452
    %2456 = vrot.lane.b32.xlu0 %v2454, 32
    %v2457 = vpop.permute.xlu0 %2456
    %v2459 = vadd.f32 %v2449, %v2457
    %2461 = vrot.lane.b32.xlu0 %v2459, 96
    %v2462 = vpop.permute.xlu0 %2461
    %v2464 = vsel %vm1020, %v2462, 0.0
    %2465 = vadd.xlane.f32.xlu0 %v2464
    %v2466 = vpop.xlane.xlu0 %2465
    %v2467 = vmul.f32 %v2466, %v1024
    %v2468 = vmul.f32 %v2459, %v2459
    %2470 = vrot.lane.b32.xlu0 %v2468, 96
    %v2471 = vpop.permute.xlu0 %2470
    %v2473 = vsel %vm1020, %v2471, 0.0
    %2474 = vadd.xlane.f32.xlu0 %v2473
    %v2475 = vpop.xlane.xlu0 %2474
    %v2476 = vmul.f32 %v2475, %v1024
    %v2477 = vmul.f32 %v2467, %v2467
    %v2478 = vsub.f32 %v2476, %v2477
    %v2479 = vmax.f32 %v2478, 0.0
    %v2480 = vsub.f32 %v2459, %v2467
    %v2481 = vadd.f32 %v2479, 1e-05
    %v2482 = vrsqrt.pop %v2481
    %v2483 = vmul.f32 %v2480, %v2482
    %v2484 = vmul.f32 %v2483, %v1331
    %v2485 = vadd.f32 %v2484, %v1340
    %v2486 = vtanh.pop %v2485
    %2488 = vrot.lane.b32.xlu0 %v2486, 32
    %v2489 = vpop.permute.xlu0 %2488
    %v2491 = vmul.f32 %v2448, %v2489
    %2492 = vmatprep.subr.mxu0 0.0
    %2493 = vmatpush1.msra.mxu0 %v724
    %2494 = vmatprep.subr.mxu0 0.0
    %2495 = vmatpush1.msra.mxu0 %v725
    %2496 = vmatprep.subr.mxu0 0.0
    %2497 = vmatpush1.msra.mxu0 %v726
    %2498 = vmatprep.subr.mxu0 0.0
    %2499 = vmatpush1.msra.mxu0 %v727
    %2500 = vmatprep.subr.mxu0 0.0
    %2501 = vmatpush1.msra.mxu0 0.0
    %2502 = vmatprep.subr.mxu0 0.0
    %2503 = vmatpush1.msra.mxu0 0.0
    %2504 = vmatprep.subr.mxu0 0.0
    %2505 = vmatpush1.msra.mxu0 0.0
    %2506 = vmatprep.subr.mxu0 0.0
    %2507 = vmatpush1.msra.mxu0 0.0
    %2508 = vmatprep.subr.mxu0 0.0
    %2509 = vmatpush1.msra.mxu0 0.0
    %2510 = vmatprep.subr.mxu0 0.0
    %2511 = vmatpush1.msra.mxu0 0.0
    %2512 = vmatprep.subr.mxu0 0.0
    %2513 = vmatpush1.msra.mxu0 0.0
    %2514 = vmatprep.subr.mxu0 0.0
    %2515 = vmatpush1.msra.mxu0 0.0
    %2516 = vmatprep.subr.mxu0 0.0
    %2517 = vmatpush1.msra.mxu0 0.0
    %2518 = vmatprep.subr.mxu0 0.0
    %2519 = vmatpush1.msra.mxu0 0.0
    %2520 = vmatprep.subr.mxu0 0.0
    %2521 = vmatpush1.msra.mxu0 0.0
    %2522 = vmatprep.subr.mxu0 0.0
    %2523 = vmatpush1.msra.mxu0 0.0
    %2524 = vmatprep.subr.mxu0 0.0
    %2525 = vmatpush1.msra.mxu0 0.0
    %2526 = vmatprep.subr.mxu0 0.0
    %2527 = vmatpush1.msra.mxu0 0.0
    %2528 = vmatprep.subr.mxu0 0.0
    %2529 = vmatpush1.msra.mxu0 0.0
    %2530 = vmatprep.subr.mxu0 0.0
    %2531 = vmatpush1.msra.mxu0 0.0
    %2532 = vmatprep.subr.mxu0 0.0
    %2533 = vmatpush1.msra.mxu0 0.0
    %2534 = vmatprep.subr.mxu0 0.0
    %2535 = vmatpush1.msra.mxu0 0.0
    %2536 = vmatprep.subr.mxu0 0.0
    %2537 = vmatpush1.msra.mxu0 0.0
    %2538 = vmatprep.subr.mxu0 0.0
    %2539 = vmatpush1.msra.mxu0 0.0
    %2540 = vmatprep.subr.mxu0 0.0
    %2541 = vmatpush1.msra.mxu0 0.0
    %2542 = vmatprep.subr.mxu0 0.0
    %2543 = vmatpush1.msra.mxu0 0.0
    %2544 = vmatprep.subr.mxu0 0.0
    %2545 = vmatpush1.msra.mxu0 0.0
    %2546 = vmatprep.subr.mxu0 0.0
    %2547 = vmatpush1.msra.mxu0 0.0
    %2548 = vmatprep.subr.mxu0 0.0
    %2549 = vmatpush1.msra.mxu0 0.0
    %2550 = vmatprep.subr.mxu0 0.0
    %2551 = vmatpush1.msra.mxu0 0.0
    %2552 = vmatprep.subr.mxu0 0.0
    %2553 = vmatpush1.msra.mxu0 0.0
    %2554 = vmatprep.subr.mxu0 0.0
    %2555 = vmatpush1.msra.mxu0 0.0
    %2556 = vmatprep.mubr.f32.mxu0 0.0
    %2557 = vmatmul.mubr.f32.gmra.mrb[0].mxu0 %v2259
    %v2558 = vpop.f32.mrb[0].mxu0
    %v2559 = vadd.f32 %v891, %v2558
    %v2560 = vpop.f32.mrb[0].mxu0
    %2561 = vdwg.mxu0
    %v2562 = vsel %vm967, %v2559, 0.0
    %2563 = vadd.xlane.f32.xlu0 %v2562
    %v2564 = vpop.xlane.xlu0 %2563
    %v2565 = vmul.f32 %v2564, %v843
    %v2566 = vmul.f32 %v2559, %v2559
    %v2567 = vsel %vm967, %v2566, 0.0
    %2568 = vadd.xlane.f32.xlu0 %v2567
    %v2569 = vpop.xlane.xlu0 %2568
    %v2570 = vmul.f32 %v2569, %v843
    %v2571 = vmul.f32 %v2565, %v2565
    %v2572 = vsub.f32 %v2570, %v2571
    %v2573 = vmax.f32 %v2572, 0.0
    %v2574 = vsub.f32 %v2559, %v2565
    %v2575 = vadd.f32 %v2573, 1e-05
    %v2576 = vrsqrt.pop %v2575
    %v2577 = vmul.f32 %v2574, %v2576
    %v2578 = vmul.f32 %v2577, %v988
    %v2579 = vadd.f32 %v2578, %v995
    %v2580 = vadd.f32 %v883, %v2579
    %v2581 = vmul.f32 %v2580, 0.5
    %v2582 = vsel %vm886, %v2581, %v2580
    %v2583 = vtanh.pop %v2582
    %v2584 = vadd.f32 %v2583, 1.0
    %v2585 = vmul.f32 %v2584, 0.5
    %v2586 = vsel %vm886, %v2585, %v2583
    %v2587 = vrot.slane %v2221, 6
    %v2589 = vmul.f32 %v2586, %v2587
    %2591 = vrot.lane.b32.xlu0 %v2586, 32
    %v2592 = vpop.permute.xlu0 %2591
    %v2594 = vmul.f32 %v2586, %v2592
    %2596 = vrot.lane.b32.xlu0 %v2594, 32
    %v2597 = vpop.permute.xlu0 %2596
    %v2599 = vadd.f32 %v2589, %v2597
    %2601 = vrot.lane.b32.xlu0 %v2599, 96
    %v2602 = vpop.permute.xlu0 %2601
    %v2604 = vsel %vm1020, %v2602, 0.0
    %2605 = vadd.xlane.f32.xlu0 %v2604
    %v2606 = vpop.xlane.xlu0 %2605
    %v2607 = vmul.f32 %v2606, %v1024
    %v2608 = vmul.f32 %v2599, %v2599
    %2610 = vrot.lane.b32.xlu0 %v2608, 96
    %v2611 = vpop.permute.xlu0 %2610
    %v2613 = vsel %vm1020, %v2611, 0.0
    %2614 = vadd.xlane.f32.xlu0 %v2613
    %v2615 = vpop.xlane.xlu0 %2614
    %v2616 = vmul.f32 %v2615, %v1024
    %v2617 = vmul.f32 %v2607, %v2607
    %v2618 = vsub.f32 %v2616, %v2617
    %v2619 = vmax.f32 %v2618, 0.0
    %v2620 = vsub.f32 %v2599, %v2607
    %v2621 = vadd.f32 %v2619, 1e-05
    %v2622 = vrsqrt.pop %v2621
    %v2623 = vmul.f32 %v2620, %v2622
    %v2624 = vmul.f32 %v2623, %v1048
    %v2625 = vadd.f32 %v2624, %v1057
    %v2626 = vtanh.pop %v2625
    %2628 = vrot.lane.b32.xlu0 %v2626, 32
    %v2629 = vpop.permute.xlu0 %2628
    %v2631 = vmul.f32 %v2586, %v2629
    %2633 = vrot.lane.b32.xlu0 %v2631, 64
    %v2634 = vpop.permute.xlu0 %2633
    %v2635 = vsel %vm893, %v2634, 0
    %2637 = vmatprep.subr.mxu0 0.0
    %2638 = vmatpush1.msra.mxu0 %v736
    %2639 = vmatprep.subr.mxu0 0.0
    %2640 = vmatpush1.msra.mxu0 %v737
    %2641 = vmatprep.subr.mxu0 0.0
    %2642 = vmatpush1.msra.mxu0 %v738
    %2643 = vmatprep.subr.mxu0 0.0
    %2644 = vmatpush1.msra.mxu0 %v739
    %2645 = vmatprep.subr.mxu0 0.0
    %2646 = vmatpush1.msra.mxu0 0.0
    %2647 = vmatprep.subr.mxu0 0.0
    %2648 = vmatpush1.msra.mxu0 0.0
    %2649 = vmatprep.subr.mxu0 0.0
    %2650 = vmatpush1.msra.mxu0 0.0
    %2651 = vmatprep.subr.mxu0 0.0
    %2652 = vmatpush1.msra.mxu0 0.0
    %2653 = vmatprep.subr.mxu0 0.0
    %2654 = vmatpush1.msra.mxu0 0.0
    %2655 = vmatprep.subr.mxu0 0.0
    %2656 = vmatpush1.msra.mxu0 0.0
    %2657 = vmatprep.subr.mxu0 0.0
    %2658 = vmatpush1.msra.mxu0 0.0
    %2659 = vmatprep.subr.mxu0 0.0
    %2660 = vmatpush1.msra.mxu0 0.0
    %2661 = vmatprep.subr.mxu0 0.0
    %2662 = vmatpush1.msra.mxu0 0.0
    %2663 = vmatprep.subr.mxu0 0.0
    %2664 = vmatpush1.msra.mxu0 0.0
    %2665 = vmatprep.subr.mxu0 0.0
    %2666 = vmatpush1.msra.mxu0 0.0
    %2667 = vmatprep.subr.mxu0 0.0
    %2668 = vmatpush1.msra.mxu0 0.0
    %2669 = vmatprep.subr.mxu0 0.0
    %2670 = vmatpush1.msra.mxu0 0.0
    %2671 = vmatprep.subr.mxu0 0.0
    %2672 = vmatpush1.msra.mxu0 0.0
    %2673 = vmatprep.subr.mxu0 0.0
    %2674 = vmatpush1.msra.mxu0 0.0
    %2675 = vmatprep.subr.mxu0 0.0
    %2676 = vmatpush1.msra.mxu0 0.0
    %2677 = vmatprep.subr.mxu0 0.0
    %2678 = vmatpush1.msra.mxu0 0.0
    %2679 = vmatprep.subr.mxu0 0.0
    %2680 = vmatpush1.msra.mxu0 0.0
    %2681 = vmatprep.subr.mxu0 0.0
    %2682 = vmatpush1.msra.mxu0 0.0
    %2683 = vmatprep.subr.mxu0 0.0
    %2684 = vmatpush1.msra.mxu0 0.0
    %2685 = vmatprep.subr.mxu0 0.0
    %2686 = vmatpush1.msra.mxu0 0.0
    %2687 = vmatprep.subr.mxu0 0.0
    %2688 = vmatpush1.msra.mxu0 0.0
    %2689 = vmatprep.subr.mxu0 0.0
    %2690 = vmatpush1.msra.mxu0 0.0
    %2691 = vmatprep.subr.mxu0 0.0
    %2692 = vmatpush1.msra.mxu0 0.0
    %2693 = vmatprep.subr.mxu0 0.0
    %2694 = vmatpush1.msra.mxu0 0.0
    %2695 = vmatprep.subr.mxu0 0.0
    %2696 = vmatpush1.msra.mxu0 0.0
    %2697 = vmatprep.subr.mxu0 0.0
    %2698 = vmatpush1.msra.mxu0 0.0
    %2699 = vmatprep.subr.mxu0 0.0
    %2700 = vmatpush1.msra.mxu0 0.0
    %2701 = vmatprep.mubr.f32.mxu0 0.0
    %2702 = vmatmul.mubr.f32.gmra.mrb[0].mxu0 %v2635
    %v2703 = vpop.f32.mrb[0].mxu0
    %v2704 = vadd.f32 %v1070, %v2703
    %v2705 = vpop.f32.mrb[0].mxu0
    %2706 = vdwg.mxu0
    %v2707 = vsel %vm967, %v2704, 0.0
    %2708 = vadd.xlane.f32.xlu0 %v2707
    %v2709 = vpop.xlane.xlu0 %2708
    %v2710 = vmul.f32 %v2709, %v843
    %v2711 = vmul.f32 %v2704, %v2704
    %v2712 = vsel %vm967, %v2711, 0.0
    %2713 = vadd.xlane.f32.xlu0 %v2712
    %v2714 = vpop.xlane.xlu0 %2713
    %v2715 = vmul.f32 %v2714, %v843
    %v2716 = vmul.f32 %v2710, %v2710
    %v2717 = vsub.f32 %v2715, %v2716
    %v2718 = vmax.f32 %v2717, 0.0
    %v2719 = vsub.f32 %v2704, %v2710
    %v2720 = vadd.f32 %v2718, 1e-05
    %v2721 = vrsqrt.pop %v2720
    %v2722 = vmul.f32 %v2719, %v2721
    %v2723 = vmul.f32 %v2722, %v1167
    %v2724 = vadd.f32 %v2723, %v1174
    %2726 = vrot.lane.b32.xlu0 %v2491, 64
    %v2727 = vpop.permute.xlu0 %2726
    %v2728 = vsel %vm893, %v2727, 0
    %2730 = vmatprep.subr.mxu0 0.0
    %2731 = vmatpush1.msra.mxu0 %v740
    %2732 = vmatprep.subr.mxu0 0.0
    %2733 = vmatpush1.msra.mxu0 %v741
    %2734 = vmatprep.subr.mxu0 0.0
    %2735 = vmatpush1.msra.mxu0 %v742
    %2736 = vmatprep.subr.mxu0 0.0
    %2737 = vmatpush1.msra.mxu0 %v743
    %2738 = vmatprep.subr.mxu0 0.0
    %2739 = vmatpush1.msra.mxu0 0.0
    %2740 = vmatprep.subr.mxu0 0.0
    %2741 = vmatpush1.msra.mxu0 0.0
    %2742 = vmatprep.subr.mxu0 0.0
    %2743 = vmatpush1.msra.mxu0 0.0
    %2744 = vmatprep.subr.mxu0 0.0
    %2745 = vmatpush1.msra.mxu0 0.0
    %2746 = vmatprep.subr.mxu0 0.0
    %2747 = vmatpush1.msra.mxu0 0.0
    %2748 = vmatprep.subr.mxu0 0.0
    %2749 = vmatpush1.msra.mxu0 0.0
    %2750 = vmatprep.subr.mxu0 0.0
    %2751 = vmatpush1.msra.mxu0 0.0
    %2752 = vmatprep.subr.mxu0 0.0
    %2753 = vmatpush1.msra.mxu0 0.0
    %2754 = vmatprep.subr.mxu0 0.0
    %2755 = vmatpush1.msra.mxu0 0.0
    %2756 = vmatprep.subr.mxu0 0.0
    %2757 = vmatpush1.msra.mxu0 0.0
    %2758 = vmatprep.subr.mxu0 0.0
    %2759 = vmatpush1.msra.mxu0 0.0
    %2760 = vmatprep.subr.mxu0 0.0
    %2761 = vmatpush1.msra.mxu0 0.0
    %2762 = vmatprep.subr.mxu0 0.0
    %2763 = vmatpush1.msra.mxu0 0.0
    %2764 = vmatprep.subr.mxu0 0.0
    %2765 = vmatpush1.msra.mxu0 0.0
    %2766 = vmatprep.subr.mxu0 0.0
    %2767 = vmatpush1.msra.mxu0 0.0
    %2768 = vmatprep.subr.mxu0 0.0
    %2769 = vmatpush1.msra.mxu0 0.0
    %2770 = vmatprep.subr.mxu0 0.0
    %2771 = vmatpush1.msra.mxu0 0.0
    %2772 = vmatprep.subr.mxu0 0.0
    %2773 = vmatpush1.msra.mxu0 0.0
    %2774 = vmatprep.subr.mxu0 0.0
    %2775 = vmatpush1.msra.mxu0 0.0
    %2776 = vmatprep.subr.mxu0 0.0
    %2777 = vmatpush1.msra.mxu0 0.0
    %2778 = vmatprep.subr.mxu0 0.0
    %2779 = vmatpush1.msra.mxu0 0.0
    %2780 = vmatprep.subr.mxu0 0.0
    %2781 = vmatpush1.msra.mxu0 0.0
    %2782 = vmatprep.subr.mxu0 0.0
    %2783 = vmatpush1.msra.mxu0 0.0
    %2784 = vmatprep.subr.mxu0 0.0
    %2785 = vmatpush1.msra.mxu0 0.0
    %2786 = vmatprep.subr.mxu0 0.0
    %2787 = vmatpush1.msra.mxu0 0.0
    %2788 = vmatprep.subr.mxu0 0.0
    %2789 = vmatpush1.msra.mxu0 0.0
    %2790 = vmatprep.subr.mxu0 0.0
    %2791 = vmatpush1.msra.mxu0 0.0
    %2792 = vmatprep.subr.mxu0 0.0
    %2793 = vmatpush1.msra.mxu0 0.0
    %2794 = vmatprep.mubr.f32.mxu0 0.0
    %2795 = vmatmul.mubr.f32.gmra.mrb[0].mxu0 %v2728
    %v2796 = vpop.f32.mrb[0].mxu0
    %v2797 = vadd.f32 %v1181, %v2796
    %v2798 = vpop.f32.mrb[0].mxu0
    %2799 = vdwg.mxu0
    %v2800 = vsel %vm967, %v2797, 0.0
    %2801 = vadd.xlane.f32.xlu0 %v2800
    %v2802 = vpop.xlane.xlu0 %2801
    %v2803 = vmul.f32 %v2802, %v843
    %v2804 = vmul.f32 %v2797, %v2797
    %v2805 = vsel %vm967, %v2804, 0.0
    %2806 = vadd.xlane.f32.xlu0 %v2805
    %v2807 = vpop.xlane.xlu0 %2806
    %v2808 = vmul.f32 %v2807, %v843
    %v2809 = vmul.f32 %v2803, %v2803
    %v2810 = vsub.f32 %v2808, %v2809
    %v2811 = vmax.f32 %v2810, 0.0
    %v2812 = vsub.f32 %v2797, %v2803
    %v2813 = vadd.f32 %v2811, 1e-05
    %v2814 = vrsqrt.pop %v2813
    %v2815 = vmul.f32 %v2812, %v2814
    %v2816 = vmul.f32 %v2815, %v1273
    %v2817 = vadd.f32 %v2816, %v1280
    %v2818 = vadd.f32 %v2724, %v2817
    %v2819 = vmul.f32 %v2818, 0.5
    %v2820 = vsel %vm886, %v2819, %v2818
    %v2821 = vtanh.pop %v2820
    %v2822 = vadd.f32 %v2821, 1.0
    %v2823 = vmul.f32 %v2822, 0.5
    %v2824 = vsel %vm886, %v2823, %v2821
    %v2825 = vmul.f32 %v2824, %v2459
    %2827 = vrot.lane.b32.xlu0 %v2824, 32
    %v2828 = vpop.permute.xlu0 %2827
    %v2830 = vmul.f32 %v2824, %v2828
    %2832 = vrot.lane.b32.xlu0 %v2830, 32
    %v2833 = vpop.permute.xlu0 %2832
    %v2835 = vadd.f32 %v2825, %v2833
    %2837 = vrot.lane.b32.xlu0 %v2835, 96
    %v2838 = vpop.permute.xlu0 %2837
    %v2840 = vsel %vm1020, %v2838, 0.0
    %2841 = vadd.xlane.f32.xlu0 %v2840
    %v2842 = vpop.xlane.xlu0 %2841
    %v2843 = vmul.f32 %v2842, %v1024
    %v2844 = vmul.f32 %v2835, %v2835
    %2846 = vrot.lane.b32.xlu0 %v2844, 96
    %v2847 = vpop.permute.xlu0 %2846
    %v2849 = vsel %vm1020, %v2847, 0.0
    %2850 = vadd.xlane.f32.xlu0 %v2849
    %v2851 = vpop.xlane.xlu0 %2850
    %v2852 = vmul.f32 %v2851, %v1024
    %v2853 = vmul.f32 %v2843, %v2843
    %v2854 = vsub.f32 %v2852, %v2853
    %v2855 = vmax.f32 %v2854, 0.0
    %v2856 = vsub.f32 %v2835, %v2843
    %v2857 = vadd.f32 %v2855, 1e-05
    %v2858 = vrsqrt.pop %v2857
    %v2859 = vmul.f32 %v2856, %v2858
    %v2860 = vmul.f32 %v2859, %v1331
    %v2861 = vadd.f32 %v2860, %v1340
    %v2862 = vtanh.pop %v2861
    %2864 = vrot.lane.b32.xlu0 %v2862, 32
    %v2865 = vpop.permute.xlu0 %2864
    %v2867 = vmul.f32 %v2824, %v2865
    %2868 = vmatprep.subr.mxu0 0.0
    %2869 = vmatpush1.msra.mxu0 %v724
    %2870 = vmatprep.subr.mxu0 0.0
    %2871 = vmatpush1.msra.mxu0 %v725
    %2872 = vmatprep.subr.mxu0 0.0
    %2873 = vmatpush1.msra.mxu0 %v726
    %2874 = vmatprep.subr.mxu0 0.0
    %2875 = vmatpush1.msra.mxu0 %v727
    %2876 = vmatprep.subr.mxu0 0.0
    %2877 = vmatpush1.msra.mxu0 0.0
    %2878 = vmatprep.subr.mxu0 0.0
    %2879 = vmatpush1.msra.mxu0 0.0
    %2880 = vmatprep.subr.mxu0 0.0
    %2881 = vmatpush1.msra.mxu0 0.0
    %2882 = vmatprep.subr.mxu0 0.0
    %2883 = vmatpush1.msra.mxu0 0.0
    %2884 = vmatprep.subr.mxu0 0.0
    %2885 = vmatpush1.msra.mxu0 0.0
    %2886 = vmatprep.subr.mxu0 0.0
    %2887 = vmatpush1.msra.mxu0 0.0
    %2888 = vmatprep.subr.mxu0 0.0
    %2889 = vmatpush1.msra.mxu0 0.0
    %2890 = vmatprep.subr.mxu0 0.0
    %2891 = vmatpush1.msra.mxu0 0.0
    %2892 = vmatprep.subr.mxu0 0.0
    %2893 = vmatpush1.msra.mxu0 0.0
    %2894 = vmatprep.subr.mxu0 0.0
    %2895 = vmatpush1.msra.mxu0 0.0
    %2896 = vmatprep.subr.mxu0 0.0
    %2897 = vmatpush1.msra.mxu0 0.0
    %2898 = vmatprep.subr.mxu0 0.0
    %2899 = vmatpush1.msra.mxu0 0.0
    %2900 = vmatprep.subr.mxu0 0.0
    %2901 = vmatpush1.msra.mxu0 0.0
    %2902 = vmatprep.subr.mxu0 0.0
    %2903 = vmatpush1.msra.mxu0 0.0
    %2904 = vmatprep.subr.mxu0 0.0
    %2905 = vmatpush1.msra.mxu0 0.0
    %2906 = vmatprep.subr.mxu0 0.0
    %2907 = vmatpush1.msra.mxu0 0.0
    %2908 = vmatprep.subr.mxu0 0.0
    %2909 = vmatpush1.msra.mxu0 0.0
    %2910 = vmatprep.subr.mxu0 0.0
    %2911 = vmatpush1.msra.mxu0 0.0
    %2912 = vmatprep.subr.mxu0 0.0
    %2913 = vmatpush1.msra.mxu0 0.0
    %2914 = vmatprep.subr.mxu0 0.0
    %2915 = vmatpush1.msra.mxu0 0.0
    %2916 = vmatprep.subr.mxu0 0.0
    %2917 = vmatpush1.msra.mxu0 0.0
    %2918 = vmatprep.subr.mxu0 0.0
    %2919 = vmatpush1.msra.mxu0 0.0
    %2920 = vmatprep.subr.mxu0 0.0
    %2921 = vmatpush1.msra.mxu0 0.0
    %2922 = vmatprep.subr.mxu0 0.0
    %2923 = vmatpush1.msra.mxu0 0.0
    %2924 = vmatprep.subr.mxu0 0.0
    %2925 = vmatpush1.msra.mxu0 0.0
    %2926 = vmatprep.subr.mxu0 0.0
    %2927 = vmatpush1.msra.mxu0 0.0
    %2928 = vmatprep.subr.mxu0 0.0
    %2929 = vmatpush1.msra.mxu0 0.0
    %2930 = vmatprep.subr.mxu0 0.0
    %2931 = vmatpush1.msra.mxu0 0.0
    %2932 = vmatprep.mubr.f32.mxu0 0.0
    %2933 = vmatmul.mubr.f32.gmra.mrb[0].mxu0 %v2635
    %v2934 = vpop.f32.mrb[0].mxu0
    %v2935 = vadd.f32 %v891, %v2934
    %v2936 = vpop.f32.mrb[0].mxu0
    %2937 = vdwg.mxu0
    %v2938 = vsel %vm967, %v2935, 0.0
    %2939 = vadd.xlane.f32.xlu0 %v2938
    %v2940 = vpop.xlane.xlu0 %2939
    %v2941 = vmul.f32 %v2940, %v843
    %v2942 = vmul.f32 %v2935, %v2935
    %v2943 = vsel %vm967, %v2942, 0.0
    %2944 = vadd.xlane.f32.xlu0 %v2943
    %v2945 = vpop.xlane.xlu0 %2944
    %v2946 = vmul.f32 %v2945, %v843
    %v2947 = vmul.f32 %v2941, %v2941
    %v2948 = vsub.f32 %v2946, %v2947
    %v2949 = vmax.f32 %v2948, 0.0
    %v2950 = vsub.f32 %v2935, %v2941
    %v2951 = vadd.f32 %v2949, 1e-05
    %v2952 = vrsqrt.pop %v2951
    %v2953 = vmul.f32 %v2950, %v2952
    %v2954 = vmul.f32 %v2953, %v988
    %v2955 = vadd.f32 %v2954, %v995
    %v2957 = vrot.slane %v2955, 6
    %v2959 = vadd.f32 %v883, %v2957
    %v2960 = vmul.f32 %v2959, 0.5
    %v2961 = vsel %vm886, %v2960, %v2959
    %v2962 = vtanh.pop %v2961
    %v2963 = vadd.f32 %v2962, 1.0
    %v2964 = vmul.f32 %v2963, 0.5
    %v2965 = vsel %vm886, %v2964, %v2962
    %v2966 = vrot.slane %v2599, 6
    %v2968 = vmul.f32 %v2965, %v2966
    %2970 = vrot.lane.b32.xlu0 %v2965, 32
    %v2971 = vpop.permute.xlu0 %2970
    %v2973 = vmul.f32 %v2965, %v2971
    %2975 = vrot.lane.b32.xlu0 %v2973, 32
    %v2976 = vpop.permute.xlu0 %2975
    %v2978 = vadd.f32 %v2968, %v2976
    %2980 = vrot.lane.b32.xlu0 %v2978, 96
    %v2981 = vpop.permute.xlu0 %2980
    %v2983 = vsel %vm1464, %v2981, 0.0
    %2984 = vadd.xlane.f32.xlu0 %v2983
    %v2985 = vpop.xlane.xlu0 %2984
    %v2986 = vmul.f32 %v2985, %v1024
    %v2987 = vmul.f32 %v2978, %v2978
    %2989 = vrot.lane.b32.xlu0 %v2987, 96
    %v2990 = vpop.permute.xlu0 %2989
    %v2992 = vsel %vm1464, %v2990, 0.0
    %2993 = vadd.xlane.f32.xlu0 %v2992
    %v2994 = vpop.xlane.xlu0 %2993
    %v2995 = vmul.f32 %v2994, %v1024
    %v2996 = vmul.f32 %v2986, %v2986
    %v2997 = vsub.f32 %v2995, %v2996
    %v2998 = vmax.f32 %v2997, 0.0
    %v2999 = vsub.f32 %v2978, %v2986
    %v3000 = vadd.f32 %v2998, 1e-05
    %v3001 = vrsqrt.pop %v3000
    %v3002 = vmul.f32 %v2999, %v3001
    %v3003 = vmul.f32 %v3002, %v1048
    %v3004 = vadd.f32 %v3003, %v1057
    %v3005 = vtanh.pop %v3004
    %3007 = vrot.lane.b32.xlu0 %v3005, 32
    %v3008 = vpop.permute.xlu0 %3007
    %v3010 = vmul.f32 %v2965, %v3008
    %v3012 = vrot.slane %v3010, 2
    %3013 = vrot.lane.b32.xlu0 %v3012, 64
    %v3014 = vpop.permute.xlu0 %3013
    %v3015 = vsel %vm893, %v3014, 0
    %3017 = vmatprep.subr.mxu0 0.0
    %3018 = vmatpush1.msra.mxu0 %v736
    %3019 = vmatprep.subr.mxu0 0.0
    %3020 = vmatpush1.msra.mxu0 %v737
    %3021 = vmatprep.subr.mxu0 0.0
    %3022 = vmatpush1.msra.mxu0 %v738
    %3023 = vmatprep.subr.mxu0 0.0
    %3024 = vmatpush1.msra.mxu0 %v739
    %3025 = vmatprep.subr.mxu0 0.0
    %3026 = vmatpush1.msra.mxu0 0.0
    %3027 = vmatprep.subr.mxu0 0.0
    %3028 = vmatpush1.msra.mxu0 0.0
    %3029 = vmatprep.subr.mxu0 0.0
    %3030 = vmatpush1.msra.mxu0 0.0
    %3031 = vmatprep.subr.mxu0 0.0
    %3032 = vmatpush1.msra.mxu0 0.0
    %3033 = vmatprep.subr.mxu0 0.0
    %3034 = vmatpush1.msra.mxu0 0.0
    %3035 = vmatprep.subr.mxu0 0.0
    %3036 = vmatpush1.msra.mxu0 0.0
    %3037 = vmatprep.subr.mxu0 0.0
    %3038 = vmatpush1.msra.mxu0 0.0
    %3039 = vmatprep.subr.mxu0 0.0
    %3040 = vmatpush1.msra.mxu0 0.0
    %3041 = vmatprep.subr.mxu0 0.0
    %3042 = vmatpush1.msra.mxu0 0.0
    %3043 = vmatprep.subr.mxu0 0.0
    %3044 = vmatpush1.msra.mxu0 0.0
    %3045 = vmatprep.subr.mxu0 0.0
    %3046 = vmatpush1.msra.mxu0 0.0
    %3047 = vmatprep.subr.mxu0 0.0
    %3048 = vmatpush1.msra.mxu0 0.0
    %3049 = vmatprep.subr.mxu0 0.0
    %3050 = vmatpush1.msra.mxu0 0.0
    %3051 = vmatprep.subr.mxu0 0.0
    %3052 = vmatpush1.msra.mxu0 0.0
    %3053 = vmatprep.subr.mxu0 0.0
    %3054 = vmatpush1.msra.mxu0 0.0
    %3055 = vmatprep.subr.mxu0 0.0
    %3056 = vmatpush1.msra.mxu0 0.0
    %3057 = vmatprep.subr.mxu0 0.0
    %3058 = vmatpush1.msra.mxu0 0.0
    %3059 = vmatprep.subr.mxu0 0.0
    %3060 = vmatpush1.msra.mxu0 0.0
    %3061 = vmatprep.subr.mxu0 0.0
    %3062 = vmatpush1.msra.mxu0 0.0
    %3063 = vmatprep.subr.mxu0 0.0
    %3064 = vmatpush1.msra.mxu0 0.0
    %3065 = vmatprep.subr.mxu0 0.0
    %3066 = vmatpush1.msra.mxu0 0.0
    %3067 = vmatprep.subr.mxu0 0.0
    %3068 = vmatpush1.msra.mxu0 0.0
    %3069 = vmatprep.subr.mxu0 0.0
    %3070 = vmatpush1.msra.mxu0 0.0
    %3071 = vmatprep.subr.mxu0 0.0
    %3072 = vmatpush1.msra.mxu0 0.0
    %3073 = vmatprep.subr.mxu0 0.0
    %3074 = vmatpush1.msra.mxu0 0.0
    %3075 = vmatprep.subr.mxu0 0.0
    %3076 = vmatpush1.msra.mxu0 0.0
    %3077 = vmatprep.subr.mxu0 0.0
    %3078 = vmatpush1.msra.mxu0 0.0
    %3079 = vmatprep.subr.mxu0 0.0
    %3080 = vmatpush1.msra.mxu0 0.0
    %3081 = vmatprep.mubr.f32.mxu0 0.0
    %3082 = vmatmul.mubr.f32.gmra.mrb[0].mxu0 %v3015
    %v3083 = vpop.f32.mrb[0].mxu0
    %v3084 = vadd.f32 %v1070, %v3083
    %v3085 = vpop.f32.mrb[0].mxu0
    %3086 = vdwg.mxu0
    %v3087 = vsel %vm967, %v3084, 0.0
    %3088 = vadd.xlane.f32.xlu0 %v3087
    %v3089 = vpop.xlane.xlu0 %3088
    %v3090 = vmul.f32 %v3089, %v843
    %v3091 = vmul.f32 %v3084, %v3084
    %v3092 = vsel %vm967, %v3091, 0.0
    %3093 = vadd.xlane.f32.xlu0 %v3092
    %v3094 = vpop.xlane.xlu0 %3093
    %v3095 = vmul.f32 %v3094, %v843
    %v3096 = vmul.f32 %v3090, %v3090
    %v3097 = vsub.f32 %v3095, %v3096
    %v3098 = vmax.f32 %v3097, 0.0
    %v3099 = vsub.f32 %v3084, %v3090
    %v3100 = vadd.f32 %v3098, 1e-05
    %v3101 = vrsqrt.pop %v3100
    %v3102 = vmul.f32 %v3099, %v3101
    %v3103 = vmul.f32 %v3102, %v1167
    %v3104 = vadd.f32 %v3103, %v1174
    %3106 = vrot.lane.b32.xlu0 %v2867, 64
    %v3107 = vpop.permute.xlu0 %3106
    %v3108 = vsel %vm893, %v3107, 0
    %3110 = vmatprep.subr.mxu0 0.0
    %3111 = vmatpush1.msra.mxu0 %v740
    %3112 = vmatprep.subr.mxu0 0.0
    %3113 = vmatpush1.msra.mxu0 %v741
    %3114 = vmatprep.subr.mxu0 0.0
    %3115 = vmatpush1.msra.mxu0 %v742
    %3116 = vmatprep.subr.mxu0 0.0
    %3117 = vmatpush1.msra.mxu0 %v743
    %3118 = vmatprep.subr.mxu0 0.0
    %3119 = vmatpush1.msra.mxu0 0.0
    %3120 = vmatprep.subr.mxu0 0.0
    %3121 = vmatpush1.msra.mxu0 0.0
    %3122 = vmatprep.subr.mxu0 0.0
    %3123 = vmatpush1.msra.mxu0 0.0
    %3124 = vmatprep.subr.mxu0 0.0
    %3125 = vmatpush1.msra.mxu0 0.0
    %3126 = vmatprep.subr.mxu0 0.0
    %3127 = vmatpush1.msra.mxu0 0.0
    %3128 = vmatprep.subr.mxu0 0.0
    %3129 = vmatpush1.msra.mxu0 0.0
    %3130 = vmatprep.subr.mxu0 0.0
    %3131 = vmatpush1.msra.mxu0 0.0
    %3132 = vmatprep.subr.mxu0 0.0
    %3133 = vmatpush1.msra.mxu0 0.0
    %3134 = vmatprep.subr.mxu0 0.0
    %3135 = vmatpush1.msra.mxu0 0.0
    %3136 = vmatprep.subr.mxu0 0.0
    %3137 = vmatpush1.msra.mxu0 0.0
    %3138 = vmatprep.subr.mxu0 0.0
    %3139 = vmatpush1.msra.mxu0 0.0
    %3140 = vmatprep.subr.mxu0 0.0
    %3141 = vmatpush1.msra.mxu0 0.0
    %3142 = vmatprep.subr.mxu0 0.0
    %3143 = vmatpush1.msra.mxu0 0.0
    %3144 = vmatprep.subr.mxu0 0.0
    %3145 = vmatpush1.msra.mxu0 0.0
    %3146 = vmatprep.subr.mxu0 0.0
    %3147 = vmatpush1.msra.mxu0 0.0
    %3148 = vmatprep.subr.mxu0 0.0
    %3149 = vmatpush1.msra.mxu0 0.0
    %3150 = vmatprep.subr.mxu0 0.0
    %3151 = vmatpush1.msra.mxu0 0.0
    %3152 = vmatprep.subr.mxu0 0.0
    %3153 = vmatpush1.msra.mxu0 0.0
    %3154 = vmatprep.subr.mxu0 0.0
    %3155 = vmatpush1.msra.mxu0 0.0
    %3156 = vmatprep.subr.mxu0 0.0
    %3157 = vmatpush1.msra.mxu0 0.0
    %3158 = vmatprep.subr.mxu0 0.0
    %3159 = vmatpush1.msra.mxu0 0.0
    %3160 = vmatprep.subr.mxu0 0.0
    %3161 = vmatpush1.msra.mxu0 0.0
    %3162 = vmatprep.subr.mxu0 0.0
    %3163 = vmatpush1.msra.mxu0 0.0
    %3164 = vmatprep.subr.mxu0 0.0
    %3165 = vmatpush1.msra.mxu0 0.0
    %3166 = vmatprep.subr.mxu0 0.0
    %3167 = vmatpush1.msra.mxu0 0.0
    %3168 = vmatprep.subr.mxu0 0.0
    %3169 = vmatpush1.msra.mxu0 0.0
    %3170 = vmatprep.subr.mxu0 0.0
    %3171 = vmatpush1.msra.mxu0 0.0
    %3172 = vmatprep.subr.mxu0 0.0
    %3173 = vmatpush1.msra.mxu0 0.0
    %3174 = vmatprep.mubr.f32.mxu0 0.0
    %3175 = vmatmul.mubr.f32.gmra.mrb[0].mxu0 %v3108
    %v3176 = vpop.f32.mrb[0].mxu0
    %v3177 = vadd.f32 %v1181, %v3176
    %v3178 = vpop.f32.mrb[0].mxu0
    %3179 = vdwg.mxu0
    %v3180 = vsel %vm967, %v3177, 0.0
    %3181 = vadd.xlane.f32.xlu0 %v3180
    %v3182 = vpop.xlane.xlu0 %3181
    %v3183 = vmul.f32 %v3182, %v843
    %v3184 = vmul.f32 %v3177, %v3177
    %v3185 = vsel %vm967, %v3184, 0.0
    %3186 = vadd.xlane.f32.xlu0 %v3185
    %v3187 = vpop.xlane.xlu0 %3186
    %v3188 = vmul.f32 %v3187, %v843
    %v3189 = vmul.f32 %v3183, %v3183
    %v3190 = vsub.f32 %v3188, %v3189
    %v3191 = vmax.f32 %v3190, 0.0
    %v3192 = vsub.f32 %v3177, %v3183
    %v3193 = vadd.f32 %v3191, 1e-05
    %v3194 = vrsqrt.pop %v3193
    %v3195 = vmul.f32 %v3192, %v3194
    %v3196 = vmul.f32 %v3195, %v1273
    %v3197 = vadd.f32 %v3196, %v1280
    %v3198 = vadd.f32 %v3104, %v3197
    %v3199 = vmul.f32 %v3198, 0.5
    %v3200 = vsel %vm886, %v3199, %v3198
    %v3201 = vtanh.pop %v3200
    %v3202 = vadd.f32 %v3201, 1.0
    %v3203 = vmul.f32 %v3202, 0.5
    %v3204 = vsel %vm886, %v3203, %v3201
    %v3205 = vmul.f32 %v3204, %v2835
    %3207 = vrot.lane.b32.xlu0 %v3204, 32
    %v3208 = vpop.permute.xlu0 %3207
    %v3210 = vmul.f32 %v3204, %v3208
    %3212 = vrot.lane.b32.xlu0 %v3210, 32
    %v3213 = vpop.permute.xlu0 %3212
    %v3215 = vadd.f32 %v3205, %v3213
    %3217 = vrot.lane.b32.xlu0 %v3215, 96
    %v3218 = vpop.permute.xlu0 %3217
    %v3220 = vsel %vm1020, %v3218, 0.0
    %3221 = vadd.xlane.f32.xlu0 %v3220
    %v3222 = vpop.xlane.xlu0 %3221
    %v3223 = vmul.f32 %v3222, %v1024
    %v3224 = vmul.f32 %v3215, %v3215
    %3226 = vrot.lane.b32.xlu0 %v3224, 96
    %v3227 = vpop.permute.xlu0 %3226
    %v3229 = vsel %vm1020, %v3227, 0.0
    %3230 = vadd.xlane.f32.xlu0 %v3229
    %v3231 = vpop.xlane.xlu0 %3230
    %v3232 = vmul.f32 %v3231, %v1024
    %v3233 = vmul.f32 %v3223, %v3223
    %v3234 = vsub.f32 %v3232, %v3233
    %v3235 = vmax.f32 %v3234, 0.0
    %v3236 = vsub.f32 %v3215, %v3223
    %v3237 = vadd.f32 %v3235, 1e-05
    %v3238 = vrsqrt.pop %v3237
    %v3239 = vmul.f32 %v3236, %v3238
    %v3240 = vmul.f32 %v3239, %v1331
    %v3241 = vadd.f32 %v3240, %v1340
    %v3242 = vtanh.pop %v3241
    %3244 = vrot.lane.b32.xlu0 %v3242, 32
    %v3245 = vpop.permute.xlu0 %3244
    %v3247 = vmul.f32 %v3204, %v3245
    %3248 = vmatprep.subr.mxu0 0.0
    %3249 = vmatpush1.msra.mxu0 %v724
    %3250 = vmatprep.subr.mxu0 0.0
    %3251 = vmatpush1.msra.mxu0 %v725
    %3252 = vmatprep.subr.mxu0 0.0
    %3253 = vmatpush1.msra.mxu0 %v726
    %3254 = vmatprep.subr.mxu0 0.0
    %3255 = vmatpush1.msra.mxu0 %v727
    %3256 = vmatprep.subr.mxu0 0.0
    %3257 = vmatpush1.msra.mxu0 0.0
    %3258 = vmatprep.subr.mxu0 0.0
    %3259 = vmatpush1.msra.mxu0 0.0
    %3260 = vmatprep.subr.mxu0 0.0
    %3261 = vmatpush1.msra.mxu0 0.0
    %3262 = vmatprep.subr.mxu0 0.0
    %3263 = vmatpush1.msra.mxu0 0.0
    %3264 = vmatprep.subr.mxu0 0.0
    %3265 = vmatpush1.msra.mxu0 0.0
    %3266 = vmatprep.subr.mxu0 0.0
    %3267 = vmatpush1.msra.mxu0 0.0
    %3268 = vmatprep.subr.mxu0 0.0
    %3269 = vmatpush1.msra.mxu0 0.0
    %3270 = vmatprep.subr.mxu0 0.0
    %3271 = vmatpush1.msra.mxu0 0.0
    %3272 = vmatprep.subr.mxu0 0.0
    %3273 = vmatpush1.msra.mxu0 0.0
    %3274 = vmatprep.subr.mxu0 0.0
    %3275 = vmatpush1.msra.mxu0 0.0
    %3276 = vmatprep.subr.mxu0 0.0
    %3277 = vmatpush1.msra.mxu0 0.0
    %3278 = vmatprep.subr.mxu0 0.0
    %3279 = vmatpush1.msra.mxu0 0.0
    %3280 = vmatprep.subr.mxu0 0.0
    %3281 = vmatpush1.msra.mxu0 0.0
    %3282 = vmatprep.subr.mxu0 0.0
    %3283 = vmatpush1.msra.mxu0 0.0
    %3284 = vmatprep.subr.mxu0 0.0
    %3285 = vmatpush1.msra.mxu0 0.0
    %3286 = vmatprep.subr.mxu0 0.0
    %3287 = vmatpush1.msra.mxu0 0.0
    %3288 = vmatprep.subr.mxu0 0.0
    %3289 = vmatpush1.msra.mxu0 0.0
    %3290 = vmatprep.subr.mxu0 0.0
    %3291 = vmatpush1.msra.mxu0 0.0
    %3292 = vmatprep.subr.mxu0 0.0
    %3293 = vmatpush1.msra.mxu0 0.0
    %3294 = vmatprep.subr.mxu0 0.0
    %3295 = vmatpush1.msra.mxu0 0.0
    %3296 = vmatprep.subr.mxu0 0.0
    %3297 = vmatpush1.msra.mxu0 0.0
    %3298 = vmatprep.subr.mxu0 0.0
    %3299 = vmatpush1.msra.mxu0 0.0
    %3300 = vmatprep.subr.mxu0 0.0
    %3301 = vmatpush1.msra.mxu0 0.0
    %3302 = vmatprep.subr.mxu0 0.0
    %3303 = vmatpush1.msra.mxu0 0.0
    %3304 = vmatprep.subr.mxu0 0.0
    %3305 = vmatpush1.msra.mxu0 0.0
    %3306 = vmatprep.subr.mxu0 0.0
    %3307 = vmatpush1.msra.mxu0 0.0
    %3308 = vmatprep.subr.mxu0 0.0
    %3309 = vmatpush1.msra.mxu0 0.0
    %3310 = vmatprep.subr.mxu0 0.0
    %3311 = vmatpush1.msra.mxu0 0.0
    %3312 = vmatprep.mubr.f32.mxu0 0.0
    %3313 = vmatmul.mubr.f32.gmra.mrb[0].mxu0 %v3015
    %v3314 = vpop.f32.mrb[0].mxu0
    %v3315 = vadd.f32 %v891, %v3314
    %v3316 = vpop.f32.mrb[0].mxu0
    %3317 = vdwg.mxu0
    %v3318 = vsel %vm967, %v3315, 0.0
    %3319 = vadd.xlane.f32.xlu0 %v3318
    %v3320 = vpop.xlane.xlu0 %3319
    %v3321 = vmul.f32 %v3320, %v843
    %v3322 = vmul.f32 %v3315, %v3315
    %v3323 = vsel %vm967, %v3322, 0.0
    %3324 = vadd.xlane.f32.xlu0 %v3323
    %v3325 = vpop.xlane.xlu0 %3324
    %v3326 = vmul.f32 %v3325, %v843
    %v3327 = vmul.f32 %v3321, %v3321
    %v3328 = vsub.f32 %v3326, %v3327
    %v3329 = vmax.f32 %v3328, 0.0
    %v3330 = vsub.f32 %v3315, %v3321
    %v3331 = vadd.f32 %v3329, 1e-05
    %v3332 = vrsqrt.pop %v3331
    %v3333 = vmul.f32 %v3330, %v3332
    %v3334 = vmul.f32 %v3333, %v988
    %v3335 = vadd.f32 %v3334, %v995
    %v3337 = vrot.slane %v3335, 4
    %v3339 = vadd.f32 %v883, %v3337
    %v3340 = vmul.f32 %v3339, 0.5
    %v3341 = vsel %vm886, %v3340, %v3339
    %v3342 = vtanh.pop %v3341
    %v3343 = vadd.f32 %v3342, 1.0
    %v3344 = vmul.f32 %v3343, 0.5
    %v3345 = vsel %vm886, %v3344, %v3342
    %v3346 = vrot.slane %v2978, 6
    %v3348 = vmul.f32 %v3345, %v3346
    %3350 = vrot.lane.b32.xlu0 %v3345, 32
    %v3351 = vpop.permute.xlu0 %3350
    %v3353 = vmul.f32 %v3345, %v3351
    %3355 = vrot.lane.b32.xlu0 %v3353, 32
    %v3356 = vpop.permute.xlu0 %3355
    %v3358 = vadd.f32 %v3348, %v3356
    %3360 = vrot.lane.b32.xlu0 %v3358, 96
    %v3361 = vpop.permute.xlu0 %3360
    %v3363 = vsel %vm1845, %v3361, 0.0
    %3364 = vadd.xlane.f32.xlu0 %v3363
    %v3365 = vpop.xlane.xlu0 %3364
    %v3366 = vmul.f32 %v3365, %v1024
    %v3367 = vmul.f32 %v3358, %v3358
    %3369 = vrot.lane.b32.xlu0 %v3367, 96
    %v3370 = vpop.permute.xlu0 %3369
    %v3372 = vsel %vm1845, %v3370, 0.0
    %3373 = vadd.xlane.f32.xlu0 %v3372
    %v3374 = vpop.xlane.xlu0 %3373
    %v3375 = vmul.f32 %v3374, %v1024
    %v3376 = vmul.f32 %v3366, %v3366
    %v3377 = vsub.f32 %v3375, %v3376
    %v3378 = vmax.f32 %v3377, 0.0
    %v3379 = vsub.f32 %v3358, %v3366
    %v3380 = vadd.f32 %v3378, 1e-05
    %v3381 = vrsqrt.pop %v3380
    %v3382 = vmul.f32 %v3379, %v3381
    %v3383 = vmul.f32 %v3382, %v1048
    %v3384 = vadd.f32 %v3383, %v1057
    %v3385 = vtanh.pop %v3384
    %3387 = vrot.lane.b32.xlu0 %v3385, 32
    %v3388 = vpop.permute.xlu0 %3387
    %v3390 = vmul.f32 %v3345, %v3388
    %v3392 = vrot.slane %v3390, 4
    %3393 = vrot.lane.b32.xlu0 %v3392, 64
    %v3394 = vpop.permute.xlu0 %3393
    %v3395 = vsel %vm893, %v3394, 0
    %3397 = vmatprep.subr.mxu0 0.0
    %3398 = vmatpush1.msra.mxu0 %v736
    %3399 = vmatprep.subr.mxu0 0.0
    %3400 = vmatpush1.msra.mxu0 %v737
    %3401 = vmatprep.subr.mxu0 0.0
    %3402 = vmatpush1.msra.mxu0 %v738
    %3403 = vmatprep.subr.mxu0 0.0
    %3404 = vmatpush1.msra.mxu0 %v739
    %3405 = vmatprep.subr.mxu0 0.0
    %3406 = vmatpush1.msra.mxu0 0.0
    %3407 = vmatprep.subr.mxu0 0.0
    %3408 = vmatpush1.msra.mxu0 0.0
    %3409 = vmatprep.subr.mxu0 0.0
    %3410 = vmatpush1.msra.mxu0 0.0
    %3411 = vmatprep.subr.mxu0 0.0
    %3412 = vmatpush1.msra.mxu0 0.0
    %3413 = vmatprep.subr.mxu0 0.0
    %3414 = vmatpush1.msra.mxu0 0.0
    %3415 = vmatprep.subr.mxu0 0.0
    %3416 = vmatpush1.msra.mxu0 0.0
    %3417 = vmatprep.subr.mxu0 0.0
    %3418 = vmatpush1.msra.mxu0 0.0
    %3419 = vmatprep.subr.mxu0 0.0
    %3420 = vmatpush1.msra.mxu0 0.0
    %3421 = vmatprep.subr.mxu0 0.0
    %3422 = vmatpush1.msra.mxu0 0.0
    %3423 = vmatprep.subr.mxu0 0.0
    %3424 = vmatpush1.msra.mxu0 0.0
    %3425 = vmatprep.subr.mxu0 0.0
    %3426 = vmatpush1.msra.mxu0 0.0
    %3427 = vmatprep.subr.mxu0 0.0
    %3428 = vmatpush1.msra.mxu0 0.0
    %3429 = vmatprep.subr.mxu0 0.0
    %3430 = vmatpush1.msra.mxu0 0.0
    %3431 = vmatprep.subr.mxu0 0.0
    %3432 = vmatpush1.msra.mxu0 0.0
    %3433 = vmatprep.subr.mxu0 0.0
    %3434 = vmatpush1.msra.mxu0 0.0
    %3435 = vmatprep.subr.mxu0 0.0
    %3436 = vmatpush1.msra.mxu0 0.0
    %3437 = vmatprep.subr.mxu0 0.0
    %3438 = vmatpush1.msra.mxu0 0.0
    %3439 = vmatprep.subr.mxu0 0.0
    %3440 = vmatpush1.msra.mxu0 0.0
    %3441 = vmatprep.subr.mxu0 0.0
    %3442 = vmatpush1.msra.mxu0 0.0
    %3443 = vmatprep.subr.mxu0 0.0
    %3444 = vmatpush1.msra.mxu0 0.0
    %3445 = vmatprep.subr.mxu0 0.0
    %3446 = vmatpush1.msra.mxu0 0.0
    %3447 = vmatprep.subr.mxu0 0.0
    %3448 = vmatpush1.msra.mxu0 0.0
    %3449 = vmatprep.subr.mxu0 0.0
    %3450 = vmatpush1.msra.mxu0 0.0
    %3451 = vmatprep.subr.mxu0 0.0
    %3452 = vmatpush1.msra.mxu0 0.0
    %3453 = vmatprep.subr.mxu0 0.0
    %3454 = vmatpush1.msra.mxu0 0.0
    %3455 = vmatprep.subr.mxu0 0.0
    %3456 = vmatpush1.msra.mxu0 0.0
    %3457 = vmatprep.subr.mxu0 0.0
    %3458 = vmatpush1.msra.mxu0 0.0
    %3459 = vmatprep.subr.mxu0 0.0
    %3460 = vmatpush1.msra.mxu0 0.0
    %3461 = vmatprep.mubr.f32.mxu0 0.0
    %3462 = vmatmul.mubr.f32.gmra.mrb[0].mxu0 %v3395
    %v3463 = vpop.f32.mrb[0].mxu0
    %v3464 = vadd.f32 %v1070, %v3463
    %v3465 = vpop.f32.mrb[0].mxu0
    %3466 = vdwg.mxu0
    %v3467 = vsel %vm967, %v3464, 0.0
    %3468 = vadd.xlane.f32.xlu0 %v3467
    %v3469 = vpop.xlane.xlu0 %3468
    %v3470 = vmul.f32 %v3469, %v843
    %v3471 = vmul.f32 %v3464, %v3464
    %v3472 = vsel %vm967, %v3471, 0.0
    %3473 = vadd.xlane.f32.xlu0 %v3472
    %v3474 = vpop.xlane.xlu0 %3473
    %v3475 = vmul.f32 %v3474, %v843
    %v3476 = vmul.f32 %v3470, %v3470
    %v3477 = vsub.f32 %v3475, %v3476
    %v3478 = vmax.f32 %v3477, 0.0
    %v3479 = vsub.f32 %v3464, %v3470
    %v3480 = vadd.f32 %v3478, 1e-05
    %v3481 = vrsqrt.pop %v3480
    %v3482 = vmul.f32 %v3479, %v3481
    %v3483 = vmul.f32 %v3482, %v1167
    %v3484 = vadd.f32 %v3483, %v1174
    %3486 = vrot.lane.b32.xlu0 %v3247, 64
    %v3487 = vpop.permute.xlu0 %3486
    %v3488 = vsel %vm893, %v3487, 0
    %3490 = vmatprep.subr.mxu0 0.0
    %3491 = vmatpush1.msra.mxu0 %v740
    %3492 = vmatprep.subr.mxu0 0.0
    %3493 = vmatpush1.msra.mxu0 %v741
    %3494 = vmatprep.subr.mxu0 0.0
    %3495 = vmatpush1.msra.mxu0 %v742
    %3496 = vmatprep.subr.mxu0 0.0
    %3497 = vmatpush1.msra.mxu0 %v743
    %3498 = vmatprep.subr.mxu0 0.0
    %3499 = vmatpush1.msra.mxu0 0.0
    %3500 = vmatprep.subr.mxu0 0.0
    %3501 = vmatpush1.msra.mxu0 0.0
    %3502 = vmatprep.subr.mxu0 0.0
    %3503 = vmatpush1.msra.mxu0 0.0
    %3504 = vmatprep.subr.mxu0 0.0
    %3505 = vmatpush1.msra.mxu0 0.0
    %3506 = vmatprep.subr.mxu0 0.0
    %3507 = vmatpush1.msra.mxu0 0.0
    %3508 = vmatprep.subr.mxu0 0.0
    %3509 = vmatpush1.msra.mxu0 0.0
    %3510 = vmatprep.subr.mxu0 0.0
    %3511 = vmatpush1.msra.mxu0 0.0
    %3512 = vmatprep.subr.mxu0 0.0
    %3513 = vmatpush1.msra.mxu0 0.0
    %3514 = vmatprep.subr.mxu0 0.0
    %3515 = vmatpush1.msra.mxu0 0.0
    %3516 = vmatprep.subr.mxu0 0.0
    %3517 = vmatpush1.msra.mxu0 0.0
    %3518 = vmatprep.subr.mxu0 0.0
    %3519 = vmatpush1.msra.mxu0 0.0
    %3520 = vmatprep.subr.mxu0 0.0
    %3521 = vmatpush1.msra.mxu0 0.0
    %3522 = vmatprep.subr.mxu0 0.0
    %3523 = vmatpush1.msra.mxu0 0.0
    %3524 = vmatprep.subr.mxu0 0.0
    %3525 = vmatpush1.msra.mxu0 0.0
    %3526 = vmatprep.subr.mxu0 0.0
    %3527 = vmatpush1.msra.mxu0 0.0
    %3528 = vmatprep.subr.mxu0 0.0
    %3529 = vmatpush1.msra.mxu0 0.0
    %3530 = vmatprep.subr.mxu0 0.0
    %3531 = vmatpush1.msra.mxu0 0.0
    %3532 = vmatprep.subr.mxu0 0.0
    %3533 = vmatpush1.msra.mxu0 0.0
    %3534 = vmatprep.subr.mxu0 0.0
    %3535 = vmatpush1.msra.mxu0 0.0
    %3536 = vmatprep.subr.mxu0 0.0
    %3537 = vmatpush1.msra.mxu0 0.0
    %3538 = vmatprep.subr.mxu0 0.0
    %3539 = vmatpush1.msra.mxu0 0.0
    %3540 = vmatprep.subr.mxu0 0.0
    %3541 = vmatpush1.msra.mxu0 0.0
    %3542 = vmatprep.subr.mxu0 0.0
    %3543 = vmatpush1.msra.mxu0 0.0
    %3544 = vmatprep.subr.mxu0 0.0
    %3545 = vmatpush1.msra.mxu0 0.0
    %3546 = vmatprep.subr.mxu0 0.0
    %3547 = vmatpush1.msra.mxu0 0.0
    %3548 = vmatprep.subr.mxu0 0.0
    %3549 = vmatpush1.msra.mxu0 0.0
    %3550 = vmatprep.subr.mxu0 0.0
    %3551 = vmatpush1.msra.mxu0 0.0
    %3552 = vmatprep.subr.mxu0 0.0
    %3553 = vmatpush1.msra.mxu0 0.0
    %3554 = vmatprep.mubr.f32.mxu0 0.0
    %3555 = vmatmul.mubr.f32.gmra.mrb[0].mxu0 %v3488
    %v3556 = vpop.f32.mrb[0].mxu0
    %v3557 = vadd.f32 %v1181, %v3556
    %v3558 = vpop.f32.mrb[0].mxu0
    %3559 = vdwg.mxu0
    %v3560 = vsel %vm967, %v3557, 0.0
    %3561 = vadd.xlane.f32.xlu0 %v3560
    %v3562 = vpop.xlane.xlu0 %3561
    %v3563 = vmul.f32 %v3562, %v843
    %v3564 = vmul.f32 %v3557, %v3557
    %v3565 = vsel %vm967, %v3564, 0.0
    %3566 = vadd.xlane.f32.xlu0 %v3565
    %v3567 = vpop.xlane.xlu0 %3566
    %v3568 = vmul.f32 %v3567, %v843
    %v3569 = vmul.f32 %v3563, %v3563
    %v3570 = vsub.f32 %v3568, %v3569
    %v3571 = vmax.f32 %v3570, 0.0
    %v3572 = vsub.f32 %v3557, %v3563
    %v3573 = vadd.f32 %v3571, 1e-05
    %v3574 = vrsqrt.pop %v3573
    %v3575 = vmul.f32 %v3572, %v3574
    %v3576 = vmul.f32 %v3575, %v1273
    %v3577 = vadd.f32 %v3576, %v1280
    %v3578 = vadd.f32 %v3484, %v3577
    %v3579 = vmul.f32 %v3578, 0.5
    %v3580 = vsel %vm886, %v3579, %v3578
    %v3581 = vtanh.pop %v3580
    %v3582 = vadd.f32 %v3581, 1.0
    %v3583 = vmul.f32 %v3582, 0.5
    %v3584 = vsel %vm886, %v3583, %v3581
    %v3585 = vmul.f32 %v3584, %v3215
    %3587 = vrot.lane.b32.xlu0 %v3584, 32
    %v3588 = vpop.permute.xlu0 %3587
    %v3590 = vmul.f32 %v3584, %v3588
    %3592 = vrot.lane.b32.xlu0 %v3590, 32
    %v3593 = vpop.permute.xlu0 %3592
    %v3595 = vadd.f32 %v3585, %v3593
    %3597 = vrot.lane.b32.xlu0 %v3595, 96
    %v3598 = vpop.permute.xlu0 %3597
    %v3600 = vsel %vm1020, %v3598, 0.0
    %3601 = vadd.xlane.f32.xlu0 %v3600
    %v3602 = vpop.xlane.xlu0 %3601
    %v3603 = vmul.f32 %v3602, %v1024
    %v3604 = vmul.f32 %v3595, %v3595
    %3606 = vrot.lane.b32.xlu0 %v3604, 96
    %v3607 = vpop.permute.xlu0 %3606
    %v3609 = vsel %vm1020, %v3607, 0.0
    %3610 = vadd.xlane.f32.xlu0 %v3609
    %v3611 = vpop.xlane.xlu0 %3610
    %v3612 = vmul.f32 %v3611, %v1024
    %v3613 = vmul.f32 %v3603, %v3603
    %v3614 = vsub.f32 %v3612, %v3613
    %v3615 = vmax.f32 %v3614, 0.0
    %v3616 = vsub.f32 %v3595, %v3603
    %v3617 = vadd.f32 %v3615, 1e-05
    %v3618 = vrsqrt.pop %v3617
    %v3619 = vmul.f32 %v3616, %v3618
    %v3620 = vmul.f32 %v3619, %v1331
    %v3621 = vadd.f32 %v3620, %v1340
    %v3622 = vtanh.pop %v3621
    %3624 = vrot.lane.b32.xlu0 %v3622, 32
    %v3625 = vpop.permute.xlu0 %3624
    %v3627 = vmul.f32 %v3584, %v3625
    %3628 = vmatprep.subr.mxu0 0.0
    %3629 = vmatpush1.msra.mxu0 %v724
    %3630 = vmatprep.subr.mxu0 0.0
    %3631 = vmatpush1.msra.mxu0 %v725
    %3632 = vmatprep.subr.mxu0 0.0
    %3633 = vmatpush1.msra.mxu0 %v726
    %3634 = vmatprep.subr.mxu0 0.0
    %3635 = vmatpush1.msra.mxu0 %v727
    %3636 = vmatprep.subr.mxu0 0.0
    %3637 = vmatpush1.msra.mxu0 0.0
    %3638 = vmatprep.subr.mxu0 0.0
    %3639 = vmatpush1.msra.mxu0 0.0
    %3640 = vmatprep.subr.mxu0 0.0
    %3641 = vmatpush1.msra.mxu0 0.0
    %3642 = vmatprep.subr.mxu0 0.0
    %3643 = vmatpush1.msra.mxu0 0.0
    %3644 = vmatprep.subr.mxu0 0.0
    %3645 = vmatpush1.msra.mxu0 0.0
    %3646 = vmatprep.subr.mxu0 0.0
    %3647 = vmatpush1.msra.mxu0 0.0
    %3648 = vmatprep.subr.mxu0 0.0
    %3649 = vmatpush1.msra.mxu0 0.0
    %3650 = vmatprep.subr.mxu0 0.0
    %3651 = vmatpush1.msra.mxu0 0.0
    %3652 = vmatprep.subr.mxu0 0.0
    %3653 = vmatpush1.msra.mxu0 0.0
    %3654 = vmatprep.subr.mxu0 0.0
    %3655 = vmatpush1.msra.mxu0 0.0
    %3656 = vmatprep.subr.mxu0 0.0
    %3657 = vmatpush1.msra.mxu0 0.0
    %3658 = vmatprep.subr.mxu0 0.0
    %3659 = vmatpush1.msra.mxu0 0.0
    %3660 = vmatprep.subr.mxu0 0.0
    %3661 = vmatpush1.msra.mxu0 0.0
    %3662 = vmatprep.subr.mxu0 0.0
    %3663 = vmatpush1.msra.mxu0 0.0
    %3664 = vmatprep.subr.mxu0 0.0
    %3665 = vmatpush1.msra.mxu0 0.0
    %3666 = vmatprep.subr.mxu0 0.0
    %3667 = vmatpush1.msra.mxu0 0.0
    %3668 = vmatprep.subr.mxu0 0.0
    %3669 = vmatpush1.msra.mxu0 0.0
    %3670 = vmatprep.subr.mxu0 0.0
    %3671 = vmatpush1.msra.mxu0 0.0
    %3672 = vmatprep.subr.mxu0 0.0
    %3673 = vmatpush1.msra.mxu0 0.0
    %3674 = vmatprep.subr.mxu0 0.0
    %3675 = vmatpush1.msra.mxu0 0.0
    %3676 = vmatprep.subr.mxu0 0.0
    %3677 = vmatpush1.msra.mxu0 0.0
    %3678 = vmatprep.subr.mxu0 0.0
    %3679 = vmatpush1.msra.mxu0 0.0
    %3680 = vmatprep.subr.mxu0 0.0
    %3681 = vmatpush1.msra.mxu0 0.0
    %3682 = vmatprep.subr.mxu0 0.0
    %3683 = vmatpush1.msra.mxu0 0.0
    %3684 = vmatprep.subr.mxu0 0.0
    %3685 = vmatpush1.msra.mxu0 0.0
    %3686 = vmatprep.subr.mxu0 0.0
    %3687 = vmatpush1.msra.mxu0 0.0
    %3688 = vmatprep.subr.mxu0 0.0
    %3689 = vmatpush1.msra.mxu0 0.0
    %3690 = vmatprep.subr.mxu0 0.0
    %3691 = vmatpush1.msra.mxu0 0.0
    %3692 = vmatprep.mubr.f32.mxu0 0.0
    %3693 = vmatmul.mubr.f32.gmra.mrb[0].mxu0 %v3395
    %v3694 = vpop.f32.mrb[0].mxu0
    %v3695 = vadd.f32 %v891, %v3694
    %v3696 = vpop.f32.mrb[0].mxu0
    %3697 = vdwg.mxu0
    %v3698 = vsel %vm967, %v3695, 0.0
    %3699 = vadd.xlane.f32.xlu0 %v3698
    %v3700 = vpop.xlane.xlu0 %3699
    %v3701 = vmul.f32 %v3700, %v843
    %v3702 = vmul.f32 %v3695, %v3695
    %v3703 = vsel %vm967, %v3702, 0.0
    %3704 = vadd.xlane.f32.xlu0 %v3703
    %v3705 = vpop.xlane.xlu0 %3704
    %v3706 = vmul.f32 %v3705, %v843
    %v3707 = vmul.f32 %v3701, %v3701
    %v3708 = vsub.f32 %v3706, %v3707
    %v3709 = vmax.f32 %v3708, 0.0
    %v3710 = vsub.f32 %v3695, %v3701
    %v3711 = vadd.f32 %v3709, 1e-05
    %v3712 = vrsqrt.pop %v3711
    %v3713 = vmul.f32 %v3710, %v3712
    %v3714 = vmul.f32 %v3713, %v988
    %v3715 = vadd.f32 %v3714, %v995
    %v3717 = vrot.slane %v3715, 2
    %v3719 = vadd.f32 %v883, %v3717
    %v3720 = vmul.f32 %v3719, 0.5
    %v3721 = vsel %vm886, %v3720, %v3719
    %v3722 = vtanh.pop %v3721
    %v3723 = vadd.f32 %v3722, 1.0
    %v3724 = vmul.f32 %v3723, 0.5
    %v3725 = vsel %vm886, %v3724, %v3722
    %v3726 = vrot.slane %v3358, 6
    %v3728 = vmul.f32 %v3725, %v3726
    %3730 = vrot.lane.b32.xlu0 %v3725, 32
    %v3731 = vpop.permute.xlu0 %3730
    %v3733 = vmul.f32 %v3725, %v3731
    %3735 = vrot.lane.b32.xlu0 %v3733, 32
    %v3736 = vpop.permute.xlu0 %3735
    %v3738 = vadd.f32 %v3728, %v3736
    %3740 = vrot.lane.b32.xlu0 %v3738, 96
    %v3741 = vpop.permute.xlu0 %3740
    %v3743 = vsel %vm2226, %v3741, 0.0
    %3744 = vadd.xlane.f32.xlu0 %v3743
    %v3745 = vpop.xlane.xlu0 %3744
    %v3746 = vmul.f32 %v3745, %v1024
    %v3747 = vmul.f32 %v3738, %v3738
    %3749 = vrot.lane.b32.xlu0 %v3747, 96
    %v3750 = vpop.permute.xlu0 %3749
    %v3752 = vsel %vm2226, %v3750, 0.0
    %3753 = vadd.xlane.f32.xlu0 %v3752
    %v3754 = vpop.xlane.xlu0 %3753
    %v3755 = vmul.f32 %v3754, %v1024
    %v3756 = vmul.f32 %v3746, %v3746
    %v3757 = vsub.f32 %v3755, %v3756
    %v3758 = vmax.f32 %v3757, 0.0
    %v3759 = vsub.f32 %v3738, %v3746
    %v3760 = vadd.f32 %v3758, 1e-05
    %v3761 = vrsqrt.pop %v3760
    %v3762 = vmul.f32 %v3759, %v3761
    %v3763 = vmul.f32 %v3762, %v1048
    %v3764 = vadd.f32 %v3763, %v1057
    %v3765 = vtanh.pop %v3764
    %3767 = vrot.lane.b32.xlu0 %v3765, 32
    %v3768 = vpop.permute.xlu0 %3767
    %v3770 = vmul.f32 %v3725, %v3768
    %v3772 = vrot.slane %v3770, 6
    %3773 = vrot.lane.b32.xlu0 %v3772, 64
    %v3774 = vpop.permute.xlu0 %3773
    %v3775 = vsel %vm893, %v3774, 0
    %3777 = vmatprep.subr.mxu0 0.0
    %3778 = vmatpush1.msra.mxu0 %v736
    %3779 = vmatprep.subr.mxu0 0.0
    %3780 = vmatpush1.msra.mxu0 %v737
    %3781 = vmatprep.subr.mxu0 0.0
    %3782 = vmatpush1.msra.mxu0 %v738
    %3783 = vmatprep.subr.mxu0 0.0
    %3784 = vmatpush1.msra.mxu0 %v739
    %3785 = vmatprep.subr.mxu0 0.0
    %3786 = vmatpush1.msra.mxu0 0.0
    %3787 = vmatprep.subr.mxu0 0.0
    %3788 = vmatpush1.msra.mxu0 0.0
    %3789 = vmatprep.subr.mxu0 0.0
    %3790 = vmatpush1.msra.mxu0 0.0
    %3791 = vmatprep.subr.mxu0 0.0
    %3792 = vmatpush1.msra.mxu0 0.0
    %3793 = vmatprep.subr.mxu0 0.0
    %3794 = vmatpush1.msra.mxu0 0.0
    %3795 = vmatprep.subr.mxu0 0.0
    %3796 = vmatpush1.msra.mxu0 0.0
    %3797 = vmatprep.subr.mxu0 0.0
    %3798 = vmatpush1.msra.mxu0 0.0
    %3799 = vmatprep.subr.mxu0 0.0
    %3800 = vmatpush1.msra.mxu0 0.0
    %3801 = vmatprep.subr.mxu0 0.0
    %3802 = vmatpush1.msra.mxu0 0.0
    %3803 = vmatprep.subr.mxu0 0.0
    %3804 = vmatpush1.msra.mxu0 0.0
    %3805 = vmatprep.subr.mxu0 0.0
    %3806 = vmatpush1.msra.mxu0 0.0
    %3807 = vmatprep.subr.mxu0 0.0
    %3808 = vmatpush1.msra.mxu0 0.0
    %3809 = vmatprep.subr.mxu0 0.0
    %3810 = vmatpush1.msra.mxu0 0.0
    %3811 = vmatprep.subr.mxu0 0.0
    %3812 = vmatpush1.msra.mxu0 0.0
    %3813 = vmatprep.subr.mxu0 0.0
    %3814 = vmatpush1.msra.mxu0 0.0
    %3815 = vmatprep.subr.mxu0 0.0
    %3816 = vmatpush1.msra.mxu0 0.0
    %3817 = vmatprep.subr.mxu0 0.0
    %3818 = vmatpush1.msra.mxu0 0.0
    %3819 = vmatprep.subr.mxu0 0.0
    %3820 = vmatpush1.msra.mxu0 0.0
    %3821 = vmatprep.subr.mxu0 0.0
    %3822 = vmatpush1.msra.mxu0 0.0
    %3823 = vmatprep.subr.mxu0 0.0
    %3824 = vmatpush1.msra.mxu0 0.0
    %3825 = vmatprep.subr.mxu0 0.0
    %3826 = vmatpush1.msra.mxu0 0.0
    %3827 = vmatprep.subr.mxu0 0.0
    %3828 = vmatpush1.msra.mxu0 0.0
    %3829 = vmatprep.subr.mxu0 0.0
    %3830 = vmatpush1.msra.mxu0 0.0
    %3831 = vmatprep.subr.mxu0 0.0
    %3832 = vmatpush1.msra.mxu0 0.0
    %3833 = vmatprep.subr.mxu0 0.0
    %3834 = vmatpush1.msra.mxu0 0.0
    %3835 = vmatprep.subr.mxu0 0.0
    %3836 = vmatpush1.msra.mxu0 0.0
    %3837 = vmatprep.subr.mxu0 0.0
    %3838 = vmatpush1.msra.mxu0 0.0
    %3839 = vmatprep.subr.mxu0 0.0
    %3840 = vmatpush1.msra.mxu0 0.0
    %3841 = vmatprep.mubr.f32.mxu0 0.0
    %3842 = vmatmul.mubr.f32.gmra.mrb[0].mxu0 %v3775
    %v3843 = vpop.f32.mrb[0].mxu0
    %v3844 = vadd.f32 %v1070, %v3843
    %v3845 = vpop.f32.mrb[0].mxu0
    %3846 = vdwg.mxu0
    %v3847 = vsel %vm967, %v3844, 0.0
    %3848 = vadd.xlane.f32.xlu0 %v3847
    %v3849 = vpop.xlane.xlu0 %3848
    %v3850 = vmul.f32 %v3849, %v843
    %v3851 = vmul.f32 %v3844, %v3844
    %v3852 = vsel %vm967, %v3851, 0.0
    %3853 = vadd.xlane.f32.xlu0 %v3852
    %v3854 = vpop.xlane.xlu0 %3853
    %v3855 = vmul.f32 %v3854, %v843
    %v3856 = vmul.f32 %v3850, %v3850
    %v3857 = vsub.f32 %v3855, %v3856
    %v3858 = vmax.f32 %v3857, 0.0
    %v3859 = vsub.f32 %v3844, %v3850
    %v3860 = vadd.f32 %v3858, 1e-05
    %v3861 = vrsqrt.pop %v3860
    %v3862 = vmul.f32 %v3859, %v3861
    %v3863 = vmul.f32 %v3862, %v1167
    %v3864 = vadd.f32 %v3863, %v1174
    %3866 = vrot.lane.b32.xlu0 %v3627, 64
    %v3867 = vpop.permute.xlu0 %3866
    %v3868 = vsel %vm893, %v3867, 0
    %3870 = vmatprep.subr.mxu0 0.0
    %3871 = vmatpush1.msra.mxu0 %v740
    %3872 = vmatprep.subr.mxu0 0.0
    %3873 = vmatpush1.msra.mxu0 %v741
    %3874 = vmatprep.subr.mxu0 0.0
    %3875 = vmatpush1.msra.mxu0 %v742
    %3876 = vmatprep.subr.mxu0 0.0
    %3877 = vmatpush1.msra.mxu0 %v743
    %3878 = vmatprep.subr.mxu0 0.0
    %3879 = vmatpush1.msra.mxu0 0.0
    %3880 = vmatprep.subr.mxu0 0.0
    %3881 = vmatpush1.msra.mxu0 0.0
    %3882 = vmatprep.subr.mxu0 0.0
    %3883 = vmatpush1.msra.mxu0 0.0
    %3884 = vmatprep.subr.mxu0 0.0
    %3885 = vmatpush1.msra.mxu0 0.0
    %3886 = vmatprep.subr.mxu0 0.0
    %3887 = vmatpush1.msra.mxu0 0.0
    %3888 = vmatprep.subr.mxu0 0.0
    %3889 = vmatpush1.msra.mxu0 0.0
    %3890 = vmatprep.subr.mxu0 0.0
    %3891 = vmatpush1.msra.mxu0 0.0
    %3892 = vmatprep.subr.mxu0 0.0
    %3893 = vmatpush1.msra.mxu0 0.0
    %3894 = vmatprep.subr.mxu0 0.0
    %3895 = vmatpush1.msra.mxu0 0.0
    %3896 = vmatprep.subr.mxu0 0.0
    %3897 = vmatpush1.msra.mxu0 0.0
    %3898 = vmatprep.subr.mxu0 0.0
    %3899 = vmatpush1.msra.mxu0 0.0
    %3900 = vmatprep.subr.mxu0 0.0
    %3901 = vmatpush1.msra.mxu0 0.0
    %3902 = vmatprep.subr.mxu0 0.0
    %3903 = vmatpush1.msra.mxu0 0.0
    %3904 = vmatprep.subr.mxu0 0.0
    %3905 = vmatpush1.msra.mxu0 0.0
    %3906 = vmatprep.subr.mxu0 0.0
    %3907 = vmatpush1.msra.mxu0 0.0
    %3908 = vmatprep.subr.mxu0 0.0
    %3909 = vmatpush1.msra.mxu0 0.0
    %3910 = vmatprep.subr.mxu0 0.0
    %3911 = vmatpush1.msra.mxu0 0.0
    %3912 = vmatprep.subr.mxu0 0.0
    %3913 = vmatpush1.msra.mxu0 0.0
    %3914 = vmatprep.subr.mxu0 0.0
    %3915 = vmatpush1.msra.mxu0 0.0
    %3916 = vmatprep.subr.mxu0 0.0
    %3917 = vmatpush1.msra.mxu0 0.0
    %3918 = vmatprep.subr.mxu0 0.0
    %3919 = vmatpush1.msra.mxu0 0.0
    %3920 = vmatprep.subr.mxu0 0.0
    %3921 = vmatpush1.msra.mxu0 0.0
    %3922 = vmatprep.subr.mxu0 0.0
    %3923 = vmatpush1.msra.mxu0 0.0
    %3924 = vmatprep.subr.mxu0 0.0
    %3925 = vmatpush1.msra.mxu0 0.0
    %3926 = vmatprep.subr.mxu0 0.0
    %3927 = vmatpush1.msra.mxu0 0.0
    %3928 = vmatprep.subr.mxu0 0.0
    %3929 = vmatpush1.msra.mxu0 0.0
    %3930 = vmatprep.subr.mxu0 0.0
    %3931 = vmatpush1.msra.mxu0 0.0
    %3932 = vmatprep.subr.mxu0 0.0
    %3933 = vmatpush1.msra.mxu0 0.0
    %3934 = vmatprep.mubr.f32.mxu0 0.0
    %3935 = vmatmul.mubr.f32.gmra.mrb[0].mxu0 %v3868
    %v3936 = vpop.f32.mrb[0].mxu0
    %v3937 = vadd.f32 %v1181, %v3936
    %v3938 = vpop.f32.mrb[0].mxu0
    %3939 = vdwg.mxu0
    %v3940 = vsel %vm967, %v3937, 0.0
    %3941 = vadd.xlane.f32.xlu0 %v3940
    %v3942 = vpop.xlane.xlu0 %3941
    %v3943 = vmul.f32 %v3942, %v843
    %v3944 = vmul.f32 %v3937, %v3937
    %v3945 = vsel %vm967, %v3944, 0.0
    %3946 = vadd.xlane.f32.xlu0 %v3945
    %v3947 = vpop.xlane.xlu0 %3946
    %v3948 = vmul.f32 %v3947, %v843
    %v3949 = vmul.f32 %v3943, %v3943
    %v3950 = vsub.f32 %v3948, %v3949
    %v3951 = vmax.f32 %v3950, 0.0
    %v3952 = vsub.f32 %v3937, %v3943
    %v3953 = vadd.f32 %v3951, 1e-05
    %v3954 = vrsqrt.pop %v3953
    %v3955 = vmul.f32 %v3952, %v3954
    %v3956 = vmul.f32 %v3955, %v1273
    %v3957 = vadd.f32 %v3956, %v1280
    %v3958 = vadd.f32 %v3864, %v3957
    %v3959 = vmul.f32 %v3958, 0.5
    %v3960 = vsel %vm886, %v3959, %v3958
    %v3961 = vtanh.pop %v3960
    %v3962 = vadd.f32 %v3961, 1.0
    %v3963 = vmul.f32 %v3962, 0.5
    %v3964 = vsel %vm886, %v3963, %v3961
    %v3965 = vmul.f32 %v3964, %v3595
    %3967 = vrot.lane.b32.xlu0 %v3964, 32
    %v3968 = vpop.permute.xlu0 %3967
    %v3970 = vmul.f32 %v3964, %v3968
    %3972 = vrot.lane.b32.xlu0 %v3970, 32
    %v3973 = vpop.permute.xlu0 %3972
    %v3975 = vadd.f32 %v3965, %v3973
    %3977 = vrot.lane.b32.xlu0 %v3975, 96
    %v3978 = vpop.permute.xlu0 %3977
    %v3980 = vsel %vm1020, %v3978, 0.0
    %3981 = vadd.xlane.f32.xlu0 %v3980
    %v3982 = vpop.xlane.xlu0 %3981
    %v3983 = vmul.f32 %v3982, %v1024
    %v3984 = vmul.f32 %v3975, %v3975
    %3986 = vrot.lane.b32.xlu0 %v3984, 96
    %v3987 = vpop.permute.xlu0 %3986
    %v3989 = vsel %vm1020, %v3987, 0.0
    %3990 = vadd.xlane.f32.xlu0 %v3989
    %v3991 = vpop.xlane.xlu0 %3990
    %v3992 = vmul.f32 %v3991, %v1024
    %v3993 = vmul.f32 %v3983, %v3983
    %v3994 = vsub.f32 %v3992, %v3993
    %v3995 = vmax.f32 %v3994, 0.0
    %v3996 = vsub.f32 %v3975, %v3983
    %v3997 = vadd.f32 %v3995, 1e-05
    %v3998 = vrsqrt.pop %v3997
    %v3999 = vmul.f32 %v3996, %v3998
    %v4000 = vmul.f32 %v3999, %v1331
    %v4001 = vadd.f32 %v4000, %v1340
    %v4002 = vtanh.pop %v4001
    %4004 = vrot.lane.b32.xlu0 %v4002, 32
    %v4005 = vpop.permute.xlu0 %4004
    %v4007 = vmul.f32 %v3964, %v4005
    %v4008 = vrot.slane %v1729, 6
    %v4010 = vrot.slane %v2110, 4
    %v4012 = vrot.slane %v2491, 2
    %v4014 = vrot.slane %v3247, 6
    %v4016 = vrot.slane %v3627, 4
    %v4019 = vrot.slane %v4007, 2
    %v4021 = vsel %vm967, %v1348, %v4008
    %vm4022 = vcmask 1043456
    %v4023 = vsel %vm4022, %v4021, %v4010
    %vm4024 = vcmask 1045504
    %v4025 = vsel %vm4024, %v4023, %v4012
    %v4026 = vsel %vm967, %v2867, %v4014
    %v4027 = vsel %vm4022, %v4026, %v4016
    %v4028 = vsel %vm4024, %v4027, %v4019
    %v4029 = vld [vmem:[%s57] sm:$0xff]
    %v4030 = vld [vmem:[%s57 + $0x8] sm:$0xff]
    %v4031 = vld [vmem:[%s57 + $0x10] sm:$0xff]
    %v4032 = vld [vmem:[%s57 + $0x18] sm:$0xff]
    %v4033 = vld [vmem:[%s59] sm:$0x1]
    %v4035 = vlaneseq
    %v4036 = vshrl.u32 %v4035, 7
    %v4037 = vsub.s32 0, %v4036
    %v4038 = vrot.slane %v4033, %v4037
    %4042 = vrot.lane.b32.xlu0 %v4025, 64
    %v4043 = vpop.permute.xlu0 %4042
    %4044 = vrot.lane.b32.xlu0 %v4028, 64
    %v4045 = vpop.permute.xlu0 %4044
    %v4046 = vsel %vm893, %v4043, 0
    %v4048 = vsel %vm893, %v4045, 0
    %4050 = vmatprep.subr.mxu0 0.0
    %4051 = vmatpush1.msra.mxu0 %v4029
    %4052 = vmatprep.subr.mxu0 0.0
    %4053 = vmatpush1.msra.mxu0 %v4030
    %4054 = vmatprep.subr.mxu0 0.0
    %4055 = vmatpush1.msra.mxu0 %v4031
    %4056 = vmatprep.subr.mxu0 0.0
    %4057 = vmatpush1.msra.mxu0 %v4032
    %4058 = vmatprep.subr.mxu0 0.0
    %4059 = vmatpush1.msra.mxu0 0.0
    %4060 = vmatprep.subr.mxu0 0.0
    %4061 = vmatpush1.msra.mxu0 0.0
    %4062 = vmatprep.subr.mxu0 0.0
    %4063 = vmatpush1.msra.mxu0 0.0
    %4064 = vmatprep.subr.mxu0 0.0
    %4065 = vmatpush1.msra.mxu0 0.0
    %4066 = vmatprep.subr.mxu0 0.0
    %4067 = vmatpush1.msra.mxu0 0.0
    %4068 = vmatprep.subr.mxu0 0.0
    %4069 = vmatpush1.msra.mxu0 0.0
    %4070 = vmatprep.subr.mxu0 0.0
    %4071 = vmatpush1.msra.mxu0 0.0
    %4072 = vmatprep.subr.mxu0 0.0
    %4073 = vmatpush1.msra.mxu0 0.0
    %4074 = vmatprep.subr.mxu0 0.0
    %4075 = vmatpush1.msra.mxu0 0.0
    %4076 = vmatprep.subr.mxu0 0.0
    %4077 = vmatpush1.msra.mxu0 0.0
    %4078 = vmatprep.subr.mxu0 0.0
    %4079 = vmatpush1.msra.mxu0 0.0
    %4080 = vmatprep.subr.mxu0 0.0
    %4081 = vmatpush1.msra.mxu0 0.0
    %4082 = vmatprep.subr.mxu0 0.0
    %4083 = vmatpush1.msra.mxu0 0.0
    %4084 = vmatprep.subr.mxu0 0.0
    %4085 = vmatpush1.msra.mxu0 0.0
    %4086 = vmatprep.subr.mxu0 0.0
    %4087 = vmatpush1.msra.mxu0 0.0
    %4088 = vmatprep.subr.mxu0 0.0
    %4089 = vmatpush1.msra.mxu0 0.0
    %4090 = vmatprep.subr.mxu0 0.0
    %4091 = vmatpush1.msra.mxu0 0.0
    %4092 = vmatprep.subr.mxu0 0.0
    %4093 = vmatpush1.msra.mxu0 0.0
    %4094 = vmatprep.subr.mxu0 0.0
    %4095 = vmatpush1.msra.mxu0 0.0
    %4096 = vmatprep.subr.mxu0 0.0
    %4097 = vmatpush1.msra.mxu0 0.0
    %4098 = vmatprep.subr.mxu0 0.0
    %4099 = vmatpush1.msra.mxu0 0.0
    %4100 = vmatprep.subr.mxu0 0.0
    %4101 = vmatpush1.msra.mxu0 0.0
    %4102 = vmatprep.subr.mxu0 0.0
    %4103 = vmatpush1.msra.mxu0 0.0
    %4104 = vmatprep.subr.mxu0 0.0
    %4105 = vmatpush1.msra.mxu0 0.0
    %4106 = vmatprep.subr.mxu0 0.0
    %4107 = vmatpush1.msra.mxu0 0.0
    %4108 = vmatprep.subr.mxu0 0.0
    %4109 = vmatpush1.msra.mxu0 0.0
    %4110 = vmatprep.subr.mxu0 0.0
    %4111 = vmatpush1.msra.mxu0 0.0
    %4112 = vmatprep.subr.mxu0 0.0
    %4113 = vmatpush1.msra.mxu0 0.0
    %4114 = vmatprep.mubr.f32.mxu0 0.0
    %4115 = vmatmul.mubr.f32.gmra.mrb[0].mxu0 %v4046
    %v4116 = vpop.f32.mrb[0].mxu0
    %v4117 = vadd.f32 %v4038, %v4116
    %v4118 = vpop.f32.mrb[0].mxu0
    %4119 = vmatprep.mubr.f32.mxu0 0.0
    %4120 = vmatmul.mubr.f32.gmra.mrb[0].mxu0 %v4048
    %v4121 = vpop.f32.mrb[0].mxu0
    %v4122 = vadd.f32 %v4038, %v4121
    %v4123 = vpop.f32.mrb[0].mxu0
    %4124 = vdwg.mxu0
    %4125 = vst [vmem:[#allocation26] sm:$0xff] %v4117
    %4126 = vst [vmem:[#allocation26 + $0x8] sm:$0xff] %v4122
    // Predicated region
    $region182: #{tpu_custom_call.1} parent=1 // pred_check
      _
    $region183: #{tpu_custom_call.1} parent=1 // pred_check_branch
      %4128 = sbr.rel (0) target = $region185
    $region184: #{tpu_custom_call.1} parent=1 // pred_region
      %s4130 = ssub.s32 256, 256
      %4131 = vsyncadd [#allocation4], %s4130
      %s4132 = sshll.u32 [#allocation26], 4
      %s4133 = int_to_ptr.vmem [resolvable:$true] %s4132
      %4138 = dma.vmem_to_hbm [thread:$0]  %s4133, 256, %s61, [#allocation4], 128, 128, 8
    $region185: #{tpu_custom_call.1} parent=1 // pred_fallthru
      _
    // Predicated region
    $region186: #{tpu_custom_call.1} parent=1 // pred_check
      _
    $region187: #{tpu_custom_call.1} parent=1 // pred_check_branch
      %4140 = sbr.rel (0) target = $region189
    $region188: #{tpu_custom_call.1} parent=1 // pred_region
      %4141 = dma.done [#allocation4], 256
    $region189: #{tpu_custom_call.1} parent=1 // pred_fallthru
      _
    %4142 = vsyncpa [#allocation3], 1
    %4143 = vsyncpa [#allocation6], 1
    %4144 = vsyncpa [#allocation9], 1
    %4145 = vsyncpa [#allocation12], 1
    %4146 = vsyncpa [#allocation15], 1
    %4147 = vsyncpa [#allocation18], 1
    %4148 = vsyncpa [#allocation21], 1
    %4149 = vsyncpa [#allocation24], 1
    %4150 = vsyncpa [#allocation4], 1

</llo_original>
